<compile_context>
chip_gen: v6e
topology: v6e:2x2x1
jax: 0.10.0
libtpu: 0.0.40
codegen_flags: <defaults>
</compile_context>

<pallas_src>
import functools

import jax
import jax.numpy as jnp
from jax.experimental import pallas as pl
from jax.experimental.pallas import tpu as pltpu


def propagator_kernel(a_in_ref, a_out_ref, sin_ref, sout_ref, scur_ref,
                      w_in_ref, w_out_ref, w_cur_rz_ref, w_cur_t_ref, b_ref,
                      out_ref, a_in_acc, a_out_acc, *,
                      n_nodes, state_dim, batch_block):
    D = state_dim
    M = batch_block * n_nodes
    k = pl.program_id(1)

    @pl.when(k == 0)
    def _():
        a_in_acc[...] = jnp.zeros_like(a_in_acc)
        a_out_acc[...] = jnp.zeros_like(a_out_acc)

    # Per-batch neighbourhood aggregation (bmm) on the MXU, f32 accumulate.
    # States are cast in-kernel to the adjacency dtype (a no-op in the f32
    # path; no extra wrapper HBM pass in the bf16 path).
    a_dt = a_in_ref.dtype
    s_in = sin_ref[...].astype(a_dt)
    s_out = sout_ref[...].astype(a_dt)
    a_in_acc[...] += jnp.einsum("bnk,bkd->bnd", a_in_ref[...], s_in,
                                preferred_element_type=jnp.float32)
    a_out_acc[...] += jnp.einsum("bnk,bkd->bnd", a_out_ref[...], s_out,
                                 preferred_element_type=jnp.float32)

    # Gate math once the ne reduction is complete.
    @pl.when(k == pl.num_programs(1) - 1)
    def _():
        w_dt = w_in_ref.dtype
        # Fold batch into the sublane (M) dimension of the gate matmuls.
        a_in = a_in_acc[...].reshape(M, D)
        a_out = a_out_acc[...].reshape(M, D)
        s_cur = scur_ref[...]                                   # (M, D) f32

        # Split-weight / fused-gate form (no concatenations); the a_in/a_out
        # partial products (incl. bias) are shared by r, z and h_hat.
        pre = (jnp.dot(a_in.astype(w_dt), w_in_ref[...],
                       preferred_element_type=jnp.float32)
               + jnp.dot(a_out.astype(w_dt), w_out_ref[...],
                         preferred_element_type=jnp.float32)
               + b_ref[...])                                    # (M, 3D) f32
        rz = pre[:, :2 * D] + jnp.dot(s_cur.astype(w_dt), w_cur_rz_ref[...],
                                      preferred_element_type=jnp.float32)
        r = jax.nn.sigmoid(rz[:, :D])
        z = jax.nn.sigmoid(rz[:, D:])
        h_hat = jnp.tanh(pre[:, 2 * D:]
                         + jnp.dot((r * s_cur).astype(w_dt), w_cur_t_ref[...],
                                   preferred_element_type=jnp.float32))
        out_ref[...] = ((1.0 - z) * s_cur + z * h_hat).astype(out_ref.dtype)


def pack_gate_params(params, state_dim, w_dtype=jnp.float32):
    """Pre-split + pre-transpose + fuse the three Linear(3D -> D) layers.

    a_cat @ W.T == a_in @ W_in + a_out @ W_out + s_cur @ W_cur, so the lane
    concatenation disappears; the three gates are fused along the output
    (lane) dim.  Call ONCE per model (outside the propagation loop).
    """
    W_r, b_r, W_z, b_z, W_t, b_t = params
    D = state_dim

    def split(W):                                    # W: (D, 3D) torch layout
        return W[:, :D].T, W[:, D:2 * D].T, W[:, 2 * D:].T

    Wr_in, Wr_out, Wr_cur = split(W_r)
    Wz_in, Wz_out, Wz_cur = split(W_z)
    Wt_in, Wt_out, Wt_cur = split(W_t)

    W_in_pack = jnp.concatenate([Wr_in, Wz_in, Wt_in], axis=1).astype(w_dtype)
    W_out_pack = jnp.concatenate([Wr_out, Wz_out, Wt_out], axis=1).astype(w_dtype)
    W_cur_rz = jnp.concatenate([Wr_cur, Wz_cur], axis=1).astype(w_dtype)
    W_cur_t = Wt_cur.astype(w_dtype)
    b_pack = jnp.concatenate([b_r, b_z, b_t]).reshape(1, 3 * D).astype(jnp.float32)
    return W_in_pack, W_out_pack, W_cur_rz, W_cur_t, b_pack


def prepare_adjacency(A, n_nodes, n_edge_types, a_dtype=jnp.float32):
    """Split + cast the adjacency ONCE, outside the GGNN propagation loop."""
    ne = n_nodes * n_edge_types
    return A[:, :, :ne].astype(a_dtype), A[:, :, ne:].astype(a_dtype)


def propagator_step(A_in, A_out, state_in, state_out, state_cur, packed_params,
                    *, n_nodes, n_edge_types, state_dim,
                    batch_block=None, ne_block=None):
    B = state_cur.shape[0]
    N = n_nodes
    D = state_dim
    ne = n_nodes * n_edge_types

    if batch_block is None:
        batch_block = B
    if ne_block is None:
        ne_block = ne
    assert B % batch_block == 0, "batch must be divisible by batch_block"
    assert ne % ne_block == 0, "ne must be divisible by ne_block"
    assert ne_block == ne or ne_block % 128 == 0, (
        "ne_block must equal ne or be a multiple of 128 lanes")
    G = B // batch_block
    NK = ne // ne_block
    Bb = batch_block

    W_in_pack, W_out_pack, W_cur_rz, W_cur_t, b_pack = packed_params

    # Flat (B*N, D) row slab: contiguous per-step DMA; with D a multiple of
    # 128 every output store is a full-width unmasked vst.
    s_cur_flat = state_cur.reshape(B * N, D).astype(jnp.float32)

    kernel = functools.partial(propagator_kernel, n_nodes=N, state_dim=D,
                               batch_block=Bb)
    # Unblocked VMEM-resident operands: single copy, no double buffering.
    vmem_full = lambda: pl.BlockSpec(memory_space=pltpu.MemorySpace.VMEM)

    out_flat = pl.pallas_call(
        kernel,
        grid=(G, NK),
        in_specs=[
            pl.BlockSpec((Bb, N, ne_block), lambda g, k: (g, 0, k)),   # A_in
            pl.BlockSpec((Bb, N, ne_block), lambda g, k: (g, 0, k)),   # A_out
            pl.BlockSpec((Bb, ne_block, D), lambda g, k: (g, k, 0)),   # state_in
            pl.BlockSpec((Bb, ne_block, D), lambda g, k: (g, k, 0)),   # state_out
            pl.BlockSpec((Bb * N, D), lambda g, k: (g, 0)),            # state_cur
            vmem_full(),    # W_in_pack  (D, 3D)
            vmem_full(),    # W_out_pack (D, 3D)
            vmem_full(),    # W_cur_rz   (D, 2D)
            vmem_full(),    # W_cur_t    (D, D)
            vmem_full(),    # b_pack     (1, 3D)
        ],
        out_specs=pl.BlockSpec((Bb * N, D), lambda g, k: (g, 0)),
        out_shape=jax.ShapeDtypeStruct((B * N, D), jnp.float32),
        scratch_shapes=[pltpu.VMEM((Bb, N, D), jnp.float32),   # a_in accumulator
                        pltpu.VMEM((Bb, N, D), jnp.float32)],  # a_out accumulator
        compiler_params=pltpu.CompilerParams(
            dimension_semantics=("parallel", "arbitrary"),
            vmem_limit_bytes=64 * 1024 * 1024),
    )(A_in, A_out, state_in, state_out, s_cur_flat,
      W_in_pack, W_out_pack, W_cur_rz, W_cur_t, b_pack)

    return out_flat.reshape(B, N, D)


def propagator_reference(state_in, state_out, state_cur, A, params, *,
                         n_nodes, n_edge_types, state_dim):
    W_r, b_r, W_z, b_z, W_t, b_t = params
    ne = n_nodes * n_edge_types
    with jax.default_matmul_precision("highest"):
        A_in = A[:, :, :ne]
        A_out = A[:, :, ne:]
        a_in = jnp.einsum("bnk,bkd->bnd", A_in, state_in)
        a_out = jnp.einsum("bnk,bkd->bnd", A_out, state_out)
        a = jnp.concatenate([a_in, a_out, state_cur], axis=2)
        r = jax.nn.sigmoid(a @ W_r.T + b_r)
        z = jax.nn.sigmoid(a @ W_z.T + b_z)
        joined = jnp.concatenate([a_in, a_out, r * state_cur], axis=2)
        h_hat = jnp.tanh(joined @ W_t.T + b_t)
        return (1.0 - z) * state_cur + z * h_hat


if __name__ == "__main__":
    # Lane-aligned demo shapes: D = 128 makes the output slab lane-dense and
    # the gate slices tile-aligned; batch_block * n_nodes = 256 fills the
    # v6e/v7x MXU row dimension (128 for the G=2 run).
    state_dim = 128
    n_nodes = 8
    n_edge_types = 2
    B = 32
    ne = n_nodes * n_edge_types

    key = jax.random.PRNGKey(0)
    keys = jax.random.split(key, 10)

    state_in = jax.random.normal(keys[0], (B, ne, state_dim), jnp.float32)
    state_out = jax.random.normal(keys[1], (B, ne, state_dim), jnp.float32)
    state_cur = jax.random.normal(keys[2], (B, n_nodes, state_dim), jnp.float32)
    A = jax.random.normal(keys[3], (B, n_nodes, 2 * ne), jnp.float32) * 0.1

    # PyTorch nn.Linear weights: (out_features, in_features) = (D, 3D).
    scale = 1.0 / jnp.sqrt(3.0 * state_dim)
    W_r = jax.random.uniform(keys[4], (state_dim, 3 * state_dim), jnp.float32, -scale, scale)
    b_r = jax.random.uniform(keys[5], (state_dim,), jnp.float32, -scale, scale)
    W_z = jax.random.uniform(keys[6], (state_dim, 3 * state_dim), jnp.float32, -scale, scale)
    b_z = jax.random.uniform(keys[7], (state_dim,), jnp.float32, -scale, scale)
    W_t = jax.random.uniform(keys[8], (state_dim, 3 * state_dim), jnp.float32, -scale, scale)
    b_t = jax.random.uniform(keys[9], (state_dim,), jnp.float32, -scale, scale)
    params = (W_r, b_r, W_z, b_z, W_t, b_t)

    ref = propagator_reference(state_in, state_out, state_cur, A, params,
                               n_nodes=n_nodes, n_edge_types=n_edge_types,
                               state_dim=state_dim)

    # ---- f32 path (all generations). --------------------------------------
    # prepare_adjacency / pack_gate_params run ONCE (outside the GGNN step
    # loop in a real model) per the hoist-the-cast feedback.
    A_in32, A_out32 = prepare_adjacency(A, n_nodes, n_edge_types, jnp.float32)
    packed32 = pack_gate_params(params, state_dim, jnp.float32)
    out = propagator_step(A_in32, A_out32, state_in, state_out, state_cur,
                          packed32, n_nodes=n_nodes, n_edge_types=n_edge_types,
                          state_dim=state_dim, batch_block=B)      # G = 1
    out = jax.block_until_ready(out)
    assert out.shape == (B, n_nodes, state_dim)
    assert jnp.allclose(out, ref, atol=1e-3, rtol=1e-3)

    # ---- bf16 MXU-operand path (v6e/v7x suggestion): halves A + weight DMA
    # bytes; gate elementwise math stays f32.  Accuracy contract: ~1e-1. ----
    A_in16, A_out16 = prepare_adjacency(A, n_nodes, n_edge_types, jnp.bfloat16)
    packed16 = pack_gate_params(params, state_dim, jnp.bfloat16)
    out_bf16 = propagator_step(A_in16, A_out16, state_in, state_out, state_cur,
                               packed16, n_nodes=n_nodes,
                               n_edge_types=n_edge_types, state_dim=state_dim,
                               batch_block=B // 2)                 # G = 2
    out_bf16 = jax.block_until_ready(out_bf16)
    assert jnp.allclose(out_bf16, ref, atol=1e-1, rtol=1e-1)

    print("KERNEL_OK")
</pallas_src>

<mosaic_0001>
module attributes {stable_mosaic.version = 11 : i64} {
  func.func @propagator_kernel(%arg0: i32, %arg1: i32, %arg2: memref<32x8x16xf32, #tpu.memory_space<vmem>>, %arg3: memref<32x8x16xf32, #tpu.memory_space<vmem>>, %arg4: memref<32x16x128xf32, #tpu.memory_space<vmem>>, %arg5: memref<32x16x128xf32, #tpu.memory_space<vmem>>, %arg6: memref<256x128xf32, #tpu.memory_space<vmem>>, %arg7: memref<128x384xf32, #tpu.memory_space<vmem>>, %arg8: memref<128x384xf32, #tpu.memory_space<vmem>>, %arg9: memref<128x256xf32, #tpu.memory_space<vmem>>, %arg10: memref<128x128xf32, #tpu.memory_space<vmem>>, %arg11: memref<1x384xf32, #tpu.memory_space<vmem>>, %arg12: memref<256x128xf32, #tpu.memory_space<vmem>>, %arg13: memref<32x8x128xf32, #tpu.memory_space<vmem>>, %arg14: memref<32x8x128xf32, #tpu.memory_space<vmem>>) attributes {dimension_semantics = [#tpu.dimension_semantics<parallel>, #tpu.dimension_semantics<arbitrary>], iteration_bounds = array<i64: 1, 1>, scalar_prefetch = 0 : i64, scratch_operands = 2 : i64, tpu.core_type = #tpu.core_type<tc>, window_params = [{transform_indices = @transform_0, window_bounds = array<i64: 32, 8, 16>}, {transform_indices = @transform_1, window_bounds = array<i64: 32, 8, 16>}, {transform_indices = @transform_2, window_bounds = array<i64: 32, 16, 128>}, {transform_indices = @transform_3, window_bounds = array<i64: 32, 16, 128>}, {transform_indices = @transform_4, window_bounds = array<i64: 256, 128>}, {pipeline_mode = #tpu.pipeline_mode<synchronous>, transform_indices = @transform_5, window_bounds = array<i64: 128, 384>}, {pipeline_mode = #tpu.pipeline_mode<synchronous>, transform_indices = @transform_6, window_bounds = array<i64: 128, 384>}, {pipeline_mode = #tpu.pipeline_mode<synchronous>, transform_indices = @transform_7, window_bounds = array<i64: 128, 256>}, {pipeline_mode = #tpu.pipeline_mode<synchronous>, transform_indices = @transform_8, window_bounds = array<i64: 128, 128>}, {pipeline_mode = #tpu.pipeline_mode<synchronous>, transform_indices = @transform_9, window_bounds = array<i64: 1, 384>}, {transform_indices = @transform_10, window_bounds = array<i64: 256, 128>}]} {
    %c0_i32 = arith.constant 0 : i32
    %0 = arith.cmpi eq, %arg1, %c0_i32 : i32
    %1 = arith.extui %0 : i1 to i32
    %c0_i32_0 = arith.constant 0 : i32
    %2 = arith.cmpi ne, %1, %c0_i32_0 : i32
    scf.if %2 {
      %cst_27 = arith.constant 0.000000e+00 : f32
      %18 = vector.broadcast %cst_27 : f32 to vector<32x8x128xf32>
      %c0_28 = arith.constant 0 : index
      %c0_29 = arith.constant 0 : index
      %c0_30 = arith.constant 0 : index
      %19 = vector.load %arg13[%c0_28, %c0_29, %c0_30] : memref<32x8x128xf32, #tpu.memory_space<vmem>>, vector<32x8x128xf32>
      tpu.vector_store %arg13[%c0_28, %c0_29, %c0_30], %18 {strides = array<i32>} : memref<32x8x128xf32, #tpu.memory_space<vmem>>, vector<32x8x128xf32>,
      %cst_31 = arith.constant 0.000000e+00 : f32
      %20 = vector.broadcast %cst_31 : f32 to vector<32x8x128xf32>
      %c0_32 = arith.constant 0 : index
      %c0_33 = arith.constant 0 : index
      %c0_34 = arith.constant 0 : index
      %21 = vector.load %arg14[%c0_32, %c0_33, %c0_34] : memref<32x8x128xf32, #tpu.memory_space<vmem>>, vector<32x8x128xf32>
      tpu.vector_store %arg14[%c0_32, %c0_33, %c0_34], %20 {strides = array<i32>} : memref<32x8x128xf32, #tpu.memory_space<vmem>>, vector<32x8x128xf32>,
    } else {
    }
    %c0 = arith.constant 0 : index
    %c0_1 = arith.constant 0 : index
    %c0_2 = arith.constant 0 : index
    %3 = vector.load %arg4[%c0, %c0_1, %c0_2] : memref<32x16x128xf32, #tpu.memory_space<vmem>>, vector<32x16x128xf32>
    %c0_3 = arith.constant 0 : index
    %c0_4 = arith.constant 0 : index
    %c0_5 = arith.constant 0 : index
    %4 = vector.load %arg5[%c0_3, %c0_4, %c0_5] : memref<32x16x128xf32, #tpu.memory_space<vmem>>, vector<32x16x128xf32>
    %c0_6 = arith.constant 0 : index
    %c0_7 = arith.constant 0 : index
    %c0_8 = arith.constant 0 : index
    %5 = vector.load %arg13[%c0_6, %c0_7, %c0_8] : memref<32x8x128xf32, #tpu.memory_space<vmem>>, vector<32x8x128xf32>
    %c0_9 = arith.constant 0 : index
    %c0_10 = arith.constant 0 : index
    %c0_11 = arith.constant 0 : index
    %6 = vector.load %arg2[%c0_9, %c0_10, %c0_11] : memref<32x8x16xf32, #tpu.memory_space<vmem>>, vector<32x8x16xf32>
    "tpu.trace_start"() <{level = 10 : i32, message = "bnk,bkd->bnd"}> : () -> ()
    %cst = arith.constant dense<0.000000e+00> : vector<32x8x128xf32>
    %7 = tpu.matmul %6, %3, %cst {dimension_numbers = #tpu.dot_dimension_numbers<[2], [1], [1], [2], [0, 0, 0, 1, 1, 2], [0], [0]>} : vector<32x8x16xf32>, vector<32x16x128xf32>, vector<32x8x128xf32> -> vector<32x8x128xf32>
    "tpu.trace_stop"() : () -> ()
    %8 = arith.addf %5, %7 : vector<32x8x128xf32>
    %c0_12 = arith.constant 0 : index
    %c0_13 = arith.constant 0 : index
    %c0_14 = arith.constant 0 : index
    %9 = vector.load %arg13[%c0_12, %c0_13, %c0_14] : memref<32x8x128xf32, #tpu.memory_space<vmem>>, vector<32x8x128xf32>
    tpu.vector_store %arg13[%c0_12, %c0_13, %c0_14], %8 {strides = array<i32>} : memref<32x8x128xf32, #tpu.memory_space<vmem>>, vector<32x8x128xf32>,
    %c0_15 = arith.constant 0 : index
    %c0_16 = arith.constant 0 : index
    %c0_17 = arith.constant 0 : index
    %10 = vector.load %arg14[%c0_15, %c0_16, %c0_17] : memref<32x8x128xf32, #tpu.memory_space<vmem>>, vector<32x8x128xf32>
    %c0_18 = arith.constant 0 : index
    %c0_19 = arith.constant 0 : index
    %c0_20 = arith.constant 0 : index
    %11 = vector.load %arg3[%c0_18, %c0_19, %c0_20] : memref<32x8x16xf32, #tpu.memory_space<vmem>>, vector<32x8x16xf32>
    "tpu.trace_start"() <{level = 10 : i32, message = "bnk,bkd->bnd"}> : () -> ()
    %cst_21 = arith.constant dense<0.000000e+00> : vector<32x8x128xf32>
    %12 = tpu.matmul %11, %4, %cst_21 {dimension_numbers = #tpu.dot_dimension_numbers<[2], [1], [1], [2], [0, 0, 0, 1, 1, 2], [0], [0]>} : vector<32x8x16xf32>, vector<32x16x128xf32>, vector<32x8x128xf32> -> vector<32x8x128xf32>
    "tpu.trace_stop"() : () -> ()
    %13 = arith.addf %10, %12 : vector<32x8x128xf32>
    %c0_22 = arith.constant 0 : index
    %c0_23 = arith.constant 0 : index
    %c0_24 = arith.constant 0 : index
    %14 = vector.load %arg14[%c0_22, %c0_23, %c0_24] : memref<32x8x128xf32, #tpu.memory_space<vmem>>, vector<32x8x128xf32>
    tpu.vector_store %arg14[%c0_22, %c0_23, %c0_24], %13 {strides = array<i32>} : memref<32x8x128xf32, #tpu.memory_space<vmem>>, vector<32x8x128xf32>,
    %c0_i32_25 = arith.constant 0 : i32
    %15 = arith.cmpi eq, %arg1, %c0_i32_25 : i32
    %16 = arith.extui %15 : i1 to i32
    %c0_i32_26 = arith.constant 0 : i32
    %17 = arith.cmpi ne, %16, %c0_i32_26 : i32
    scf.if %17 {
      %c0_27 = arith.constant 0 : index
      %c0_28 = arith.constant 0 : index
      %c0_29 = arith.constant 0 : index
      %18 = vector.load %arg13[%c0_27, %c0_28, %c0_29] : memref<32x8x128xf32, #tpu.memory_space<vmem>>, vector<32x8x128xf32>
      %19 = vector.shape_cast %18 : vector<32x8x128xf32> to vector<256x128xf32>
      %c0_30 = arith.constant 0 : index
      %c0_31 = arith.constant 0 : index
      %c0_32 = arith.constant 0 : index
      %20 = vector.load %arg14[%c0_30, %c0_31, %c0_32] : memref<32x8x128xf32, #tpu.memory_space<vmem>>, vector<32x8x128xf32>
      %21 = vector.shape_cast %20 : vector<32x8x128xf32> to vector<256x128xf32>
      %c0_33 = arith.constant 0 : index
      %c0_34 = arith.constant 0 : index
      %22 = vector.load %arg6[%c0_33, %c0_34] : memref<256x128xf32, #tpu.memory_space<vmem>>, vector<256x128xf32>
      %c0_35 = arith.constant 0 : index
      %c0_36 = arith.constant 0 : index
      %23 = vector.load %arg7[%c0_35, %c0_36] : memref<128x384xf32, #tpu.memory_space<vmem>>, vector<128x384xf32>
      %cst_37 = arith.constant dense<0.000000e+00> : vector<256x384xf32>
      %24 = tpu.matmul %19, %23, %cst_37 {dimension_numbers = #tpu.dot_dimension_numbers<[1], [0], [0], [1], [0, 0, 1, 1], [], []>} : vector<256x128xf32>, vector<128x384xf32>, vector<256x384xf32> -> vector<256x384xf32>
      %c0_38 = arith.constant 0 : index
      %c0_39 = arith.constant 0 : index
      %25 = vector.load %arg8[%c0_38, %c0_39] : memref<128x384xf32, #tpu.memory_space<vmem>>, vector<128x384xf32>
      %cst_40 = arith.constant dense<0.000000e+00> : vector<256x384xf32>
      %26 = tpu.matmul %21, %25, %cst_40 {dimension_numbers = #tpu.dot_dimension_numbers<[1], [0], [0], [1], [0, 0, 1, 1], [], []>} : vector<256x128xf32>, vector<128x384xf32>, vector<256x384xf32> -> vector<256x384xf32>
      %27 = arith.addf %24, %26 : vector<256x384xf32>
      %c0_41 = arith.constant 0 : index
      %c0_42 = arith.constant 0 : index
      %28 = vector.load %arg11[%c0_41, %c0_42] : memref<1x384xf32, #tpu.memory_space<vmem>>, vector<1x384xf32>
      %29 = vector.broadcast %28 : vector<1x384xf32> to vector<256x384xf32>
      %30 = arith.addf %27, %29 : vector<256x384xf32>
      %31 = vector.extract_strided_slice %30 {offsets = [0, 0], sizes = [256, 256], strides = [1, 1]} : vector<256x384xf32> to vector<256x256xf32>
      %c0_43 = arith.constant 0 : index
      %c0_44 = arith.constant 0 : index
      %32 = vector.load %arg9[%c0_43, %c0_44] : memref<128x256xf32, #tpu.memory_space<vmem>>, vector<128x256xf32>
      %cst_45 = arith.constant dense<0.000000e+00> : vector<256x256xf32>
      %33 = tpu.matmul %22, %32, %cst_45 {dimension_numbers = #tpu.dot_dimension_numbers<[1], [0], [0], [1], [0, 0, 1, 1], [], []>} : vector<256x128xf32>, vector<128x256xf32>, vector<256x256xf32> -> vector<256x256xf32>
      %34 = arith.addf %31, %33 : vector<256x256xf32>
      %35 = vector.extract_strided_slice %34 {offsets = [0, 0], sizes = [256, 128], strides = [1, 1]} : vector<256x256xf32> to vector<256x128xf32>
      %36 = arith.negf %35 : vector<256x128xf32>
      %37 = math.exp %36 : vector<256x128xf32>
      %cst_46 = arith.constant 1.000000e+00 : f32
      %38 = vector.broadcast %cst_46 : f32 to vector<256x128xf32>
      %39 = arith.addf %38, %37 : vector<256x128xf32>
      %40 = arith.divf %38, %39 : vector<256x128xf32>
      %41 = vector.extract_strided_slice %34 {offsets = [0, 128], sizes = [256, 128], strides = [1, 1]} : vector<256x256xf32> to vector<256x128xf32>
      %42 = arith.negf %41 : vector<256x128xf32>
      %43 = math.exp %42 : vector<256x128xf32>
      %cst_47 = arith.constant 1.000000e+00 : f32
      %44 = vector.broadcast %cst_47 : f32 to vector<256x128xf32>
      %45 = arith.addf %44, %43 : vector<256x128xf32>
      %46 = arith.divf %44, %45 : vector<256x128xf32>
      %47 = vector.extract_strided_slice %30 {offsets = [0, 256], sizes = [256, 128], strides = [1, 1]} : vector<256x384xf32> to vector<256x128xf32>
      %48 = arith.mulf %40, %22 : vector<256x128xf32>
      %c0_48 = arith.constant 0 : index
      %c0_49 = arith.constant 0 : index
      %49 = vector.load %arg10[%c0_48, %c0_49] : memref<128x128xf32, #tpu.memory_space<vmem>>, vector<128x128xf32>
      %cst_50 = arith.constant dense<0.000000e+00> : vector<256x128xf32>
      %50 = tpu.matmul %48, %49, %cst_50 {dimension_numbers = #tpu.dot_dimension_numbers<[1], [0], [0], [1], [0, 0, 1, 1], [], []>} : vector<256x128xf32>, vector<128x128xf32>, vector<256x128xf32> -> vector<256x128xf32>
      %51 = arith.addf %47, %50 : vector<256x128xf32>
      %52 = math.tanh %51 : vector<256x128xf32>
      %cst_51 = arith.constant 1.000000e+00 : f32
      %53 = vector.broadcast %cst_51 : f32 to vector<256x128xf32>
      %54 = arith.subf %53, %46 : vector<256x128xf32>
      %55 = arith.mulf %54, %22 : vector<256x128xf32>
      %56 = arith.mulf %46, %52 : vector<256x128xf32>
      %57 = arith.addf %55, %56 : vector<256x128xf32>
      %c0_52 = arith.constant 0 : index
      %c0_53 = arith.constant 0 : index
      %58 = vector.load %arg12[%c0_52, %c0_53] : memref<256x128xf32, #tpu.memory_space<vmem>>, vector<256x128xf32>
      tpu.vector_store %arg12[%c0_52, %c0_53], %57 {strides = array<i32>} : memref<256x128xf32, #tpu.memory_space<vmem>>, vector<256x128xf32>,
    } else {
    }
    return
  }
  func.func @transform_0(%arg0: i32, %arg1: i32) -> (i32, i32, i32) {
    %c0_i32 = arith.constant 0 : i32
    %c0_i32_0 = arith.constant 0 : i32
    return %arg0, %c0_i32, %arg1 : i32, i32, i32
  }
  func.func @transform_1(%arg0: i32, %arg1: i32) -> (i32, i32, i32) {
    %c0_i32 = arith.constant 0 : i32
    %c0_i32_0 = arith.constant 0 : i32
    return %arg0, %c0_i32, %arg1 : i32, i32, i32
  }
  func.func @transform_2(%arg0: i32, %arg1: i32) -> (i32, i32, i32) {
    %c0_i32 = arith.constant 0 : i32
    %c0_i32_0 = arith.constant 0 : i32
    return %arg0, %arg1, %c0_i32 : i32, i32, i32
  }
  func.func @transform_3(%arg0: i32, %arg1: i32) -> (i32, i32, i32) {
    %c0_i32 = arith.constant 0 : i32
    %c0_i32_0 = arith.constant 0 : i32
    return %arg0, %arg1, %c0_i32 : i32, i32, i32
  }
  func.func @transform_4(%arg0: i32, %arg1: i32) -> (i32, i32) {
    %c0_i32 = arith.constant 0 : i32
    %c0_i32_0 = arith.constant 0 : i32
    return %arg0, %c0_i32 : i32, i32
  }
  func.func @transform_5(%arg0: i32, %arg1: i32) -> (i32, i32) {
    %c0_i32 = arith.constant 0 : i32
    %c0_i32_0 = arith.constant 0 : i32
    %c0_i32_1 = arith.constant 0 : i32
    return %c0_i32, %c0_i32_0 : i32, i32
  }
  func.func @transform_6(%arg0: i32, %arg1: i32) -> (i32, i32) {
    %c0_i32 = arith.constant 0 : i32
    %c0_i32_0 = arith.constant 0 : i32
    %c0_i32_1 = arith.constant 0 : i32
    return %c0_i32, %c0_i32_0 : i32, i32
  }
  func.func @transform_7(%arg0: i32, %arg1: i32) -> (i32, i32) {
    %c0_i32 = arith.constant 0 : i32
    %c0_i32_0 = arith.constant 0 : i32
    %c0_i32_1 = arith.constant 0 : i32
    return %c0_i32, %c0_i32_0 : i32, i32
  }
  func.func @transform_8(%arg0: i32, %arg1: i32) -> (i32, i32) {
    %c0_i32 = arith.constant 0 : i32
    %c0_i32_0 = arith.constant 0 : i32
    %c0_i32_1 = arith.constant 0 : i32
    return %c0_i32, %c0_i32_0 : i32, i32
  }
  func.func @transform_9(%arg0: i32, %arg1: i32) -> (i32, i32) {
    %c0_i32 = arith.constant 0 : i32
    %c0_i32_0 = arith.constant 0 : i32
    %c0_i32_1 = arith.constant 0 : i32
    return %c0_i32, %c0_i32_0 : i32, i32
  }
  func.func @transform_10(%arg0: i32, %arg1: i32) -> (i32, i32) {
    %c0_i32 = arith.constant 0 : i32
    %c0_i32_0 = arith.constant 0 : i32
    return %arg0, %c0_i32 : i32, i32
  }
}

</mosaic_0001>

<llo_original>
// kernel: tpu_custom_call.1
$region0: #{tpu_custom_call.1}
  #allocation0 [shape = 'u32[]', space=smem, size = 0x4, offset = 0x4, fixed_abs, tag = 'smem constant byte address 0x4 - core index']
  #allocation1 [shape = 'u32[144,128]{1,0:T(1,128)}', space=vmem, size = 0x12000, scoped, tag = 'internal scratch']
  #allocation2 [shape = 'f32[32,8,128]{2,1,0:T(8,128)}', space=vmem, size = 0x20000, scoped, tag = 'scratch operand']
  #allocation3 [shape = 'f32[32,8,128]{2,1,0:T(8,128)}', space=vmem, size = 0x20000, scoped, tag = 'scratch operand']
  %s0 = inlined_call_operand.vmem [shape: f32[32,8,16], index: 0, kind: input, shape index: {}]
  %s1 = inlined_call_operand.vmem [shape: f32[32,8,16], index: 1, kind: input, shape index: {}]
  %s2 = inlined_call_operand.vmem [shape: f32[32,16,128], index: 2, kind: input, shape index: {}]
  %s3 = inlined_call_operand.hbm [shape: f32[32,16,128], index: 3, kind: input, shape index: {}]
  %s4 = inlined_call_operand.vmem [shape: f32[256,128], index: 4, kind: input, shape index: {}]
  %s5 = inlined_call_operand.hbm [shape: f32[128,384], index: 5, kind: input, shape index: {}]
  %s6 = inlined_call_operand.hbm [shape: f32[128,384], index: 6, kind: input, shape index: {}]
  %s7 = inlined_call_operand.hbm [shape: f32[128,256], index: 7, kind: input, shape index: {}]
  %s8 = inlined_call_operand.hbm [shape: f32[128,128], index: 8, kind: input, shape index: {}]
  %s9 = inlined_call_operand.vmem [shape: f32[1,384], index: 9, kind: input, shape index: {}]
  %s10 = inlined_call_operand.hbm [shape: f32[256,128], index: 10, kind: output, shape index: {}]
  %s11 = sld [smem:[#allocation0]]
  $region78: #{tpu_custom_call.1} parent=0
    _
  %s13 = ssub.s32 1, %s11
  %s14 = scalar_select 0, %s13, %s11
  $region1: #{tpu_custom_call.1} parent=0
    #allocation4 [shape = 'u8[262144]{0}', space=vmem, size = 0x40000, scoped, tag = 'input window, operand 3, single buffered']
    #allocation5 [shape = 's32[1]{0}', space=sflag, size = 0x4, scoped, tag = 'scoped memory for tpu_custom_call.1']
    #allocation6 [shape = 's32[1]{0}', space=sflag, size = 0x4, scoped, tag = 'scoped memory for tpu_custom_call.1']
    #allocation7 [shape = 'u8[196608]{0}', space=vmem, size = 0x30000, scoped, tag = 'input window, operand 5, single buffered']
    #allocation8 [shape = 's32[1]{0}', space=sflag, size = 0x4, scoped, tag = 'scoped memory for tpu_custom_call.1']
    #allocation9 [shape = 'u8[196608]{0}', space=vmem, size = 0x30000, scoped, tag = 'input window, operand 6, single buffered']
    #allocation10 [shape = 'u8[131072]{0}', space=vmem, size = 0x20000, scoped, tag = 'input window, operand 7, single buffered']
    #allocation11 [shape = 's32[1]{0}', space=sflag, size = 0x4, scoped, tag = 'scoped memory for tpu_custom_call.1']
    #allocation12 [shape = 'u8[65536]{0}', space=vmem, size = 0x10000, scoped, tag = 'input window, operand 8, single buffered']
    #allocation13 [shape = 'u8[131072]{0}', space=vmem, size = 0x20000, scoped, tag = 'output window, operand 0, single buffered']
    %15 = vsyncpa [#allocation5], 0
    %16 = vsyncpa [#allocation8], 0
    %17 = vsyncpa [#allocation11], 0
    %18 = vsyncpa [#allocation6], 0
    // Predicated region
    $region2: #{tpu_custom_call.1} parent=1 // pred_check
      _
    $region3: #{tpu_custom_call.1} parent=1 // pred_check_branch
      %20 = sbr.rel (0) target = $region5
    $region4: #{tpu_custom_call.1} parent=1 // pred_region
      _
    $region5: #{tpu_custom_call.1} parent=1 // pred_fallthru
      _
    // Predicated region
    $region6: #{tpu_custom_call.1} parent=1 // pred_check
      _
    $region7: #{tpu_custom_call.1} parent=1 // pred_check_branch
      %22 = sbr.rel (0) target = $region9
    $region8: #{tpu_custom_call.1} parent=1 // pred_region
      _
    $region9: #{tpu_custom_call.1} parent=1 // pred_fallthru
      _
    // Predicated region
    $region10: #{tpu_custom_call.1} parent=1 // pred_check
      _
    $region11: #{tpu_custom_call.1} parent=1 // pred_check_branch
      %24 = sbr.rel (0) target = $region13
    $region12: #{tpu_custom_call.1} parent=1 // pred_region
      _
    $region13: #{tpu_custom_call.1} parent=1 // pred_fallthru
      _
    // Predicated region
    $region14: #{tpu_custom_call.1} parent=1 // pred_check
      _
    $region15: #{tpu_custom_call.1} parent=1 // pred_check_branch
      %26 = sbr.rel (0) target = $region17
    $region16: #{tpu_custom_call.1} parent=1 // pred_region
      %s28 = ssub.s32 8192, 8192
      %29 = vsyncadd [#allocation5], %s28
      %s30 = sshll.u32 [#allocation4], 4
      %s31 = int_to_ptr.vmem [resolvable:$true] %s30
      %36 = dma.hbm_to_vmem [thread:$0]  %s3, 8192, %s31, [#allocation5], 128, 128, 8
    $region17: #{tpu_custom_call.1} parent=1 // pred_fallthru
      _
    // Predicated region
    $region18: #{tpu_custom_call.1} parent=1 // pred_check
      _
    $region19: #{tpu_custom_call.1} parent=1 // pred_check_branch
      %38 = sbr.rel (0) target = $region21
    $region20: #{tpu_custom_call.1} parent=1 // pred_region
      _
    $region21: #{tpu_custom_call.1} parent=1 // pred_fallthru
      _
    // Predicated region
    $region22: #{tpu_custom_call.1} parent=1 // pred_check
      _
    $region23: #{tpu_custom_call.1} parent=1 // pred_check_branch
      %40 = sbr.rel (0) target = $region25
    $region24: #{tpu_custom_call.1} parent=1 // pred_region
      %s42 = ssub.s32 6144, 6144
      %43 = vsyncadd [#allocation8], %s42
      %s44 = sshll.u32 [#allocation7], 4
      %s45 = int_to_ptr.vmem [resolvable:$true] %s44
      %50 = dma.hbm_to_vmem [thread:$0]  %s5, 6144, %s45, [#allocation8], 384, 384, 24
    $region25: #{tpu_custom_call.1} parent=1 // pred_fallthru
      _
    // Predicated region
    $region26: #{tpu_custom_call.1} parent=1 // pred_check
      _
    $region27: #{tpu_custom_call.1} parent=1 // pred_check_branch
      %52 = sbr.rel (0) target = $region29
    $region28: #{tpu_custom_call.1} parent=1 // pred_region
      %s54 = ssub.s32 6144, 6144
      %55 = vsyncadd [#allocation8], %s54
      %s56 = sshll.u32 [#allocation9], 4
      %s57 = int_to_ptr.vmem [resolvable:$true] %s56
      %62 = dma.hbm_to_vmem [thread:$0]  %s6, 6144, %s57, [#allocation8], 384, 384, 24
    $region29: #{tpu_custom_call.1} parent=1 // pred_fallthru
      _
    // Predicated region
    $region30: #{tpu_custom_call.1} parent=1 // pred_check
      _
    $region31: #{tpu_custom_call.1} parent=1 // pred_check_branch
      %64 = sbr.rel (0) target = $region33
    $region32: #{tpu_custom_call.1} parent=1 // pred_region
      %s66 = ssub.s32 4096, 4096
      %67 = vsyncadd [#allocation11], %s66
      %s68 = sshll.u32 [#allocation10], 4
      %s69 = int_to_ptr.vmem [resolvable:$true] %s68
      %74 = dma.hbm_to_vmem [thread:$0]  %s7, 4096, %s69, [#allocation11], 256, 256, 16
    $region33: #{tpu_custom_call.1} parent=1 // pred_fallthru
      _
    // Predicated region
    $region34: #{tpu_custom_call.1} parent=1 // pred_check
      _
    $region35: #{tpu_custom_call.1} parent=1 // pred_check_branch
      %76 = sbr.rel (0) target = $region37
    $region36: #{tpu_custom_call.1} parent=1 // pred_region
      %s78 = ssub.s32 2048, 2048
      %79 = vsyncadd [#allocation11], %s78
      %s80 = sshll.u32 [#allocation12], 4
      %s81 = int_to_ptr.vmem [resolvable:$true] %s80
      %86 = dma.hbm_to_vmem [thread:$0]  %s8, 2048, %s81, [#allocation11], 128, 128, 8
    $region37: #{tpu_custom_call.1} parent=1 // pred_fallthru
      _
    // Predicated region
    $region38: #{tpu_custom_call.1} parent=1 // pred_check
      _
    $region39: #{tpu_custom_call.1} parent=1 // pred_check_branch
      %88 = sbr.rel (0) target = $region41
    $region40: #{tpu_custom_call.1} parent=1 // pred_region
      _
    $region41: #{tpu_custom_call.1} parent=1 // pred_fallthru
      _
    // Predicated region
    $region42: #{tpu_custom_call.1} parent=1 // pred_check
      _
    $region43: #{tpu_custom_call.1} parent=1 // pred_check_branch
      %90 = sbr.rel (0) target = $region45
    $region44: #{tpu_custom_call.1} parent=1 // pred_region
      %91 = dma.done [#allocation5], 8192
    $region45: #{tpu_custom_call.1} parent=1 // pred_fallthru
      _
    // Predicated region
    $region46: #{tpu_custom_call.1} parent=1 // pred_check
      _
    $region47: #{tpu_custom_call.1} parent=1 // pred_check_branch
      %93 = sbr.rel (0) target = $region49
    $region48: #{tpu_custom_call.1} parent=1 // pred_region
      %94 = dma.done [#allocation8], 6144
    $region49: #{tpu_custom_call.1} parent=1 // pred_fallthru
      _
    // Predicated region
    $region50: #{tpu_custom_call.1} parent=1 // pred_check
      _
    $region51: #{tpu_custom_call.1} parent=1 // pred_check_branch
      %96 = sbr.rel (0) target = $region53
    $region52: #{tpu_custom_call.1} parent=1 // pred_region
      %97 = dma.done [#allocation8], 6144
    $region53: #{tpu_custom_call.1} parent=1 // pred_fallthru
      _
    // Predicated region
    $region54: #{tpu_custom_call.1} parent=1 // pred_check
      _
    $region55: #{tpu_custom_call.1} parent=1 // pred_check_branch
      %99 = sbr.rel (0) target = $region57
    $region56: #{tpu_custom_call.1} parent=1 // pred_region
      %100 = dma.done [#allocation11], 4096
    $region57: #{tpu_custom_call.1} parent=1 // pred_fallthru
      _
    // Predicated region
    $region58: #{tpu_custom_call.1} parent=1 // pred_check
      _
    $region59: #{tpu_custom_call.1} parent=1 // pred_check_branch
      %102 = sbr.rel (0) target = $region61
    $region60: #{tpu_custom_call.1} parent=1 // pred_region
      %103 = dma.done [#allocation11], 2048
    $region61: #{tpu_custom_call.1} parent=1 // pred_fallthru
      _
    %p104 = scmp.eq.s32.totalorder 0, 0
    // Predicated region
    $region62: #{tpu_custom_call.1} parent=1 // pred_check
      %p105 = pneg %p104
    $region63: #{tpu_custom_call.1} parent=1 // pred_check_branch
      %107 = sbr.rel (%p105) target = $region65
    $region64: #{tpu_custom_call.1} parent=1 // pred_region
      %108 = vst [vmem:[#allocation2] sm:$0xff] 0.0
      %109 = vst [vmem:[#allocation2 + $0x8] sm:$0xff] 0.0
      %110 = vst [vmem:[#allocation2 + $0x10] sm:$0xff] 0.0
      %111 = vst [vmem:[#allocation2 + $0x18] sm:$0xff] 0.0
      %112 = vst [vmem:[#allocation2 + $0x20] sm:$0xff] 0.0
      %113 = vst [vmem:[#allocation2 + $0x28] sm:$0xff] 0.0
      %114 = vst [vmem:[#allocation2 + $0x30] sm:$0xff] 0.0
      %115 = vst [vmem:[#allocation2 + $0x38] sm:$0xff] 0.0
      %116 = vst [vmem:[#allocation2 + $0x40] sm:$0xff] 0.0
      %117 = vst [vmem:[#allocation2 + $0x48] sm:$0xff] 0.0
      %118 = vst [vmem:[#allocation2 + $0x50] sm:$0xff] 0.0
      %119 = vst [vmem:[#allocation2 + $0x58] sm:$0xff] 0.0
      %120 = vst [vmem:[#allocation2 + $0x60] sm:$0xff] 0.0
      %121 = vst [vmem:[#allocation2 + $0x68] sm:$0xff] 0.0
      %122 = vst [vmem:[#allocation2 + $0x70] sm:$0xff] 0.0
      %123 = vst [vmem:[#allocation2 + $0x78] sm:$0xff] 0.0
      %124 = vst [vmem:[#allocation2 + $0x80] sm:$0xff] 0.0
      %125 = vst [vmem:[#allocation2 + $0x88] sm:$0xff] 0.0
      %126 = vst [vmem:[#allocation2 + $0x90] sm:$0xff] 0.0
      %127 = vst [vmem:[#allocation2 + $0x98] sm:$0xff] 0.0
      %128 = vst [vmem:[#allocation2 + $0xa0] sm:$0xff] 0.0
      %129 = vst [vmem:[#allocation2 + $0xa8] sm:$0xff] 0.0
      %130 = vst [vmem:[#allocation2 + $0xb0] sm:$0xff] 0.0
      %131 = vst [vmem:[#allocation2 + $0xb8] sm:$0xff] 0.0
      %132 = vst [vmem:[#allocation2 + $0xc0] sm:$0xff] 0.0
      %133 = vst [vmem:[#allocation2 + $0xc8] sm:$0xff] 0.0
      %134 = vst [vmem:[#allocation2 + $0xd0] sm:$0xff] 0.0
      %135 = vst [vmem:[#allocation2 + $0xd8] sm:$0xff] 0.0
      %136 = vst [vmem:[#allocation2 + $0xe0] sm:$0xff] 0.0
      %137 = vst [vmem:[#allocation2 + $0xe8] sm:$0xff] 0.0
      %138 = vst [vmem:[#allocation2 + $0xf0] sm:$0xff] 0.0
      %139 = vst [vmem:[#allocation2 + $0xf8] sm:$0xff] 0.0
      %140 = vst [vmem:[#allocation3] sm:$0xff] 0.0
      %141 = vst [vmem:[#allocation3 + $0x8] sm:$0xff] 0.0
      %142 = vst [vmem:[#allocation3 + $0x10] sm:$0xff] 0.0
      %143 = vst [vmem:[#allocation3 + $0x18] sm:$0xff] 0.0
      %144 = vst [vmem:[#allocation3 + $0x20] sm:$0xff] 0.0
      %145 = vst [vmem:[#allocation3 + $0x28] sm:$0xff] 0.0
      %146 = vst [vmem:[#allocation3 + $0x30] sm:$0xff] 0.0
      %147 = vst [vmem:[#allocation3 + $0x38] sm:$0xff] 0.0
      %148 = vst [vmem:[#allocation3 + $0x40] sm:$0xff] 0.0
      %149 = vst [vmem:[#allocation3 + $0x48] sm:$0xff] 0.0
      %150 = vst [vmem:[#allocation3 + $0x50] sm:$0xff] 0.0
      %151 = vst [vmem:[#allocation3 + $0x58] sm:$0xff] 0.0
      %152 = vst [vmem:[#allocation3 + $0x60] sm:$0xff] 0.0
      %153 = vst [vmem:[#allocation3 + $0x68] sm:$0xff] 0.0
      %154 = vst [vmem:[#allocation3 + $0x70] sm:$0xff] 0.0
      %155 = vst [vmem:[#allocation3 + $0x78] sm:$0xff] 0.0
      %156 = vst [vmem:[#allocation3 + $0x80] sm:$0xff] 0.0
      %157 = vst [vmem:[#allocation3 + $0x88] sm:$0xff] 0.0
      %158 = vst [vmem:[#allocation3 + $0x90] sm:$0xff] 0.0
      %159 = vst [vmem:[#allocation3 + $0x98] sm:$0xff] 0.0
      %160 = vst [vmem:[#allocation3 + $0xa0] sm:$0xff] 0.0
      %161 = vst [vmem:[#allocation3 + $0xa8] sm:$0xff] 0.0
      %162 = vst [vmem:[#allocation3 + $0xb0] sm:$0xff] 0.0
      %163 = vst [vmem:[#allocation3 + $0xb8] sm:$0xff] 0.0
      %164 = vst [vmem:[#allocation3 + $0xc0] sm:$0xff] 0.0
      %165 = vst [vmem:[#allocation3 + $0xc8] sm:$0xff] 0.0
      %166 = vst [vmem:[#allocation3 + $0xd0] sm:$0xff] 0.0
      %167 = vst [vmem:[#allocation3 + $0xd8] sm:$0xff] 0.0
      %168 = vst [vmem:[#allocation3 + $0xe0] sm:$0xff] 0.0
      %169 = vst [vmem:[#allocation3 + $0xe8] sm:$0xff] 0.0
      %170 = vst [vmem:[#allocation3 + $0xf0] sm:$0xff] 0.0
      %171 = vst [vmem:[#allocation3 + $0xf8] sm:$0xff] 0.0
    $region65: #{tpu_custom_call.1} parent=1 // pred_fallthru
      _
    %v172 = vld [vmem:[%s2] sm:$0xff]
    %v173 = vld [vmem:[%s2 + $0x8] sm:$0xff]
    %v174 = vld [vmem:[%s2 + $0x10] sm:$0xff]
    %v175 = vld [vmem:[%s2 + $0x18] sm:$0xff]
    %v176 = vld [vmem:[%s2 + $0x20] sm:$0xff]
    %v177 = vld [vmem:[%s2 + $0x28] sm:$0xff]
    %v178 = vld [vmem:[%s2 + $0x30] sm:$0xff]
    %v179 = vld [vmem:[%s2 + $0x38] sm:$0xff]
    %v180 = vld [vmem:[%s2 + $0x40] sm:$0xff]
    %v181 = vld [vmem:[%s2 + $0x48] sm:$0xff]
    %v182 = vld [vmem:[%s2 + $0x50] sm:$0xff]
    %v183 = vld [vmem:[%s2 + $0x58] sm:$0xff]
    %v184 = vld [vmem:[%s2 + $0x60] sm:$0xff]
    %v185 = vld [vmem:[%s2 + $0x68] sm:$0xff]
    %v186 = vld [vmem:[%s2 + $0x70] sm:$0xff]
    %v187 = vld [vmem:[%s2 + $0x78] sm:$0xff]
    %v188 = vld [vmem:[%s2 + $0x80] sm:$0xff]
    %v189 = vld [vmem:[%s2 + $0x88] sm:$0xff]
    %v190 = vld [vmem:[%s2 + $0x90] sm:$0xff]
    %v191 = vld [vmem:[%s2 + $0x98] sm:$0xff]
    %v192 = vld [vmem:[%s2 + $0xa0] sm:$0xff]
    %v193 = vld [vmem:[%s2 + $0xa8] sm:$0xff]
    %v194 = vld [vmem:[%s2 + $0xb0] sm:$0xff]
    %v195 = vld [vmem:[%s2 + $0xb8] sm:$0xff]
    %v196 = vld [vmem:[%s2 + $0xc0] sm:$0xff]
    %v197 = vld [vmem:[%s2 + $0xc8] sm:$0xff]
    %v198 = vld [vmem:[%s2 + $0xd0] sm:$0xff]
    %v199 = vld [vmem:[%s2 + $0xd8] sm:$0xff]
    %v200 = vld [vmem:[%s2 + $0xe0] sm:$0xff]
    %v201 = vld [vmem:[%s2 + $0xe8] sm:$0xff]
    %v202 = vld [vmem:[%s2 + $0xf0] sm:$0xff]
    %v203 = vld [vmem:[%s2 + $0xf8] sm:$0xff]
    %v204 = vld [vmem:[%s2 + $0x100] sm:$0xff]
    %v205 = vld [vmem:[%s2 + $0x108] sm:$0xff]
    %v206 = vld [vmem:[%s2 + $0x110] sm:$0xff]
    %v207 = vld [vmem:[%s2 + $0x118] sm:$0xff]
    %v208 = vld [vmem:[%s2 + $0x120] sm:$0xff]
    %v209 = vld [vmem:[%s2 + $0x128] sm:$0xff]
    %v210 = vld [vmem:[%s2 + $0x130] sm:$0xff]
    %v211 = vld [vmem:[%s2 + $0x138] sm:$0xff]
    %v212 = vld [vmem:[%s2 + $0x140] sm:$0xff]
    %v213 = vld [vmem:[%s2 + $0x148] sm:$0xff]
    %v214 = vld [vmem:[%s2 + $0x150] sm:$0xff]
    %v215 = vld [vmem:[%s2 + $0x158] sm:$0xff]
    %v216 = vld [vmem:[%s2 + $0x160] sm:$0xff]
    %v217 = vld [vmem:[%s2 + $0x168] sm:$0xff]
    %v218 = vld [vmem:[%s2 + $0x170] sm:$0xff]
    %v219 = vld [vmem:[%s2 + $0x178] sm:$0xff]
    %v220 = vld [vmem:[%s2 + $0x180] sm:$0xff]
    %v221 = vld [vmem:[%s2 + $0x188] sm:$0xff]
    %v222 = vld [vmem:[%s2 + $0x190] sm:$0xff]
    %v223 = vld [vmem:[%s2 + $0x198] sm:$0xff]
    %v224 = vld [vmem:[%s2 + $0x1a0] sm:$0xff]
    %v225 = vld [vmem:[%s2 + $0x1a8] sm:$0xff]
    %v226 = vld [vmem:[%s2 + $0x1b0] sm:$0xff]
    %v227 = vld [vmem:[%s2 + $0x1b8] sm:$0xff]
    %v228 = vld [vmem:[%s2 + $0x1c0] sm:$0xff]
    %v229 = vld [vmem:[%s2 + $0x1c8] sm:$0xff]
    %v230 = vld [vmem:[%s2 + $0x1d0] sm:$0xff]
    %v231 = vld [vmem:[%s2 + $0x1d8] sm:$0xff]
    %v232 = vld [vmem:[%s2 + $0x1e0] sm:$0xff]
    %v233 = vld [vmem:[%s2 + $0x1e8] sm:$0xff]
    %v234 = vld [vmem:[%s2 + $0x1f0] sm:$0xff]
    %v235 = vld [vmem:[%s2 + $0x1f8] sm:$0xff]
    %v236 = vld [vmem:[#allocation4] sm:$0xff]
    %v237 = vld [vmem:[#allocation4 + $0x8] sm:$0xff]
    %v238 = vld [vmem:[#allocation4 + $0x10] sm:$0xff]
    %v239 = vld [vmem:[#allocation4 + $0x18] sm:$0xff]
    %v240 = vld [vmem:[#allocation4 + $0x20] sm:$0xff]
    %v241 = vld [vmem:[#allocation4 + $0x28] sm:$0xff]
    %v242 = vld [vmem:[#allocation4 + $0x30] sm:$0xff]
    %v243 = vld [vmem:[#allocation4 + $0x38] sm:$0xff]
    %v244 = vld [vmem:[#allocation4 + $0x40] sm:$0xff]
    %v245 = vld [vmem:[#allocation4 + $0x48] sm:$0xff]
    %v246 = vld [vmem:[#allocation4 + $0x50] sm:$0xff]
    %v247 = vld [vmem:[#allocation4 + $0x58] sm:$0xff]
    %v248 = vld [vmem:[#allocation4 + $0x60] sm:$0xff]
    %v249 = vld [vmem:[#allocation4 + $0x68] sm:$0xff]
    %v250 = vld [vmem:[#allocation4 + $0x70] sm:$0xff]
    %v251 = vld [vmem:[#allocation4 + $0x78] sm:$0xff]
    %v252 = vld [vmem:[#allocation4 + $0x80] sm:$0xff]
    %v253 = vld [vmem:[#allocation4 + $0x88] sm:$0xff]
    %v254 = vld [vmem:[#allocation4 + $0x90] sm:$0xff]
    %v255 = vld [vmem:[#allocation4 + $0x98] sm:$0xff]
    %v256 = vld [vmem:[#allocation4 + $0xa0] sm:$0xff]
    %v257 = vld [vmem:[#allocation4 + $0xa8] sm:$0xff]
    %v258 = vld [vmem:[#allocation4 + $0xb0] sm:$0xff]
    %v259 = vld [vmem:[#allocation4 + $0xb8] sm:$0xff]
    %v260 = vld [vmem:[#allocation4 + $0xc0] sm:$0xff]
    %v261 = vld [vmem:[#allocation4 + $0xc8] sm:$0xff]
    %v262 = vld [vmem:[#allocation4 + $0xd0] sm:$0xff]
    %v263 = vld [vmem:[#allocation4 + $0xd8] sm:$0xff]
    %v264 = vld [vmem:[#allocation4 + $0xe0] sm:$0xff]
    %v265 = vld [vmem:[#allocation4 + $0xe8] sm:$0xff]
    %v266 = vld [vmem:[#allocation4 + $0xf0] sm:$0xff]
    %v267 = vld [vmem:[#allocation4 + $0xf8] sm:$0xff]
    %v268 = vld [vmem:[#allocation4 + $0x100] sm:$0xff]
    %v269 = vld [vmem:[#allocation4 + $0x108] sm:$0xff]
    %v270 = vld [vmem:[#allocation4 + $0x110] sm:$0xff]
    %v271 = vld [vmem:[#allocation4 + $0x118] sm:$0xff]
    %v272 = vld [vmem:[#allocation4 + $0x120] sm:$0xff]
    %v273 = vld [vmem:[#allocation4 + $0x128] sm:$0xff]
    %v274 = vld [vmem:[#allocation4 + $0x130] sm:$0xff]
    %v275 = vld [vmem:[#allocation4 + $0x138] sm:$0xff]
    %v276 = vld [vmem:[#allocation4 + $0x140] sm:$0xff]
    %v277 = vld [vmem:[#allocation4 + $0x148] sm:$0xff]
    %v278 = vld [vmem:[#allocation4 + $0x150] sm:$0xff]
    %v279 = vld [vmem:[#allocation4 + $0x158] sm:$0xff]
    %v280 = vld [vmem:[#allocation4 + $0x160] sm:$0xff]
    %v281 = vld [vmem:[#allocation4 + $0x168] sm:$0xff]
    %v282 = vld [vmem:[#allocation4 + $0x170] sm:$0xff]
    %v283 = vld [vmem:[#allocation4 + $0x178] sm:$0xff]
    %v284 = vld [vmem:[#allocation4 + $0x180] sm:$0xff]
    %v285 = vld [vmem:[#allocation4 + $0x188] sm:$0xff]
    %v286 = vld [vmem:[#allocation4 + $0x190] sm:$0xff]
    %v287 = vld [vmem:[#allocation4 + $0x198] sm:$0xff]
    %v288 = vld [vmem:[#allocation4 + $0x1a0] sm:$0xff]
    %v289 = vld [vmem:[#allocation4 + $0x1a8] sm:$0xff]
    %v290 = vld [vmem:[#allocation4 + $0x1b0] sm:$0xff]
    %v291 = vld [vmem:[#allocation4 + $0x1b8] sm:$0xff]
    %v292 = vld [vmem:[#allocation4 + $0x1c0] sm:$0xff]
    %v293 = vld [vmem:[#allocation4 + $0x1c8] sm:$0xff]
    %v294 = vld [vmem:[#allocation4 + $0x1d0] sm:$0xff]
    %v295 = vld [vmem:[#allocation4 + $0x1d8] sm:$0xff]
    %v296 = vld [vmem:[#allocation4 + $0x1e0] sm:$0xff]
    %v297 = vld [vmem:[#allocation4 + $0x1e8] sm:$0xff]
    %v298 = vld [vmem:[#allocation4 + $0x1f0] sm:$0xff]
    %v299 = vld [vmem:[#allocation4 + $0x1f8] sm:$0xff]
    %v300 = vld [vmem:[#allocation2] sm:$0xff]
    %v301 = vld [vmem:[#allocation2 + $0x8] sm:$0xff]
    %v302 = vld [vmem:[#allocation2 + $0x10] sm:$0xff]
    %v303 = vld [vmem:[#allocation2 + $0x18] sm:$0xff]
    %v304 = vld [vmem:[#allocation2 + $0x20] sm:$0xff]
    %v305 = vld [vmem:[#allocation2 + $0x28] sm:$0xff]
    %v306 = vld [vmem:[#allocation2 + $0x30] sm:$0xff]
    %v307 = vld [vmem:[#allocation2 + $0x38] sm:$0xff]
    %v308 = vld [vmem:[#allocation2 + $0x40] sm:$0xff]
    %v309 = vld [vmem:[#allocation2 + $0x48] sm:$0xff]
    %v310 = vld [vmem:[#allocation2 + $0x50] sm:$0xff]
    %v311 = vld [vmem:[#allocation2 + $0x58] sm:$0xff]
    %v312 = vld [vmem:[#allocation2 + $0x60] sm:$0xff]
    %v313 = vld [vmem:[#allocation2 + $0x68] sm:$0xff]
    %v314 = vld [vmem:[#allocation2 + $0x70] sm:$0xff]
    %v315 = vld [vmem:[#allocation2 + $0x78] sm:$0xff]
    %v316 = vld [vmem:[#allocation2 + $0x80] sm:$0xff]
    %v317 = vld [vmem:[#allocation2 + $0x88] sm:$0xff]
    %v318 = vld [vmem:[#allocation2 + $0x90] sm:$0xff]
    %v319 = vld [vmem:[#allocation2 + $0x98] sm:$0xff]
    %v320 = vld [vmem:[#allocation2 + $0xa0] sm:$0xff]
    %v321 = vld [vmem:[#allocation2 + $0xa8] sm:$0xff]
    %v322 = vld [vmem:[#allocation2 + $0xb0] sm:$0xff]
    %v323 = vld [vmem:[#allocation2 + $0xb8] sm:$0xff]
    %v324 = vld [vmem:[#allocation2 + $0xc0] sm:$0xff]
    %v325 = vld [vmem:[#allocation2 + $0xc8] sm:$0xff]
    %v326 = vld [vmem:[#allocation2 + $0xd0] sm:$0xff]
    %v327 = vld [vmem:[#allocation2 + $0xd8] sm:$0xff]
    %v328 = vld [vmem:[#allocation2 + $0xe0] sm:$0xff]
    %v329 = vld [vmem:[#allocation2 + $0xe8] sm:$0xff]
    %v330 = vld [vmem:[#allocation2 + $0xf0] sm:$0xff]
    %v331 = vld [vmem:[#allocation2 + $0xf8] sm:$0xff]
    %v332 = vld [vmem:[%s0] sm:$0xff]
    %v333 = vld [vmem:[%s0 + $0x8] sm:$0xff]
    %v334 = vld [vmem:[%s0 + $0x10] sm:$0xff]
    %v335 = vld [vmem:[%s0 + $0x18] sm:$0xff]
    %v336 = vld [vmem:[%s0 + $0x20] sm:$0xff]
    %v337 = vld [vmem:[%s0 + $0x28] sm:$0xff]
    %v338 = vld [vmem:[%s0 + $0x30] sm:$0xff]
    %v339 = vld [vmem:[%s0 + $0x38] sm:$0xff]
    %v340 = vld [vmem:[%s0 + $0x40] sm:$0xff]
    %v341 = vld [vmem:[%s0 + $0x48] sm:$0xff]
    %v342 = vld [vmem:[%s0 + $0x50] sm:$0xff]
    %v343 = vld [vmem:[%s0 + $0x58] sm:$0xff]
    %v344 = vld [vmem:[%s0 + $0x60] sm:$0xff]
    %v345 = vld [vmem:[%s0 + $0x68] sm:$0xff]
    %v346 = vld [vmem:[%s0 + $0x70] sm:$0xff]
    %v347 = vld [vmem:[%s0 + $0x78] sm:$0xff]
    %v348 = vld [vmem:[%s0 + $0x80] sm:$0xff]
    %v349 = vld [vmem:[%s0 + $0x88] sm:$0xff]
    %v350 = vld [vmem:[%s0 + $0x90] sm:$0xff]
    %v351 = vld [vmem:[%s0 + $0x98] sm:$0xff]
    %v352 = vld [vmem:[%s0 + $0xa0] sm:$0xff]
    %v353 = vld [vmem:[%s0 + $0xa8] sm:$0xff]
    %v354 = vld [vmem:[%s0 + $0xb0] sm:$0xff]
    %v355 = vld [vmem:[%s0 + $0xb8] sm:$0xff]
    %v356 = vld [vmem:[%s0 + $0xc0] sm:$0xff]
    %v357 = vld [vmem:[%s0 + $0xc8] sm:$0xff]
    %v358 = vld [vmem:[%s0 + $0xd0] sm:$0xff]
    %v359 = vld [vmem:[%s0 + $0xd8] sm:$0xff]
    %v360 = vld [vmem:[%s0 + $0xe0] sm:$0xff]
    %v361 = vld [vmem:[%s0 + $0xe8] sm:$0xff]
    %v362 = vld [vmem:[%s0 + $0xf0] sm:$0xff]
    %v363 = vld [vmem:[%s0 + $0xf8] sm:$0xff]
    %vm364 = vcmask 130048
    %v366 = vsel %vm364, %v332, 0
    %368 = vmatprep.subr.mxu0 0.0
    %369 = vmatpush1.msra.mxu0 0.0
    %370 = vmatprep.subr.mxu0 0.0
    %371 = vmatpush1.msra.mxu0 0.0
    %372 = vmatprep.subr.mxu0 0.0
    %373 = vmatpush1.msra.mxu0 0.0
    %374 = vmatprep.subr.mxu0 0.0
    %375 = vmatpush1.msra.mxu0 0.0
    %376 = vmatprep.subr.mxu0 0.0
    %377 = vmatpush1.msra.mxu0 0.0
    %378 = vmatprep.subr.mxu0 0.0
    %379 = vmatpush1.msra.mxu0 0.0
    %380 = vmatprep.subr.mxu0 0.0
    %381 = vmatpush1.msra.mxu0 0.0
    %382 = vmatprep.subr.mxu0 0.0
    %383 = vmatpush1.msra.mxu0 0.0
    %384 = vmatprep.subr.mxu0 0.0
    %385 = vmatpush1.msra.mxu0 0.0
    %386 = vmatprep.subr.mxu0 0.0
    %387 = vmatpush1.msra.mxu0 0.0
    %388 = vmatprep.subr.mxu0 0.0
    %389 = vmatpush1.msra.mxu0 0.0
    %390 = vmatprep.subr.mxu0 0.0
    %391 = vmatpush1.msra.mxu0 0.0
    %392 = vmatprep.subr.mxu0 0.0
    %393 = vmatpush1.msra.mxu0 0.0
    %394 = vmatprep.subr.mxu0 0.0
    %395 = vmatpush1.msra.mxu0 0.0
    %396 = vmatprep.subr.mxu0 0.0
    %397 = vmatpush1.msra.mxu0 %v173
    %398 = vmatprep.subr.mxu0 0.0
    %399 = vmatpush1.msra.mxu0 %v172
    %400 = vmatprep.subr.mxu0 0.0
    %401 = vmatpush2.msra.mxu0 0.0
    %402 = vmatprep.subr.mxu0 0.0
    %403 = vmatpush2.msra.mxu0 0.0
    %404 = vmatprep.subr.mxu0 0.0
    %405 = vmatpush2.msra.mxu0 0.0
    %406 = vmatprep.subr.mxu0 0.0
    %407 = vmatpush2.msra.mxu0 0.0
    %408 = vmatprep.subr.mxu0 0.0
    %409 = vmatpush2.msra.mxu0 0.0
    %410 = vmatprep.subr.mxu0 0.0
    %411 = vmatpush2.msra.mxu0 0.0
    %412 = vmatprep.subr.mxu0 0.0
    %413 = vmatpush2.msra.mxu0 0.0
    %414 = vmatprep.subr.mxu0 0.0
    %415 = vmatpush2.msra.mxu0 0.0
    %416 = vmatprep.subr.mxu0 0.0
    %417 = vmatpush2.msra.mxu0 0.0
    %418 = vmatprep.subr.mxu0 0.0
    %419 = vmatpush2.msra.mxu0 0.0
    %420 = vmatprep.subr.mxu0 0.0
    %421 = vmatpush2.msra.mxu0 0.0
    %422 = vmatprep.subr.mxu0 0.0
    %423 = vmatpush2.msra.mxu0 0.0
    %424 = vmatprep.subr.mxu0 0.0
    %425 = vmatpush2.msra.mxu0 0.0
    %426 = vmatprep.subr.mxu0 0.0
    %427 = vmatpush2.msra.mxu0 0.0
    %428 = vmatprep.subr.mxu0 0.0
    %429 = vmatpush2.msra.mxu0 0.0
    %430 = vmatprep.subr.mxu0 0.0
    %431 = vmatpush2.msra.mxu0 0.0
    %432 = vmatprep.mubr.f32.mxu0 0.0
    %433 = vmatmul.mubr.f32.gmra.mxu0 %v366
    %v434 = vpop.f32.mrf.mxu0
    %v435 = vadd.f32 0.0, %v434
    %v436 = vpop.f32.mrf.mxu0
    %437 = vdwg.mxu0
    %v439 = vsel %vm364, %v333, 0
    %441 = vmatprep.subr.mxu0 0.0
    %442 = vmatpush1.msra.mxu0 0.0
    %443 = vmatprep.subr.mxu0 0.0
    %444 = vmatpush1.msra.mxu0 0.0
    %445 = vmatprep.subr.mxu0 0.0
    %446 = vmatpush1.msra.mxu0 0.0
    %447 = vmatprep.subr.mxu0 0.0
    %448 = vmatpush1.msra.mxu0 0.0
    %449 = vmatprep.subr.mxu0 0.0
    %450 = vmatpush1.msra.mxu0 0.0
    %451 = vmatprep.subr.mxu0 0.0
    %452 = vmatpush1.msra.mxu0 0.0
    %453 = vmatprep.subr.mxu0 0.0
    %454 = vmatpush1.msra.mxu0 0.0
    %455 = vmatprep.subr.mxu0 0.0
    %456 = vmatpush1.msra.mxu0 0.0
    %457 = vmatprep.subr.mxu0 0.0
    %458 = vmatpush1.msra.mxu0 0.0
    %459 = vmatprep.subr.mxu0 0.0
    %460 = vmatpush1.msra.mxu0 0.0
    %461 = vmatprep.subr.mxu0 0.0
    %462 = vmatpush1.msra.mxu0 0.0
    %463 = vmatprep.subr.mxu0 0.0
    %464 = vmatpush1.msra.mxu0 0.0
    %465 = vmatprep.subr.mxu0 0.0
    %466 = vmatpush1.msra.mxu0 0.0
    %467 = vmatprep.subr.mxu0 0.0
    %468 = vmatpush1.msra.mxu0 0.0
    %469 = vmatprep.subr.mxu0 0.0
    %470 = vmatpush1.msra.mxu0 %v175
    %471 = vmatprep.subr.mxu0 0.0
    %472 = vmatpush1.msra.mxu0 %v174
    %473 = vmatprep.subr.mxu0 0.0
    %474 = vmatpush2.msra.mxu0 0.0
    %475 = vmatprep.subr.mxu0 0.0
    %476 = vmatpush2.msra.mxu0 0.0
    %477 = vmatprep.subr.mxu0 0.0
    %478 = vmatpush2.msra.mxu0 0.0
    %479 = vmatprep.subr.mxu0 0.0
    %480 = vmatpush2.msra.mxu0 0.0
    %481 = vmatprep.subr.mxu0 0.0
    %482 = vmatpush2.msra.mxu0 0.0
    %483 = vmatprep.subr.mxu0 0.0
    %484 = vmatpush2.msra.mxu0 0.0
    %485 = vmatprep.subr.mxu0 0.0
    %486 = vmatpush2.msra.mxu0 0.0
    %487 = vmatprep.subr.mxu0 0.0
    %488 = vmatpush2.msra.mxu0 0.0
    %489 = vmatprep.subr.mxu0 0.0
    %490 = vmatpush2.msra.mxu0 0.0
    %491 = vmatprep.subr.mxu0 0.0
    %492 = vmatpush2.msra.mxu0 0.0
    %493 = vmatprep.subr.mxu0 0.0
    %494 = vmatpush2.msra.mxu0 0.0
    %495 = vmatprep.subr.mxu0 0.0
    %496 = vmatpush2.msra.mxu0 0.0
    %497 = vmatprep.subr.mxu0 0.0
    %498 = vmatpush2.msra.mxu0 0.0
    %499 = vmatprep.subr.mxu0 0.0
    %500 = vmatpush2.msra.mxu0 0.0
    %501 = vmatprep.subr.mxu0 0.0
    %502 = vmatpush2.msra.mxu0 0.0
    %503 = vmatprep.subr.mxu0 0.0
    %504 = vmatpush2.msra.mxu0 0.0
    %505 = vmatprep.mubr.f32.mxu0 0.0
    %506 = vmatmul.mubr.f32.gmra.mxu0 %v439
    %v507 = vpop.f32.mrf.mxu0
    %v508 = vadd.f32 0.0, %v507
    %v509 = vpop.f32.mrf.mxu0
    %510 = vdwg.mxu0
    %v512 = vsel %vm364, %v334, 0
    %514 = vmatprep.subr.mxu0 0.0
    %515 = vmatpush1.msra.mxu0 0.0
    %516 = vmatprep.subr.mxu0 0.0
    %517 = vmatpush1.msra.mxu0 0.0
    %518 = vmatprep.subr.mxu0 0.0
    %519 = vmatpush1.msra.mxu0 0.0
    %520 = vmatprep.subr.mxu0 0.0
    %521 = vmatpush1.msra.mxu0 0.0
    %522 = vmatprep.subr.mxu0 0.0
    %523 = vmatpush1.msra.mxu0 0.0
    %524 = vmatprep.subr.mxu0 0.0
    %525 = vmatpush1.msra.mxu0 0.0
    %526 = vmatprep.subr.mxu0 0.0
    %527 = vmatpush1.msra.mxu0 0.0
    %528 = vmatprep.subr.mxu0 0.0
    %529 = vmatpush1.msra.mxu0 0.0
    %530 = vmatprep.subr.mxu0 0.0
    %531 = vmatpush1.msra.mxu0 0.0
    %532 = vmatprep.subr.mxu0 0.0
    %533 = vmatpush1.msra.mxu0 0.0
    %534 = vmatprep.subr.mxu0 0.0
    %535 = vmatpush1.msra.mxu0 0.0
    %536 = vmatprep.subr.mxu0 0.0
    %537 = vmatpush1.msra.mxu0 0.0
    %538 = vmatprep.subr.mxu0 0.0
    %539 = vmatpush1.msra.mxu0 0.0
    %540 = vmatprep.subr.mxu0 0.0
    %541 = vmatpush1.msra.mxu0 0.0
    %542 = vmatprep.subr.mxu0 0.0
    %543 = vmatpush1.msra.mxu0 %v177
    %544 = vmatprep.subr.mxu0 0.0
    %545 = vmatpush1.msra.mxu0 %v176
    %546 = vmatprep.subr.mxu0 0.0
    %547 = vmatpush2.msra.mxu0 0.0
    %548 = vmatprep.subr.mxu0 0.0
    %549 = vmatpush2.msra.mxu0 0.0
    %550 = vmatprep.subr.mxu0 0.0
    %551 = vmatpush2.msra.mxu0 0.0
    %552 = vmatprep.subr.mxu0 0.0
    %553 = vmatpush2.msra.mxu0 0.0
    %554 = vmatprep.subr.mxu0 0.0
    %555 = vmatpush2.msra.mxu0 0.0
    %556 = vmatprep.subr.mxu0 0.0
    %557 = vmatpush2.msra.mxu0 0.0
    %558 = vmatprep.subr.mxu0 0.0
    %559 = vmatpush2.msra.mxu0 0.0
    %560 = vmatprep.subr.mxu0 0.0
    %561 = vmatpush2.msra.mxu0 0.0
    %562 = vmatprep.subr.mxu0 0.0
    %563 = vmatpush2.msra.mxu0 0.0
    %564 = vmatprep.subr.mxu0 0.0
    %565 = vmatpush2.msra.mxu0 0.0
    %566 = vmatprep.subr.mxu0 0.0
    %567 = vmatpush2.msra.mxu0 0.0
    %568 = vmatprep.subr.mxu0 0.0
    %569 = vmatpush2.msra.mxu0 0.0
    %570 = vmatprep.subr.mxu0 0.0
    %571 = vmatpush2.msra.mxu0 0.0
    %572 = vmatprep.subr.mxu0 0.0
    %573 = vmatpush2.msra.mxu0 0.0
    %574 = vmatprep.subr.mxu0 0.0
    %575 = vmatpush2.msra.mxu0 0.0
    %576 = vmatprep.subr.mxu0 0.0
    %577 = vmatpush2.msra.mxu0 0.0
    %578 = vmatprep.mubr.f32.mxu0 0.0
    %579 = vmatmul.mubr.f32.gmra.mxu0 %v512
    %v580 = vpop.f32.mrf.mxu0
    %v581 = vadd.f32 0.0, %v580
    %v582 = vpop.f32.mrf.mxu0
    %583 = vdwg.mxu0
    %v585 = vsel %vm364, %v335, 0
    %587 = vmatprep.subr.mxu0 0.0
    %588 = vmatpush1.msra.mxu0 0.0
    %589 = vmatprep.subr.mxu0 0.0
    %590 = vmatpush1.msra.mxu0 0.0
    %591 = vmatprep.subr.mxu0 0.0
    %592 = vmatpush1.msra.mxu0 0.0
    %593 = vmatprep.subr.mxu0 0.0
    %594 = vmatpush1.msra.mxu0 0.0
    %595 = vmatprep.subr.mxu0 0.0
    %596 = vmatpush1.msra.mxu0 0.0
    %597 = vmatprep.subr.mxu0 0.0
    %598 = vmatpush1.msra.mxu0 0.0
    %599 = vmatprep.subr.mxu0 0.0
    %600 = vmatpush1.msra.mxu0 0.0
    %601 = vmatprep.subr.mxu0 0.0
    %602 = vmatpush1.msra.mxu0 0.0
    %603 = vmatprep.subr.mxu0 0.0
    %604 = vmatpush1.msra.mxu0 0.0
    %605 = vmatprep.subr.mxu0 0.0
    %606 = vmatpush1.msra.mxu0 0.0
    %607 = vmatprep.subr.mxu0 0.0
    %608 = vmatpush1.msra.mxu0 0.0
    %609 = vmatprep.subr.mxu0 0.0
    %610 = vmatpush1.msra.mxu0 0.0
    %611 = vmatprep.subr.mxu0 0.0
    %612 = vmatpush1.msra.mxu0 0.0
    %613 = vmatprep.subr.mxu0 0.0
    %614 = vmatpush1.msra.mxu0 0.0
    %615 = vmatprep.subr.mxu0 0.0
    %616 = vmatpush1.msra.mxu0 %v179
    %617 = vmatprep.subr.mxu0 0.0
    %618 = vmatpush1.msra.mxu0 %v178
    %619 = vmatprep.subr.mxu0 0.0
    %620 = vmatpush2.msra.mxu0 0.0
    %621 = vmatprep.subr.mxu0 0.0
    %622 = vmatpush2.msra.mxu0 0.0
    %623 = vmatprep.subr.mxu0 0.0
    %624 = vmatpush2.msra.mxu0 0.0
    %625 = vmatprep.subr.mxu0 0.0
    %626 = vmatpush2.msra.mxu0 0.0
    %627 = vmatprep.subr.mxu0 0.0
    %628 = vmatpush2.msra.mxu0 0.0
    %629 = vmatprep.subr.mxu0 0.0
    %630 = vmatpush2.msra.mxu0 0.0
    %631 = vmatprep.subr.mxu0 0.0
    %632 = vmatpush2.msra.mxu0 0.0
    %633 = vmatprep.subr.mxu0 0.0
    %634 = vmatpush2.msra.mxu0 0.0
    %635 = vmatprep.subr.mxu0 0.0
    %636 = vmatpush2.msra.mxu0 0.0
    %637 = vmatprep.subr.mxu0 0.0
    %638 = vmatpush2.msra.mxu0 0.0
    %639 = vmatprep.subr.mxu0 0.0
    %640 = vmatpush2.msra.mxu0 0.0
    %641 = vmatprep.subr.mxu0 0.0
    %642 = vmatpush2.msra.mxu0 0.0
    %643 = vmatprep.subr.mxu0 0.0
    %644 = vmatpush2.msra.mxu0 0.0
    %645 = vmatprep.subr.mxu0 0.0
    %646 = vmatpush2.msra.mxu0 0.0
    %647 = vmatprep.subr.mxu0 0.0
    %648 = vmatpush2.msra.mxu0 0.0
    %649 = vmatprep.subr.mxu0 0.0
    %650 = vmatpush2.msra.mxu0 0.0
    %651 = vmatprep.mubr.f32.mxu0 0.0
    %652 = vmatmul.mubr.f32.gmra.mxu0 %v585
    %v653 = vpop.f32.mrf.mxu0
    %v654 = vadd.f32 0.0, %v653
    %v655 = vpop.f32.mrf.mxu0
    %656 = vdwg.mxu0
    %v658 = vsel %vm364, %v336, 0
    %660 = vmatprep.subr.mxu0 0.0
    %661 = vmatpush1.msra.mxu0 0.0
    %662 = vmatprep.subr.mxu0 0.0
    %663 = vmatpush1.msra.mxu0 0.0
    %664 = vmatprep.subr.mxu0 0.0
    %665 = vmatpush1.msra.mxu0 0.0
    %666 = vmatprep.subr.mxu0 0.0
    %667 = vmatpush1.msra.mxu0 0.0
    %668 = vmatprep.subr.mxu0 0.0
    %669 = vmatpush1.msra.mxu0 0.0
    %670 = vmatprep.subr.mxu0 0.0
    %671 = vmatpush1.msra.mxu0 0.0
    %672 = vmatprep.subr.mxu0 0.0
    %673 = vmatpush1.msra.mxu0 0.0
    %674 = vmatprep.subr.mxu0 0.0
    %675 = vmatpush1.msra.mxu0 0.0
    %676 = vmatprep.subr.mxu0 0.0
    %677 = vmatpush1.msra.mxu0 0.0
    %678 = vmatprep.subr.mxu0 0.0
    %679 = vmatpush1.msra.mxu0 0.0
    %680 = vmatprep.subr.mxu0 0.0
    %681 = vmatpush1.msra.mxu0 0.0
    %682 = vmatprep.subr.mxu0 0.0
    %683 = vmatpush1.msra.mxu0 0.0
    %684 = vmatprep.subr.mxu0 0.0
    %685 = vmatpush1.msra.mxu0 0.0
    %686 = vmatprep.subr.mxu0 0.0
    %687 = vmatpush1.msra.mxu0 0.0
    %688 = vmatprep.subr.mxu0 0.0
    %689 = vmatpush1.msra.mxu0 %v181
    %690 = vmatprep.subr.mxu0 0.0
    %691 = vmatpush1.msra.mxu0 %v180
    %692 = vmatprep.subr.mxu0 0.0
    %693 = vmatpush2.msra.mxu0 0.0
    %694 = vmatprep.subr.mxu0 0.0
    %695 = vmatpush2.msra.mxu0 0.0
    %696 = vmatprep.subr.mxu0 0.0
    %697 = vmatpush2.msra.mxu0 0.0
    %698 = vmatprep.subr.mxu0 0.0
    %699 = vmatpush2.msra.mxu0 0.0
    %700 = vmatprep.subr.mxu0 0.0
    %701 = vmatpush2.msra.mxu0 0.0
    %702 = vmatprep.subr.mxu0 0.0
    %703 = vmatpush2.msra.mxu0 0.0
    %704 = vmatprep.subr.mxu0 0.0
    %705 = vmatpush2.msra.mxu0 0.0
    %706 = vmatprep.subr.mxu0 0.0
    %707 = vmatpush2.msra.mxu0 0.0
    %708 = vmatprep.subr.mxu0 0.0
    %709 = vmatpush2.msra.mxu0 0.0
    %710 = vmatprep.subr.mxu0 0.0
    %711 = vmatpush2.msra.mxu0 0.0
    %712 = vmatprep.subr.mxu0 0.0
    %713 = vmatpush2.msra.mxu0 0.0
    %714 = vmatprep.subr.mxu0 0.0
    %715 = vmatpush2.msra.mxu0 0.0
    %716 = vmatprep.subr.mxu0 0.0
    %717 = vmatpush2.msra.mxu0 0.0
    %718 = vmatprep.subr.mxu0 0.0
    %719 = vmatpush2.msra.mxu0 0.0
    %720 = vmatprep.subr.mxu0 0.0
    %721 = vmatpush2.msra.mxu0 0.0
    %722 = vmatprep.subr.mxu0 0.0
    %723 = vmatpush2.msra.mxu0 0.0
    %724 = vmatprep.mubr.f32.mxu0 0.0
    %725 = vmatmul.mubr.f32.gmra.mxu0 %v658
    %v726 = vpop.f32.mrf.mxu0
    %v727 = vadd.f32 0.0, %v726
    %v728 = vpop.f32.mrf.mxu0
    %729 = vdwg.mxu0
    %v731 = vsel %vm364, %v337, 0
    %733 = vmatprep.subr.mxu0 0.0
    %734 = vmatpush1.msra.mxu0 0.0
    %735 = vmatprep.subr.mxu0 0.0
    %736 = vmatpush1.msra.mxu0 0.0
    %737 = vmatprep.subr.mxu0 0.0
    %738 = vmatpush1.msra.mxu0 0.0
    %739 = vmatprep.subr.mxu0 0.0
    %740 = vmatpush1.msra.mxu0 0.0
    %741 = vmatprep.subr.mxu0 0.0
    %742 = vmatpush1.msra.mxu0 0.0
    %743 = vmatprep.subr.mxu0 0.0
    %744 = vmatpush1.msra.mxu0 0.0
    %745 = vmatprep.subr.mxu0 0.0
    %746 = vmatpush1.msra.mxu0 0.0
    %747 = vmatprep.subr.mxu0 0.0
    %748 = vmatpush1.msra.mxu0 0.0
    %749 = vmatprep.subr.mxu0 0.0
    %750 = vmatpush1.msra.mxu0 0.0
    %751 = vmatprep.subr.mxu0 0.0
    %752 = vmatpush1.msra.mxu0 0.0
    %753 = vmatprep.subr.mxu0 0.0
    %754 = vmatpush1.msra.mxu0 0.0
    %755 = vmatprep.subr.mxu0 0.0
    %756 = vmatpush1.msra.mxu0 0.0
    %757 = vmatprep.subr.mxu0 0.0
    %758 = vmatpush1.msra.mxu0 0.0
    %759 = vmatprep.subr.mxu0 0.0
    %760 = vmatpush1.msra.mxu0 0.0
    %761 = vmatprep.subr.mxu0 0.0
    %762 = vmatpush1.msra.mxu0 %v183
    %763 = vmatprep.subr.mxu0 0.0
    %764 = vmatpush1.msra.mxu0 %v182
    %765 = vmatprep.subr.mxu0 0.0
    %766 = vmatpush2.msra.mxu0 0.0
    %767 = vmatprep.subr.mxu0 0.0
    %768 = vmatpush2.msra.mxu0 0.0
    %769 = vmatprep.subr.mxu0 0.0
    %770 = vmatpush2.msra.mxu0 0.0
    %771 = vmatprep.subr.mxu0 0.0
    %772 = vmatpush2.msra.mxu0 0.0
    %773 = vmatprep.subr.mxu0 0.0
    %774 = vmatpush2.msra.mxu0 0.0
    %775 = vmatprep.subr.mxu0 0.0
    %776 = vmatpush2.msra.mxu0 0.0
    %777 = vmatprep.subr.mxu0 0.0
    %778 = vmatpush2.msra.mxu0 0.0
    %779 = vmatprep.subr.mxu0 0.0
    %780 = vmatpush2.msra.mxu0 0.0
    %781 = vmatprep.subr.mxu0 0.0
    %782 = vmatpush2.msra.mxu0 0.0
    %783 = vmatprep.subr.mxu0 0.0
    %784 = vmatpush2.msra.mxu0 0.0
    %785 = vmatprep.subr.mxu0 0.0
    %786 = vmatpush2.msra.mxu0 0.0
    %787 = vmatprep.subr.mxu0 0.0
    %788 = vmatpush2.msra.mxu0 0.0
    %789 = vmatprep.subr.mxu0 0.0
    %790 = vmatpush2.msra.mxu0 0.0
    %791 = vmatprep.subr.mxu0 0.0
    %792 = vmatpush2.msra.mxu0 0.0
    %793 = vmatprep.subr.mxu0 0.0
    %794 = vmatpush2.msra.mxu0 0.0
    %795 = vmatprep.subr.mxu0 0.0
    %796 = vmatpush2.msra.mxu0 0.0
    %797 = vmatprep.mubr.f32.mxu0 0.0
    %798 = vmatmul.mubr.f32.gmra.mxu0 %v731
    %v799 = vpop.f32.mrf.mxu0
    %v800 = vadd.f32 0.0, %v799
    %v801 = vpop.f32.mrf.mxu0
    %802 = vdwg.mxu0
    %v804 = vsel %vm364, %v338, 0
    %806 = vmatprep.subr.mxu0 0.0
    %807 = vmatpush1.msra.mxu0 0.0
    %808 = vmatprep.subr.mxu0 0.0
    %809 = vmatpush1.msra.mxu0 0.0
    %810 = vmatprep.subr.mxu0 0.0
    %811 = vmatpush1.msra.mxu0 0.0
    %812 = vmatprep.subr.mxu0 0.0
    %813 = vmatpush1.msra.mxu0 0.0
    %814 = vmatprep.subr.mxu0 0.0
    %815 = vmatpush1.msra.mxu0 0.0
    %816 = vmatprep.subr.mxu0 0.0
    %817 = vmatpush1.msra.mxu0 0.0
    %818 = vmatprep.subr.mxu0 0.0
    %819 = vmatpush1.msra.mxu0 0.0
    %820 = vmatprep.subr.mxu0 0.0
    %821 = vmatpush1.msra.mxu0 0.0
    %822 = vmatprep.subr.mxu0 0.0
    %823 = vmatpush1.msra.mxu0 0.0
    %824 = vmatprep.subr.mxu0 0.0
    %825 = vmatpush1.msra.mxu0 0.0
    %826 = vmatprep.subr.mxu0 0.0
    %827 = vmatpush1.msra.mxu0 0.0
    %828 = vmatprep.subr.mxu0 0.0
    %829 = vmatpush1.msra.mxu0 0.0
    %830 = vmatprep.subr.mxu0 0.0
    %831 = vmatpush1.msra.mxu0 0.0
    %832 = vmatprep.subr.mxu0 0.0
    %833 = vmatpush1.msra.mxu0 0.0
    %834 = vmatprep.subr.mxu0 0.0
    %835 = vmatpush1.msra.mxu0 %v185
    %836 = vmatprep.subr.mxu0 0.0
    %837 = vmatpush1.msra.mxu0 %v184
    %838 = vmatprep.subr.mxu0 0.0
    %839 = vmatpush2.msra.mxu0 0.0
    %840 = vmatprep.subr.mxu0 0.0
    %841 = vmatpush2.msra.mxu0 0.0
    %842 = vmatprep.subr.mxu0 0.0
    %843 = vmatpush2.msra.mxu0 0.0
    %844 = vmatprep.subr.mxu0 0.0
    %845 = vmatpush2.msra.mxu0 0.0
    %846 = vmatprep.subr.mxu0 0.0
    %847 = vmatpush2.msra.mxu0 0.0
    %848 = vmatprep.subr.mxu0 0.0
    %849 = vmatpush2.msra.mxu0 0.0
    %850 = vmatprep.subr.mxu0 0.0
    %851 = vmatpush2.msra.mxu0 0.0
    %852 = vmatprep.subr.mxu0 0.0
    %853 = vmatpush2.msra.mxu0 0.0
    %854 = vmatprep.subr.mxu0 0.0
    %855 = vmatpush2.msra.mxu0 0.0
    %856 = vmatprep.subr.mxu0 0.0
    %857 = vmatpush2.msra.mxu0 0.0
    %858 = vmatprep.subr.mxu0 0.0
    %859 = vmatpush2.msra.mxu0 0.0
    %860 = vmatprep.subr.mxu0 0.0
    %861 = vmatpush2.msra.mxu0 0.0
    %862 = vmatprep.subr.mxu0 0.0
    %863 = vmatpush2.msra.mxu0 0.0
    %864 = vmatprep.subr.mxu0 0.0
    %865 = vmatpush2.msra.mxu0 0.0
    %866 = vmatprep.subr.mxu0 0.0
    %867 = vmatpush2.msra.mxu0 0.0
    %868 = vmatprep.subr.mxu0 0.0
    %869 = vmatpush2.msra.mxu0 0.0
    %870 = vmatprep.mubr.f32.mxu0 0.0
    %871 = vmatmul.mubr.f32.gmra.mxu0 %v804
    %v872 = vpop.f32.mrf.mxu0
    %v873 = vadd.f32 0.0, %v872
    %v874 = vpop.f32.mrf.mxu0
    %875 = vdwg.mxu0
    %v877 = vsel %vm364, %v339, 0
    %879 = vmatprep.subr.mxu0 0.0
    %880 = vmatpush1.msra.mxu0 0.0
    %881 = vmatprep.subr.mxu0 0.0
    %882 = vmatpush1.msra.mxu0 0.0
    %883 = vmatprep.subr.mxu0 0.0
    %884 = vmatpush1.msra.mxu0 0.0
    %885 = vmatprep.subr.mxu0 0.0
    %886 = vmatpush1.msra.mxu0 0.0
    %887 = vmatprep.subr.mxu0 0.0
    %888 = vmatpush1.msra.mxu0 0.0
    %889 = vmatprep.subr.mxu0 0.0
    %890 = vmatpush1.msra.mxu0 0.0
    %891 = vmatprep.subr.mxu0 0.0
    %892 = vmatpush1.msra.mxu0 0.0
    %893 = vmatprep.subr.mxu0 0.0
    %894 = vmatpush1.msra.mxu0 0.0
    %895 = vmatprep.subr.mxu0 0.0
    %896 = vmatpush1.msra.mxu0 0.0
    %897 = vmatprep.subr.mxu0 0.0
    %898 = vmatpush1.msra.mxu0 0.0
    %899 = vmatprep.subr.mxu0 0.0
    %900 = vmatpush1.msra.mxu0 0.0
    %901 = vmatprep.subr.mxu0 0.0
    %902 = vmatpush1.msra.mxu0 0.0
    %903 = vmatprep.subr.mxu0 0.0
    %904 = vmatpush1.msra.mxu0 0.0
    %905 = vmatprep.subr.mxu0 0.0
    %906 = vmatpush1.msra.mxu0 0.0
    %907 = vmatprep.subr.mxu0 0.0
    %908 = vmatpush1.msra.mxu0 %v187
    %909 = vmatprep.subr.mxu0 0.0
    %910 = vmatpush1.msra.mxu0 %v186
    %911 = vmatprep.subr.mxu0 0.0
    %912 = vmatpush2.msra.mxu0 0.0
    %913 = vmatprep.subr.mxu0 0.0
    %914 = vmatpush2.msra.mxu0 0.0
    %915 = vmatprep.subr.mxu0 0.0
    %916 = vmatpush2.msra.mxu0 0.0
    %917 = vmatprep.subr.mxu0 0.0
    %918 = vmatpush2.msra.mxu0 0.0
    %919 = vmatprep.subr.mxu0 0.0
    %920 = vmatpush2.msra.mxu0 0.0
    %921 = vmatprep.subr.mxu0 0.0
    %922 = vmatpush2.msra.mxu0 0.0
    %923 = vmatprep.subr.mxu0 0.0
    %924 = vmatpush2.msra.mxu0 0.0
    %925 = vmatprep.subr.mxu0 0.0
    %926 = vmatpush2.msra.mxu0 0.0
    %927 = vmatprep.subr.mxu0 0.0
    %928 = vmatpush2.msra.mxu0 0.0
    %929 = vmatprep.subr.mxu0 0.0
    %930 = vmatpush2.msra.mxu0 0.0
    %931 = vmatprep.subr.mxu0 0.0
    %932 = vmatpush2.msra.mxu0 0.0
    %933 = vmatprep.subr.mxu0 0.0
    %934 = vmatpush2.msra.mxu0 0.0
    %935 = vmatprep.subr.mxu0 0.0
    %936 = vmatpush2.msra.mxu0 0.0
    %937 = vmatprep.subr.mxu0 0.0
    %938 = vmatpush2.msra.mxu0 0.0
    %939 = vmatprep.subr.mxu0 0.0
    %940 = vmatpush2.msra.mxu0 0.0
    %941 = vmatprep.subr.mxu0 0.0
    %942 = vmatpush2.msra.mxu0 0.0
    %943 = vmatprep.mubr.f32.mxu0 0.0
    %944 = vmatmul.mubr.f32.gmra.mxu0 %v877
    %v945 = vpop.f32.mrf.mxu0
    %v946 = vadd.f32 0.0, %v945
    %v947 = vpop.f32.mrf.mxu0
    %948 = vdwg.mxu0
    %v950 = vsel %vm364, %v340, 0
    %952 = vmatprep.subr.mxu0 0.0
    %953 = vmatpush1.msra.mxu0 0.0
    %954 = vmatprep.subr.mxu0 0.0
    %955 = vmatpush1.msra.mxu0 0.0
    %956 = vmatprep.subr.mxu0 0.0
    %957 = vmatpush1.msra.mxu0 0.0
    %958 = vmatprep.subr.mxu0 0.0
    %959 = vmatpush1.msra.mxu0 0.0
    %960 = vmatprep.subr.mxu0 0.0
    %961 = vmatpush1.msra.mxu0 0.0
    %962 = vmatprep.subr.mxu0 0.0
    %963 = vmatpush1.msra.mxu0 0.0
    %964 = vmatprep.subr.mxu0 0.0
    %965 = vmatpush1.msra.mxu0 0.0
    %966 = vmatprep.subr.mxu0 0.0
    %967 = vmatpush1.msra.mxu0 0.0
    %968 = vmatprep.subr.mxu0 0.0
    %969 = vmatpush1.msra.mxu0 0.0
    %970 = vmatprep.subr.mxu0 0.0
    %971 = vmatpush1.msra.mxu0 0.0
    %972 = vmatprep.subr.mxu0 0.0
    %973 = vmatpush1.msra.mxu0 0.0
    %974 = vmatprep.subr.mxu0 0.0
    %975 = vmatpush1.msra.mxu0 0.0
    %976 = vmatprep.subr.mxu0 0.0
    %977 = vmatpush1.msra.mxu0 0.0
    %978 = vmatprep.subr.mxu0 0.0
    %979 = vmatpush1.msra.mxu0 0.0
    %980 = vmatprep.subr.mxu0 0.0
    %981 = vmatpush1.msra.mxu0 %v189
    %982 = vmatprep.subr.mxu0 0.0
    %983 = vmatpush1.msra.mxu0 %v188
    %984 = vmatprep.subr.mxu0 0.0
    %985 = vmatpush2.msra.mxu0 0.0
    %986 = vmatprep.subr.mxu0 0.0
    %987 = vmatpush2.msra.mxu0 0.0
    %988 = vmatprep.subr.mxu0 0.0
    %989 = vmatpush2.msra.mxu0 0.0
    %990 = vmatprep.subr.mxu0 0.0
    %991 = vmatpush2.msra.mxu0 0.0
    %992 = vmatprep.subr.mxu0 0.0
    %993 = vmatpush2.msra.mxu0 0.0
    %994 = vmatprep.subr.mxu0 0.0
    %995 = vmatpush2.msra.mxu0 0.0
    %996 = vmatprep.subr.mxu0 0.0
    %997 = vmatpush2.msra.mxu0 0.0
    %998 = vmatprep.subr.mxu0 0.0
    %999 = vmatpush2.msra.mxu0 0.0
    %1000 = vmatprep.subr.mxu0 0.0
    %1001 = vmatpush2.msra.mxu0 0.0
    %1002 = vmatprep.subr.mxu0 0.0
    %1003 = vmatpush2.msra.mxu0 0.0
    %1004 = vmatprep.subr.mxu0 0.0
    %1005 = vmatpush2.msra.mxu0 0.0
    %1006 = vmatprep.subr.mxu0 0.0
    %1007 = vmatpush2.msra.mxu0 0.0
    %1008 = vmatprep.subr.mxu0 0.0
    %1009 = vmatpush2.msra.mxu0 0.0
    %1010 = vmatprep.subr.mxu0 0.0
    %1011 = vmatpush2.msra.mxu0 0.0
    %1012 = vmatprep.subr.mxu0 0.0
    %1013 = vmatpush2.msra.mxu0 0.0
    %1014 = vmatprep.subr.mxu0 0.0
    %1015 = vmatpush2.msra.mxu0 0.0
    %1016 = vmatprep.mubr.f32.mxu0 0.0
    %1017 = vmatmul.mubr.f32.gmra.mxu0 %v950
    %v1018 = vpop.f32.mrf.mxu0
    %v1019 = vadd.f32 0.0, %v1018
    %v1020 = vpop.f32.mrf.mxu0
    %1021 = vdwg.mxu0
    %v1023 = vsel %vm364, %v341, 0
    %1025 = vmatprep.subr.mxu0 0.0
    %1026 = vmatpush1.msra.mxu0 0.0
    %1027 = vmatprep.subr.mxu0 0.0
    %1028 = vmatpush1.msra.mxu0 0.0
    %1029 = vmatprep.subr.mxu0 0.0
    %1030 = vmatpush1.msra.mxu0 0.0
    %1031 = vmatprep.subr.mxu0 0.0
    %1032 = vmatpush1.msra.mxu0 0.0
    %1033 = vmatprep.subr.mxu0 0.0
    %1034 = vmatpush1.msra.mxu0 0.0
    %1035 = vmatprep.subr.mxu0 0.0
    %1036 = vmatpush1.msra.mxu0 0.0
    %1037 = vmatprep.subr.mxu0 0.0
    %1038 = vmatpush1.msra.mxu0 0.0
    %1039 = vmatprep.subr.mxu0 0.0
    %1040 = vmatpush1.msra.mxu0 0.0
    %1041 = vmatprep.subr.mxu0 0.0
    %1042 = vmatpush1.msra.mxu0 0.0
    %1043 = vmatprep.subr.mxu0 0.0
    %1044 = vmatpush1.msra.mxu0 0.0
    %1045 = vmatprep.subr.mxu0 0.0
    %1046 = vmatpush1.msra.mxu0 0.0
    %1047 = vmatprep.subr.mxu0 0.0
    %1048 = vmatpush1.msra.mxu0 0.0
    %1049 = vmatprep.subr.mxu0 0.0
    %1050 = vmatpush1.msra.mxu0 0.0
    %1051 = vmatprep.subr.mxu0 0.0
    %1052 = vmatpush1.msra.mxu0 0.0
    %1053 = vmatprep.subr.mxu0 0.0
    %1054 = vmatpush1.msra.mxu0 %v191
    %1055 = vmatprep.subr.mxu0 0.0
    %1056 = vmatpush1.msra.mxu0 %v190
    %1057 = vmatprep.subr.mxu0 0.0
    %1058 = vmatpush2.msra.mxu0 0.0
    %1059 = vmatprep.subr.mxu0 0.0
    %1060 = vmatpush2.msra.mxu0 0.0
    %1061 = vmatprep.subr.mxu0 0.0
    %1062 = vmatpush2.msra.mxu0 0.0
    %1063 = vmatprep.subr.mxu0 0.0
    %1064 = vmatpush2.msra.mxu0 0.0
    %1065 = vmatprep.subr.mxu0 0.0
    %1066 = vmatpush2.msra.mxu0 0.0
    %1067 = vmatprep.subr.mxu0 0.0
    %1068 = vmatpush2.msra.mxu0 0.0
    %1069 = vmatprep.subr.mxu0 0.0
    %1070 = vmatpush2.msra.mxu0 0.0
    %1071 = vmatprep.subr.mxu0 0.0
    %1072 = vmatpush2.msra.mxu0 0.0
    %1073 = vmatprep.subr.mxu0 0.0
    %1074 = vmatpush2.msra.mxu0 0.0
    %1075 = vmatprep.subr.mxu0 0.0
    %1076 = vmatpush2.msra.mxu0 0.0
    %1077 = vmatprep.subr.mxu0 0.0
    %1078 = vmatpush2.msra.mxu0 0.0
    %1079 = vmatprep.subr.mxu0 0.0
    %1080 = vmatpush2.msra.mxu0 0.0
    %1081 = vmatprep.subr.mxu0 0.0
    %1082 = vmatpush2.msra.mxu0 0.0
    %1083 = vmatprep.subr.mxu0 0.0
    %1084 = vmatpush2.msra.mxu0 0.0
    %1085 = vmatprep.subr.mxu0 0.0
    %1086 = vmatpush2.msra.mxu0 0.0
    %1087 = vmatprep.subr.mxu0 0.0
    %1088 = vmatpush2.msra.mxu0 0.0
    %1089 = vmatprep.mubr.f32.mxu0 0.0
    %1090 = vmatmul.mubr.f32.gmra.mxu0 %v1023
    %v1091 = vpop.f32.mrf.mxu0
    %v1092 = vadd.f32 0.0, %v1091
    %v1093 = vpop.f32.mrf.mxu0
    %1094 = vdwg.mxu0
    %v1096 = vsel %vm364, %v342, 0
    %1098 = vmatprep.subr.mxu0 0.0
    %1099 = vmatpush1.msra.mxu0 0.0
    %1100 = vmatprep.subr.mxu0 0.0
    %1101 = vmatpush1.msra.mxu0 0.0
    %1102 = vmatprep.subr.mxu0 0.0
    %1103 = vmatpush1.msra.mxu0 0.0
    %1104 = vmatprep.subr.mxu0 0.0
    %1105 = vmatpush1.msra.mxu0 0.0
    %1106 = vmatprep.subr.mxu0 0.0
    %1107 = vmatpush1.msra.mxu0 0.0
    %1108 = vmatprep.subr.mxu0 0.0
    %1109 = vmatpush1.msra.mxu0 0.0
    %1110 = vmatprep.subr.mxu0 0.0
    %1111 = vmatpush1.msra.mxu0 0.0
    %1112 = vmatprep.subr.mxu0 0.0
    %1113 = vmatpush1.msra.mxu0 0.0
    %1114 = vmatprep.subr.mxu0 0.0
    %1115 = vmatpush1.msra.mxu0 0.0
    %1116 = vmatprep.subr.mxu0 0.0
    %1117 = vmatpush1.msra.mxu0 0.0
    %1118 = vmatprep.subr.mxu0 0.0
    %1119 = vmatpush1.msra.mxu0 0.0
    %1120 = vmatprep.subr.mxu0 0.0
    %1121 = vmatpush1.msra.mxu0 0.0
    %1122 = vmatprep.subr.mxu0 0.0
    %1123 = vmatpush1.msra.mxu0 0.0
    %1124 = vmatprep.subr.mxu0 0.0
    %1125 = vmatpush1.msra.mxu0 0.0
    %1126 = vmatprep.subr.mxu0 0.0
    %1127 = vmatpush1.msra.mxu0 %v193
    %1128 = vmatprep.subr.mxu0 0.0
    %1129 = vmatpush1.msra.mxu0 %v192
    %1130 = vmatprep.subr.mxu0 0.0
    %1131 = vmatpush2.msra.mxu0 0.0
    %1132 = vmatprep.subr.mxu0 0.0
    %1133 = vmatpush2.msra.mxu0 0.0
    %1134 = vmatprep.subr.mxu0 0.0
    %1135 = vmatpush2.msra.mxu0 0.0
    %1136 = vmatprep.subr.mxu0 0.0
    %1137 = vmatpush2.msra.mxu0 0.0
    %1138 = vmatprep.subr.mxu0 0.0
    %1139 = vmatpush2.msra.mxu0 0.0
    %1140 = vmatprep.subr.mxu0 0.0
    %1141 = vmatpush2.msra.mxu0 0.0
    %1142 = vmatprep.subr.mxu0 0.0
    %1143 = vmatpush2.msra.mxu0 0.0
    %1144 = vmatprep.subr.mxu0 0.0
    %1145 = vmatpush2.msra.mxu0 0.0
    %1146 = vmatprep.subr.mxu0 0.0
    %1147 = vmatpush2.msra.mxu0 0.0
    %1148 = vmatprep.subr.mxu0 0.0
    %1149 = vmatpush2.msra.mxu0 0.0
    %1150 = vmatprep.subr.mxu0 0.0
    %1151 = vmatpush2.msra.mxu0 0.0
    %1152 = vmatprep.subr.mxu0 0.0
    %1153 = vmatpush2.msra.mxu0 0.0
    %1154 = vmatprep.subr.mxu0 0.0
    %1155 = vmatpush2.msra.mxu0 0.0
    %1156 = vmatprep.subr.mxu0 0.0
    %1157 = vmatpush2.msra.mxu0 0.0
    %1158 = vmatprep.subr.mxu0 0.0
    %1159 = vmatpush2.msra.mxu0 0.0
    %1160 = vmatprep.subr.mxu0 0.0
    %1161 = vmatpush2.msra.mxu0 0.0
    %1162 = vmatprep.mubr.f32.mxu0 0.0
    %1163 = vmatmul.mubr.f32.gmra.mxu0 %v1096
    %v1164 = vpop.f32.mrf.mxu0
    %v1165 = vadd.f32 0.0, %v1164
    %v1166 = vpop.f32.mrf.mxu0
    %1167 = vdwg.mxu0
    %v1169 = vsel %vm364, %v343, 0
    %1171 = vmatprep.subr.mxu0 0.0
    %1172 = vmatpush1.msra.mxu0 0.0
    %1173 = vmatprep.subr.mxu0 0.0
    %1174 = vmatpush1.msra.mxu0 0.0
    %1175 = vmatprep.subr.mxu0 0.0
    %1176 = vmatpush1.msra.mxu0 0.0
    %1177 = vmatprep.subr.mxu0 0.0
    %1178 = vmatpush1.msra.mxu0 0.0
    %1179 = vmatprep.subr.mxu0 0.0
    %1180 = vmatpush1.msra.mxu0 0.0
    %1181 = vmatprep.subr.mxu0 0.0
    %1182 = vmatpush1.msra.mxu0 0.0
    %1183 = vmatprep.subr.mxu0 0.0
    %1184 = vmatpush1.msra.mxu0 0.0
    %1185 = vmatprep.subr.mxu0 0.0
    %1186 = vmatpush1.msra.mxu0 0.0
    %1187 = vmatprep.subr.mxu0 0.0
    %1188 = vmatpush1.msra.mxu0 0.0
    %1189 = vmatprep.subr.mxu0 0.0
    %1190 = vmatpush1.msra.mxu0 0.0
    %1191 = vmatprep.subr.mxu0 0.0
    %1192 = vmatpush1.msra.mxu0 0.0
    %1193 = vmatprep.subr.mxu0 0.0
    %1194 = vmatpush1.msra.mxu0 0.0
    %1195 = vmatprep.subr.mxu0 0.0
    %1196 = vmatpush1.msra.mxu0 0.0
    %1197 = vmatprep.subr.mxu0 0.0
    %1198 = vmatpush1.msra.mxu0 0.0
    %1199 = vmatprep.subr.mxu0 0.0
    %1200 = vmatpush1.msra.mxu0 %v195
    %1201 = vmatprep.subr.mxu0 0.0
    %1202 = vmatpush1.msra.mxu0 %v194
    %1203 = vmatprep.subr.mxu0 0.0
    %1204 = vmatpush2.msra.mxu0 0.0
    %1205 = vmatprep.subr.mxu0 0.0
    %1206 = vmatpush2.msra.mxu0 0.0
    %1207 = vmatprep.subr.mxu0 0.0
    %1208 = vmatpush2.msra.mxu0 0.0
    %1209 = vmatprep.subr.mxu0 0.0
    %1210 = vmatpush2.msra.mxu0 0.0
    %1211 = vmatprep.subr.mxu0 0.0
    %1212 = vmatpush2.msra.mxu0 0.0
    %1213 = vmatprep.subr.mxu0 0.0
    %1214 = vmatpush2.msra.mxu0 0.0
    %1215 = vmatprep.subr.mxu0 0.0
    %1216 = vmatpush2.msra.mxu0 0.0
    %1217 = vmatprep.subr.mxu0 0.0
    %1218 = vmatpush2.msra.mxu0 0.0
    %1219 = vmatprep.subr.mxu0 0.0
    %1220 = vmatpush2.msra.mxu0 0.0
    %1221 = vmatprep.subr.mxu0 0.0
    %1222 = vmatpush2.msra.mxu0 0.0
    %1223 = vmatprep.subr.mxu0 0.0
    %1224 = vmatpush2.msra.mxu0 0.0
    %1225 = vmatprep.subr.mxu0 0.0
    %1226 = vmatpush2.msra.mxu0 0.0
    %1227 = vmatprep.subr.mxu0 0.0
    %1228 = vmatpush2.msra.mxu0 0.0
    %1229 = vmatprep.subr.mxu0 0.0
    %1230 = vmatpush2.msra.mxu0 0.0
    %1231 = vmatprep.subr.mxu0 0.0
    %1232 = vmatpush2.msra.mxu0 0.0
    %1233 = vmatprep.subr.mxu0 0.0
    %1234 = vmatpush2.msra.mxu0 0.0
    %1235 = vmatprep.mubr.f32.mxu0 0.0
    %1236 = vmatmul.mubr.f32.gmra.mxu0 %v1169
    %v1237 = vpop.f32.mrf.mxu0
    %v1238 = vadd.f32 0.0, %v1237
    %v1239 = vpop.f32.mrf.mxu0
    %1240 = vdwg.mxu0
    %v1242 = vsel %vm364, %v344, 0
    %1244 = vmatprep.subr.mxu0 0.0
    %1245 = vmatpush1.msra.mxu0 0.0
    %1246 = vmatprep.subr.mxu0 0.0
    %1247 = vmatpush1.msra.mxu0 0.0
    %1248 = vmatprep.subr.mxu0 0.0
    %1249 = vmatpush1.msra.mxu0 0.0
    %1250 = vmatprep.subr.mxu0 0.0
    %1251 = vmatpush1.msra.mxu0 0.0
    %1252 = vmatprep.subr.mxu0 0.0
    %1253 = vmatpush1.msra.mxu0 0.0
    %1254 = vmatprep.subr.mxu0 0.0
    %1255 = vmatpush1.msra.mxu0 0.0
    %1256 = vmatprep.subr.mxu0 0.0
    %1257 = vmatpush1.msra.mxu0 0.0
    %1258 = vmatprep.subr.mxu0 0.0
    %1259 = vmatpush1.msra.mxu0 0.0
    %1260 = vmatprep.subr.mxu0 0.0
    %1261 = vmatpush1.msra.mxu0 0.0
    %1262 = vmatprep.subr.mxu0 0.0
    %1263 = vmatpush1.msra.mxu0 0.0
    %1264 = vmatprep.subr.mxu0 0.0
    %1265 = vmatpush1.msra.mxu0 0.0
    %1266 = vmatprep.subr.mxu0 0.0
    %1267 = vmatpush1.msra.mxu0 0.0
    %1268 = vmatprep.subr.mxu0 0.0
    %1269 = vmatpush1.msra.mxu0 0.0
    %1270 = vmatprep.subr.mxu0 0.0
    %1271 = vmatpush1.msra.mxu0 0.0
    %1272 = vmatprep.subr.mxu0 0.0
    %1273 = vmatpush1.msra.mxu0 %v197
    %1274 = vmatprep.subr.mxu0 0.0
    %1275 = vmatpush1.msra.mxu0 %v196
    %1276 = vmatprep.subr.mxu0 0.0
    %1277 = vmatpush2.msra.mxu0 0.0
    %1278 = vmatprep.subr.mxu0 0.0
    %1279 = vmatpush2.msra.mxu0 0.0
    %1280 = vmatprep.subr.mxu0 0.0
    %1281 = vmatpush2.msra.mxu0 0.0
    %1282 = vmatprep.subr.mxu0 0.0
    %1283 = vmatpush2.msra.mxu0 0.0
    %1284 = vmatprep.subr.mxu0 0.0
    %1285 = vmatpush2.msra.mxu0 0.0
    %1286 = vmatprep.subr.mxu0 0.0
    %1287 = vmatpush2.msra.mxu0 0.0
    %1288 = vmatprep.subr.mxu0 0.0
    %1289 = vmatpush2.msra.mxu0 0.0
    %1290 = vmatprep.subr.mxu0 0.0
    %1291 = vmatpush2.msra.mxu0 0.0
    %1292 = vmatprep.subr.mxu0 0.0
    %1293 = vmatpush2.msra.mxu0 0.0
    %1294 = vmatprep.subr.mxu0 0.0
    %1295 = vmatpush2.msra.mxu0 0.0
    %1296 = vmatprep.subr.mxu0 0.0
    %1297 = vmatpush2.msra.mxu0 0.0
    %1298 = vmatprep.subr.mxu0 0.0
    %1299 = vmatpush2.msra.mxu0 0.0
    %1300 = vmatprep.subr.mxu0 0.0
    %1301 = vmatpush2.msra.mxu0 0.0
    %1302 = vmatprep.subr.mxu0 0.0
    %1303 = vmatpush2.msra.mxu0 0.0
    %1304 = vmatprep.subr.mxu0 0.0
    %1305 = vmatpush2.msra.mxu0 0.0
    %1306 = vmatprep.subr.mxu0 0.0
    %1307 = vmatpush2.msra.mxu0 0.0
    %1308 = vmatprep.mubr.f32.mxu0 0.0
    %1309 = vmatmul.mubr.f32.gmra.mxu0 %v1242
    %v1310 = vpop.f32.mrf.mxu0
    %v1311 = vadd.f32 0.0, %v1310
    %v1312 = vpop.f32.mrf.mxu0
    %1313 = vdwg.mxu0
    %v1315 = vsel %vm364, %v345, 0
    %1317 = vmatprep.subr.mxu0 0.0
    %1318 = vmatpush1.msra.mxu0 0.0
    %1319 = vmatprep.subr.mxu0 0.0
    %1320 = vmatpush1.msra.mxu0 0.0
    %1321 = vmatprep.subr.mxu0 0.0
    %1322 = vmatpush1.msra.mxu0 0.0
    %1323 = vmatprep.subr.mxu0 0.0
    %1324 = vmatpush1.msra.mxu0 0.0
    %1325 = vmatprep.subr.mxu0 0.0
    %1326 = vmatpush1.msra.mxu0 0.0
    %1327 = vmatprep.subr.mxu0 0.0
    %1328 = vmatpush1.msra.mxu0 0.0
    %1329 = vmatprep.subr.mxu0 0.0
    %1330 = vmatpush1.msra.mxu0 0.0
    %1331 = vmatprep.subr.mxu0 0.0
    %1332 = vmatpush1.msra.mxu0 0.0
    %1333 = vmatprep.subr.mxu0 0.0
    %1334 = vmatpush1.msra.mxu0 0.0
    %1335 = vmatprep.subr.mxu0 0.0
    %1336 = vmatpush1.msra.mxu0 0.0
    %1337 = vmatprep.subr.mxu0 0.0
    %1338 = vmatpush1.msra.mxu0 0.0
    %1339 = vmatprep.subr.mxu0 0.0
    %1340 = vmatpush1.msra.mxu0 0.0
    %1341 = vmatprep.subr.mxu0 0.0
    %1342 = vmatpush1.msra.mxu0 0.0
    %1343 = vmatprep.subr.mxu0 0.0
    %1344 = vmatpush1.msra.mxu0 0.0
    %1345 = vmatprep.subr.mxu0 0.0
    %1346 = vmatpush1.msra.mxu0 %v199
    %1347 = vmatprep.subr.mxu0 0.0
    %1348 = vmatpush1.msra.mxu0 %v198
    %1349 = vmatprep.subr.mxu0 0.0
    %1350 = vmatpush2.msra.mxu0 0.0
    %1351 = vmatprep.subr.mxu0 0.0
    %1352 = vmatpush2.msra.mxu0 0.0
    %1353 = vmatprep.subr.mxu0 0.0
    %1354 = vmatpush2.msra.mxu0 0.0
    %1355 = vmatprep.subr.mxu0 0.0
    %1356 = vmatpush2.msra.mxu0 0.0
    %1357 = vmatprep.subr.mxu0 0.0
    %1358 = vmatpush2.msra.mxu0 0.0
    %1359 = vmatprep.subr.mxu0 0.0
    %1360 = vmatpush2.msra.mxu0 0.0
    %1361 = vmatprep.subr.mxu0 0.0
    %1362 = vmatpush2.msra.mxu0 0.0
    %1363 = vmatprep.subr.mxu0 0.0
    %1364 = vmatpush2.msra.mxu0 0.0
    %1365 = vmatprep.subr.mxu0 0.0
    %1366 = vmatpush2.msra.mxu0 0.0
    %1367 = vmatprep.subr.mxu0 0.0
    %1368 = vmatpush2.msra.mxu0 0.0
    %1369 = vmatprep.subr.mxu0 0.0
    %1370 = vmatpush2.msra.mxu0 0.0
    %1371 = vmatprep.subr.mxu0 0.0
    %1372 = vmatpush2.msra.mxu0 0.0
    %1373 = vmatprep.subr.mxu0 0.0
    %1374 = vmatpush2.msra.mxu0 0.0
    %1375 = vmatprep.subr.mxu0 0.0
    %1376 = vmatpush2.msra.mxu0 0.0
    %1377 = vmatprep.subr.mxu0 0.0
    %1378 = vmatpush2.msra.mxu0 0.0
    %1379 = vmatprep.subr.mxu0 0.0
    %1380 = vmatpush2.msra.mxu0 0.0
    %1381 = vmatprep.mubr.f32.mxu0 0.0
    %1382 = vmatmul.mubr.f32.gmra.mxu0 %v1315
    %v1383 = vpop.f32.mrf.mxu0
    %v1384 = vadd.f32 0.0, %v1383
    %v1385 = vpop.f32.mrf.mxu0
    %1386 = vdwg.mxu0
    %v1388 = vsel %vm364, %v346, 0
    %1390 = vmatprep.subr.mxu0 0.0
    %1391 = vmatpush1.msra.mxu0 0.0
    %1392 = vmatprep.subr.mxu0 0.0
    %1393 = vmatpush1.msra.mxu0 0.0
    %1394 = vmatprep.subr.mxu0 0.0
    %1395 = vmatpush1.msra.mxu0 0.0
    %1396 = vmatprep.subr.mxu0 0.0
    %1397 = vmatpush1.msra.mxu0 0.0
    %1398 = vmatprep.subr.mxu0 0.0
    %1399 = vmatpush1.msra.mxu0 0.0
    %1400 = vmatprep.subr.mxu0 0.0
    %1401 = vmatpush1.msra.mxu0 0.0
    %1402 = vmatprep.subr.mxu0 0.0
    %1403 = vmatpush1.msra.mxu0 0.0
    %1404 = vmatprep.subr.mxu0 0.0
    %1405 = vmatpush1.msra.mxu0 0.0
    %1406 = vmatprep.subr.mxu0 0.0
    %1407 = vmatpush1.msra.mxu0 0.0
    %1408 = vmatprep.subr.mxu0 0.0
    %1409 = vmatpush1.msra.mxu0 0.0
    %1410 = vmatprep.subr.mxu0 0.0
    %1411 = vmatpush1.msra.mxu0 0.0
    %1412 = vmatprep.subr.mxu0 0.0
    %1413 = vmatpush1.msra.mxu0 0.0
    %1414 = vmatprep.subr.mxu0 0.0
    %1415 = vmatpush1.msra.mxu0 0.0
    %1416 = vmatprep.subr.mxu0 0.0
    %1417 = vmatpush1.msra.mxu0 0.0
    %1418 = vmatprep.subr.mxu0 0.0
    %1419 = vmatpush1.msra.mxu0 %v201
    %1420 = vmatprep.subr.mxu0 0.0
    %1421 = vmatpush1.msra.mxu0 %v200
    %1422 = vmatprep.subr.mxu0 0.0
    %1423 = vmatpush2.msra.mxu0 0.0
    %1424 = vmatprep.subr.mxu0 0.0
    %1425 = vmatpush2.msra.mxu0 0.0
    %1426 = vmatprep.subr.mxu0 0.0
    %1427 = vmatpush2.msra.mxu0 0.0
    %1428 = vmatprep.subr.mxu0 0.0
    %1429 = vmatpush2.msra.mxu0 0.0
    %1430 = vmatprep.subr.mxu0 0.0
    %1431 = vmatpush2.msra.mxu0 0.0
    %1432 = vmatprep.subr.mxu0 0.0
    %1433 = vmatpush2.msra.mxu0 0.0
    %1434 = vmatprep.subr.mxu0 0.0
    %1435 = vmatpush2.msra.mxu0 0.0
    %1436 = vmatprep.subr.mxu0 0.0
    %1437 = vmatpush2.msra.mxu0 0.0
    %1438 = vmatprep.subr.mxu0 0.0
    %1439 = vmatpush2.msra.mxu0 0.0
    %1440 = vmatprep.subr.mxu0 0.0
    %1441 = vmatpush2.msra.mxu0 0.0
    %1442 = vmatprep.subr.mxu0 0.0
    %1443 = vmatpush2.msra.mxu0 0.0
    %1444 = vmatprep.subr.mxu0 0.0
    %1445 = vmatpush2.msra.mxu0 0.0
    %1446 = vmatprep.subr.mxu0 0.0
    %1447 = vmatpush2.msra.mxu0 0.0
    %1448 = vmatprep.subr.mxu0 0.0
    %1449 = vmatpush2.msra.mxu0 0.0
    %1450 = vmatprep.subr.mxu0 0.0
    %1451 = vmatpush2.msra.mxu0 0.0
    %1452 = vmatprep.subr.mxu0 0.0
    %1453 = vmatpush2.msra.mxu0 0.0
    %1454 = vmatprep.mubr.f32.mxu0 0.0
    %1455 = vmatmul.mubr.f32.gmra.mxu0 %v1388
    %v1456 = vpop.f32.mrf.mxu0
    %v1457 = vadd.f32 0.0, %v1456
    %v1458 = vpop.f32.mrf.mxu0
    %1459 = vdwg.mxu0
    %v1461 = vsel %vm364, %v347, 0
    %1463 = vmatprep.subr.mxu0 0.0
    %1464 = vmatpush1.msra.mxu0 0.0
    %1465 = vmatprep.subr.mxu0 0.0
    %1466 = vmatpush1.msra.mxu0 0.0
    %1467 = vmatprep.subr.mxu0 0.0
    %1468 = vmatpush1.msra.mxu0 0.0
    %1469 = vmatprep.subr.mxu0 0.0
    %1470 = vmatpush1.msra.mxu0 0.0
    %1471 = vmatprep.subr.mxu0 0.0
    %1472 = vmatpush1.msra.mxu0 0.0
    %1473 = vmatprep.subr.mxu0 0.0
    %1474 = vmatpush1.msra.mxu0 0.0
    %1475 = vmatprep.subr.mxu0 0.0
    %1476 = vmatpush1.msra.mxu0 0.0
    %1477 = vmatprep.subr.mxu0 0.0
    %1478 = vmatpush1.msra.mxu0 0.0
    %1479 = vmatprep.subr.mxu0 0.0
    %1480 = vmatpush1.msra.mxu0 0.0
    %1481 = vmatprep.subr.mxu0 0.0
    %1482 = vmatpush1.msra.mxu0 0.0
    %1483 = vmatprep.subr.mxu0 0.0
    %1484 = vmatpush1.msra.mxu0 0.0
    %1485 = vmatprep.subr.mxu0 0.0
    %1486 = vmatpush1.msra.mxu0 0.0
    %1487 = vmatprep.subr.mxu0 0.0
    %1488 = vmatpush1.msra.mxu0 0.0
    %1489 = vmatprep.subr.mxu0 0.0
    %1490 = vmatpush1.msra.mxu0 0.0
    %1491 = vmatprep.subr.mxu0 0.0
    %1492 = vmatpush1.msra.mxu0 %v203
    %1493 = vmatprep.subr.mxu0 0.0
    %1494 = vmatpush1.msra.mxu0 %v202
    %1495 = vmatprep.subr.mxu0 0.0
    %1496 = vmatpush2.msra.mxu0 0.0
    %1497 = vmatprep.subr.mxu0 0.0
    %1498 = vmatpush2.msra.mxu0 0.0
    %1499 = vmatprep.subr.mxu0 0.0
    %1500 = vmatpush2.msra.mxu0 0.0
    %1501 = vmatprep.subr.mxu0 0.0
    %1502 = vmatpush2.msra.mxu0 0.0
    %1503 = vmatprep.subr.mxu0 0.0
    %1504 = vmatpush2.msra.mxu0 0.0
    %1505 = vmatprep.subr.mxu0 0.0
    %1506 = vmatpush2.msra.mxu0 0.0
    %1507 = vmatprep.subr.mxu0 0.0
    %1508 = vmatpush2.msra.mxu0 0.0
    %1509 = vmatprep.subr.mxu0 0.0
    %1510 = vmatpush2.msra.mxu0 0.0
    %1511 = vmatprep.subr.mxu0 0.0
    %1512 = vmatpush2.msra.mxu0 0.0
    %1513 = vmatprep.subr.mxu0 0.0
    %1514 = vmatpush2.msra.mxu0 0.0
    %1515 = vmatprep.subr.mxu0 0.0
    %1516 = vmatpush2.msra.mxu0 0.0
    %1517 = vmatprep.subr.mxu0 0.0
    %1518 = vmatpush2.msra.mxu0 0.0
    %1519 = vmatprep.subr.mxu0 0.0
    %1520 = vmatpush2.msra.mxu0 0.0
    %1521 = vmatprep.subr.mxu0 0.0
    %1522 = vmatpush2.msra.mxu0 0.0
    %1523 = vmatprep.subr.mxu0 0.0
    %1524 = vmatpush2.msra.mxu0 0.0
    %1525 = vmatprep.subr.mxu0 0.0
    %1526 = vmatpush2.msra.mxu0 0.0
    %1527 = vmatprep.mubr.f32.mxu0 0.0
    %1528 = vmatmul.mubr.f32.gmra.mxu0 %v1461
    %v1529 = vpop.f32.mrf.mxu0
    %v1530 = vadd.f32 0.0, %v1529
    %v1531 = vpop.f32.mrf.mxu0
    %1532 = vdwg.mxu0
    %v1534 = vsel %vm364, %v348, 0
    %1536 = vmatprep.subr.mxu0 0.0
    %1537 = vmatpush1.msra.mxu0 0.0
    %1538 = vmatprep.subr.mxu0 0.0
    %1539 = vmatpush1.msra.mxu0 0.0
    %1540 = vmatprep.subr.mxu0 0.0
    %1541 = vmatpush1.msra.mxu0 0.0
    %1542 = vmatprep.subr.mxu0 0.0
    %1543 = vmatpush1.msra.mxu0 0.0
    %1544 = vmatprep.subr.mxu0 0.0
    %1545 = vmatpush1.msra.mxu0 0.0
    %1546 = vmatprep.subr.mxu0 0.0
    %1547 = vmatpush1.msra.mxu0 0.0
    %1548 = vmatprep.subr.mxu0 0.0
    %1549 = vmatpush1.msra.mxu0 0.0
    %1550 = vmatprep.subr.mxu0 0.0
    %1551 = vmatpush1.msra.mxu0 0.0
    %1552 = vmatprep.subr.mxu0 0.0
    %1553 = vmatpush1.msra.mxu0 0.0
    %1554 = vmatprep.subr.mxu0 0.0
    %1555 = vmatpush1.msra.mxu0 0.0
    %1556 = vmatprep.subr.mxu0 0.0
    %1557 = vmatpush1.msra.mxu0 0.0
    %1558 = vmatprep.subr.mxu0 0.0
    %1559 = vmatpush1.msra.mxu0 0.0
    %1560 = vmatprep.subr.mxu0 0.0
    %1561 = vmatpush1.msra.mxu0 0.0
    %1562 = vmatprep.subr.mxu0 0.0
    %1563 = vmatpush1.msra.mxu0 0.0
    %1564 = vmatprep.subr.mxu0 0.0
    %1565 = vmatpush1.msra.mxu0 %v205
    %1566 = vmatprep.subr.mxu0 0.0
    %1567 = vmatpush1.msra.mxu0 %v204
    %1568 = vmatprep.subr.mxu0 0.0
    %1569 = vmatpush2.msra.mxu0 0.0
    %1570 = vmatprep.subr.mxu0 0.0
    %1571 = vmatpush2.msra.mxu0 0.0
    %1572 = vmatprep.subr.mxu0 0.0
    %1573 = vmatpush2.msra.mxu0 0.0
    %1574 = vmatprep.subr.mxu0 0.0
    %1575 = vmatpush2.msra.mxu0 0.0
    %1576 = vmatprep.subr.mxu0 0.0
    %1577 = vmatpush2.msra.mxu0 0.0
    %1578 = vmatprep.subr.mxu0 0.0
    %1579 = vmatpush2.msra.mxu0 0.0
    %1580 = vmatprep.subr.mxu0 0.0
    %1581 = vmatpush2.msra.mxu0 0.0
    %1582 = vmatprep.subr.mxu0 0.0
    %1583 = vmatpush2.msra.mxu0 0.0
    %1584 = vmatprep.subr.mxu0 0.0
    %1585 = vmatpush2.msra.mxu0 0.0
    %1586 = vmatprep.subr.mxu0 0.0
    %1587 = vmatpush2.msra.mxu0 0.0
    %1588 = vmatprep.subr.mxu0 0.0
    %1589 = vmatpush2.msra.mxu0 0.0
    %1590 = vmatprep.subr.mxu0 0.0
    %1591 = vmatpush2.msra.mxu0 0.0
    %1592 = vmatprep.subr.mxu0 0.0
    %1593 = vmatpush2.msra.mxu0 0.0
    %1594 = vmatprep.subr.mxu0 0.0
    %1595 = vmatpush2.msra.mxu0 0.0
    %1596 = vmatprep.subr.mxu0 0.0
    %1597 = vmatpush2.msra.mxu0 0.0
    %1598 = vmatprep.subr.mxu0 0.0
    %1599 = vmatpush2.msra.mxu0 0.0
    %1600 = vmatprep.mubr.f32.mxu0 0.0
    %1601 = vmatmul.mubr.f32.gmra.mxu0 %v1534
    %v1602 = vpop.f32.mrf.mxu0
    %v1603 = vadd.f32 0.0, %v1602
    %v1604 = vpop.f32.mrf.mxu0
    %1605 = vdwg.mxu0
    %v1607 = vsel %vm364, %v349, 0
    %1609 = vmatprep.subr.mxu0 0.0
    %1610 = vmatpush1.msra.mxu0 0.0
    %1611 = vmatprep.subr.mxu0 0.0
    %1612 = vmatpush1.msra.mxu0 0.0
    %1613 = vmatprep.subr.mxu0 0.0
    %1614 = vmatpush1.msra.mxu0 0.0
    %1615 = vmatprep.subr.mxu0 0.0
    %1616 = vmatpush1.msra.mxu0 0.0
    %1617 = vmatprep.subr.mxu0 0.0
    %1618 = vmatpush1.msra.mxu0 0.0
    %1619 = vmatprep.subr.mxu0 0.0
    %1620 = vmatpush1.msra.mxu0 0.0
    %1621 = vmatprep.subr.mxu0 0.0
    %1622 = vmatpush1.msra.mxu0 0.0
    %1623 = vmatprep.subr.mxu0 0.0
    %1624 = vmatpush1.msra.mxu0 0.0
    %1625 = vmatprep.subr.mxu0 0.0
    %1626 = vmatpush1.msra.mxu0 0.0
    %1627 = vmatprep.subr.mxu0 0.0
    %1628 = vmatpush1.msra.mxu0 0.0
    %1629 = vmatprep.subr.mxu0 0.0
    %1630 = vmatpush1.msra.mxu0 0.0
    %1631 = vmatprep.subr.mxu0 0.0
    %1632 = vmatpush1.msra.mxu0 0.0
    %1633 = vmatprep.subr.mxu0 0.0
    %1634 = vmatpush1.msra.mxu0 0.0
    %1635 = vmatprep.subr.mxu0 0.0
    %1636 = vmatpush1.msra.mxu0 0.0
    %1637 = vmatprep.subr.mxu0 0.0
    %1638 = vmatpush1.msra.mxu0 %v207
    %1639 = vmatprep.subr.mxu0 0.0
    %1640 = vmatpush1.msra.mxu0 %v206
    %1641 = vmatprep.subr.mxu0 0.0
    %1642 = vmatpush2.msra.mxu0 0.0
    %1643 = vmatprep.subr.mxu0 0.0
    %1644 = vmatpush2.msra.mxu0 0.0
    %1645 = vmatprep.subr.mxu0 0.0
    %1646 = vmatpush2.msra.mxu0 0.0
    %1647 = vmatprep.subr.mxu0 0.0
    %1648 = vmatpush2.msra.mxu0 0.0
    %1649 = vmatprep.subr.mxu0 0.0
    %1650 = vmatpush2.msra.mxu0 0.0
    %1651 = vmatprep.subr.mxu0 0.0
    %1652 = vmatpush2.msra.mxu0 0.0
    %1653 = vmatprep.subr.mxu0 0.0
    %1654 = vmatpush2.msra.mxu0 0.0
    %1655 = vmatprep.subr.mxu0 0.0
    %1656 = vmatpush2.msra.mxu0 0.0
    %1657 = vmatprep.subr.mxu0 0.0
    %1658 = vmatpush2.msra.mxu0 0.0
    %1659 = vmatprep.subr.mxu0 0.0
    %1660 = vmatpush2.msra.mxu0 0.0
    %1661 = vmatprep.subr.mxu0 0.0
    %1662 = vmatpush2.msra.mxu0 0.0
    %1663 = vmatprep.subr.mxu0 0.0
    %1664 = vmatpush2.msra.mxu0 0.0
    %1665 = vmatprep.subr.mxu0 0.0
    %1666 = vmatpush2.msra.mxu0 0.0
    %1667 = vmatprep.subr.mxu0 0.0
    %1668 = vmatpush2.msra.mxu0 0.0
    %1669 = vmatprep.subr.mxu0 0.0
    %1670 = vmatpush2.msra.mxu0 0.0
    %1671 = vmatprep.subr.mxu0 0.0
    %1672 = vmatpush2.msra.mxu0 0.0
    %1673 = vmatprep.mubr.f32.mxu0 0.0
    %1674 = vmatmul.mubr.f32.gmra.mxu0 %v1607
    %v1675 = vpop.f32.mrf.mxu0
    %v1676 = vadd.f32 0.0, %v1675
    %v1677 = vpop.f32.mrf.mxu0
    %1678 = vdwg.mxu0
    %v1680 = vsel %vm364, %v350, 0
    %1682 = vmatprep.subr.mxu0 0.0
    %1683 = vmatpush1.msra.mxu0 0.0
    %1684 = vmatprep.subr.mxu0 0.0
    %1685 = vmatpush1.msra.mxu0 0.0
    %1686 = vmatprep.subr.mxu0 0.0
    %1687 = vmatpush1.msra.mxu0 0.0
    %1688 = vmatprep.subr.mxu0 0.0
    %1689 = vmatpush1.msra.mxu0 0.0
    %1690 = vmatprep.subr.mxu0 0.0
    %1691 = vmatpush1.msra.mxu0 0.0
    %1692 = vmatprep.subr.mxu0 0.0
    %1693 = vmatpush1.msra.mxu0 0.0
    %1694 = vmatprep.subr.mxu0 0.0
    %1695 = vmatpush1.msra.mxu0 0.0
    %1696 = vmatprep.subr.mxu0 0.0
    %1697 = vmatpush1.msra.mxu0 0.0
    %1698 = vmatprep.subr.mxu0 0.0
    %1699 = vmatpush1.msra.mxu0 0.0
    %1700 = vmatprep.subr.mxu0 0.0
    %1701 = vmatpush1.msra.mxu0 0.0
    %1702 = vmatprep.subr.mxu0 0.0
    %1703 = vmatpush1.msra.mxu0 0.0
    %1704 = vmatprep.subr.mxu0 0.0
    %1705 = vmatpush1.msra.mxu0 0.0
    %1706 = vmatprep.subr.mxu0 0.0
    %1707 = vmatpush1.msra.mxu0 0.0
    %1708 = vmatprep.subr.mxu0 0.0
    %1709 = vmatpush1.msra.mxu0 0.0
    %1710 = vmatprep.subr.mxu0 0.0
    %1711 = vmatpush1.msra.mxu0 %v209
    %1712 = vmatprep.subr.mxu0 0.0
    %1713 = vmatpush1.msra.mxu0 %v208
    %1714 = vmatprep.subr.mxu0 0.0
    %1715 = vmatpush2.msra.mxu0 0.0
    %1716 = vmatprep.subr.mxu0 0.0
    %1717 = vmatpush2.msra.mxu0 0.0
    %1718 = vmatprep.subr.mxu0 0.0
    %1719 = vmatpush2.msra.mxu0 0.0
    %1720 = vmatprep.subr.mxu0 0.0
    %1721 = vmatpush2.msra.mxu0 0.0
    %1722 = vmatprep.subr.mxu0 0.0
    %1723 = vmatpush2.msra.mxu0 0.0
    %1724 = vmatprep.subr.mxu0 0.0
    %1725 = vmatpush2.msra.mxu0 0.0
    %1726 = vmatprep.subr.mxu0 0.0
    %1727 = vmatpush2.msra.mxu0 0.0
    %1728 = vmatprep.subr.mxu0 0.0
    %1729 = vmatpush2.msra.mxu0 0.0
    %1730 = vmatprep.subr.mxu0 0.0
    %1731 = vmatpush2.msra.mxu0 0.0
    %1732 = vmatprep.subr.mxu0 0.0
    %1733 = vmatpush2.msra.mxu0 0.0
    %1734 = vmatprep.subr.mxu0 0.0
    %1735 = vmatpush2.msra.mxu0 0.0
    %1736 = vmatprep.subr.mxu0 0.0
    %1737 = vmatpush2.msra.mxu0 0.0
    %1738 = vmatprep.subr.mxu0 0.0
    %1739 = vmatpush2.msra.mxu0 0.0
    %1740 = vmatprep.subr.mxu0 0.0
    %1741 = vmatpush2.msra.mxu0 0.0
    %1742 = vmatprep.subr.mxu0 0.0
    %1743 = vmatpush2.msra.mxu0 0.0
    %1744 = vmatprep.subr.mxu0 0.0
    %1745 = vmatpush2.msra.mxu0 0.0
    %1746 = vmatprep.mubr.f32.mxu0 0.0
    %1747 = vmatmul.mubr.f32.gmra.mxu0 %v1680
    %v1748 = vpop.f32.mrf.mxu0
    %v1749 = vadd.f32 0.0, %v1748
    %v1750 = vpop.f32.mrf.mxu0
    %1751 = vdwg.mxu0
    %v1753 = vsel %vm364, %v351, 0
    %1755 = vmatprep.subr.mxu0 0.0
    %1756 = vmatpush1.msra.mxu0 0.0
    %1757 = vmatprep.subr.mxu0 0.0
    %1758 = vmatpush1.msra.mxu0 0.0
    %1759 = vmatprep.subr.mxu0 0.0
    %1760 = vmatpush1.msra.mxu0 0.0
    %1761 = vmatprep.subr.mxu0 0.0
    %1762 = vmatpush1.msra.mxu0 0.0
    %1763 = vmatprep.subr.mxu0 0.0
    %1764 = vmatpush1.msra.mxu0 0.0
    %1765 = vmatprep.subr.mxu0 0.0
    %1766 = vmatpush1.msra.mxu0 0.0
    %1767 = vmatprep.subr.mxu0 0.0
    %1768 = vmatpush1.msra.mxu0 0.0
    %1769 = vmatprep.subr.mxu0 0.0
    %1770 = vmatpush1.msra.mxu0 0.0
    %1771 = vmatprep.subr.mxu0 0.0
    %1772 = vmatpush1.msra.mxu0 0.0
    %1773 = vmatprep.subr.mxu0 0.0
    %1774 = vmatpush1.msra.mxu0 0.0
    %1775 = vmatprep.subr.mxu0 0.0
    %1776 = vmatpush1.msra.mxu0 0.0
    %1777 = vmatprep.subr.mxu0 0.0
    %1778 = vmatpush1.msra.mxu0 0.0
    %1779 = vmatprep.subr.mxu0 0.0
    %1780 = vmatpush1.msra.mxu0 0.0
    %1781 = vmatprep.subr.mxu0 0.0
    %1782 = vmatpush1.msra.mxu0 0.0
    %1783 = vmatprep.subr.mxu0 0.0
    %1784 = vmatpush1.msra.mxu0 %v211
    %1785 = vmatprep.subr.mxu0 0.0
    %1786 = vmatpush1.msra.mxu0 %v210
    %1787 = vmatprep.subr.mxu0 0.0
    %1788 = vmatpush2.msra.mxu0 0.0
    %1789 = vmatprep.subr.mxu0 0.0
    %1790 = vmatpush2.msra.mxu0 0.0
    %1791 = vmatprep.subr.mxu0 0.0
    %1792 = vmatpush2.msra.mxu0 0.0
    %1793 = vmatprep.subr.mxu0 0.0
    %1794 = vmatpush2.msra.mxu0 0.0
    %1795 = vmatprep.subr.mxu0 0.0
    %1796 = vmatpush2.msra.mxu0 0.0
    %1797 = vmatprep.subr.mxu0 0.0
    %1798 = vmatpush2.msra.mxu0 0.0
    %1799 = vmatprep.subr.mxu0 0.0
    %1800 = vmatpush2.msra.mxu0 0.0
    %1801 = vmatprep.subr.mxu0 0.0
    %1802 = vmatpush2.msra.mxu0 0.0
    %1803 = vmatprep.subr.mxu0 0.0
    %1804 = vmatpush2.msra.mxu0 0.0
    %1805 = vmatprep.subr.mxu0 0.0
    %1806 = vmatpush2.msra.mxu0 0.0
    %1807 = vmatprep.subr.mxu0 0.0
    %1808 = vmatpush2.msra.mxu0 0.0
    %1809 = vmatprep.subr.mxu0 0.0
    %1810 = vmatpush2.msra.mxu0 0.0
    %1811 = vmatprep.subr.mxu0 0.0
    %1812 = vmatpush2.msra.mxu0 0.0
    %1813 = vmatprep.subr.mxu0 0.0
    %1814 = vmatpush2.msra.mxu0 0.0
    %1815 = vmatprep.subr.mxu0 0.0
    %1816 = vmatpush2.msra.mxu0 0.0
    %1817 = vmatprep.subr.mxu0 0.0
    %1818 = vmatpush2.msra.mxu0 0.0
    %1819 = vmatprep.mubr.f32.mxu0 0.0
    %1820 = vmatmul.mubr.f32.gmra.mxu0 %v1753
    %v1821 = vpop.f32.mrf.mxu0
    %v1822 = vadd.f32 0.0, %v1821
    %v1823 = vpop.f32.mrf.mxu0
    %1824 = vdwg.mxu0
    %v1826 = vsel %vm364, %v352, 0
    %1828 = vmatprep.subr.mxu0 0.0
    %1829 = vmatpush1.msra.mxu0 0.0
    %1830 = vmatprep.subr.mxu0 0.0
    %1831 = vmatpush1.msra.mxu0 0.0
    %1832 = vmatprep.subr.mxu0 0.0
    %1833 = vmatpush1.msra.mxu0 0.0
    %1834 = vmatprep.subr.mxu0 0.0
    %1835 = vmatpush1.msra.mxu0 0.0
    %1836 = vmatprep.subr.mxu0 0.0
    %1837 = vmatpush1.msra.mxu0 0.0
    %1838 = vmatprep.subr.mxu0 0.0
    %1839 = vmatpush1.msra.mxu0 0.0
    %1840 = vmatprep.subr.mxu0 0.0
    %1841 = vmatpush1.msra.mxu0 0.0
    %1842 = vmatprep.subr.mxu0 0.0
    %1843 = vmatpush1.msra.mxu0 0.0
    %1844 = vmatprep.subr.mxu0 0.0
    %1845 = vmatpush1.msra.mxu0 0.0
    %1846 = vmatprep.subr.mxu0 0.0
    %1847 = vmatpush1.msra.mxu0 0.0
    %1848 = vmatprep.subr.mxu0 0.0
    %1849 = vmatpush1.msra.mxu0 0.0
    %1850 = vmatprep.subr.mxu0 0.0
    %1851 = vmatpush1.msra.mxu0 0.0
    %1852 = vmatprep.subr.mxu0 0.0
    %1853 = vmatpush1.msra.mxu0 0.0
    %1854 = vmatprep.subr.mxu0 0.0
    %1855 = vmatpush1.msra.mxu0 0.0
    %1856 = vmatprep.subr.mxu0 0.0
    %1857 = vmatpush1.msra.mxu0 %v213
    %1858 = vmatprep.subr.mxu0 0.0
    %1859 = vmatpush1.msra.mxu0 %v212
    %1860 = vmatprep.subr.mxu0 0.0
    %1861 = vmatpush2.msra.mxu0 0.0
    %1862 = vmatprep.subr.mxu0 0.0
    %1863 = vmatpush2.msra.mxu0 0.0
    %1864 = vmatprep.subr.mxu0 0.0
    %1865 = vmatpush2.msra.mxu0 0.0
    %1866 = vmatprep.subr.mxu0 0.0
    %1867 = vmatpush2.msra.mxu0 0.0
    %1868 = vmatprep.subr.mxu0 0.0
    %1869 = vmatpush2.msra.mxu0 0.0
    %1870 = vmatprep.subr.mxu0 0.0
    %1871 = vmatpush2.msra.mxu0 0.0
    %1872 = vmatprep.subr.mxu0 0.0
    %1873 = vmatpush2.msra.mxu0 0.0
    %1874 = vmatprep.subr.mxu0 0.0
    %1875 = vmatpush2.msra.mxu0 0.0
    %1876 = vmatprep.subr.mxu0 0.0
    %1877 = vmatpush2.msra.mxu0 0.0
    %1878 = vmatprep.subr.mxu0 0.0
    %1879 = vmatpush2.msra.mxu0 0.0
    %1880 = vmatprep.subr.mxu0 0.0
    %1881 = vmatpush2.msra.mxu0 0.0
    %1882 = vmatprep.subr.mxu0 0.0
    %1883 = vmatpush2.msra.mxu0 0.0
    %1884 = vmatprep.subr.mxu0 0.0
    %1885 = vmatpush2.msra.mxu0 0.0
    %1886 = vmatprep.subr.mxu0 0.0
    %1887 = vmatpush2.msra.mxu0 0.0
    %1888 = vmatprep.subr.mxu0 0.0
    %1889 = vmatpush2.msra.mxu0 0.0
    %1890 = vmatprep.subr.mxu0 0.0
    %1891 = vmatpush2.msra.mxu0 0.0
    %1892 = vmatprep.mubr.f32.mxu0 0.0
    %1893 = vmatmul.mubr.f32.gmra.mxu0 %v1826
    %v1894 = vpop.f32.mrf.mxu0
    %v1895 = vadd.f32 0.0, %v1894
    %v1896 = vpop.f32.mrf.mxu0
    %1897 = vdwg.mxu0
    %v1899 = vsel %vm364, %v353, 0
    %1901 = vmatprep.subr.mxu0 0.0
    %1902 = vmatpush1.msra.mxu0 0.0
    %1903 = vmatprep.subr.mxu0 0.0
    %1904 = vmatpush1.msra.mxu0 0.0
    %1905 = vmatprep.subr.mxu0 0.0
    %1906 = vmatpush1.msra.mxu0 0.0
    %1907 = vmatprep.subr.mxu0 0.0
    %1908 = vmatpush1.msra.mxu0 0.0
    %1909 = vmatprep.subr.mxu0 0.0
    %1910 = vmatpush1.msra.mxu0 0.0
    %1911 = vmatprep.subr.mxu0 0.0
    %1912 = vmatpush1.msra.mxu0 0.0
    %1913 = vmatprep.subr.mxu0 0.0
    %1914 = vmatpush1.msra.mxu0 0.0
    %1915 = vmatprep.subr.mxu0 0.0
    %1916 = vmatpush1.msra.mxu0 0.0
    %1917 = vmatprep.subr.mxu0 0.0
    %1918 = vmatpush1.msra.mxu0 0.0
    %1919 = vmatprep.subr.mxu0 0.0
    %1920 = vmatpush1.msra.mxu0 0.0
    %1921 = vmatprep.subr.mxu0 0.0
    %1922 = vmatpush1.msra.mxu0 0.0
    %1923 = vmatprep.subr.mxu0 0.0
    %1924 = vmatpush1.msra.mxu0 0.0
    %1925 = vmatprep.subr.mxu0 0.0
    %1926 = vmatpush1.msra.mxu0 0.0
    %1927 = vmatprep.subr.mxu0 0.0
    %1928 = vmatpush1.msra.mxu0 0.0
    %1929 = vmatprep.subr.mxu0 0.0
    %1930 = vmatpush1.msra.mxu0 %v215
    %1931 = vmatprep.subr.mxu0 0.0
    %1932 = vmatpush1.msra.mxu0 %v214
    %1933 = vmatprep.subr.mxu0 0.0
    %1934 = vmatpush2.msra.mxu0 0.0
    %1935 = vmatprep.subr.mxu0 0.0
    %1936 = vmatpush2.msra.mxu0 0.0
    %1937 = vmatprep.subr.mxu0 0.0
    %1938 = vmatpush2.msra.mxu0 0.0
    %1939 = vmatprep.subr.mxu0 0.0
    %1940 = vmatpush2.msra.mxu0 0.0
    %1941 = vmatprep.subr.mxu0 0.0
    %1942 = vmatpush2.msra.mxu0 0.0
    %1943 = vmatprep.subr.mxu0 0.0
    %1944 = vmatpush2.msra.mxu0 0.0
    %1945 = vmatprep.subr.mxu0 0.0
    %1946 = vmatpush2.msra.mxu0 0.0
    %1947 = vmatprep.subr.mxu0 0.0
    %1948 = vmatpush2.msra.mxu0 0.0
    %1949 = vmatprep.subr.mxu0 0.0
    %1950 = vmatpush2.msra.mxu0 0.0
    %1951 = vmatprep.subr.mxu0 0.0
    %1952 = vmatpush2.msra.mxu0 0.0
    %1953 = vmatprep.subr.mxu0 0.0
    %1954 = vmatpush2.msra.mxu0 0.0
    %1955 = vmatprep.subr.mxu0 0.0
    %1956 = vmatpush2.msra.mxu0 0.0
    %1957 = vmatprep.subr.mxu0 0.0
    %1958 = vmatpush2.msra.mxu0 0.0
    %1959 = vmatprep.subr.mxu0 0.0
    %1960 = vmatpush2.msra.mxu0 0.0
    %1961 = vmatprep.subr.mxu0 0.0
    %1962 = vmatpush2.msra.mxu0 0.0
    %1963 = vmatprep.subr.mxu0 0.0
    %1964 = vmatpush2.msra.mxu0 0.0
    %1965 = vmatprep.mubr.f32.mxu0 0.0
    %1966 = vmatmul.mubr.f32.gmra.mxu0 %v1899
    %v1967 = vpop.f32.mrf.mxu0
    %v1968 = vadd.f32 0.0, %v1967
    %v1969 = vpop.f32.mrf.mxu0
    %1970 = vdwg.mxu0
    %v1972 = vsel %vm364, %v354, 0
    %1974 = vmatprep.subr.mxu0 0.0
    %1975 = vmatpush1.msra.mxu0 0.0
    %1976 = vmatprep.subr.mxu0 0.0
    %1977 = vmatpush1.msra.mxu0 0.0
    %1978 = vmatprep.subr.mxu0 0.0
    %1979 = vmatpush1.msra.mxu0 0.0
    %1980 = vmatprep.subr.mxu0 0.0
    %1981 = vmatpush1.msra.mxu0 0.0
    %1982 = vmatprep.subr.mxu0 0.0
    %1983 = vmatpush1.msra.mxu0 0.0
    %1984 = vmatprep.subr.mxu0 0.0
    %1985 = vmatpush1.msra.mxu0 0.0
    %1986 = vmatprep.subr.mxu0 0.0
    %1987 = vmatpush1.msra.mxu0 0.0
    %1988 = vmatprep.subr.mxu0 0.0
    %1989 = vmatpush1.msra.mxu0 0.0
    %1990 = vmatprep.subr.mxu0 0.0
    %1991 = vmatpush1.msra.mxu0 0.0
    %1992 = vmatprep.subr.mxu0 0.0
    %1993 = vmatpush1.msra.mxu0 0.0
    %1994 = vmatprep.subr.mxu0 0.0
    %1995 = vmatpush1.msra.mxu0 0.0
    %1996 = vmatprep.subr.mxu0 0.0
    %1997 = vmatpush1.msra.mxu0 0.0
    %1998 = vmatprep.subr.mxu0 0.0
    %1999 = vmatpush1.msra.mxu0 0.0
    %2000 = vmatprep.subr.mxu0 0.0
    %2001 = vmatpush1.msra.mxu0 0.0
    %2002 = vmatprep.subr.mxu0 0.0
    %2003 = vmatpush1.msra.mxu0 %v217
    %2004 = vmatprep.subr.mxu0 0.0
    %2005 = vmatpush1.msra.mxu0 %v216
    %2006 = vmatprep.subr.mxu0 0.0
    %2007 = vmatpush2.msra.mxu0 0.0
    %2008 = vmatprep.subr.mxu0 0.0
    %2009 = vmatpush2.msra.mxu0 0.0
    %2010 = vmatprep.subr.mxu0 0.0
    %2011 = vmatpush2.msra.mxu0 0.0
    %2012 = vmatprep.subr.mxu0 0.0
    %2013 = vmatpush2.msra.mxu0 0.0
    %2014 = vmatprep.subr.mxu0 0.0
    %2015 = vmatpush2.msra.mxu0 0.0
    %2016 = vmatprep.subr.mxu0 0.0
    %2017 = vmatpush2.msra.mxu0 0.0
    %2018 = vmatprep.subr.mxu0 0.0
    %2019 = vmatpush2.msra.mxu0 0.0
    %2020 = vmatprep.subr.mxu0 0.0
    %2021 = vmatpush2.msra.mxu0 0.0
    %2022 = vmatprep.subr.mxu0 0.0
    %2023 = vmatpush2.msra.mxu0 0.0
    %2024 = vmatprep.subr.mxu0 0.0
    %2025 = vmatpush2.msra.mxu0 0.0
    %2026 = vmatprep.subr.mxu0 0.0
    %2027 = vmatpush2.msra.mxu0 0.0
    %2028 = vmatprep.subr.mxu0 0.0
    %2029 = vmatpush2.msra.mxu0 0.0
    %2030 = vmatprep.subr.mxu0 0.0
    %2031 = vmatpush2.msra.mxu0 0.0
    %2032 = vmatprep.subr.mxu0 0.0
    %2033 = vmatpush2.msra.mxu0 0.0
    %2034 = vmatprep.subr.mxu0 0.0
    %2035 = vmatpush2.msra.mxu0 0.0
    %2036 = vmatprep.subr.mxu0 0.0
    %2037 = vmatpush2.msra.mxu0 0.0
    %2038 = vmatprep.mubr.f32.mxu0 0.0
    %2039 = vmatmul.mubr.f32.gmra.mxu0 %v1972
    %v2040 = vpop.f32.mrf.mxu0
    %v2041 = vadd.f32 0.0, %v2040
    %v2042 = vpop.f32.mrf.mxu0
    %2043 = vdwg.mxu0
    %v2045 = vsel %vm364, %v355, 0
    %2047 = vmatprep.subr.mxu0 0.0
    %2048 = vmatpush1.msra.mxu0 0.0
    %2049 = vmatprep.subr.mxu0 0.0
    %2050 = vmatpush1.msra.mxu0 0.0
    %2051 = vmatprep.subr.mxu0 0.0
    %2052 = vmatpush1.msra.mxu0 0.0
    %2053 = vmatprep.subr.mxu0 0.0
    %2054 = vmatpush1.msra.mxu0 0.0
    %2055 = vmatprep.subr.mxu0 0.0
    %2056 = vmatpush1.msra.mxu0 0.0
    %2057 = vmatprep.subr.mxu0 0.0
    %2058 = vmatpush1.msra.mxu0 0.0
    %2059 = vmatprep.subr.mxu0 0.0
    %2060 = vmatpush1.msra.mxu0 0.0
    %2061 = vmatprep.subr.mxu0 0.0
    %2062 = vmatpush1.msra.mxu0 0.0
    %2063 = vmatprep.subr.mxu0 0.0
    %2064 = vmatpush1.msra.mxu0 0.0
    %2065 = vmatprep.subr.mxu0 0.0
    %2066 = vmatpush1.msra.mxu0 0.0
    %2067 = vmatprep.subr.mxu0 0.0
    %2068 = vmatpush1.msra.mxu0 0.0
    %2069 = vmatprep.subr.mxu0 0.0
    %2070 = vmatpush1.msra.mxu0 0.0
    %2071 = vmatprep.subr.mxu0 0.0
    %2072 = vmatpush1.msra.mxu0 0.0
    %2073 = vmatprep.subr.mxu0 0.0
    %2074 = vmatpush1.msra.mxu0 0.0
    %2075 = vmatprep.subr.mxu0 0.0
    %2076 = vmatpush1.msra.mxu0 %v219
    %2077 = vmatprep.subr.mxu0 0.0
    %2078 = vmatpush1.msra.mxu0 %v218
    %2079 = vmatprep.subr.mxu0 0.0
    %2080 = vmatpush2.msra.mxu0 0.0
    %2081 = vmatprep.subr.mxu0 0.0
    %2082 = vmatpush2.msra.mxu0 0.0
    %2083 = vmatprep.subr.mxu0 0.0
    %2084 = vmatpush2.msra.mxu0 0.0
    %2085 = vmatprep.subr.mxu0 0.0
    %2086 = vmatpush2.msra.mxu0 0.0
    %2087 = vmatprep.subr.mxu0 0.0
    %2088 = vmatpush2.msra.mxu0 0.0
    %2089 = vmatprep.subr.mxu0 0.0
    %2090 = vmatpush2.msra.mxu0 0.0
    %2091 = vmatprep.subr.mxu0 0.0
    %2092 = vmatpush2.msra.mxu0 0.0
    %2093 = vmatprep.subr.mxu0 0.0
    %2094 = vmatpush2.msra.mxu0 0.0
    %2095 = vmatprep.subr.mxu0 0.0
    %2096 = vmatpush2.msra.mxu0 0.0
    %2097 = vmatprep.subr.mxu0 0.0
    %2098 = vmatpush2.msra.mxu0 0.0
    %2099 = vmatprep.subr.mxu0 0.0
    %2100 = vmatpush2.msra.mxu0 0.0
    %2101 = vmatprep.subr.mxu0 0.0
    %2102 = vmatpush2.msra.mxu0 0.0
    %2103 = vmatprep.subr.mxu0 0.0
    %2104 = vmatpush2.msra.mxu0 0.0
    %2105 = vmatprep.subr.mxu0 0.0
    %2106 = vmatpush2.msra.mxu0 0.0
    %2107 = vmatprep.subr.mxu0 0.0
    %2108 = vmatpush2.msra.mxu0 0.0
    %2109 = vmatprep.subr.mxu0 0.0
    %2110 = vmatpush2.msra.mxu0 0.0
    %2111 = vmatprep.mubr.f32.mxu0 0.0
    %2112 = vmatmul.mubr.f32.gmra.mxu0 %v2045
    %v2113 = vpop.f32.mrf.mxu0
    %v2114 = vadd.f32 0.0, %v2113
    %v2115 = vpop.f32.mrf.mxu0
    %2116 = vdwg.mxu0
    %v2118 = vsel %vm364, %v356, 0
    %2120 = vmatprep.subr.mxu0 0.0
    %2121 = vmatpush1.msra.mxu0 0.0
    %2122 = vmatprep.subr.mxu0 0.0
    %2123 = vmatpush1.msra.mxu0 0.0
    %2124 = vmatprep.subr.mxu0 0.0
    %2125 = vmatpush1.msra.mxu0 0.0
    %2126 = vmatprep.subr.mxu0 0.0
    %2127 = vmatpush1.msra.mxu0 0.0
    %2128 = vmatprep.subr.mxu0 0.0
    %2129 = vmatpush1.msra.mxu0 0.0
    %2130 = vmatprep.subr.mxu0 0.0
    %2131 = vmatpush1.msra.mxu0 0.0
    %2132 = vmatprep.subr.mxu0 0.0
    %2133 = vmatpush1.msra.mxu0 0.0
    %2134 = vmatprep.subr.mxu0 0.0
    %2135 = vmatpush1.msra.mxu0 0.0
    %2136 = vmatprep.subr.mxu0 0.0
    %2137 = vmatpush1.msra.mxu0 0.0
    %2138 = vmatprep.subr.mxu0 0.0
    %2139 = vmatpush1.msra.mxu0 0.0
    %2140 = vmatprep.subr.mxu0 0.0
    %2141 = vmatpush1.msra.mxu0 0.0
    %2142 = vmatprep.subr.mxu0 0.0
    %2143 = vmatpush1.msra.mxu0 0.0
    %2144 = vmatprep.subr.mxu0 0.0
    %2145 = vmatpush1.msra.mxu0 0.0
    %2146 = vmatprep.subr.mxu0 0.0
    %2147 = vmatpush1.msra.mxu0 0.0
    %2148 = vmatprep.subr.mxu0 0.0
    %2149 = vmatpush1.msra.mxu0 %v221
    %2150 = vmatprep.subr.mxu0 0.0
    %2151 = vmatpush1.msra.mxu0 %v220
    %2152 = vmatprep.subr.mxu0 0.0
    %2153 = vmatpush2.msra.mxu0 0.0
    %2154 = vmatprep.subr.mxu0 0.0
    %2155 = vmatpush2.msra.mxu0 0.0
    %2156 = vmatprep.subr.mxu0 0.0
    %2157 = vmatpush2.msra.mxu0 0.0
    %2158 = vmatprep.subr.mxu0 0.0
    %2159 = vmatpush2.msra.mxu0 0.0
    %2160 = vmatprep.subr.mxu0 0.0
    %2161 = vmatpush2.msra.mxu0 0.0
    %2162 = vmatprep.subr.mxu0 0.0
    %2163 = vmatpush2.msra.mxu0 0.0
    %2164 = vmatprep.subr.mxu0 0.0
    %2165 = vmatpush2.msra.mxu0 0.0
    %2166 = vmatprep.subr.mxu0 0.0
    %2167 = vmatpush2.msra.mxu0 0.0
    %2168 = vmatprep.subr.mxu0 0.0
    %2169 = vmatpush2.msra.mxu0 0.0
    %2170 = vmatprep.subr.mxu0 0.0
    %2171 = vmatpush2.msra.mxu0 0.0
    %2172 = vmatprep.subr.mxu0 0.0
    %2173 = vmatpush2.msra.mxu0 0.0
    %2174 = vmatprep.subr.mxu0 0.0
    %2175 = vmatpush2.msra.mxu0 0.0
    %2176 = vmatprep.subr.mxu0 0.0
    %2177 = vmatpush2.msra.mxu0 0.0
    %2178 = vmatprep.subr.mxu0 0.0
    %2179 = vmatpush2.msra.mxu0 0.0
    %2180 = vmatprep.subr.mxu0 0.0
    %2181 = vmatpush2.msra.mxu0 0.0
    %2182 = vmatprep.subr.mxu0 0.0
    %2183 = vmatpush2.msra.mxu0 0.0
    %2184 = vmatprep.mubr.f32.mxu0 0.0
    %2185 = vmatmul.mubr.f32.gmra.mxu0 %v2118
    %v2186 = vpop.f32.mrf.mxu0
    %v2187 = vadd.f32 0.0, %v2186
    %v2188 = vpop.f32.mrf.mxu0
    %2189 = vdwg.mxu0
    %v2191 = vsel %vm364, %v357, 0
    %2193 = vmatprep.subr.mxu0 0.0
    %2194 = vmatpush1.msra.mxu0 0.0
    %2195 = vmatprep.subr.mxu0 0.0
    %2196 = vmatpush1.msra.mxu0 0.0
    %2197 = vmatprep.subr.mxu0 0.0
    %2198 = vmatpush1.msra.mxu0 0.0
    %2199 = vmatprep.subr.mxu0 0.0
    %2200 = vmatpush1.msra.mxu0 0.0
    %2201 = vmatprep.subr.mxu0 0.0
    %2202 = vmatpush1.msra.mxu0 0.0
    %2203 = vmatprep.subr.mxu0 0.0
    %2204 = vmatpush1.msra.mxu0 0.0
    %2205 = vmatprep.subr.mxu0 0.0
    %2206 = vmatpush1.msra.mxu0 0.0
    %2207 = vmatprep.subr.mxu0 0.0
    %2208 = vmatpush1.msra.mxu0 0.0
    %2209 = vmatprep.subr.mxu0 0.0
    %2210 = vmatpush1.msra.mxu0 0.0
    %2211 = vmatprep.subr.mxu0 0.0
    %2212 = vmatpush1.msra.mxu0 0.0
    %2213 = vmatprep.subr.mxu0 0.0
    %2214 = vmatpush1.msra.mxu0 0.0
    %2215 = vmatprep.subr.mxu0 0.0
    %2216 = vmatpush1.msra.mxu0 0.0
    %2217 = vmatprep.subr.mxu0 0.0
    %2218 = vmatpush1.msra.mxu0 0.0
    %2219 = vmatprep.subr.mxu0 0.0
    %2220 = vmatpush1.msra.mxu0 0.0
    %2221 = vmatprep.subr.mxu0 0.0
    %2222 = vmatpush1.msra.mxu0 %v223
    %2223 = vmatprep.subr.mxu0 0.0
    %2224 = vmatpush1.msra.mxu0 %v222
    %2225 = vmatprep.subr.mxu0 0.0
    %2226 = vmatpush2.msra.mxu0 0.0
    %2227 = vmatprep.subr.mxu0 0.0
    %2228 = vmatpush2.msra.mxu0 0.0
    %2229 = vmatprep.subr.mxu0 0.0
    %2230 = vmatpush2.msra.mxu0 0.0
    %2231 = vmatprep.subr.mxu0 0.0
    %2232 = vmatpush2.msra.mxu0 0.0
    %2233 = vmatprep.subr.mxu0 0.0
    %2234 = vmatpush2.msra.mxu0 0.0
    %2235 = vmatprep.subr.mxu0 0.0
    %2236 = vmatpush2.msra.mxu0 0.0
    %2237 = vmatprep.subr.mxu0 0.0
    %2238 = vmatpush2.msra.mxu0 0.0
    %2239 = vmatprep.subr.mxu0 0.0
    %2240 = vmatpush2.msra.mxu0 0.0
    %2241 = vmatprep.subr.mxu0 0.0
    %2242 = vmatpush2.msra.mxu0 0.0
    %2243 = vmatprep.subr.mxu0 0.0
    %2244 = vmatpush2.msra.mxu0 0.0
    %2245 = vmatprep.subr.mxu0 0.0
    %2246 = vmatpush2.msra.mxu0 0.0
    %2247 = vmatprep.subr.mxu0 0.0
    %2248 = vmatpush2.msra.mxu0 0.0
    %2249 = vmatprep.subr.mxu0 0.0
    %2250 = vmatpush2.msra.mxu0 0.0
    %2251 = vmatprep.subr.mxu0 0.0
    %2252 = vmatpush2.msra.mxu0 0.0
    %2253 = vmatprep.subr.mxu0 0.0
    %2254 = vmatpush2.msra.mxu0 0.0
    %2255 = vmatprep.subr.mxu0 0.0
    %2256 = vmatpush2.msra.mxu0 0.0
    %2257 = vmatprep.mubr.f32.mxu0 0.0
    %2258 = vmatmul.mubr.f32.gmra.mxu0 %v2191
    %v2259 = vpop.f32.mrf.mxu0
    %v2260 = vadd.f32 0.0, %v2259
    %v2261 = vpop.f32.mrf.mxu0
    %2262 = vdwg.mxu0
    %v2264 = vsel %vm364, %v358, 0
    %2266 = vmatprep.subr.mxu0 0.0
    %2267 = vmatpush1.msra.mxu0 0.0
    %2268 = vmatprep.subr.mxu0 0.0
    %2269 = vmatpush1.msra.mxu0 0.0
    %2270 = vmatprep.subr.mxu0 0.0
    %2271 = vmatpush1.msra.mxu0 0.0
    %2272 = vmatprep.subr.mxu0 0.0
    %2273 = vmatpush1.msra.mxu0 0.0
    %2274 = vmatprep.subr.mxu0 0.0
    %2275 = vmatpush1.msra.mxu0 0.0
    %2276 = vmatprep.subr.mxu0 0.0
    %2277 = vmatpush1.msra.mxu0 0.0
    %2278 = vmatprep.subr.mxu0 0.0
    %2279 = vmatpush1.msra.mxu0 0.0
    %2280 = vmatprep.subr.mxu0 0.0
    %2281 = vmatpush1.msra.mxu0 0.0
    %2282 = vmatprep.subr.mxu0 0.0
    %2283 = vmatpush1.msra.mxu0 0.0
    %2284 = vmatprep.subr.mxu0 0.0
    %2285 = vmatpush1.msra.mxu0 0.0
    %2286 = vmatprep.subr.mxu0 0.0
    %2287 = vmatpush1.msra.mxu0 0.0
    %2288 = vmatprep.subr.mxu0 0.0
    %2289 = vmatpush1.msra.mxu0 0.0
    %2290 = vmatprep.subr.mxu0 0.0
    %2291 = vmatpush1.msra.mxu0 0.0
    %2292 = vmatprep.subr.mxu0 0.0
    %2293 = vmatpush1.msra.mxu0 0.0
    %2294 = vmatprep.subr.mxu0 0.0
    %2295 = vmatpush1.msra.mxu0 %v225
    %2296 = vmatprep.subr.mxu0 0.0
    %2297 = vmatpush1.msra.mxu0 %v224
    %2298 = vmatprep.subr.mxu0 0.0
    %2299 = vmatpush2.msra.mxu0 0.0
    %2300 = vmatprep.subr.mxu0 0.0
    %2301 = vmatpush2.msra.mxu0 0.0
    %2302 = vmatprep.subr.mxu0 0.0
    %2303 = vmatpush2.msra.mxu0 0.0
    %2304 = vmatprep.subr.mxu0 0.0
    %2305 = vmatpush2.msra.mxu0 0.0
    %2306 = vmatprep.subr.mxu0 0.0
    %2307 = vmatpush2.msra.mxu0 0.0
    %2308 = vmatprep.subr.mxu0 0.0
    %2309 = vmatpush2.msra.mxu0 0.0
    %2310 = vmatprep.subr.mxu0 0.0
    %2311 = vmatpush2.msra.mxu0 0.0
    %2312 = vmatprep.subr.mxu0 0.0
    %2313 = vmatpush2.msra.mxu0 0.0
    %2314 = vmatprep.subr.mxu0 0.0
    %2315 = vmatpush2.msra.mxu0 0.0
    %2316 = vmatprep.subr.mxu0 0.0
    %2317 = vmatpush2.msra.mxu0 0.0
    %2318 = vmatprep.subr.mxu0 0.0
    %2319 = vmatpush2.msra.mxu0 0.0
    %2320 = vmatprep.subr.mxu0 0.0
    %2321 = vmatpush2.msra.mxu0 0.0
    %2322 = vmatprep.subr.mxu0 0.0
    %2323 = vmatpush2.msra.mxu0 0.0
    %2324 = vmatprep.subr.mxu0 0.0
    %2325 = vmatpush2.msra.mxu0 0.0
    %2326 = vmatprep.subr.mxu0 0.0
    %2327 = vmatpush2.msra.mxu0 0.0
    %2328 = vmatprep.subr.mxu0 0.0
    %2329 = vmatpush2.msra.mxu0 0.0
    %2330 = vmatprep.mubr.f32.mxu0 0.0
    %2331 = vmatmul.mubr.f32.gmra.mxu0 %v2264
    %v2332 = vpop.f32.mrf.mxu0
    %v2333 = vadd.f32 0.0, %v2332
    %v2334 = vpop.f32.mrf.mxu0
    %2335 = vdwg.mxu0
    %v2337 = vsel %vm364, %v359, 0
    %2339 = vmatprep.subr.mxu0 0.0
    %2340 = vmatpush1.msra.mxu0 0.0
    %2341 = vmatprep.subr.mxu0 0.0
    %2342 = vmatpush1.msra.mxu0 0.0
    %2343 = vmatprep.subr.mxu0 0.0
    %2344 = vmatpush1.msra.mxu0 0.0
    %2345 = vmatprep.subr.mxu0 0.0
    %2346 = vmatpush1.msra.mxu0 0.0
    %2347 = vmatprep.subr.mxu0 0.0
    %2348 = vmatpush1.msra.mxu0 0.0
    %2349 = vmatprep.subr.mxu0 0.0
    %2350 = vmatpush1.msra.mxu0 0.0
    %2351 = vmatprep.subr.mxu0 0.0
    %2352 = vmatpush1.msra.mxu0 0.0
    %2353 = vmatprep.subr.mxu0 0.0
    %2354 = vmatpush1.msra.mxu0 0.0
    %2355 = vmatprep.subr.mxu0 0.0
    %2356 = vmatpush1.msra.mxu0 0.0
    %2357 = vmatprep.subr.mxu0 0.0
    %2358 = vmatpush1.msra.mxu0 0.0
    %2359 = vmatprep.subr.mxu0 0.0
    %2360 = vmatpush1.msra.mxu0 0.0
    %2361 = vmatprep.subr.mxu0 0.0
    %2362 = vmatpush1.msra.mxu0 0.0
    %2363 = vmatprep.subr.mxu0 0.0
    %2364 = vmatpush1.msra.mxu0 0.0
    %2365 = vmatprep.subr.mxu0 0.0
    %2366 = vmatpush1.msra.mxu0 0.0
    %2367 = vmatprep.subr.mxu0 0.0
    %2368 = vmatpush1.msra.mxu0 %v227
    %2369 = vmatprep.subr.mxu0 0.0
    %2370 = vmatpush1.msra.mxu0 %v226
    %2371 = vmatprep.subr.mxu0 0.0
    %2372 = vmatpush2.msra.mxu0 0.0
    %2373 = vmatprep.subr.mxu0 0.0
    %2374 = vmatpush2.msra.mxu0 0.0
    %2375 = vmatprep.subr.mxu0 0.0
    %2376 = vmatpush2.msra.mxu0 0.0
    %2377 = vmatprep.subr.mxu0 0.0
    %2378 = vmatpush2.msra.mxu0 0.0
    %2379 = vmatprep.subr.mxu0 0.0
    %2380 = vmatpush2.msra.mxu0 0.0
    %2381 = vmatprep.subr.mxu0 0.0
    %2382 = vmatpush2.msra.mxu0 0.0
    %2383 = vmatprep.subr.mxu0 0.0
    %2384 = vmatpush2.msra.mxu0 0.0
    %2385 = vmatprep.subr.mxu0 0.0
    %2386 = vmatpush2.msra.mxu0 0.0
    %2387 = vmatprep.subr.mxu0 0.0
    %2388 = vmatpush2.msra.mxu0 0.0
    %2389 = vmatprep.subr.mxu0 0.0
    %2390 = vmatpush2.msra.mxu0 0.0
    %2391 = vmatprep.subr.mxu0 0.0
    %2392 = vmatpush2.msra.mxu0 0.0
    %2393 = vmatprep.subr.mxu0 0.0
    %2394 = vmatpush2.msra.mxu0 0.0
    %2395 = vmatprep.subr.mxu0 0.0
    %2396 = vmatpush2.msra.mxu0 0.0
    %2397 = vmatprep.subr.mxu0 0.0
    %2398 = vmatpush2.msra.mxu0 0.0
    %2399 = vmatprep.subr.mxu0 0.0
    %2400 = vmatpush2.msra.mxu0 0.0
    %2401 = vmatprep.subr.mxu0 0.0
    %2402 = vmatpush2.msra.mxu0 0.0
    %2403 = vmatprep.mubr.f32.mxu0 0.0
    %2404 = vmatmul.mubr.f32.gmra.mxu0 %v2337
    %v2405 = vpop.f32.mrf.mxu0
    %v2406 = vadd.f32 0.0, %v2405
    %v2407 = vpop.f32.mrf.mxu0
    %2408 = vdwg.mxu0
    %v2410 = vsel %vm364, %v360, 0
    %2412 = vmatprep.subr.mxu0 0.0
    %2413 = vmatpush1.msra.mxu0 0.0
    %2414 = vmatprep.subr.mxu0 0.0
    %2415 = vmatpush1.msra.mxu0 0.0
    %2416 = vmatprep.subr.mxu0 0.0
    %2417 = vmatpush1.msra.mxu0 0.0
    %2418 = vmatprep.subr.mxu0 0.0
    %2419 = vmatpush1.msra.mxu0 0.0
    %2420 = vmatprep.subr.mxu0 0.0
    %2421 = vmatpush1.msra.mxu0 0.0
    %2422 = vmatprep.subr.mxu0 0.0
    %2423 = vmatpush1.msra.mxu0 0.0
    %2424 = vmatprep.subr.mxu0 0.0
    %2425 = vmatpush1.msra.mxu0 0.0
    %2426 = vmatprep.subr.mxu0 0.0
    %2427 = vmatpush1.msra.mxu0 0.0
    %2428 = vmatprep.subr.mxu0 0.0
    %2429 = vmatpush1.msra.mxu0 0.0
    %2430 = vmatprep.subr.mxu0 0.0
    %2431 = vmatpush1.msra.mxu0 0.0
    %2432 = vmatprep.subr.mxu0 0.0
    %2433 = vmatpush1.msra.mxu0 0.0
    %2434 = vmatprep.subr.mxu0 0.0
    %2435 = vmatpush1.msra.mxu0 0.0
    %2436 = vmatprep.subr.mxu0 0.0
    %2437 = vmatpush1.msra.mxu0 0.0
    %2438 = vmatprep.subr.mxu0 0.0
    %2439 = vmatpush1.msra.mxu0 0.0
    %2440 = vmatprep.subr.mxu0 0.0
    %2441 = vmatpush1.msra.mxu0 %v229
    %2442 = vmatprep.subr.mxu0 0.0
    %2443 = vmatpush1.msra.mxu0 %v228
    %2444 = vmatprep.subr.mxu0 0.0
    %2445 = vmatpush2.msra.mxu0 0.0
    %2446 = vmatprep.subr.mxu0 0.0
    %2447 = vmatpush2.msra.mxu0 0.0
    %2448 = vmatprep.subr.mxu0 0.0
    %2449 = vmatpush2.msra.mxu0 0.0
    %2450 = vmatprep.subr.mxu0 0.0
    %2451 = vmatpush2.msra.mxu0 0.0
    %2452 = vmatprep.subr.mxu0 0.0
    %2453 = vmatpush2.msra.mxu0 0.0
    %2454 = vmatprep.subr.mxu0 0.0
    %2455 = vmatpush2.msra.mxu0 0.0
    %2456 = vmatprep.subr.mxu0 0.0
    %2457 = vmatpush2.msra.mxu0 0.0
    %2458 = vmatprep.subr.mxu0 0.0
    %2459 = vmatpush2.msra.mxu0 0.0
    %2460 = vmatprep.subr.mxu0 0.0
    %2461 = vmatpush2.msra.mxu0 0.0
    %2462 = vmatprep.subr.mxu0 0.0
    %2463 = vmatpush2.msra.mxu0 0.0
    %2464 = vmatprep.subr.mxu0 0.0
    %2465 = vmatpush2.msra.mxu0 0.0
    %2466 = vmatprep.subr.mxu0 0.0
    %2467 = vmatpush2.msra.mxu0 0.0
    %2468 = vmatprep.subr.mxu0 0.0
    %2469 = vmatpush2.msra.mxu0 0.0
    %2470 = vmatprep.subr.mxu0 0.0
    %2471 = vmatpush2.msra.mxu0 0.0
    %2472 = vmatprep.subr.mxu0 0.0
    %2473 = vmatpush2.msra.mxu0 0.0
    %2474 = vmatprep.subr.mxu0 0.0
    %2475 = vmatpush2.msra.mxu0 0.0
    %2476 = vmatprep.mubr.f32.mxu0 0.0
    %2477 = vmatmul.mubr.f32.gmra.mxu0 %v2410
    %v2478 = vpop.f32.mrf.mxu0
    %v2479 = vadd.f32 0.0, %v2478
    %v2480 = vpop.f32.mrf.mxu0
    %2481 = vdwg.mxu0
    %v2483 = vsel %vm364, %v361, 0
    %2485 = vmatprep.subr.mxu0 0.0
    %2486 = vmatpush1.msra.mxu0 0.0
    %2487 = vmatprep.subr.mxu0 0.0
    %2488 = vmatpush1.msra.mxu0 0.0
    %2489 = vmatprep.subr.mxu0 0.0
    %2490 = vmatpush1.msra.mxu0 0.0
    %2491 = vmatprep.subr.mxu0 0.0
    %2492 = vmatpush1.msra.mxu0 0.0
    %2493 = vmatprep.subr.mxu0 0.0
    %2494 = vmatpush1.msra.mxu0 0.0
    %2495 = vmatprep.subr.mxu0 0.0
    %2496 = vmatpush1.msra.mxu0 0.0
    %2497 = vmatprep.subr.mxu0 0.0
    %2498 = vmatpush1.msra.mxu0 0.0
    %2499 = vmatprep.subr.mxu0 0.0
    %2500 = vmatpush1.msra.mxu0 0.0
    %2501 = vmatprep.subr.mxu0 0.0
    %2502 = vmatpush1.msra.mxu0 0.0
    %2503 = vmatprep.subr.mxu0 0.0
    %2504 = vmatpush1.msra.mxu0 0.0
    %2505 = vmatprep.subr.mxu0 0.0
    %2506 = vmatpush1.msra.mxu0 0.0
    %2507 = vmatprep.subr.mxu0 0.0
    %2508 = vmatpush1.msra.mxu0 0.0
    %2509 = vmatprep.subr.mxu0 0.0
    %2510 = vmatpush1.msra.mxu0 0.0
    %2511 = vmatprep.subr.mxu0 0.0
    %2512 = vmatpush1.msra.mxu0 0.0
    %2513 = vmatprep.subr.mxu0 0.0
    %2514 = vmatpush1.msra.mxu0 %v231
    %2515 = vmatprep.subr.mxu0 0.0
    %2516 = vmatpush1.msra.mxu0 %v230
    %2517 = vmatprep.subr.mxu0 0.0
    %2518 = vmatpush2.msra.mxu0 0.0
    %2519 = vmatprep.subr.mxu0 0.0
    %2520 = vmatpush2.msra.mxu0 0.0
    %2521 = vmatprep.subr.mxu0 0.0
    %2522 = vmatpush2.msra.mxu0 0.0
    %2523 = vmatprep.subr.mxu0 0.0
    %2524 = vmatpush2.msra.mxu0 0.0
    %2525 = vmatprep.subr.mxu0 0.0
    %2526 = vmatpush2.msra.mxu0 0.0
    %2527 = vmatprep.subr.mxu0 0.0
    %2528 = vmatpush2.msra.mxu0 0.0
    %2529 = vmatprep.subr.mxu0 0.0
    %2530 = vmatpush2.msra.mxu0 0.0
    %2531 = vmatprep.subr.mxu0 0.0
    %2532 = vmatpush2.msra.mxu0 0.0
    %2533 = vmatprep.subr.mxu0 0.0
    %2534 = vmatpush2.msra.mxu0 0.0
    %2535 = vmatprep.subr.mxu0 0.0
    %2536 = vmatpush2.msra.mxu0 0.0
    %2537 = vmatprep.subr.mxu0 0.0
    %2538 = vmatpush2.msra.mxu0 0.0
    %2539 = vmatprep.subr.mxu0 0.0
    %2540 = vmatpush2.msra.mxu0 0.0
    %2541 = vmatprep.subr.mxu0 0.0
    %2542 = vmatpush2.msra.mxu0 0.0
    %2543 = vmatprep.subr.mxu0 0.0
    %2544 = vmatpush2.msra.mxu0 0.0
    %2545 = vmatprep.subr.mxu0 0.0
    %2546 = vmatpush2.msra.mxu0 0.0
    %2547 = vmatprep.subr.mxu0 0.0
    %2548 = vmatpush2.msra.mxu0 0.0
    %2549 = vmatprep.mubr.f32.mxu0 0.0
    %2550 = vmatmul.mubr.f32.gmra.mxu0 %v2483
    %v2551 = vpop.f32.mrf.mxu0
    %v2552 = vadd.f32 0.0, %v2551
    %v2553 = vpop.f32.mrf.mxu0
    %2554 = vdwg.mxu0
    %v2556 = vsel %vm364, %v362, 0
    %2558 = vmatprep.subr.mxu0 0.0
    %2559 = vmatpush1.msra.mxu0 0.0
    %2560 = vmatprep.subr.mxu0 0.0
    %2561 = vmatpush1.msra.mxu0 0.0
    %2562 = vmatprep.subr.mxu0 0.0
    %2563 = vmatpush1.msra.mxu0 0.0
    %2564 = vmatprep.subr.mxu0 0.0
    %2565 = vmatpush1.msra.mxu0 0.0
    %2566 = vmatprep.subr.mxu0 0.0
    %2567 = vmatpush1.msra.mxu0 0.0
    %2568 = vmatprep.subr.mxu0 0.0
    %2569 = vmatpush1.msra.mxu0 0.0
    %2570 = vmatprep.subr.mxu0 0.0
    %2571 = vmatpush1.msra.mxu0 0.0
    %2572 = vmatprep.subr.mxu0 0.0
    %2573 = vmatpush1.msra.mxu0 0.0
    %2574 = vmatprep.subr.mxu0 0.0
    %2575 = vmatpush1.msra.mxu0 0.0
    %2576 = vmatprep.subr.mxu0 0.0
    %2577 = vmatpush1.msra.mxu0 0.0
    %2578 = vmatprep.subr.mxu0 0.0
    %2579 = vmatpush1.msra.mxu0 0.0
    %2580 = vmatprep.subr.mxu0 0.0
    %2581 = vmatpush1.msra.mxu0 0.0
    %2582 = vmatprep.subr.mxu0 0.0
    %2583 = vmatpush1.msra.mxu0 0.0
    %2584 = vmatprep.subr.mxu0 0.0
    %2585 = vmatpush1.msra.mxu0 0.0
    %2586 = vmatprep.subr.mxu0 0.0
    %2587 = vmatpush1.msra.mxu0 %v233
    %2588 = vmatprep.subr.mxu0 0.0
    %2589 = vmatpush1.msra.mxu0 %v232
    %2590 = vmatprep.subr.mxu0 0.0
    %2591 = vmatpush2.msra.mxu0 0.0
    %2592 = vmatprep.subr.mxu0 0.0
    %2593 = vmatpush2.msra.mxu0 0.0
    %2594 = vmatprep.subr.mxu0 0.0
    %2595 = vmatpush2.msra.mxu0 0.0
    %2596 = vmatprep.subr.mxu0 0.0
    %2597 = vmatpush2.msra.mxu0 0.0
    %2598 = vmatprep.subr.mxu0 0.0
    %2599 = vmatpush2.msra.mxu0 0.0
    %2600 = vmatprep.subr.mxu0 0.0
    %2601 = vmatpush2.msra.mxu0 0.0
    %2602 = vmatprep.subr.mxu0 0.0
    %2603 = vmatpush2.msra.mxu0 0.0
    %2604 = vmatprep.subr.mxu0 0.0
    %2605 = vmatpush2.msra.mxu0 0.0
    %2606 = vmatprep.subr.mxu0 0.0
    %2607 = vmatpush2.msra.mxu0 0.0
    %2608 = vmatprep.subr.mxu0 0.0
    %2609 = vmatpush2.msra.mxu0 0.0
    %2610 = vmatprep.subr.mxu0 0.0
    %2611 = vmatpush2.msra.mxu0 0.0
    %2612 = vmatprep.subr.mxu0 0.0
    %2613 = vmatpush2.msra.mxu0 0.0
    %2614 = vmatprep.subr.mxu0 0.0
    %2615 = vmatpush2.msra.mxu0 0.0
    %2616 = vmatprep.subr.mxu0 0.0
    %2617 = vmatpush2.msra.mxu0 0.0
    %2618 = vmatprep.subr.mxu0 0.0
    %2619 = vmatpush2.msra.mxu0 0.0
    %2620 = vmatprep.subr.mxu0 0.0
    %2621 = vmatpush2.msra.mxu0 0.0
    %2622 = vmatprep.mubr.f32.mxu0 0.0
    %2623 = vmatmul.mubr.f32.gmra.mxu0 %v2556
    %v2624 = vpop.f32.mrf.mxu0
    %v2625 = vadd.f32 0.0, %v2624
    %v2626 = vpop.f32.mrf.mxu0
    %2627 = vdwg.mxu0
    %v2629 = vsel %vm364, %v363, 0
    %2631 = vmatprep.subr.mxu0 0.0
    %2632 = vmatpush1.msra.mxu0 0.0
    %2633 = vmatprep.subr.mxu0 0.0
    %2634 = vmatpush1.msra.mxu0 0.0
    %2635 = vmatprep.subr.mxu0 0.0
    %2636 = vmatpush1.msra.mxu0 0.0
    %2637 = vmatprep.subr.mxu0 0.0
    %2638 = vmatpush1.msra.mxu0 0.0
    %2639 = vmatprep.subr.mxu0 0.0
    %2640 = vmatpush1.msra.mxu0 0.0
    %2641 = vmatprep.subr.mxu0 0.0
    %2642 = vmatpush1.msra.mxu0 0.0
    %2643 = vmatprep.subr.mxu0 0.0
    %2644 = vmatpush1.msra.mxu0 0.0
    %2645 = vmatprep.subr.mxu0 0.0
    %2646 = vmatpush1.msra.mxu0 0.0
    %2647 = vmatprep.subr.mxu0 0.0
    %2648 = vmatpush1.msra.mxu0 0.0
    %2649 = vmatprep.subr.mxu0 0.0
    %2650 = vmatpush1.msra.mxu0 0.0
    %2651 = vmatprep.subr.mxu0 0.0
    %2652 = vmatpush1.msra.mxu0 0.0
    %2653 = vmatprep.subr.mxu0 0.0
    %2654 = vmatpush1.msra.mxu0 0.0
    %2655 = vmatprep.subr.mxu0 0.0
    %2656 = vmatpush1.msra.mxu0 0.0
    %2657 = vmatprep.subr.mxu0 0.0
    %2658 = vmatpush1.msra.mxu0 0.0
    %2659 = vmatprep.subr.mxu0 0.0
    %2660 = vmatpush1.msra.mxu0 %v235
    %2661 = vmatprep.subr.mxu0 0.0
    %2662 = vmatpush1.msra.mxu0 %v234
    %2663 = vmatprep.subr.mxu0 0.0
    %2664 = vmatpush2.msra.mxu0 0.0
    %2665 = vmatprep.subr.mxu0 0.0
    %2666 = vmatpush2.msra.mxu0 0.0
    %2667 = vmatprep.subr.mxu0 0.0
    %2668 = vmatpush2.msra.mxu0 0.0
    %2669 = vmatprep.subr.mxu0 0.0
    %2670 = vmatpush2.msra.mxu0 0.0
    %2671 = vmatprep.subr.mxu0 0.0
    %2672 = vmatpush2.msra.mxu0 0.0
    %2673 = vmatprep.subr.mxu0 0.0
    %2674 = vmatpush2.msra.mxu0 0.0
    %2675 = vmatprep.subr.mxu0 0.0
    %2676 = vmatpush2.msra.mxu0 0.0
    %2677 = vmatprep.subr.mxu0 0.0
    %2678 = vmatpush2.msra.mxu0 0.0
    %2679 = vmatprep.subr.mxu0 0.0
    %2680 = vmatpush2.msra.mxu0 0.0
    %2681 = vmatprep.subr.mxu0 0.0
    %2682 = vmatpush2.msra.mxu0 0.0
    %2683 = vmatprep.subr.mxu0 0.0
    %2684 = vmatpush2.msra.mxu0 0.0
    %2685 = vmatprep.subr.mxu0 0.0
    %2686 = vmatpush2.msra.mxu0 0.0
    %2687 = vmatprep.subr.mxu0 0.0
    %2688 = vmatpush2.msra.mxu0 0.0
    %2689 = vmatprep.subr.mxu0 0.0
    %2690 = vmatpush2.msra.mxu0 0.0
    %2691 = vmatprep.subr.mxu0 0.0
    %2692 = vmatpush2.msra.mxu0 0.0
    %2693 = vmatprep.subr.mxu0 0.0
    %2694 = vmatpush2.msra.mxu0 0.0
    %2695 = vmatprep.mubr.f32.mxu0 0.0
    %2696 = vmatmul.mubr.f32.gmra.mxu0 %v2629
    %v2697 = vpop.f32.mrf.mxu0
    %v2698 = vadd.f32 0.0, %v2697
    %v2699 = vpop.f32.mrf.mxu0
    %2700 = vdwg.mxu0
    %v2701 = vadd.f32 %v300, %v435
    %v2702 = vadd.f32 %v301, %v508
    %v2703 = vadd.f32 %v302, %v581
    %v2704 = vadd.f32 %v303, %v654
    %v2705 = vadd.f32 %v304, %v727
    %v2706 = vadd.f32 %v305, %v800
    %v2707 = vadd.f32 %v306, %v873
    %v2708 = vadd.f32 %v307, %v946
    %v2709 = vadd.f32 %v308, %v1019
    %v2710 = vadd.f32 %v309, %v1092
    %v2711 = vadd.f32 %v310, %v1165
    %v2712 = vadd.f32 %v311, %v1238
    %v2713 = vadd.f32 %v312, %v1311
    %v2714 = vadd.f32 %v313, %v1384
    %v2715 = vadd.f32 %v314, %v1457
    %v2716 = vadd.f32 %v315, %v1530
    %v2717 = vadd.f32 %v316, %v1603
    %v2718 = vadd.f32 %v317, %v1676
    %v2719 = vadd.f32 %v318, %v1749
    %v2720 = vadd.f32 %v319, %v1822
    %v2721 = vadd.f32 %v320, %v1895
    %v2722 = vadd.f32 %v321, %v1968
    %v2723 = vadd.f32 %v322, %v2041
    %v2724 = vadd.f32 %v323, %v2114
    %v2725 = vadd.f32 %v324, %v2187
    %v2726 = vadd.f32 %v325, %v2260
    %v2727 = vadd.f32 %v326, %v2333
    %v2728 = vadd.f32 %v327, %v2406
    %v2729 = vadd.f32 %v328, %v2479
    %v2730 = vadd.f32 %v329, %v2552
    %v2731 = vadd.f32 %v330, %v2625
    %v2732 = vadd.f32 %v331, %v2698
    %2733 = vst [vmem:[#allocation2] sm:$0xff] %v2701
    %2734 = vst [vmem:[#allocation2 + $0x8] sm:$0xff] %v2702
    %2735 = vst [vmem:[#allocation2 + $0x10] sm:$0xff] %v2703
    %2736 = vst [vmem:[#allocation2 + $0x18] sm:$0xff] %v2704
    %2737 = vst [vmem:[#allocation2 + $0x20] sm:$0xff] %v2705
    %2738 = vst [vmem:[#allocation2 + $0x28] sm:$0xff] %v2706
    %2739 = vst [vmem:[#allocation2 + $0x30] sm:$0xff] %v2707
    %2740 = vst [vmem:[#allocation2 + $0x38] sm:$0xff] %v2708
    %2741 = vst [vmem:[#allocation2 + $0x40] sm:$0xff] %v2709
    %2742 = vst [vmem:[#allocation2 + $0x48] sm:$0xff] %v2710
    %2743 = vst [vmem:[#allocation2 + $0x50] sm:$0xff] %v2711
    %2744 = vst [vmem:[#allocation2 + $0x58] sm:$0xff] %v2712
    %2745 = vst [vmem:[#allocation2 + $0x60] sm:$0xff] %v2713
    %2746 = vst [vmem:[#allocation2 + $0x68] sm:$0xff] %v2714
    %2747 = vst [vmem:[#allocation2 + $0x70] sm:$0xff] %v2715
    %2748 = vst [vmem:[#allocation2 + $0x78] sm:$0xff] %v2716
    %2749 = vst [vmem:[#allocation2 + $0x80] sm:$0xff] %v2717
    %2750 = vst [vmem:[#allocation2 + $0x88] sm:$0xff] %v2718
    %2751 = vst [vmem:[#allocation2 + $0x90] sm:$0xff] %v2719
    %2752 = vst [vmem:[#allocation2 + $0x98] sm:$0xff] %v2720
    %2753 = vst [vmem:[#allocation2 + $0xa0] sm:$0xff] %v2721
    %2754 = vst [vmem:[#allocation2 + $0xa8] sm:$0xff] %v2722
    %2755 = vst [vmem:[#allocation2 + $0xb0] sm:$0xff] %v2723
    %2756 = vst [vmem:[#allocation2 + $0xb8] sm:$0xff] %v2724
    %2757 = vst [vmem:[#allocation2 + $0xc0] sm:$0xff] %v2725
    %2758 = vst [vmem:[#allocation2 + $0xc8] sm:$0xff] %v2726
    %2759 = vst [vmem:[#allocation2 + $0xd0] sm:$0xff] %v2727
    %2760 = vst [vmem:[#allocation2 + $0xd8] sm:$0xff] %v2728
    %2761 = vst [vmem:[#allocation2 + $0xe0] sm:$0xff] %v2729
    %2762 = vst [vmem:[#allocation2 + $0xe8] sm:$0xff] %v2730
    %2763 = vst [vmem:[#allocation2 + $0xf0] sm:$0xff] %v2731
    %2764 = vst [vmem:[#allocation2 + $0xf8] sm:$0xff] %v2732
    %v2765 = vld [vmem:[#allocation3] sm:$0xff]
    %v2766 = vld [vmem:[#allocation3 + $0x8] sm:$0xff]
    %v2767 = vld [vmem:[#allocation3 + $0x10] sm:$0xff]
    %v2768 = vld [vmem:[#allocation3 + $0x18] sm:$0xff]
    %v2769 = vld [vmem:[#allocation3 + $0x20] sm:$0xff]
    %v2770 = vld [vmem:[#allocation3 + $0x28] sm:$0xff]
    %v2771 = vld [vmem:[#allocation3 + $0x30] sm:$0xff]
    %v2772 = vld [vmem:[#allocation3 + $0x38] sm:$0xff]
    %v2773 = vld [vmem:[#allocation3 + $0x40] sm:$0xff]
    %v2774 = vld [vmem:[#allocation3 + $0x48] sm:$0xff]
    %v2775 = vld [vmem:[#allocation3 + $0x50] sm:$0xff]
    %v2776 = vld [vmem:[#allocation3 + $0x58] sm:$0xff]
    %v2777 = vld [vmem:[#allocation3 + $0x60] sm:$0xff]
    %v2778 = vld [vmem:[#allocation3 + $0x68] sm:$0xff]
    %v2779 = vld [vmem:[#allocation3 + $0x70] sm:$0xff]
    %v2780 = vld [vmem:[#allocation3 + $0x78] sm:$0xff]
    %v2781 = vld [vmem:[#allocation3 + $0x80] sm:$0xff]
    %v2782 = vld [vmem:[#allocation3 + $0x88] sm:$0xff]
    %v2783 = vld [vmem:[#allocation3 + $0x90] sm:$0xff]
    %v2784 = vld [vmem:[#allocation3 + $0x98] sm:$0xff]
    %v2785 = vld [vmem:[#allocation3 + $0xa0] sm:$0xff]
    %v2786 = vld [vmem:[#allocation3 + $0xa8] sm:$0xff]
    %v2787 = vld [vmem:[#allocation3 + $0xb0] sm:$0xff]
    %v2788 = vld [vmem:[#allocation3 + $0xb8] sm:$0xff]
    %v2789 = vld [vmem:[#allocation3 + $0xc0] sm:$0xff]
    %v2790 = vld [vmem:[#allocation3 + $0xc8] sm:$0xff]
    %v2791 = vld [vmem:[#allocation3 + $0xd0] sm:$0xff]
    %v2792 = vld [vmem:[#allocation3 + $0xd8] sm:$0xff]
    %v2793 = vld [vmem:[#allocation3 + $0xe0] sm:$0xff]
    %v2794 = vld [vmem:[#allocation3 + $0xe8] sm:$0xff]
    %v2795 = vld [vmem:[#allocation3 + $0xf0] sm:$0xff]
    %v2796 = vld [vmem:[#allocation3 + $0xf8] sm:$0xff]
    %v2797 = vld [vmem:[%s1] sm:$0xff]
    %v2798 = vld [vmem:[%s1 + $0x8] sm:$0xff]
    %v2799 = vld [vmem:[%s1 + $0x10] sm:$0xff]
    %v2800 = vld [vmem:[%s1 + $0x18] sm:$0xff]
    %v2801 = vld [vmem:[%s1 + $0x20] sm:$0xff]
    %v2802 = vld [vmem:[%s1 + $0x28] sm:$0xff]
    %v2803 = vld [vmem:[%s1 + $0x30] sm:$0xff]
    %v2804 = vld [vmem:[%s1 + $0x38] sm:$0xff]
    %v2805 = vld [vmem:[%s1 + $0x40] sm:$0xff]
    %v2806 = vld [vmem:[%s1 + $0x48] sm:$0xff]
    %v2807 = vld [vmem:[%s1 + $0x50] sm:$0xff]
    %v2808 = vld [vmem:[%s1 + $0x58] sm:$0xff]
    %v2809 = vld [vmem:[%s1 + $0x60] sm:$0xff]
    %v2810 = vld [vmem:[%s1 + $0x68] sm:$0xff]
    %v2811 = vld [vmem:[%s1 + $0x70] sm:$0xff]
    %v2812 = vld [vmem:[%s1 + $0x78] sm:$0xff]
    %v2813 = vld [vmem:[%s1 + $0x80] sm:$0xff]
    %v2814 = vld [vmem:[%s1 + $0x88] sm:$0xff]
    %v2815 = vld [vmem:[%s1 + $0x90] sm:$0xff]
    %v2816 = vld [vmem:[%s1 + $0x98] sm:$0xff]
    %v2817 = vld [vmem:[%s1 + $0xa0] sm:$0xff]
    %v2818 = vld [vmem:[%s1 + $0xa8] sm:$0xff]
    %v2819 = vld [vmem:[%s1 + $0xb0] sm:$0xff]
    %v2820 = vld [vmem:[%s1 + $0xb8] sm:$0xff]
    %v2821 = vld [vmem:[%s1 + $0xc0] sm:$0xff]
    %v2822 = vld [vmem:[%s1 + $0xc8] sm:$0xff]
    %v2823 = vld [vmem:[%s1 + $0xd0] sm:$0xff]
    %v2824 = vld [vmem:[%s1 + $0xd8] sm:$0xff]
    %v2825 = vld [vmem:[%s1 + $0xe0] sm:$0xff]
    %v2826 = vld [vmem:[%s1 + $0xe8] sm:$0xff]
    %v2827 = vld [vmem:[%s1 + $0xf0] sm:$0xff]
    %v2828 = vld [vmem:[%s1 + $0xf8] sm:$0xff]
    %v2830 = vsel %vm364, %v2797, 0
    %2832 = vmatprep.subr.mxu0 0.0
    %2833 = vmatpush1.msra.mxu0 0.0
    %2834 = vmatprep.subr.mxu0 0.0
    %2835 = vmatpush1.msra.mxu0 0.0
    %2836 = vmatprep.subr.mxu0 0.0
    %2837 = vmatpush1.msra.mxu0 0.0
    %2838 = vmatprep.subr.mxu0 0.0
    %2839 = vmatpush1.msra.mxu0 0.0
    %2840 = vmatprep.subr.mxu0 0.0
    %2841 = vmatpush1.msra.mxu0 0.0
    %2842 = vmatprep.subr.mxu0 0.0
    %2843 = vmatpush1.msra.mxu0 0.0
    %2844 = vmatprep.subr.mxu0 0.0
    %2845 = vmatpush1.msra.mxu0 0.0
    %2846 = vmatprep.subr.mxu0 0.0
    %2847 = vmatpush1.msra.mxu0 0.0
    %2848 = vmatprep.subr.mxu0 0.0
    %2849 = vmatpush1.msra.mxu0 0.0
    %2850 = vmatprep.subr.mxu0 0.0
    %2851 = vmatpush1.msra.mxu0 0.0
    %2852 = vmatprep.subr.mxu0 0.0
    %2853 = vmatpush1.msra.mxu0 0.0
    %2854 = vmatprep.subr.mxu0 0.0
    %2855 = vmatpush1.msra.mxu0 0.0
    %2856 = vmatprep.subr.mxu0 0.0
    %2857 = vmatpush1.msra.mxu0 0.0
    %2858 = vmatprep.subr.mxu0 0.0
    %2859 = vmatpush1.msra.mxu0 0.0
    %2860 = vmatprep.subr.mxu0 0.0
    %2861 = vmatpush1.msra.mxu0 %v237
    %2862 = vmatprep.subr.mxu0 0.0
    %2863 = vmatpush1.msra.mxu0 %v236
    %2864 = vmatprep.subr.mxu0 0.0
    %2865 = vmatpush2.msra.mxu0 0.0
    %2866 = vmatprep.subr.mxu0 0.0
    %2867 = vmatpush2.msra.mxu0 0.0
    %2868 = vmatprep.subr.mxu0 0.0
    %2869 = vmatpush2.msra.mxu0 0.0
    %2870 = vmatprep.subr.mxu0 0.0
    %2871 = vmatpush2.msra.mxu0 0.0
    %2872 = vmatprep.subr.mxu0 0.0
    %2873 = vmatpush2.msra.mxu0 0.0
    %2874 = vmatprep.subr.mxu0 0.0
    %2875 = vmatpush2.msra.mxu0 0.0
    %2876 = vmatprep.subr.mxu0 0.0
    %2877 = vmatpush2.msra.mxu0 0.0
    %2878 = vmatprep.subr.mxu0 0.0
    %2879 = vmatpush2.msra.mxu0 0.0
    %2880 = vmatprep.subr.mxu0 0.0
    %2881 = vmatpush2.msra.mxu0 0.0
    %2882 = vmatprep.subr.mxu0 0.0
    %2883 = vmatpush2.msra.mxu0 0.0
    %2884 = vmatprep.subr.mxu0 0.0
    %2885 = vmatpush2.msra.mxu0 0.0
    %2886 = vmatprep.subr.mxu0 0.0
    %2887 = vmatpush2.msra.mxu0 0.0
    %2888 = vmatprep.subr.mxu0 0.0
    %2889 = vmatpush2.msra.mxu0 0.0
    %2890 = vmatprep.subr.mxu0 0.0
    %2891 = vmatpush2.msra.mxu0 0.0
    %2892 = vmatprep.subr.mxu0 0.0
    %2893 = vmatpush2.msra.mxu0 0.0
    %2894 = vmatprep.subr.mxu0 0.0
    %2895 = vmatpush2.msra.mxu0 0.0
    %2896 = vmatprep.mubr.f32.mxu0 0.0
    %2897 = vmatmul.mubr.f32.gmra.mxu0 %v2830
    %v2898 = vpop.f32.mrf.mxu0
    %v2899 = vadd.f32 0.0, %v2898
    %v2900 = vpop.f32.mrf.mxu0
    %2901 = vdwg.mxu0
    %v2903 = vsel %vm364, %v2798, 0
    %2905 = vmatprep.subr.mxu0 0.0
    %2906 = vmatpush1.msra.mxu0 0.0
    %2907 = vmatprep.subr.mxu0 0.0
    %2908 = vmatpush1.msra.mxu0 0.0
    %2909 = vmatprep.subr.mxu0 0.0
    %2910 = vmatpush1.msra.mxu0 0.0
    %2911 = vmatprep.subr.mxu0 0.0
    %2912 = vmatpush1.msra.mxu0 0.0
    %2913 = vmatprep.subr.mxu0 0.0
    %2914 = vmatpush1.msra.mxu0 0.0
    %2915 = vmatprep.subr.mxu0 0.0
    %2916 = vmatpush1.msra.mxu0 0.0
    %2917 = vmatprep.subr.mxu0 0.0
    %2918 = vmatpush1.msra.mxu0 0.0
    %2919 = vmatprep.subr.mxu0 0.0
    %2920 = vmatpush1.msra.mxu0 0.0
    %2921 = vmatprep.subr.mxu0 0.0
    %2922 = vmatpush1.msra.mxu0 0.0
    %2923 = vmatprep.subr.mxu0 0.0
    %2924 = vmatpush1.msra.mxu0 0.0
    %2925 = vmatprep.subr.mxu0 0.0
    %2926 = vmatpush1.msra.mxu0 0.0
    %2927 = vmatprep.subr.mxu0 0.0
    %2928 = vmatpush1.msra.mxu0 0.0
    %2929 = vmatprep.subr.mxu0 0.0
    %2930 = vmatpush1.msra.mxu0 0.0
    %2931 = vmatprep.subr.mxu0 0.0
    %2932 = vmatpush1.msra.mxu0 0.0
    %2933 = vmatprep.subr.mxu0 0.0
    %2934 = vmatpush1.msra.mxu0 %v239
    %2935 = vmatprep.subr.mxu0 0.0
    %2936 = vmatpush1.msra.mxu0 %v238
    %2937 = vmatprep.subr.mxu0 0.0
    %2938 = vmatpush2.msra.mxu0 0.0
    %2939 = vmatprep.subr.mxu0 0.0
    %2940 = vmatpush2.msra.mxu0 0.0
    %2941 = vmatprep.subr.mxu0 0.0
    %2942 = vmatpush2.msra.mxu0 0.0
    %2943 = vmatprep.subr.mxu0 0.0
    %2944 = vmatpush2.msra.mxu0 0.0
    %2945 = vmatprep.subr.mxu0 0.0
    %2946 = vmatpush2.msra.mxu0 0.0
    %2947 = vmatprep.subr.mxu0 0.0
    %2948 = vmatpush2.msra.mxu0 0.0
    %2949 = vmatprep.subr.mxu0 0.0
    %2950 = vmatpush2.msra.mxu0 0.0
    %2951 = vmatprep.subr.mxu0 0.0
    %2952 = vmatpush2.msra.mxu0 0.0
    %2953 = vmatprep.subr.mxu0 0.0
    %2954 = vmatpush2.msra.mxu0 0.0
    %2955 = vmatprep.subr.mxu0 0.0
    %2956 = vmatpush2.msra.mxu0 0.0
    %2957 = vmatprep.subr.mxu0 0.0
    %2958 = vmatpush2.msra.mxu0 0.0
    %2959 = vmatprep.subr.mxu0 0.0
    %2960 = vmatpush2.msra.mxu0 0.0
    %2961 = vmatprep.subr.mxu0 0.0
    %2962 = vmatpush2.msra.mxu0 0.0
    %2963 = vmatprep.subr.mxu0 0.0
    %2964 = vmatpush2.msra.mxu0 0.0
    %2965 = vmatprep.subr.mxu0 0.0
    %2966 = vmatpush2.msra.mxu0 0.0
    %2967 = vmatprep.subr.mxu0 0.0
    %2968 = vmatpush2.msra.mxu0 0.0
    %2969 = vmatprep.mubr.f32.mxu0 0.0
    %2970 = vmatmul.mubr.f32.gmra.mxu0 %v2903
    %v2971 = vpop.f32.mrf.mxu0
    %v2972 = vadd.f32 0.0, %v2971
    %v2973 = vpop.f32.mrf.mxu0
    %2974 = vdwg.mxu0
    %v2976 = vsel %vm364, %v2799, 0
    %2978 = vmatprep.subr.mxu0 0.0
    %2979 = vmatpush1.msra.mxu0 0.0
    %2980 = vmatprep.subr.mxu0 0.0
    %2981 = vmatpush1.msra.mxu0 0.0
    %2982 = vmatprep.subr.mxu0 0.0
    %2983 = vmatpush1.msra.mxu0 0.0
    %2984 = vmatprep.subr.mxu0 0.0
    %2985 = vmatpush1.msra.mxu0 0.0
    %2986 = vmatprep.subr.mxu0 0.0
    %2987 = vmatpush1.msra.mxu0 0.0
    %2988 = vmatprep.subr.mxu0 0.0
    %2989 = vmatpush1.msra.mxu0 0.0
    %2990 = vmatprep.subr.mxu0 0.0
    %2991 = vmatpush1.msra.mxu0 0.0
    %2992 = vmatprep.subr.mxu0 0.0
    %2993 = vmatpush1.msra.mxu0 0.0
    %2994 = vmatprep.subr.mxu0 0.0
    %2995 = vmatpush1.msra.mxu0 0.0
    %2996 = vmatprep.subr.mxu0 0.0
    %2997 = vmatpush1.msra.mxu0 0.0
    %2998 = vmatprep.subr.mxu0 0.0
    %2999 = vmatpush1.msra.mxu0 0.0
    %3000 = vmatprep.subr.mxu0 0.0
    %3001 = vmatpush1.msra.mxu0 0.0
    %3002 = vmatprep.subr.mxu0 0.0
    %3003 = vmatpush1.msra.mxu0 0.0
    %3004 = vmatprep.subr.mxu0 0.0
    %3005 = vmatpush1.msra.mxu0 0.0
    %3006 = vmatprep.subr.mxu0 0.0
    %3007 = vmatpush1.msra.mxu0 %v241
    %3008 = vmatprep.subr.mxu0 0.0
    %3009 = vmatpush1.msra.mxu0 %v240
    %3010 = vmatprep.subr.mxu0 0.0
    %3011 = vmatpush2.msra.mxu0 0.0
    %3012 = vmatprep.subr.mxu0 0.0
    %3013 = vmatpush2.msra.mxu0 0.0
    %3014 = vmatprep.subr.mxu0 0.0
    %3015 = vmatpush2.msra.mxu0 0.0
    %3016 = vmatprep.subr.mxu0 0.0
    %3017 = vmatpush2.msra.mxu0 0.0
    %3018 = vmatprep.subr.mxu0 0.0
    %3019 = vmatpush2.msra.mxu0 0.0
    %3020 = vmatprep.subr.mxu0 0.0
    %3021 = vmatpush2.msra.mxu0 0.0
    %3022 = vmatprep.subr.mxu0 0.0
    %3023 = vmatpush2.msra.mxu0 0.0
    %3024 = vmatprep.subr.mxu0 0.0
    %3025 = vmatpush2.msra.mxu0 0.0
    %3026 = vmatprep.subr.mxu0 0.0
    %3027 = vmatpush2.msra.mxu0 0.0
    %3028 = vmatprep.subr.mxu0 0.0
    %3029 = vmatpush2.msra.mxu0 0.0
    %3030 = vmatprep.subr.mxu0 0.0
    %3031 = vmatpush2.msra.mxu0 0.0
    %3032 = vmatprep.subr.mxu0 0.0
    %3033 = vmatpush2.msra.mxu0 0.0
    %3034 = vmatprep.subr.mxu0 0.0
    %3035 = vmatpush2.msra.mxu0 0.0
    %3036 = vmatprep.subr.mxu0 0.0
    %3037 = vmatpush2.msra.mxu0 0.0
    %3038 = vmatprep.subr.mxu0 0.0
    %3039 = vmatpush2.msra.mxu0 0.0
    %3040 = vmatprep.subr.mxu0 0.0
    %3041 = vmatpush2.msra.mxu0 0.0
    %3042 = vmatprep.mubr.f32.mxu0 0.0
    %3043 = vmatmul.mubr.f32.gmra.mxu0 %v2976
    %v3044 = vpop.f32.mrf.mxu0
    %v3045 = vadd.f32 0.0, %v3044
    %v3046 = vpop.f32.mrf.mxu0
    %3047 = vdwg.mxu0
    %v3049 = vsel %vm364, %v2800, 0
    %3051 = vmatprep.subr.mxu0 0.0
    %3052 = vmatpush1.msra.mxu0 0.0
    %3053 = vmatprep.subr.mxu0 0.0
    %3054 = vmatpush1.msra.mxu0 0.0
    %3055 = vmatprep.subr.mxu0 0.0
    %3056 = vmatpush1.msra.mxu0 0.0
    %3057 = vmatprep.subr.mxu0 0.0
    %3058 = vmatpush1.msra.mxu0 0.0
    %3059 = vmatprep.subr.mxu0 0.0
    %3060 = vmatpush1.msra.mxu0 0.0
    %3061 = vmatprep.subr.mxu0 0.0
    %3062 = vmatpush1.msra.mxu0 0.0
    %3063 = vmatprep.subr.mxu0 0.0
    %3064 = vmatpush1.msra.mxu0 0.0
    %3065 = vmatprep.subr.mxu0 0.0
    %3066 = vmatpush1.msra.mxu0 0.0
    %3067 = vmatprep.subr.mxu0 0.0
    %3068 = vmatpush1.msra.mxu0 0.0
    %3069 = vmatprep.subr.mxu0 0.0
    %3070 = vmatpush1.msra.mxu0 0.0
    %3071 = vmatprep.subr.mxu0 0.0
    %3072 = vmatpush1.msra.mxu0 0.0
    %3073 = vmatprep.subr.mxu0 0.0
    %3074 = vmatpush1.msra.mxu0 0.0
    %3075 = vmatprep.subr.mxu0 0.0
    %3076 = vmatpush1.msra.mxu0 0.0
    %3077 = vmatprep.subr.mxu0 0.0
    %3078 = vmatpush1.msra.mxu0 0.0
    %3079 = vmatprep.subr.mxu0 0.0
    %3080 = vmatpush1.msra.mxu0 %v243
    %3081 = vmatprep.subr.mxu0 0.0
    %3082 = vmatpush1.msra.mxu0 %v242
    %3083 = vmatprep.subr.mxu0 0.0
    %3084 = vmatpush2.msra.mxu0 0.0
    %3085 = vmatprep.subr.mxu0 0.0
    %3086 = vmatpush2.msra.mxu0 0.0
    %3087 = vmatprep.subr.mxu0 0.0
    %3088 = vmatpush2.msra.mxu0 0.0
    %3089 = vmatprep.subr.mxu0 0.0
    %3090 = vmatpush2.msra.mxu0 0.0
    %3091 = vmatprep.subr.mxu0 0.0
    %3092 = vmatpush2.msra.mxu0 0.0
    %3093 = vmatprep.subr.mxu0 0.0
    %3094 = vmatpush2.msra.mxu0 0.0
    %3095 = vmatprep.subr.mxu0 0.0
    %3096 = vmatpush2.msra.mxu0 0.0
    %3097 = vmatprep.subr.mxu0 0.0
    %3098 = vmatpush2.msra.mxu0 0.0
    %3099 = vmatprep.subr.mxu0 0.0
    %3100 = vmatpush2.msra.mxu0 0.0
    %3101 = vmatprep.subr.mxu0 0.0
    %3102 = vmatpush2.msra.mxu0 0.0
    %3103 = vmatprep.subr.mxu0 0.0
    %3104 = vmatpush2.msra.mxu0 0.0
    %3105 = vmatprep.subr.mxu0 0.0
    %3106 = vmatpush2.msra.mxu0 0.0
    %3107 = vmatprep.subr.mxu0 0.0
    %3108 = vmatpush2.msra.mxu0 0.0
    %3109 = vmatprep.subr.mxu0 0.0
    %3110 = vmatpush2.msra.mxu0 0.0
    %3111 = vmatprep.subr.mxu0 0.0
    %3112 = vmatpush2.msra.mxu0 0.0
    %3113 = vmatprep.subr.mxu0 0.0
    %3114 = vmatpush2.msra.mxu0 0.0
    %3115 = vmatprep.mubr.f32.mxu0 0.0
    %3116 = vmatmul.mubr.f32.gmra.mxu0 %v3049
    %v3117 = vpop.f32.mrf.mxu0
    %v3118 = vadd.f32 0.0, %v3117
    %v3119 = vpop.f32.mrf.mxu0
    %3120 = vdwg.mxu0
    %v3122 = vsel %vm364, %v2801, 0
    %3124 = vmatprep.subr.mxu0 0.0
    %3125 = vmatpush1.msra.mxu0 0.0
    %3126 = vmatprep.subr.mxu0 0.0
    %3127 = vmatpush1.msra.mxu0 0.0
    %3128 = vmatprep.subr.mxu0 0.0
    %3129 = vmatpush1.msra.mxu0 0.0
    %3130 = vmatprep.subr.mxu0 0.0
    %3131 = vmatpush1.msra.mxu0 0.0
    %3132 = vmatprep.subr.mxu0 0.0
    %3133 = vmatpush1.msra.mxu0 0.0
    %3134 = vmatprep.subr.mxu0 0.0
    %3135 = vmatpush1.msra.mxu0 0.0
    %3136 = vmatprep.subr.mxu0 0.0
    %3137 = vmatpush1.msra.mxu0 0.0
    %3138 = vmatprep.subr.mxu0 0.0
    %3139 = vmatpush1.msra.mxu0 0.0
    %3140 = vmatprep.subr.mxu0 0.0
    %3141 = vmatpush1.msra.mxu0 0.0
    %3142 = vmatprep.subr.mxu0 0.0
    %3143 = vmatpush1.msra.mxu0 0.0
    %3144 = vmatprep.subr.mxu0 0.0
    %3145 = vmatpush1.msra.mxu0 0.0
    %3146 = vmatprep.subr.mxu0 0.0
    %3147 = vmatpush1.msra.mxu0 0.0
    %3148 = vmatprep.subr.mxu0 0.0
    %3149 = vmatpush1.msra.mxu0 0.0
    %3150 = vmatprep.subr.mxu0 0.0
    %3151 = vmatpush1.msra.mxu0 0.0
    %3152 = vmatprep.subr.mxu0 0.0
    %3153 = vmatpush1.msra.mxu0 %v245
    %3154 = vmatprep.subr.mxu0 0.0
    %3155 = vmatpush1.msra.mxu0 %v244
    %3156 = vmatprep.subr.mxu0 0.0
    %3157 = vmatpush2.msra.mxu0 0.0
    %3158 = vmatprep.subr.mxu0 0.0
    %3159 = vmatpush2.msra.mxu0 0.0
    %3160 = vmatprep.subr.mxu0 0.0
    %3161 = vmatpush2.msra.mxu0 0.0
    %3162 = vmatprep.subr.mxu0 0.0
    %3163 = vmatpush2.msra.mxu0 0.0
    %3164 = vmatprep.subr.mxu0 0.0
    %3165 = vmatpush2.msra.mxu0 0.0
    %3166 = vmatprep.subr.mxu0 0.0
    %3167 = vmatpush2.msra.mxu0 0.0
    %3168 = vmatprep.subr.mxu0 0.0
    %3169 = vmatpush2.msra.mxu0 0.0
    %3170 = vmatprep.subr.mxu0 0.0
    %3171 = vmatpush2.msra.mxu0 0.0
    %3172 = vmatprep.subr.mxu0 0.0
    %3173 = vmatpush2.msra.mxu0 0.0
    %3174 = vmatprep.subr.mxu0 0.0
    %3175 = vmatpush2.msra.mxu0 0.0
    %3176 = vmatprep.subr.mxu0 0.0
    %3177 = vmatpush2.msra.mxu0 0.0
    %3178 = vmatprep.subr.mxu0 0.0
    %3179 = vmatpush2.msra.mxu0 0.0
    %3180 = vmatprep.subr.mxu0 0.0
    %3181 = vmatpush2.msra.mxu0 0.0
    %3182 = vmatprep.subr.mxu0 0.0
    %3183 = vmatpush2.msra.mxu0 0.0
    %3184 = vmatprep.subr.mxu0 0.0
    %3185 = vmatpush2.msra.mxu0 0.0
    %3186 = vmatprep.subr.mxu0 0.0
    %3187 = vmatpush2.msra.mxu0 0.0
    %3188 = vmatprep.mubr.f32.mxu0 0.0
    %3189 = vmatmul.mubr.f32.gmra.mxu0 %v3122
    %v3190 = vpop.f32.mrf.mxu0
    %v3191 = vadd.f32 0.0, %v3190
    %v3192 = vpop.f32.mrf.mxu0
    %3193 = vdwg.mxu0
    %v3195 = vsel %vm364, %v2802, 0
    %3197 = vmatprep.subr.mxu0 0.0
    %3198 = vmatpush1.msra.mxu0 0.0
    %3199 = vmatprep.subr.mxu0 0.0
    %3200 = vmatpush1.msra.mxu0 0.0
    %3201 = vmatprep.subr.mxu0 0.0
    %3202 = vmatpush1.msra.mxu0 0.0
    %3203 = vmatprep.subr.mxu0 0.0
    %3204 = vmatpush1.msra.mxu0 0.0
    %3205 = vmatprep.subr.mxu0 0.0
    %3206 = vmatpush1.msra.mxu0 0.0
    %3207 = vmatprep.subr.mxu0 0.0
    %3208 = vmatpush1.msra.mxu0 0.0
    %3209 = vmatprep.subr.mxu0 0.0
    %3210 = vmatpush1.msra.mxu0 0.0
    %3211 = vmatprep.subr.mxu0 0.0
    %3212 = vmatpush1.msra.mxu0 0.0
    %3213 = vmatprep.subr.mxu0 0.0
    %3214 = vmatpush1.msra.mxu0 0.0
    %3215 = vmatprep.subr.mxu0 0.0
    %3216 = vmatpush1.msra.mxu0 0.0
    %3217 = vmatprep.subr.mxu0 0.0
    %3218 = vmatpush1.msra.mxu0 0.0
    %3219 = vmatprep.subr.mxu0 0.0
    %3220 = vmatpush1.msra.mxu0 0.0
    %3221 = vmatprep.subr.mxu0 0.0
    %3222 = vmatpush1.msra.mxu0 0.0
    %3223 = vmatprep.subr.mxu0 0.0
    %3224 = vmatpush1.msra.mxu0 0.0
    %3225 = vmatprep.subr.mxu0 0.0
    %3226 = vmatpush1.msra.mxu0 %v247
    %3227 = vmatprep.subr.mxu0 0.0
    %3228 = vmatpush1.msra.mxu0 %v246
    %3229 = vmatprep.subr.mxu0 0.0
    %3230 = vmatpush2.msra.mxu0 0.0
    %3231 = vmatprep.subr.mxu0 0.0
    %3232 = vmatpush2.msra.mxu0 0.0
    %3233 = vmatprep.subr.mxu0 0.0
    %3234 = vmatpush2.msra.mxu0 0.0
    %3235 = vmatprep.subr.mxu0 0.0
    %3236 = vmatpush2.msra.mxu0 0.0
    %3237 = vmatprep.subr.mxu0 0.0
    %3238 = vmatpush2.msra.mxu0 0.0
    %3239 = vmatprep.subr.mxu0 0.0
    %3240 = vmatpush2.msra.mxu0 0.0
    %3241 = vmatprep.subr.mxu0 0.0
    %3242 = vmatpush2.msra.mxu0 0.0
    %3243 = vmatprep.subr.mxu0 0.0
    %3244 = vmatpush2.msra.mxu0 0.0
    %3245 = vmatprep.subr.mxu0 0.0
    %3246 = vmatpush2.msra.mxu0 0.0
    %3247 = vmatprep.subr.mxu0 0.0
    %3248 = vmatpush2.msra.mxu0 0.0
    %3249 = vmatprep.subr.mxu0 0.0
    %3250 = vmatpush2.msra.mxu0 0.0
    %3251 = vmatprep.subr.mxu0 0.0
    %3252 = vmatpush2.msra.mxu0 0.0
    %3253 = vmatprep.subr.mxu0 0.0
    %3254 = vmatpush2.msra.mxu0 0.0
    %3255 = vmatprep.subr.mxu0 0.0
    %3256 = vmatpush2.msra.mxu0 0.0
    %3257 = vmatprep.subr.mxu0 0.0
    %3258 = vmatpush2.msra.mxu0 0.0
    %3259 = vmatprep.subr.mxu0 0.0
    %3260 = vmatpush2.msra.mxu0 0.0
    %3261 = vmatprep.mubr.f32.mxu0 0.0
    %3262 = vmatmul.mubr.f32.gmra.mxu0 %v3195
    %v3263 = vpop.f32.mrf.mxu0
    %v3264 = vadd.f32 0.0, %v3263
    %v3265 = vpop.f32.mrf.mxu0
    %3266 = vdwg.mxu0
    %v3268 = vsel %vm364, %v2803, 0
    %3270 = vmatprep.subr.mxu0 0.0
    %3271 = vmatpush1.msra.mxu0 0.0
    %3272 = vmatprep.subr.mxu0 0.0
    %3273 = vmatpush1.msra.mxu0 0.0
    %3274 = vmatprep.subr.mxu0 0.0
    %3275 = vmatpush1.msra.mxu0 0.0
    %3276 = vmatprep.subr.mxu0 0.0
    %3277 = vmatpush1.msra.mxu0 0.0
    %3278 = vmatprep.subr.mxu0 0.0
    %3279 = vmatpush1.msra.mxu0 0.0
    %3280 = vmatprep.subr.mxu0 0.0
    %3281 = vmatpush1.msra.mxu0 0.0
    %3282 = vmatprep.subr.mxu0 0.0
    %3283 = vmatpush1.msra.mxu0 0.0
    %3284 = vmatprep.subr.mxu0 0.0
    %3285 = vmatpush1.msra.mxu0 0.0
    %3286 = vmatprep.subr.mxu0 0.0
    %3287 = vmatpush1.msra.mxu0 0.0
    %3288 = vmatprep.subr.mxu0 0.0
    %3289 = vmatpush1.msra.mxu0 0.0
    %3290 = vmatprep.subr.mxu0 0.0
    %3291 = vmatpush1.msra.mxu0 0.0
    %3292 = vmatprep.subr.mxu0 0.0
    %3293 = vmatpush1.msra.mxu0 0.0
    %3294 = vmatprep.subr.mxu0 0.0
    %3295 = vmatpush1.msra.mxu0 0.0
    %3296 = vmatprep.subr.mxu0 0.0
    %3297 = vmatpush1.msra.mxu0 0.0
    %3298 = vmatprep.subr.mxu0 0.0
    %3299 = vmatpush1.msra.mxu0 %v249
    %3300 = vmatprep.subr.mxu0 0.0
    %3301 = vmatpush1.msra.mxu0 %v248
    %3302 = vmatprep.subr.mxu0 0.0
    %3303 = vmatpush2.msra.mxu0 0.0
    %3304 = vmatprep.subr.mxu0 0.0
    %3305 = vmatpush2.msra.mxu0 0.0
    %3306 = vmatprep.subr.mxu0 0.0
    %3307 = vmatpush2.msra.mxu0 0.0
    %3308 = vmatprep.subr.mxu0 0.0
    %3309 = vmatpush2.msra.mxu0 0.0
    %3310 = vmatprep.subr.mxu0 0.0
    %3311 = vmatpush2.msra.mxu0 0.0
    %3312 = vmatprep.subr.mxu0 0.0
    %3313 = vmatpush2.msra.mxu0 0.0
    %3314 = vmatprep.subr.mxu0 0.0
    %3315 = vmatpush2.msra.mxu0 0.0
    %3316 = vmatprep.subr.mxu0 0.0
    %3317 = vmatpush2.msra.mxu0 0.0
    %3318 = vmatprep.subr.mxu0 0.0
    %3319 = vmatpush2.msra.mxu0 0.0
    %3320 = vmatprep.subr.mxu0 0.0
    %3321 = vmatpush2.msra.mxu0 0.0
    %3322 = vmatprep.subr.mxu0 0.0
    %3323 = vmatpush2.msra.mxu0 0.0
    %3324 = vmatprep.subr.mxu0 0.0
    %3325 = vmatpush2.msra.mxu0 0.0
    %3326 = vmatprep.subr.mxu0 0.0
    %3327 = vmatpush2.msra.mxu0 0.0
    %3328 = vmatprep.subr.mxu0 0.0
    %3329 = vmatpush2.msra.mxu0 0.0
    %3330 = vmatprep.subr.mxu0 0.0
    %3331 = vmatpush2.msra.mxu0 0.0
    %3332 = vmatprep.subr.mxu0 0.0
    %3333 = vmatpush2.msra.mxu0 0.0
    %3334 = vmatprep.mubr.f32.mxu0 0.0
    %3335 = vmatmul.mubr.f32.gmra.mxu0 %v3268
    %v3336 = vpop.f32.mrf.mxu0
    %v3337 = vadd.f32 0.0, %v3336
    %v3338 = vpop.f32.mrf.mxu0
    %3339 = vdwg.mxu0
    %v3341 = vsel %vm364, %v2804, 0
    %3343 = vmatprep.subr.mxu0 0.0
    %3344 = vmatpush1.msra.mxu0 0.0
    %3345 = vmatprep.subr.mxu0 0.0
    %3346 = vmatpush1.msra.mxu0 0.0
    %3347 = vmatprep.subr.mxu0 0.0
    %3348 = vmatpush1.msra.mxu0 0.0
    %3349 = vmatprep.subr.mxu0 0.0
    %3350 = vmatpush1.msra.mxu0 0.0
    %3351 = vmatprep.subr.mxu0 0.0
    %3352 = vmatpush1.msra.mxu0 0.0
    %3353 = vmatprep.subr.mxu0 0.0
    %3354 = vmatpush1.msra.mxu0 0.0
    %3355 = vmatprep.subr.mxu0 0.0
    %3356 = vmatpush1.msra.mxu0 0.0
    %3357 = vmatprep.subr.mxu0 0.0
    %3358 = vmatpush1.msra.mxu0 0.0
    %3359 = vmatprep.subr.mxu0 0.0
    %3360 = vmatpush1.msra.mxu0 0.0
    %3361 = vmatprep.subr.mxu0 0.0
    %3362 = vmatpush1.msra.mxu0 0.0
    %3363 = vmatprep.subr.mxu0 0.0
    %3364 = vmatpush1.msra.mxu0 0.0
    %3365 = vmatprep.subr.mxu0 0.0
    %3366 = vmatpush1.msra.mxu0 0.0
    %3367 = vmatprep.subr.mxu0 0.0
    %3368 = vmatpush1.msra.mxu0 0.0
    %3369 = vmatprep.subr.mxu0 0.0
    %3370 = vmatpush1.msra.mxu0 0.0
    %3371 = vmatprep.subr.mxu0 0.0
    %3372 = vmatpush1.msra.mxu0 %v251
    %3373 = vmatprep.subr.mxu0 0.0
    %3374 = vmatpush1.msra.mxu0 %v250
    %3375 = vmatprep.subr.mxu0 0.0
    %3376 = vmatpush2.msra.mxu0 0.0
    %3377 = vmatprep.subr.mxu0 0.0
    %3378 = vmatpush2.msra.mxu0 0.0
    %3379 = vmatprep.subr.mxu0 0.0
    %3380 = vmatpush2.msra.mxu0 0.0
    %3381 = vmatprep.subr.mxu0 0.0
    %3382 = vmatpush2.msra.mxu0 0.0
    %3383 = vmatprep.subr.mxu0 0.0
    %3384 = vmatpush2.msra.mxu0 0.0
    %3385 = vmatprep.subr.mxu0 0.0
    %3386 = vmatpush2.msra.mxu0 0.0
    %3387 = vmatprep.subr.mxu0 0.0
    %3388 = vmatpush2.msra.mxu0 0.0
    %3389 = vmatprep.subr.mxu0 0.0
    %3390 = vmatpush2.msra.mxu0 0.0
    %3391 = vmatprep.subr.mxu0 0.0
    %3392 = vmatpush2.msra.mxu0 0.0
    %3393 = vmatprep.subr.mxu0 0.0
    %3394 = vmatpush2.msra.mxu0 0.0
    %3395 = vmatprep.subr.mxu0 0.0
    %3396 = vmatpush2.msra.mxu0 0.0
    %3397 = vmatprep.subr.mxu0 0.0
    %3398 = vmatpush2.msra.mxu0 0.0
    %3399 = vmatprep.subr.mxu0 0.0
    %3400 = vmatpush2.msra.mxu0 0.0
    %3401 = vmatprep.subr.mxu0 0.0
    %3402 = vmatpush2.msra.mxu0 0.0
    %3403 = vmatprep.subr.mxu0 0.0
    %3404 = vmatpush2.msra.mxu0 0.0
    %3405 = vmatprep.subr.mxu0 0.0
    %3406 = vmatpush2.msra.mxu0 0.0
    %3407 = vmatprep.mubr.f32.mxu0 0.0
    %3408 = vmatmul.mubr.f32.gmra.mxu0 %v3341
    %v3409 = vpop.f32.mrf.mxu0
    %v3410 = vadd.f32 0.0, %v3409
    %v3411 = vpop.f32.mrf.mxu0
    %3412 = vdwg.mxu0
    %v3414 = vsel %vm364, %v2805, 0
    %3416 = vmatprep.subr.mxu0 0.0
    %3417 = vmatpush1.msra.mxu0 0.0
    %3418 = vmatprep.subr.mxu0 0.0
    %3419 = vmatpush1.msra.mxu0 0.0
    %3420 = vmatprep.subr.mxu0 0.0
    %3421 = vmatpush1.msra.mxu0 0.0
    %3422 = vmatprep.subr.mxu0 0.0
    %3423 = vmatpush1.msra.mxu0 0.0
    %3424 = vmatprep.subr.mxu0 0.0
    %3425 = vmatpush1.msra.mxu0 0.0
    %3426 = vmatprep.subr.mxu0 0.0
    %3427 = vmatpush1.msra.mxu0 0.0
    %3428 = vmatprep.subr.mxu0 0.0
    %3429 = vmatpush1.msra.mxu0 0.0
    %3430 = vmatprep.subr.mxu0 0.0
    %3431 = vmatpush1.msra.mxu0 0.0
    %3432 = vmatprep.subr.mxu0 0.0
    %3433 = vmatpush1.msra.mxu0 0.0
    %3434 = vmatprep.subr.mxu0 0.0
    %3435 = vmatpush1.msra.mxu0 0.0
    %3436 = vmatprep.subr.mxu0 0.0
    %3437 = vmatpush1.msra.mxu0 0.0
    %3438 = vmatprep.subr.mxu0 0.0
    %3439 = vmatpush1.msra.mxu0 0.0
    %3440 = vmatprep.subr.mxu0 0.0
    %3441 = vmatpush1.msra.mxu0 0.0
    %3442 = vmatprep.subr.mxu0 0.0
    %3443 = vmatpush1.msra.mxu0 0.0
    %3444 = vmatprep.subr.mxu0 0.0
    %3445 = vmatpush1.msra.mxu0 %v253
    %3446 = vmatprep.subr.mxu0 0.0
    %3447 = vmatpush1.msra.mxu0 %v252
    %3448 = vmatprep.subr.mxu0 0.0
    %3449 = vmatpush2.msra.mxu0 0.0
    %3450 = vmatprep.subr.mxu0 0.0
    %3451 = vmatpush2.msra.mxu0 0.0
    %3452 = vmatprep.subr.mxu0 0.0
    %3453 = vmatpush2.msra.mxu0 0.0
    %3454 = vmatprep.subr.mxu0 0.0
    %3455 = vmatpush2.msra.mxu0 0.0
    %3456 = vmatprep.subr.mxu0 0.0
    %3457 = vmatpush2.msra.mxu0 0.0
    %3458 = vmatprep.subr.mxu0 0.0
    %3459 = vmatpush2.msra.mxu0 0.0
    %3460 = vmatprep.subr.mxu0 0.0
    %3461 = vmatpush2.msra.mxu0 0.0
    %3462 = vmatprep.subr.mxu0 0.0
    %3463 = vmatpush2.msra.mxu0 0.0
    %3464 = vmatprep.subr.mxu0 0.0
    %3465 = vmatpush2.msra.mxu0 0.0
    %3466 = vmatprep.subr.mxu0 0.0
    %3467 = vmatpush2.msra.mxu0 0.0
    %3468 = vmatprep.subr.mxu0 0.0
    %3469 = vmatpush2.msra.mxu0 0.0
    %3470 = vmatprep.subr.mxu0 0.0
    %3471 = vmatpush2.msra.mxu0 0.0
    %3472 = vmatprep.subr.mxu0 0.0
    %3473 = vmatpush2.msra.mxu0 0.0
    %3474 = vmatprep.subr.mxu0 0.0
    %3475 = vmatpush2.msra.mxu0 0.0
    %3476 = vmatprep.subr.mxu0 0.0
    %3477 = vmatpush2.msra.mxu0 0.0
    %3478 = vmatprep.subr.mxu0 0.0
    %3479 = vmatpush2.msra.mxu0 0.0
    %3480 = vmatprep.mubr.f32.mxu0 0.0
    %3481 = vmatmul.mubr.f32.gmra.mxu0 %v3414
    %v3482 = vpop.f32.mrf.mxu0
    %v3483 = vadd.f32 0.0, %v3482
    %v3484 = vpop.f32.mrf.mxu0
    %3485 = vdwg.mxu0
    %v3487 = vsel %vm364, %v2806, 0
    %3489 = vmatprep.subr.mxu0 0.0
    %3490 = vmatpush1.msra.mxu0 0.0
    %3491 = vmatprep.subr.mxu0 0.0
    %3492 = vmatpush1.msra.mxu0 0.0
    %3493 = vmatprep.subr.mxu0 0.0
    %3494 = vmatpush1.msra.mxu0 0.0
    %3495 = vmatprep.subr.mxu0 0.0
    %3496 = vmatpush1.msra.mxu0 0.0
    %3497 = vmatprep.subr.mxu0 0.0
    %3498 = vmatpush1.msra.mxu0 0.0
    %3499 = vmatprep.subr.mxu0 0.0
    %3500 = vmatpush1.msra.mxu0 0.0
    %3501 = vmatprep.subr.mxu0 0.0
    %3502 = vmatpush1.msra.mxu0 0.0
    %3503 = vmatprep.subr.mxu0 0.0
    %3504 = vmatpush1.msra.mxu0 0.0
    %3505 = vmatprep.subr.mxu0 0.0
    %3506 = vmatpush1.msra.mxu0 0.0
    %3507 = vmatprep.subr.mxu0 0.0
    %3508 = vmatpush1.msra.mxu0 0.0
    %3509 = vmatprep.subr.mxu0 0.0
    %3510 = vmatpush1.msra.mxu0 0.0
    %3511 = vmatprep.subr.mxu0 0.0
    %3512 = vmatpush1.msra.mxu0 0.0
    %3513 = vmatprep.subr.mxu0 0.0
    %3514 = vmatpush1.msra.mxu0 0.0
    %3515 = vmatprep.subr.mxu0 0.0
    %3516 = vmatpush1.msra.mxu0 0.0
    %3517 = vmatprep.subr.mxu0 0.0
    %3518 = vmatpush1.msra.mxu0 %v255
    %3519 = vmatprep.subr.mxu0 0.0
    %3520 = vmatpush1.msra.mxu0 %v254
    %3521 = vmatprep.subr.mxu0 0.0
    %3522 = vmatpush2.msra.mxu0 0.0
    %3523 = vmatprep.subr.mxu0 0.0
    %3524 = vmatpush2.msra.mxu0 0.0
    %3525 = vmatprep.subr.mxu0 0.0
    %3526 = vmatpush2.msra.mxu0 0.0
    %3527 = vmatprep.subr.mxu0 0.0
    %3528 = vmatpush2.msra.mxu0 0.0
    %3529 = vmatprep.subr.mxu0 0.0
    %3530 = vmatpush2.msra.mxu0 0.0
    %3531 = vmatprep.subr.mxu0 0.0
    %3532 = vmatpush2.msra.mxu0 0.0
    %3533 = vmatprep.subr.mxu0 0.0
    %3534 = vmatpush2.msra.mxu0 0.0
    %3535 = vmatprep.subr.mxu0 0.0
    %3536 = vmatpush2.msra.mxu0 0.0
    %3537 = vmatprep.subr.mxu0 0.0
    %3538 = vmatpush2.msra.mxu0 0.0
    %3539 = vmatprep.subr.mxu0 0.0
    %3540 = vmatpush2.msra.mxu0 0.0
    %3541 = vmatprep.subr.mxu0 0.0
    %3542 = vmatpush2.msra.mxu0 0.0
    %3543 = vmatprep.subr.mxu0 0.0
    %3544 = vmatpush2.msra.mxu0 0.0
    %3545 = vmatprep.subr.mxu0 0.0
    %3546 = vmatpush2.msra.mxu0 0.0
    %3547 = vmatprep.subr.mxu0 0.0
    %3548 = vmatpush2.msra.mxu0 0.0
    %3549 = vmatprep.subr.mxu0 0.0
    %3550 = vmatpush2.msra.mxu0 0.0
    %3551 = vmatprep.subr.mxu0 0.0
    %3552 = vmatpush2.msra.mxu0 0.0
    %3553 = vmatprep.mubr.f32.mxu0 0.0
    %3554 = vmatmul.mubr.f32.gmra.mxu0 %v3487
    %v3555 = vpop.f32.mrf.mxu0
    %v3556 = vadd.f32 0.0, %v3555
    %v3557 = vpop.f32.mrf.mxu0
    %3558 = vdwg.mxu0
    %v3560 = vsel %vm364, %v2807, 0
    %3562 = vmatprep.subr.mxu0 0.0
    %3563 = vmatpush1.msra.mxu0 0.0
    %3564 = vmatprep.subr.mxu0 0.0
    %3565 = vmatpush1.msra.mxu0 0.0
    %3566 = vmatprep.subr.mxu0 0.0
    %3567 = vmatpush1.msra.mxu0 0.0
    %3568 = vmatprep.subr.mxu0 0.0
    %3569 = vmatpush1.msra.mxu0 0.0
    %3570 = vmatprep.subr.mxu0 0.0
    %3571 = vmatpush1.msra.mxu0 0.0
    %3572 = vmatprep.subr.mxu0 0.0
    %3573 = vmatpush1.msra.mxu0 0.0
    %3574 = vmatprep.subr.mxu0 0.0
    %3575 = vmatpush1.msra.mxu0 0.0
    %3576 = vmatprep.subr.mxu0 0.0
    %3577 = vmatpush1.msra.mxu0 0.0
    %3578 = vmatprep.subr.mxu0 0.0
    %3579 = vmatpush1.msra.mxu0 0.0
    %3580 = vmatprep.subr.mxu0 0.0
    %3581 = vmatpush1.msra.mxu0 0.0
    %3582 = vmatprep.subr.mxu0 0.0
    %3583 = vmatpush1.msra.mxu0 0.0
    %3584 = vmatprep.subr.mxu0 0.0
    %3585 = vmatpush1.msra.mxu0 0.0
    %3586 = vmatprep.subr.mxu0 0.0
    %3587 = vmatpush1.msra.mxu0 0.0
    %3588 = vmatprep.subr.mxu0 0.0
    %3589 = vmatpush1.msra.mxu0 0.0
    %3590 = vmatprep.subr.mxu0 0.0
    %3591 = vmatpush1.msra.mxu0 %v257
    %3592 = vmatprep.subr.mxu0 0.0
    %3593 = vmatpush1.msra.mxu0 %v256
    %3594 = vmatprep.subr.mxu0 0.0
    %3595 = vmatpush2.msra.mxu0 0.0
    %3596 = vmatprep.subr.mxu0 0.0
    %3597 = vmatpush2.msra.mxu0 0.0
    %3598 = vmatprep.subr.mxu0 0.0
    %3599 = vmatpush2.msra.mxu0 0.0
    %3600 = vmatprep.subr.mxu0 0.0
    %3601 = vmatpush2.msra.mxu0 0.0
    %3602 = vmatprep.subr.mxu0 0.0
    %3603 = vmatpush2.msra.mxu0 0.0
    %3604 = vmatprep.subr.mxu0 0.0
    %3605 = vmatpush2.msra.mxu0 0.0
    %3606 = vmatprep.subr.mxu0 0.0
    %3607 = vmatpush2.msra.mxu0 0.0
    %3608 = vmatprep.subr.mxu0 0.0
    %3609 = vmatpush2.msra.mxu0 0.0
    %3610 = vmatprep.subr.mxu0 0.0
    %3611 = vmatpush2.msra.mxu0 0.0
    %3612 = vmatprep.subr.mxu0 0.0
    %3613 = vmatpush2.msra.mxu0 0.0
    %3614 = vmatprep.subr.mxu0 0.0
    %3615 = vmatpush2.msra.mxu0 0.0
    %3616 = vmatprep.subr.mxu0 0.0
    %3617 = vmatpush2.msra.mxu0 0.0
    %3618 = vmatprep.subr.mxu0 0.0
    %3619 = vmatpush2.msra.mxu0 0.0
    %3620 = vmatprep.subr.mxu0 0.0
    %3621 = vmatpush2.msra.mxu0 0.0
    %3622 = vmatprep.subr.mxu0 0.0
    %3623 = vmatpush2.msra.mxu0 0.0
    %3624 = vmatprep.subr.mxu0 0.0
    %3625 = vmatpush2.msra.mxu0 0.0
    %3626 = vmatprep.mubr.f32.mxu0 0.0
    %3627 = vmatmul.mubr.f32.gmra.mxu0 %v3560
    %v3628 = vpop.f32.mrf.mxu0
    %v3629 = vadd.f32 0.0, %v3628
    %v3630 = vpop.f32.mrf.mxu0
    %3631 = vdwg.mxu0
    %v3633 = vsel %vm364, %v2808, 0
    %3635 = vmatprep.subr.mxu0 0.0
    %3636 = vmatpush1.msra.mxu0 0.0
    %3637 = vmatprep.subr.mxu0 0.0
    %3638 = vmatpush1.msra.mxu0 0.0
    %3639 = vmatprep.subr.mxu0 0.0
    %3640 = vmatpush1.msra.mxu0 0.0
    %3641 = vmatprep.subr.mxu0 0.0
    %3642 = vmatpush1.msra.mxu0 0.0
    %3643 = vmatprep.subr.mxu0 0.0
    %3644 = vmatpush1.msra.mxu0 0.0
    %3645 = vmatprep.subr.mxu0 0.0
    %3646 = vmatpush1.msra.mxu0 0.0
    %3647 = vmatprep.subr.mxu0 0.0
    %3648 = vmatpush1.msra.mxu0 0.0
    %3649 = vmatprep.subr.mxu0 0.0
    %3650 = vmatpush1.msra.mxu0 0.0
    %3651 = vmatprep.subr.mxu0 0.0
    %3652 = vmatpush1.msra.mxu0 0.0
    %3653 = vmatprep.subr.mxu0 0.0
    %3654 = vmatpush1.msra.mxu0 0.0
    %3655 = vmatprep.subr.mxu0 0.0
    %3656 = vmatpush1.msra.mxu0 0.0
    %3657 = vmatprep.subr.mxu0 0.0
    %3658 = vmatpush1.msra.mxu0 0.0
    %3659 = vmatprep.subr.mxu0 0.0
    %3660 = vmatpush1.msra.mxu0 0.0
    %3661 = vmatprep.subr.mxu0 0.0
    %3662 = vmatpush1.msra.mxu0 0.0
    %3663 = vmatprep.subr.mxu0 0.0
    %3664 = vmatpush1.msra.mxu0 %v259
    %3665 = vmatprep.subr.mxu0 0.0
    %3666 = vmatpush1.msra.mxu0 %v258
    %3667 = vmatprep.subr.mxu0 0.0
    %3668 = vmatpush2.msra.mxu0 0.0
    %3669 = vmatprep.subr.mxu0 0.0
    %3670 = vmatpush2.msra.mxu0 0.0
    %3671 = vmatprep.subr.mxu0 0.0
    %3672 = vmatpush2.msra.mxu0 0.0
    %3673 = vmatprep.subr.mxu0 0.0
    %3674 = vmatpush2.msra.mxu0 0.0
    %3675 = vmatprep.subr.mxu0 0.0
    %3676 = vmatpush2.msra.mxu0 0.0
    %3677 = vmatprep.subr.mxu0 0.0
    %3678 = vmatpush2.msra.mxu0 0.0
    %3679 = vmatprep.subr.mxu0 0.0
    %3680 = vmatpush2.msra.mxu0 0.0
    %3681 = vmatprep.subr.mxu0 0.0
    %3682 = vmatpush2.msra.mxu0 0.0
    %3683 = vmatprep.subr.mxu0 0.0
    %3684 = vmatpush2.msra.mxu0 0.0
    %3685 = vmatprep.subr.mxu0 0.0
    %3686 = vmatpush2.msra.mxu0 0.0
    %3687 = vmatprep.subr.mxu0 0.0
    %3688 = vmatpush2.msra.mxu0 0.0
    %3689 = vmatprep.subr.mxu0 0.0
    %3690 = vmatpush2.msra.mxu0 0.0
    %3691 = vmatprep.subr.mxu0 0.0
    %3692 = vmatpush2.msra.mxu0 0.0
    %3693 = vmatprep.subr.mxu0 0.0
    %3694 = vmatpush2.msra.mxu0 0.0
    %3695 = vmatprep.subr.mxu0 0.0
    %3696 = vmatpush2.msra.mxu0 0.0
    %3697 = vmatprep.subr.mxu0 0.0
    %3698 = vmatpush2.msra.mxu0 0.0
    %3699 = vmatprep.mubr.f32.mxu0 0.0
    %3700 = vmatmul.mubr.f32.gmra.mxu0 %v3633
    %v3701 = vpop.f32.mrf.mxu0
    %v3702 = vadd.f32 0.0, %v3701
    %v3703 = vpop.f32.mrf.mxu0
    %3704 = vdwg.mxu0
    %v3706 = vsel %vm364, %v2809, 0
    %3708 = vmatprep.subr.mxu0 0.0
    %3709 = vmatpush1.msra.mxu0 0.0
    %3710 = vmatprep.subr.mxu0 0.0
    %3711 = vmatpush1.msra.mxu0 0.0
    %3712 = vmatprep.subr.mxu0 0.0
    %3713 = vmatpush1.msra.mxu0 0.0
    %3714 = vmatprep.subr.mxu0 0.0
    %3715 = vmatpush1.msra.mxu0 0.0
    %3716 = vmatprep.subr.mxu0 0.0
    %3717 = vmatpush1.msra.mxu0 0.0
    %3718 = vmatprep.subr.mxu0 0.0
    %3719 = vmatpush1.msra.mxu0 0.0
    %3720 = vmatprep.subr.mxu0 0.0
    %3721 = vmatpush1.msra.mxu0 0.0
    %3722 = vmatprep.subr.mxu0 0.0
    %3723 = vmatpush1.msra.mxu0 0.0
    %3724 = vmatprep.subr.mxu0 0.0
    %3725 = vmatpush1.msra.mxu0 0.0
    %3726 = vmatprep.subr.mxu0 0.0
    %3727 = vmatpush1.msra.mxu0 0.0
    %3728 = vmatprep.subr.mxu0 0.0
    %3729 = vmatpush1.msra.mxu0 0.0
    %3730 = vmatprep.subr.mxu0 0.0
    %3731 = vmatpush1.msra.mxu0 0.0
    %3732 = vmatprep.subr.mxu0 0.0
    %3733 = vmatpush1.msra.mxu0 0.0
    %3734 = vmatprep.subr.mxu0 0.0
    %3735 = vmatpush1.msra.mxu0 0.0
    %3736 = vmatprep.subr.mxu0 0.0
    %3737 = vmatpush1.msra.mxu0 %v261
    %3738 = vmatprep.subr.mxu0 0.0
    %3739 = vmatpush1.msra.mxu0 %v260
    %3740 = vmatprep.subr.mxu0 0.0
    %3741 = vmatpush2.msra.mxu0 0.0
    %3742 = vmatprep.subr.mxu0 0.0
    %3743 = vmatpush2.msra.mxu0 0.0
    %3744 = vmatprep.subr.mxu0 0.0
    %3745 = vmatpush2.msra.mxu0 0.0
    %3746 = vmatprep.subr.mxu0 0.0
    %3747 = vmatpush2.msra.mxu0 0.0
    %3748 = vmatprep.subr.mxu0 0.0
    %3749 = vmatpush2.msra.mxu0 0.0
    %3750 = vmatprep.subr.mxu0 0.0
    %3751 = vmatpush2.msra.mxu0 0.0
    %3752 = vmatprep.subr.mxu0 0.0
    %3753 = vmatpush2.msra.mxu0 0.0
    %3754 = vmatprep.subr.mxu0 0.0
    %3755 = vmatpush2.msra.mxu0 0.0
    %3756 = vmatprep.subr.mxu0 0.0
    %3757 = vmatpush2.msra.mxu0 0.0
    %3758 = vmatprep.subr.mxu0 0.0
    %3759 = vmatpush2.msra.mxu0 0.0
    %3760 = vmatprep.subr.mxu0 0.0
    %3761 = vmatpush2.msra.mxu0 0.0
    %3762 = vmatprep.subr.mxu0 0.0
    %3763 = vmatpush2.msra.mxu0 0.0
    %3764 = vmatprep.subr.mxu0 0.0
    %3765 = vmatpush2.msra.mxu0 0.0
    %3766 = vmatprep.subr.mxu0 0.0
    %3767 = vmatpush2.msra.mxu0 0.0
    %3768 = vmatprep.subr.mxu0 0.0
    %3769 = vmatpush2.msra.mxu0 0.0
    %3770 = vmatprep.subr.mxu0 0.0
    %3771 = vmatpush2.msra.mxu0 0.0
    %3772 = vmatprep.mubr.f32.mxu0 0.0
    %3773 = vmatmul.mubr.f32.gmra.mxu0 %v3706
    %v3774 = vpop.f32.mrf.mxu0
    %v3775 = vadd.f32 0.0, %v3774
    %v3776 = vpop.f32.mrf.mxu0
    %3777 = vdwg.mxu0
    %v3779 = vsel %vm364, %v2810, 0
    %3781 = vmatprep.subr.mxu0 0.0
    %3782 = vmatpush1.msra.mxu0 0.0
    %3783 = vmatprep.subr.mxu0 0.0
    %3784 = vmatpush1.msra.mxu0 0.0
    %3785 = vmatprep.subr.mxu0 0.0
    %3786 = vmatpush1.msra.mxu0 0.0
    %3787 = vmatprep.subr.mxu0 0.0
    %3788 = vmatpush1.msra.mxu0 0.0
    %3789 = vmatprep.subr.mxu0 0.0
    %3790 = vmatpush1.msra.mxu0 0.0
    %3791 = vmatprep.subr.mxu0 0.0
    %3792 = vmatpush1.msra.mxu0 0.0
    %3793 = vmatprep.subr.mxu0 0.0
    %3794 = vmatpush1.msra.mxu0 0.0
    %3795 = vmatprep.subr.mxu0 0.0
    %3796 = vmatpush1.msra.mxu0 0.0
    %3797 = vmatprep.subr.mxu0 0.0
    %3798 = vmatpush1.msra.mxu0 0.0
    %3799 = vmatprep.subr.mxu0 0.0
    %3800 = vmatpush1.msra.mxu0 0.0
    %3801 = vmatprep.subr.mxu0 0.0
    %3802 = vmatpush1.msra.mxu0 0.0
    %3803 = vmatprep.subr.mxu0 0.0
    %3804 = vmatpush1.msra.mxu0 0.0
    %3805 = vmatprep.subr.mxu0 0.0
    %3806 = vmatpush1.msra.mxu0 0.0
    %3807 = vmatprep.subr.mxu0 0.0
    %3808 = vmatpush1.msra.mxu0 0.0
    %3809 = vmatprep.subr.mxu0 0.0
    %3810 = vmatpush1.msra.mxu0 %v263
    %3811 = vmatprep.subr.mxu0 0.0
    %3812 = vmatpush1.msra.mxu0 %v262
    %3813 = vmatprep.subr.mxu0 0.0
    %3814 = vmatpush2.msra.mxu0 0.0
    %3815 = vmatprep.subr.mxu0 0.0
    %3816 = vmatpush2.msra.mxu0 0.0
    %3817 = vmatprep.subr.mxu0 0.0
    %3818 = vmatpush2.msra.mxu0 0.0
    %3819 = vmatprep.subr.mxu0 0.0
    %3820 = vmatpush2.msra.mxu0 0.0
    %3821 = vmatprep.subr.mxu0 0.0
    %3822 = vmatpush2.msra.mxu0 0.0
    %3823 = vmatprep.subr.mxu0 0.0
    %3824 = vmatpush2.msra.mxu0 0.0
    %3825 = vmatprep.subr.mxu0 0.0
    %3826 = vmatpush2.msra.mxu0 0.0
    %3827 = vmatprep.subr.mxu0 0.0
    %3828 = vmatpush2.msra.mxu0 0.0
    %3829 = vmatprep.subr.mxu0 0.0
    %3830 = vmatpush2.msra.mxu0 0.0
    %3831 = vmatprep.subr.mxu0 0.0
    %3832 = vmatpush2.msra.mxu0 0.0
    %3833 = vmatprep.subr.mxu0 0.0
    %3834 = vmatpush2.msra.mxu0 0.0
    %3835 = vmatprep.subr.mxu0 0.0
    %3836 = vmatpush2.msra.mxu0 0.0
    %3837 = vmatprep.subr.mxu0 0.0
    %3838 = vmatpush2.msra.mxu0 0.0
    %3839 = vmatprep.subr.mxu0 0.0
    %3840 = vmatpush2.msra.mxu0 0.0
    %3841 = vmatprep.subr.mxu0 0.0
    %3842 = vmatpush2.msra.mxu0 0.0
    %3843 = vmatprep.subr.mxu0 0.0
    %3844 = vmatpush2.msra.mxu0 0.0
    %3845 = vmatprep.mubr.f32.mxu0 0.0
    %3846 = vmatmul.mubr.f32.gmra.mxu0 %v3779
    %v3847 = vpop.f32.mrf.mxu0
    %v3848 = vadd.f32 0.0, %v3847
    %v3849 = vpop.f32.mrf.mxu0
    %3850 = vdwg.mxu0
    %v3852 = vsel %vm364, %v2811, 0
    %3854 = vmatprep.subr.mxu0 0.0
    %3855 = vmatpush1.msra.mxu0 0.0
    %3856 = vmatprep.subr.mxu0 0.0
    %3857 = vmatpush1.msra.mxu0 0.0
    %3858 = vmatprep.subr.mxu0 0.0
    %3859 = vmatpush1.msra.mxu0 0.0
    %3860 = vmatprep.subr.mxu0 0.0
    %3861 = vmatpush1.msra.mxu0 0.0
    %3862 = vmatprep.subr.mxu0 0.0
    %3863 = vmatpush1.msra.mxu0 0.0
    %3864 = vmatprep.subr.mxu0 0.0
    %3865 = vmatpush1.msra.mxu0 0.0
    %3866 = vmatprep.subr.mxu0 0.0
    %3867 = vmatpush1.msra.mxu0 0.0
    %3868 = vmatprep.subr.mxu0 0.0
    %3869 = vmatpush1.msra.mxu0 0.0
    %3870 = vmatprep.subr.mxu0 0.0
    %3871 = vmatpush1.msra.mxu0 0.0
    %3872 = vmatprep.subr.mxu0 0.0
    %3873 = vmatpush1.msra.mxu0 0.0
    %3874 = vmatprep.subr.mxu0 0.0
    %3875 = vmatpush1.msra.mxu0 0.0
    %3876 = vmatprep.subr.mxu0 0.0
    %3877 = vmatpush1.msra.mxu0 0.0
    %3878 = vmatprep.subr.mxu0 0.0
    %3879 = vmatpush1.msra.mxu0 0.0
    %3880 = vmatprep.subr.mxu0 0.0
    %3881 = vmatpush1.msra.mxu0 0.0
    %3882 = vmatprep.subr.mxu0 0.0
    %3883 = vmatpush1.msra.mxu0 %v265
    %3884 = vmatprep.subr.mxu0 0.0
    %3885 = vmatpush1.msra.mxu0 %v264
    %3886 = vmatprep.subr.mxu0 0.0
    %3887 = vmatpush2.msra.mxu0 0.0
    %3888 = vmatprep.subr.mxu0 0.0
    %3889 = vmatpush2.msra.mxu0 0.0
    %3890 = vmatprep.subr.mxu0 0.0
    %3891 = vmatpush2.msra.mxu0 0.0
    %3892 = vmatprep.subr.mxu0 0.0
    %3893 = vmatpush2.msra.mxu0 0.0
    %3894 = vmatprep.subr.mxu0 0.0
    %3895 = vmatpush2.msra.mxu0 0.0
    %3896 = vmatprep.subr.mxu0 0.0
    %3897 = vmatpush2.msra.mxu0 0.0
    %3898 = vmatprep.subr.mxu0 0.0
    %3899 = vmatpush2.msra.mxu0 0.0
    %3900 = vmatprep.subr.mxu0 0.0
    %3901 = vmatpush2.msra.mxu0 0.0
    %3902 = vmatprep.subr.mxu0 0.0
    %3903 = vmatpush2.msra.mxu0 0.0
    %3904 = vmatprep.subr.mxu0 0.0
    %3905 = vmatpush2.msra.mxu0 0.0
    %3906 = vmatprep.subr.mxu0 0.0
    %3907 = vmatpush2.msra.mxu0 0.0
    %3908 = vmatprep.subr.mxu0 0.0
    %3909 = vmatpush2.msra.mxu0 0.0
    %3910 = vmatprep.subr.mxu0 0.0
    %3911 = vmatpush2.msra.mxu0 0.0
    %3912 = vmatprep.subr.mxu0 0.0
    %3913 = vmatpush2.msra.mxu0 0.0
    %3914 = vmatprep.subr.mxu0 0.0
    %3915 = vmatpush2.msra.mxu0 0.0
    %3916 = vmatprep.subr.mxu0 0.0
    %3917 = vmatpush2.msra.mxu0 0.0
    %3918 = vmatprep.mubr.f32.mxu0 0.0
    %3919 = vmatmul.mubr.f32.gmra.mxu0 %v3852
    %v3920 = vpop.f32.mrf.mxu0
    %v3921 = vadd.f32 0.0, %v3920
    %v3922 = vpop.f32.mrf.mxu0
    %3923 = vdwg.mxu0
    %v3925 = vsel %vm364, %v2812, 0
    %3927 = vmatprep.subr.mxu0 0.0
    %3928 = vmatpush1.msra.mxu0 0.0
    %3929 = vmatprep.subr.mxu0 0.0
    %3930 = vmatpush1.msra.mxu0 0.0
    %3931 = vmatprep.subr.mxu0 0.0
    %3932 = vmatpush1.msra.mxu0 0.0
    %3933 = vmatprep.subr.mxu0 0.0
    %3934 = vmatpush1.msra.mxu0 0.0
    %3935 = vmatprep.subr.mxu0 0.0
    %3936 = vmatpush1.msra.mxu0 0.0
    %3937 = vmatprep.subr.mxu0 0.0
    %3938 = vmatpush1.msra.mxu0 0.0
    %3939 = vmatprep.subr.mxu0 0.0
    %3940 = vmatpush1.msra.mxu0 0.0
    %3941 = vmatprep.subr.mxu0 0.0
    %3942 = vmatpush1.msra.mxu0 0.0
    %3943 = vmatprep.subr.mxu0 0.0
    %3944 = vmatpush1.msra.mxu0 0.0
    %3945 = vmatprep.subr.mxu0 0.0
    %3946 = vmatpush1.msra.mxu0 0.0
    %3947 = vmatprep.subr.mxu0 0.0
    %3948 = vmatpush1.msra.mxu0 0.0
    %3949 = vmatprep.subr.mxu0 0.0
    %3950 = vmatpush1.msra.mxu0 0.0
    %3951 = vmatprep.subr.mxu0 0.0
    %3952 = vmatpush1.msra.mxu0 0.0
    %3953 = vmatprep.subr.mxu0 0.0
    %3954 = vmatpush1.msra.mxu0 0.0
    %3955 = vmatprep.subr.mxu0 0.0
    %3956 = vmatpush1.msra.mxu0 %v267
    %3957 = vmatprep.subr.mxu0 0.0
    %3958 = vmatpush1.msra.mxu0 %v266
    %3959 = vmatprep.subr.mxu0 0.0
    %3960 = vmatpush2.msra.mxu0 0.0
    %3961 = vmatprep.subr.mxu0 0.0
    %3962 = vmatpush2.msra.mxu0 0.0
    %3963 = vmatprep.subr.mxu0 0.0
    %3964 = vmatpush2.msra.mxu0 0.0
    %3965 = vmatprep.subr.mxu0 0.0
    %3966 = vmatpush2.msra.mxu0 0.0
    %3967 = vmatprep.subr.mxu0 0.0
    %3968 = vmatpush2.msra.mxu0 0.0
    %3969 = vmatprep.subr.mxu0 0.0
    %3970 = vmatpush2.msra.mxu0 0.0
    %3971 = vmatprep.subr.mxu0 0.0
    %3972 = vmatpush2.msra.mxu0 0.0
    %3973 = vmatprep.subr.mxu0 0.0
    %3974 = vmatpush2.msra.mxu0 0.0
    %3975 = vmatprep.subr.mxu0 0.0
    %3976 = vmatpush2.msra.mxu0 0.0
    %3977 = vmatprep.subr.mxu0 0.0
    %3978 = vmatpush2.msra.mxu0 0.0
    %3979 = vmatprep.subr.mxu0 0.0
    %3980 = vmatpush2.msra.mxu0 0.0
    %3981 = vmatprep.subr.mxu0 0.0
    %3982 = vmatpush2.msra.mxu0 0.0
    %3983 = vmatprep.subr.mxu0 0.0
    %3984 = vmatpush2.msra.mxu0 0.0
    %3985 = vmatprep.subr.mxu0 0.0
    %3986 = vmatpush2.msra.mxu0 0.0
    %3987 = vmatprep.subr.mxu0 0.0
    %3988 = vmatpush2.msra.mxu0 0.0
    %3989 = vmatprep.subr.mxu0 0.0
    %3990 = vmatpush2.msra.mxu0 0.0
    %3991 = vmatprep.mubr.f32.mxu0 0.0
    %3992 = vmatmul.mubr.f32.gmra.mxu0 %v3925
    %v3993 = vpop.f32.mrf.mxu0
    %v3994 = vadd.f32 0.0, %v3993
    %v3995 = vpop.f32.mrf.mxu0
    %3996 = vdwg.mxu0
    %v3998 = vsel %vm364, %v2813, 0
    %4000 = vmatprep.subr.mxu0 0.0
    %4001 = vmatpush1.msra.mxu0 0.0
    %4002 = vmatprep.subr.mxu0 0.0
    %4003 = vmatpush1.msra.mxu0 0.0
    %4004 = vmatprep.subr.mxu0 0.0
    %4005 = vmatpush1.msra.mxu0 0.0
    %4006 = vmatprep.subr.mxu0 0.0
    %4007 = vmatpush1.msra.mxu0 0.0
    %4008 = vmatprep.subr.mxu0 0.0
    %4009 = vmatpush1.msra.mxu0 0.0
    %4010 = vmatprep.subr.mxu0 0.0
    %4011 = vmatpush1.msra.mxu0 0.0
    %4012 = vmatprep.subr.mxu0 0.0
    %4013 = vmatpush1.msra.mxu0 0.0
    %4014 = vmatprep.subr.mxu0 0.0
    %4015 = vmatpush1.msra.mxu0 0.0
    %4016 = vmatprep.subr.mxu0 0.0
    %4017 = vmatpush1.msra.mxu0 0.0
    %4018 = vmatprep.subr.mxu0 0.0
    %4019 = vmatpush1.msra.mxu0 0.0
    %4020 = vmatprep.subr.mxu0 0.0
    %4021 = vmatpush1.msra.mxu0 0.0
    %4022 = vmatprep.subr.mxu0 0.0
    %4023 = vmatpush1.msra.mxu0 0.0
    %4024 = vmatprep.subr.mxu0 0.0
    %4025 = vmatpush1.msra.mxu0 0.0
    %4026 = vmatprep.subr.mxu0 0.0
    %4027 = vmatpush1.msra.mxu0 0.0
    %4028 = vmatprep.subr.mxu0 0.0
    %4029 = vmatpush1.msra.mxu0 %v269
    %4030 = vmatprep.subr.mxu0 0.0
    %4031 = vmatpush1.msra.mxu0 %v268
    %4032 = vmatprep.subr.mxu0 0.0
    %4033 = vmatpush2.msra.mxu0 0.0
    %4034 = vmatprep.subr.mxu0 0.0
    %4035 = vmatpush2.msra.mxu0 0.0
    %4036 = vmatprep.subr.mxu0 0.0
    %4037 = vmatpush2.msra.mxu0 0.0
    %4038 = vmatprep.subr.mxu0 0.0
    %4039 = vmatpush2.msra.mxu0 0.0
    %4040 = vmatprep.subr.mxu0 0.0
    %4041 = vmatpush2.msra.mxu0 0.0
    %4042 = vmatprep.subr.mxu0 0.0
    %4043 = vmatpush2.msra.mxu0 0.0
    %4044 = vmatprep.subr.mxu0 0.0
    %4045 = vmatpush2.msra.mxu0 0.0
    %4046 = vmatprep.subr.mxu0 0.0
    %4047 = vmatpush2.msra.mxu0 0.0
    %4048 = vmatprep.subr.mxu0 0.0
    %4049 = vmatpush2.msra.mxu0 0.0
    %4050 = vmatprep.subr.mxu0 0.0
    %4051 = vmatpush2.msra.mxu0 0.0
    %4052 = vmatprep.subr.mxu0 0.0
    %4053 = vmatpush2.msra.mxu0 0.0
    %4054 = vmatprep.subr.mxu0 0.0
    %4055 = vmatpush2.msra.mxu0 0.0
    %4056 = vmatprep.subr.mxu0 0.0
    %4057 = vmatpush2.msra.mxu0 0.0
    %4058 = vmatprep.subr.mxu0 0.0
    %4059 = vmatpush2.msra.mxu0 0.0
    %4060 = vmatprep.subr.mxu0 0.0
    %4061 = vmatpush2.msra.mxu0 0.0
    %4062 = vmatprep.subr.mxu0 0.0
    %4063 = vmatpush2.msra.mxu0 0.0
    %4064 = vmatprep.mubr.f32.mxu0 0.0
    %4065 = vmatmul.mubr.f32.gmra.mxu0 %v3998
    %v4066 = vpop.f32.mrf.mxu0
    %v4067 = vadd.f32 0.0, %v4066
    %v4068 = vpop.f32.mrf.mxu0
    %4069 = vdwg.mxu0
    %v4071 = vsel %vm364, %v2814, 0
    %4073 = vmatprep.subr.mxu0 0.0
    %4074 = vmatpush1.msra.mxu0 0.0
    %4075 = vmatprep.subr.mxu0 0.0
    %4076 = vmatpush1.msra.mxu0 0.0
    %4077 = vmatprep.subr.mxu0 0.0
    %4078 = vmatpush1.msra.mxu0 0.0
    %4079 = vmatprep.subr.mxu0 0.0
    %4080 = vmatpush1.msra.mxu0 0.0
    %4081 = vmatprep.subr.mxu0 0.0
    %4082 = vmatpush1.msra.mxu0 0.0
    %4083 = vmatprep.subr.mxu0 0.0
    %4084 = vmatpush1.msra.mxu0 0.0
    %4085 = vmatprep.subr.mxu0 0.0
    %4086 = vmatpush1.msra.mxu0 0.0
    %4087 = vmatprep.subr.mxu0 0.0
    %4088 = vmatpush1.msra.mxu0 0.0
    %4089 = vmatprep.subr.mxu0 0.0
    %4090 = vmatpush1.msra.mxu0 0.0
    %4091 = vmatprep.subr.mxu0 0.0
    %4092 = vmatpush1.msra.mxu0 0.0
    %4093 = vmatprep.subr.mxu0 0.0
    %4094 = vmatpush1.msra.mxu0 0.0
    %4095 = vmatprep.subr.mxu0 0.0
    %4096 = vmatpush1.msra.mxu0 0.0
    %4097 = vmatprep.subr.mxu0 0.0
    %4098 = vmatpush1.msra.mxu0 0.0
    %4099 = vmatprep.subr.mxu0 0.0
    %4100 = vmatpush1.msra.mxu0 0.0
    %4101 = vmatprep.subr.mxu0 0.0
    %4102 = vmatpush1.msra.mxu0 %v271
    %4103 = vmatprep.subr.mxu0 0.0
    %4104 = vmatpush1.msra.mxu0 %v270
    %4105 = vmatprep.subr.mxu0 0.0
    %4106 = vmatpush2.msra.mxu0 0.0
    %4107 = vmatprep.subr.mxu0 0.0
    %4108 = vmatpush2.msra.mxu0 0.0
    %4109 = vmatprep.subr.mxu0 0.0
    %4110 = vmatpush2.msra.mxu0 0.0
    %4111 = vmatprep.subr.mxu0 0.0
    %4112 = vmatpush2.msra.mxu0 0.0
    %4113 = vmatprep.subr.mxu0 0.0
    %4114 = vmatpush2.msra.mxu0 0.0
    %4115 = vmatprep.subr.mxu0 0.0
    %4116 = vmatpush2.msra.mxu0 0.0
    %4117 = vmatprep.subr.mxu0 0.0
    %4118 = vmatpush2.msra.mxu0 0.0
    %4119 = vmatprep.subr.mxu0 0.0
    %4120 = vmatpush2.msra.mxu0 0.0
    %4121 = vmatprep.subr.mxu0 0.0
    %4122 = vmatpush2.msra.mxu0 0.0
    %4123 = vmatprep.subr.mxu0 0.0
    %4124 = vmatpush2.msra.mxu0 0.0
    %4125 = vmatprep.subr.mxu0 0.0
    %4126 = vmatpush2.msra.mxu0 0.0
    %4127 = vmatprep.subr.mxu0 0.0
    %4128 = vmatpush2.msra.mxu0 0.0
    %4129 = vmatprep.subr.mxu0 0.0
    %4130 = vmatpush2.msra.mxu0 0.0
    %4131 = vmatprep.subr.mxu0 0.0
    %4132 = vmatpush2.msra.mxu0 0.0
    %4133 = vmatprep.subr.mxu0 0.0
    %4134 = vmatpush2.msra.mxu0 0.0
    %4135 = vmatprep.subr.mxu0 0.0
    %4136 = vmatpush2.msra.mxu0 0.0
    %4137 = vmatprep.mubr.f32.mxu0 0.0
    %4138 = vmatmul.mubr.f32.gmra.mxu0 %v4071
    %v4139 = vpop.f32.mrf.mxu0
    %v4140 = vadd.f32 0.0, %v4139
    %v4141 = vpop.f32.mrf.mxu0
    %4142 = vdwg.mxu0
    %v4144 = vsel %vm364, %v2815, 0
    %4146 = vmatprep.subr.mxu0 0.0
    %4147 = vmatpush1.msra.mxu0 0.0
    %4148 = vmatprep.subr.mxu0 0.0
    %4149 = vmatpush1.msra.mxu0 0.0
    %4150 = vmatprep.subr.mxu0 0.0
    %4151 = vmatpush1.msra.mxu0 0.0
    %4152 = vmatprep.subr.mxu0 0.0
    %4153 = vmatpush1.msra.mxu0 0.0
    %4154 = vmatprep.subr.mxu0 0.0
    %4155 = vmatpush1.msra.mxu0 0.0
    %4156 = vmatprep.subr.mxu0 0.0
    %4157 = vmatpush1.msra.mxu0 0.0
    %4158 = vmatprep.subr.mxu0 0.0
    %4159 = vmatpush1.msra.mxu0 0.0
    %4160 = vmatprep.subr.mxu0 0.0
    %4161 = vmatpush1.msra.mxu0 0.0
    %4162 = vmatprep.subr.mxu0 0.0
    %4163 = vmatpush1.msra.mxu0 0.0
    %4164 = vmatprep.subr.mxu0 0.0
    %4165 = vmatpush1.msra.mxu0 0.0
    %4166 = vmatprep.subr.mxu0 0.0
    %4167 = vmatpush1.msra.mxu0 0.0
    %4168 = vmatprep.subr.mxu0 0.0
    %4169 = vmatpush1.msra.mxu0 0.0
    %4170 = vmatprep.subr.mxu0 0.0
    %4171 = vmatpush1.msra.mxu0 0.0
    %4172 = vmatprep.subr.mxu0 0.0
    %4173 = vmatpush1.msra.mxu0 0.0
    %4174 = vmatprep.subr.mxu0 0.0
    %4175 = vmatpush1.msra.mxu0 %v273
    %4176 = vmatprep.subr.mxu0 0.0
    %4177 = vmatpush1.msra.mxu0 %v272
    %4178 = vmatprep.subr.mxu0 0.0
    %4179 = vmatpush2.msra.mxu0 0.0
    %4180 = vmatprep.subr.mxu0 0.0
    %4181 = vmatpush2.msra.mxu0 0.0
    %4182 = vmatprep.subr.mxu0 0.0
    %4183 = vmatpush2.msra.mxu0 0.0
    %4184 = vmatprep.subr.mxu0 0.0
    %4185 = vmatpush2.msra.mxu0 0.0
    %4186 = vmatprep.subr.mxu0 0.0
    %4187 = vmatpush2.msra.mxu0 0.0
    %4188 = vmatprep.subr.mxu0 0.0
    %4189 = vmatpush2.msra.mxu0 0.0
    %4190 = vmatprep.subr.mxu0 0.0
    %4191 = vmatpush2.msra.mxu0 0.0
    %4192 = vmatprep.subr.mxu0 0.0
    %4193 = vmatpush2.msra.mxu0 0.0
    %4194 = vmatprep.subr.mxu0 0.0
    %4195 = vmatpush2.msra.mxu0 0.0
    %4196 = vmatprep.subr.mxu0 0.0
    %4197 = vmatpush2.msra.mxu0 0.0
    %4198 = vmatprep.subr.mxu0 0.0
    %4199 = vmatpush2.msra.mxu0 0.0
    %4200 = vmatprep.subr.mxu0 0.0
    %4201 = vmatpush2.msra.mxu0 0.0
    %4202 = vmatprep.subr.mxu0 0.0
    %4203 = vmatpush2.msra.mxu0 0.0
    %4204 = vmatprep.subr.mxu0 0.0
    %4205 = vmatpush2.msra.mxu0 0.0
    %4206 = vmatprep.subr.mxu0 0.0
    %4207 = vmatpush2.msra.mxu0 0.0
    %4208 = vmatprep.subr.mxu0 0.0
    %4209 = vmatpush2.msra.mxu0 0.0
    %4210 = vmatprep.mubr.f32.mxu0 0.0
    %4211 = vmatmul.mubr.f32.gmra.mxu0 %v4144
    %v4212 = vpop.f32.mrf.mxu0
    %v4213 = vadd.f32 0.0, %v4212
    %v4214 = vpop.f32.mrf.mxu0
    %4215 = vdwg.mxu0
    %v4217 = vsel %vm364, %v2816, 0
    %4219 = vmatprep.subr.mxu0 0.0
    %4220 = vmatpush1.msra.mxu0 0.0
    %4221 = vmatprep.subr.mxu0 0.0
    %4222 = vmatpush1.msra.mxu0 0.0
    %4223 = vmatprep.subr.mxu0 0.0
    %4224 = vmatpush1.msra.mxu0 0.0
    %4225 = vmatprep.subr.mxu0 0.0
    %4226 = vmatpush1.msra.mxu0 0.0
    %4227 = vmatprep.subr.mxu0 0.0
    %4228 = vmatpush1.msra.mxu0 0.0
    %4229 = vmatprep.subr.mxu0 0.0
    %4230 = vmatpush1.msra.mxu0 0.0
    %4231 = vmatprep.subr.mxu0 0.0
    %4232 = vmatpush1.msra.mxu0 0.0
    %4233 = vmatprep.subr.mxu0 0.0
    %4234 = vmatpush1.msra.mxu0 0.0
    %4235 = vmatprep.subr.mxu0 0.0
    %4236 = vmatpush1.msra.mxu0 0.0
    %4237 = vmatprep.subr.mxu0 0.0
    %4238 = vmatpush1.msra.mxu0 0.0
    %4239 = vmatprep.subr.mxu0 0.0
    %4240 = vmatpush1.msra.mxu0 0.0
    %4241 = vmatprep.subr.mxu0 0.0
    %4242 = vmatpush1.msra.mxu0 0.0
    %4243 = vmatprep.subr.mxu0 0.0
    %4244 = vmatpush1.msra.mxu0 0.0
    %4245 = vmatprep.subr.mxu0 0.0
    %4246 = vmatpush1.msra.mxu0 0.0
    %4247 = vmatprep.subr.mxu0 0.0
    %4248 = vmatpush1.msra.mxu0 %v275
    %4249 = vmatprep.subr.mxu0 0.0
    %4250 = vmatpush1.msra.mxu0 %v274
    %4251 = vmatprep.subr.mxu0 0.0
    %4252 = vmatpush2.msra.mxu0 0.0
    %4253 = vmatprep.subr.mxu0 0.0
    %4254 = vmatpush2.msra.mxu0 0.0
    %4255 = vmatprep.subr.mxu0 0.0
    %4256 = vmatpush2.msra.mxu0 0.0
    %4257 = vmatprep.subr.mxu0 0.0
    %4258 = vmatpush2.msra.mxu0 0.0
    %4259 = vmatprep.subr.mxu0 0.0
    %4260 = vmatpush2.msra.mxu0 0.0
    %4261 = vmatprep.subr.mxu0 0.0
    %4262 = vmatpush2.msra.mxu0 0.0
    %4263 = vmatprep.subr.mxu0 0.0
    %4264 = vmatpush2.msra.mxu0 0.0
    %4265 = vmatprep.subr.mxu0 0.0
    %4266 = vmatpush2.msra.mxu0 0.0
    %4267 = vmatprep.subr.mxu0 0.0
    %4268 = vmatpush2.msra.mxu0 0.0
    %4269 = vmatprep.subr.mxu0 0.0
    %4270 = vmatpush2.msra.mxu0 0.0
    %4271 = vmatprep.subr.mxu0 0.0
    %4272 = vmatpush2.msra.mxu0 0.0
    %4273 = vmatprep.subr.mxu0 0.0
    %4274 = vmatpush2.msra.mxu0 0.0
    %4275 = vmatprep.subr.mxu0 0.0
    %4276 = vmatpush2.msra.mxu0 0.0
    %4277 = vmatprep.subr.mxu0 0.0
    %4278 = vmatpush2.msra.mxu0 0.0
    %4279 = vmatprep.subr.mxu0 0.0
    %4280 = vmatpush2.msra.mxu0 0.0
    %4281 = vmatprep.subr.mxu0 0.0
    %4282 = vmatpush2.msra.mxu0 0.0
    %4283 = vmatprep.mubr.f32.mxu0 0.0
    %4284 = vmatmul.mubr.f32.gmra.mxu0 %v4217
    %v4285 = vpop.f32.mrf.mxu0
    %v4286 = vadd.f32 0.0, %v4285
    %v4287 = vpop.f32.mrf.mxu0
    %4288 = vdwg.mxu0
    %v4290 = vsel %vm364, %v2817, 0
    %4292 = vmatprep.subr.mxu0 0.0
    %4293 = vmatpush1.msra.mxu0 0.0
    %4294 = vmatprep.subr.mxu0 0.0
    %4295 = vmatpush1.msra.mxu0 0.0
    %4296 = vmatprep.subr.mxu0 0.0
    %4297 = vmatpush1.msra.mxu0 0.0
    %4298 = vmatprep.subr.mxu0 0.0
    %4299 = vmatpush1.msra.mxu0 0.0
    %4300 = vmatprep.subr.mxu0 0.0
    %4301 = vmatpush1.msra.mxu0 0.0
    %4302 = vmatprep.subr.mxu0 0.0
    %4303 = vmatpush1.msra.mxu0 0.0
    %4304 = vmatprep.subr.mxu0 0.0
    %4305 = vmatpush1.msra.mxu0 0.0
    %4306 = vmatprep.subr.mxu0 0.0
    %4307 = vmatpush1.msra.mxu0 0.0
    %4308 = vmatprep.subr.mxu0 0.0
    %4309 = vmatpush1.msra.mxu0 0.0
    %4310 = vmatprep.subr.mxu0 0.0
    %4311 = vmatpush1.msra.mxu0 0.0
    %4312 = vmatprep.subr.mxu0 0.0
    %4313 = vmatpush1.msra.mxu0 0.0
    %4314 = vmatprep.subr.mxu0 0.0
    %4315 = vmatpush1.msra.mxu0 0.0
    %4316 = vmatprep.subr.mxu0 0.0
    %4317 = vmatpush1.msra.mxu0 0.0
    %4318 = vmatprep.subr.mxu0 0.0
    %4319 = vmatpush1.msra.mxu0 0.0
    %4320 = vmatprep.subr.mxu0 0.0
    %4321 = vmatpush1.msra.mxu0 %v277
    %4322 = vmatprep.subr.mxu0 0.0
    %4323 = vmatpush1.msra.mxu0 %v276
    %4324 = vmatprep.subr.mxu0 0.0
    %4325 = vmatpush2.msra.mxu0 0.0
    %4326 = vmatprep.subr.mxu0 0.0
    %4327 = vmatpush2.msra.mxu0 0.0
    %4328 = vmatprep.subr.mxu0 0.0
    %4329 = vmatpush2.msra.mxu0 0.0
    %4330 = vmatprep.subr.mxu0 0.0
    %4331 = vmatpush2.msra.mxu0 0.0
    %4332 = vmatprep.subr.mxu0 0.0
    %4333 = vmatpush2.msra.mxu0 0.0
    %4334 = vmatprep.subr.mxu0 0.0
    %4335 = vmatpush2.msra.mxu0 0.0
    %4336 = vmatprep.subr.mxu0 0.0
    %4337 = vmatpush2.msra.mxu0 0.0
    %4338 = vmatprep.subr.mxu0 0.0
    %4339 = vmatpush2.msra.mxu0 0.0
    %4340 = vmatprep.subr.mxu0 0.0
    %4341 = vmatpush2.msra.mxu0 0.0
    %4342 = vmatprep.subr.mxu0 0.0
    %4343 = vmatpush2.msra.mxu0 0.0
    %4344 = vmatprep.subr.mxu0 0.0
    %4345 = vmatpush2.msra.mxu0 0.0
    %4346 = vmatprep.subr.mxu0 0.0
    %4347 = vmatpush2.msra.mxu0 0.0
    %4348 = vmatprep.subr.mxu0 0.0
    %4349 = vmatpush2.msra.mxu0 0.0
    %4350 = vmatprep.subr.mxu0 0.0
    %4351 = vmatpush2.msra.mxu0 0.0
    %4352 = vmatprep.subr.mxu0 0.0
    %4353 = vmatpush2.msra.mxu0 0.0
    %4354 = vmatprep.subr.mxu0 0.0
    %4355 = vmatpush2.msra.mxu0 0.0
    %4356 = vmatprep.mubr.f32.mxu0 0.0
    %4357 = vmatmul.mubr.f32.gmra.mxu0 %v4290
    %v4358 = vpop.f32.mrf.mxu0
    %v4359 = vadd.f32 0.0, %v4358
    %v4360 = vpop.f32.mrf.mxu0
    %4361 = vdwg.mxu0
    %v4363 = vsel %vm364, %v2818, 0
    %4365 = vmatprep.subr.mxu0 0.0
    %4366 = vmatpush1.msra.mxu0 0.0
    %4367 = vmatprep.subr.mxu0 0.0
    %4368 = vmatpush1.msra.mxu0 0.0
    %4369 = vmatprep.subr.mxu0 0.0
    %4370 = vmatpush1.msra.mxu0 0.0
    %4371 = vmatprep.subr.mxu0 0.0
    %4372 = vmatpush1.msra.mxu0 0.0
    %4373 = vmatprep.subr.mxu0 0.0
    %4374 = vmatpush1.msra.mxu0 0.0
    %4375 = vmatprep.subr.mxu0 0.0
    %4376 = vmatpush1.msra.mxu0 0.0
    %4377 = vmatprep.subr.mxu0 0.0
    %4378 = vmatpush1.msra.mxu0 0.0
    %4379 = vmatprep.subr.mxu0 0.0
    %4380 = vmatpush1.msra.mxu0 0.0
    %4381 = vmatprep.subr.mxu0 0.0
    %4382 = vmatpush1.msra.mxu0 0.0
    %4383 = vmatprep.subr.mxu0 0.0
    %4384 = vmatpush1.msra.mxu0 0.0
    %4385 = vmatprep.subr.mxu0 0.0
    %4386 = vmatpush1.msra.mxu0 0.0
    %4387 = vmatprep.subr.mxu0 0.0
    %4388 = vmatpush1.msra.mxu0 0.0
    %4389 = vmatprep.subr.mxu0 0.0
    %4390 = vmatpush1.msra.mxu0 0.0
    %4391 = vmatprep.subr.mxu0 0.0
    %4392 = vmatpush1.msra.mxu0 0.0
    %4393 = vmatprep.subr.mxu0 0.0
    %4394 = vmatpush1.msra.mxu0 %v279
    %4395 = vmatprep.subr.mxu0 0.0
    %4396 = vmatpush1.msra.mxu0 %v278
    %4397 = vmatprep.subr.mxu0 0.0
    %4398 = vmatpush2.msra.mxu0 0.0
    %4399 = vmatprep.subr.mxu0 0.0
    %4400 = vmatpush2.msra.mxu0 0.0
    %4401 = vmatprep.subr.mxu0 0.0
    %4402 = vmatpush2.msra.mxu0 0.0
    %4403 = vmatprep.subr.mxu0 0.0
    %4404 = vmatpush2.msra.mxu0 0.0
    %4405 = vmatprep.subr.mxu0 0.0
    %4406 = vmatpush2.msra.mxu0 0.0
    %4407 = vmatprep.subr.mxu0 0.0
    %4408 = vmatpush2.msra.mxu0 0.0
    %4409 = vmatprep.subr.mxu0 0.0
    %4410 = vmatpush2.msra.mxu0 0.0
    %4411 = vmatprep.subr.mxu0 0.0
    %4412 = vmatpush2.msra.mxu0 0.0
    %4413 = vmatprep.subr.mxu0 0.0
    %4414 = vmatpush2.msra.mxu0 0.0
    %4415 = vmatprep.subr.mxu0 0.0
    %4416 = vmatpush2.msra.mxu0 0.0
    %4417 = vmatprep.subr.mxu0 0.0
    %4418 = vmatpush2.msra.mxu0 0.0
    %4419 = vmatprep.subr.mxu0 0.0
    %4420 = vmatpush2.msra.mxu0 0.0
    %4421 = vmatprep.subr.mxu0 0.0
    %4422 = vmatpush2.msra.mxu0 0.0
    %4423 = vmatprep.subr.mxu0 0.0
    %4424 = vmatpush2.msra.mxu0 0.0
    %4425 = vmatprep.subr.mxu0 0.0
    %4426 = vmatpush2.msra.mxu0 0.0
    %4427 = vmatprep.subr.mxu0 0.0
    %4428 = vmatpush2.msra.mxu0 0.0
    %4429 = vmatprep.mubr.f32.mxu0 0.0
    %4430 = vmatmul.mubr.f32.gmra.mxu0 %v4363
    %v4431 = vpop.f32.mrf.mxu0
    %v4432 = vadd.f32 0.0, %v4431
    %v4433 = vpop.f32.mrf.mxu0
    %4434 = vdwg.mxu0
    %v4436 = vsel %vm364, %v2819, 0
    %4438 = vmatprep.subr.mxu0 0.0
    %4439 = vmatpush1.msra.mxu0 0.0
    %4440 = vmatprep.subr.mxu0 0.0
    %4441 = vmatpush1.msra.mxu0 0.0
    %4442 = vmatprep.subr.mxu0 0.0
    %4443 = vmatpush1.msra.mxu0 0.0
    %4444 = vmatprep.subr.mxu0 0.0
    %4445 = vmatpush1.msra.mxu0 0.0
    %4446 = vmatprep.subr.mxu0 0.0
    %4447 = vmatpush1.msra.mxu0 0.0
    %4448 = vmatprep.subr.mxu0 0.0
    %4449 = vmatpush1.msra.mxu0 0.0
    %4450 = vmatprep.subr.mxu0 0.0
    %4451 = vmatpush1.msra.mxu0 0.0
    %4452 = vmatprep.subr.mxu0 0.0
    %4453 = vmatpush1.msra.mxu0 0.0
    %4454 = vmatprep.subr.mxu0 0.0
    %4455 = vmatpush1.msra.mxu0 0.0
    %4456 = vmatprep.subr.mxu0 0.0
    %4457 = vmatpush1.msra.mxu0 0.0
    %4458 = vmatprep.subr.mxu0 0.0
    %4459 = vmatpush1.msra.mxu0 0.0
    %4460 = vmatprep.subr.mxu0 0.0
    %4461 = vmatpush1.msra.mxu0 0.0
    %4462 = vmatprep.subr.mxu0 0.0
    %4463 = vmatpush1.msra.mxu0 0.0
    %4464 = vmatprep.subr.mxu0 0.0
    %4465 = vmatpush1.msra.mxu0 0.0
    %4466 = vmatprep.subr.mxu0 0.0
    %4467 = vmatpush1.msra.mxu0 %v281
    %4468 = vmatprep.subr.mxu0 0.0
    %4469 = vmatpush1.msra.mxu0 %v280
    %4470 = vmatprep.subr.mxu0 0.0
    %4471 = vmatpush2.msra.mxu0 0.0
    %4472 = vmatprep.subr.mxu0 0.0
    %4473 = vmatpush2.msra.mxu0 0.0
    %4474 = vmatprep.subr.mxu0 0.0
    %4475 = vmatpush2.msra.mxu0 0.0
    %4476 = vmatprep.subr.mxu0 0.0
    %4477 = vmatpush2.msra.mxu0 0.0
    %4478 = vmatprep.subr.mxu0 0.0
    %4479 = vmatpush2.msra.mxu0 0.0
    %4480 = vmatprep.subr.mxu0 0.0
    %4481 = vmatpush2.msra.mxu0 0.0
    %4482 = vmatprep.subr.mxu0 0.0
    %4483 = vmatpush2.msra.mxu0 0.0
    %4484 = vmatprep.subr.mxu0 0.0
    %4485 = vmatpush2.msra.mxu0 0.0
    %4486 = vmatprep.subr.mxu0 0.0
    %4487 = vmatpush2.msra.mxu0 0.0
    %4488 = vmatprep.subr.mxu0 0.0
    %4489 = vmatpush2.msra.mxu0 0.0
    %4490 = vmatprep.subr.mxu0 0.0
    %4491 = vmatpush2.msra.mxu0 0.0
    %4492 = vmatprep.subr.mxu0 0.0
    %4493 = vmatpush2.msra.mxu0 0.0
    %4494 = vmatprep.subr.mxu0 0.0
    %4495 = vmatpush2.msra.mxu0 0.0
    %4496 = vmatprep.subr.mxu0 0.0
    %4497 = vmatpush2.msra.mxu0 0.0
    %4498 = vmatprep.subr.mxu0 0.0
    %4499 = vmatpush2.msra.mxu0 0.0
    %4500 = vmatprep.subr.mxu0 0.0
    %4501 = vmatpush2.msra.mxu0 0.0
    %4502 = vmatprep.mubr.f32.mxu0 0.0
    %4503 = vmatmul.mubr.f32.gmra.mxu0 %v4436
    %v4504 = vpop.f32.mrf.mxu0
    %v4505 = vadd.f32 0.0, %v4504
    %v4506 = vpop.f32.mrf.mxu0
    %4507 = vdwg.mxu0
    %v4509 = vsel %vm364, %v2820, 0
    %4511 = vmatprep.subr.mxu0 0.0
    %4512 = vmatpush1.msra.mxu0 0.0
    %4513 = vmatprep.subr.mxu0 0.0
    %4514 = vmatpush1.msra.mxu0 0.0
    %4515 = vmatprep.subr.mxu0 0.0
    %4516 = vmatpush1.msra.mxu0 0.0
    %4517 = vmatprep.subr.mxu0 0.0
    %4518 = vmatpush1.msra.mxu0 0.0
    %4519 = vmatprep.subr.mxu0 0.0
    %4520 = vmatpush1.msra.mxu0 0.0
    %4521 = vmatprep.subr.mxu0 0.0
    %4522 = vmatpush1.msra.mxu0 0.0
    %4523 = vmatprep.subr.mxu0 0.0
    %4524 = vmatpush1.msra.mxu0 0.0
    %4525 = vmatprep.subr.mxu0 0.0
    %4526 = vmatpush1.msra.mxu0 0.0
    %4527 = vmatprep.subr.mxu0 0.0
    %4528 = vmatpush1.msra.mxu0 0.0
    %4529 = vmatprep.subr.mxu0 0.0
    %4530 = vmatpush1.msra.mxu0 0.0
    %4531 = vmatprep.subr.mxu0 0.0
    %4532 = vmatpush1.msra.mxu0 0.0
    %4533 = vmatprep.subr.mxu0 0.0
    %4534 = vmatpush1.msra.mxu0 0.0
    %4535 = vmatprep.subr.mxu0 0.0
    %4536 = vmatpush1.msra.mxu0 0.0
    %4537 = vmatprep.subr.mxu0 0.0
    %4538 = vmatpush1.msra.mxu0 0.0
    %4539 = vmatprep.subr.mxu0 0.0
    %4540 = vmatpush1.msra.mxu0 %v283
    %4541 = vmatprep.subr.mxu0 0.0
    %4542 = vmatpush1.msra.mxu0 %v282
    %4543 = vmatprep.subr.mxu0 0.0
    %4544 = vmatpush2.msra.mxu0 0.0
    %4545 = vmatprep.subr.mxu0 0.0
    %4546 = vmatpush2.msra.mxu0 0.0
    %4547 = vmatprep.subr.mxu0 0.0
    %4548 = vmatpush2.msra.mxu0 0.0
    %4549 = vmatprep.subr.mxu0 0.0
    %4550 = vmatpush2.msra.mxu0 0.0
    %4551 = vmatprep.subr.mxu0 0.0
    %4552 = vmatpush2.msra.mxu0 0.0
    %4553 = vmatprep.subr.mxu0 0.0
    %4554 = vmatpush2.msra.mxu0 0.0
    %4555 = vmatprep.subr.mxu0 0.0
    %4556 = vmatpush2.msra.mxu0 0.0
    %4557 = vmatprep.subr.mxu0 0.0
    %4558 = vmatpush2.msra.mxu0 0.0
    %4559 = vmatprep.subr.mxu0 0.0
    %4560 = vmatpush2.msra.mxu0 0.0
    %4561 = vmatprep.subr.mxu0 0.0
    %4562 = vmatpush2.msra.mxu0 0.0
    %4563 = vmatprep.subr.mxu0 0.0
    %4564 = vmatpush2.msra.mxu0 0.0
    %4565 = vmatprep.subr.mxu0 0.0
    %4566 = vmatpush2.msra.mxu0 0.0
    %4567 = vmatprep.subr.mxu0 0.0
    %4568 = vmatpush2.msra.mxu0 0.0
    %4569 = vmatprep.subr.mxu0 0.0
    %4570 = vmatpush2.msra.mxu0 0.0
    %4571 = vmatprep.subr.mxu0 0.0
    %4572 = vmatpush2.msra.mxu0 0.0
    %4573 = vmatprep.subr.mxu0 0.0
    %4574 = vmatpush2.msra.mxu0 0.0
    %4575 = vmatprep.mubr.f32.mxu0 0.0
    %4576 = vmatmul.mubr.f32.gmra.mxu0 %v4509
    %v4577 = vpop.f32.mrf.mxu0
    %v4578 = vadd.f32 0.0, %v4577
    %v4579 = vpop.f32.mrf.mxu0
    %4580 = vdwg.mxu0
    %v4582 = vsel %vm364, %v2821, 0
    %4584 = vmatprep.subr.mxu0 0.0
    %4585 = vmatpush1.msra.mxu0 0.0
    %4586 = vmatprep.subr.mxu0 0.0
    %4587 = vmatpush1.msra.mxu0 0.0
    %4588 = vmatprep.subr.mxu0 0.0
    %4589 = vmatpush1.msra.mxu0 0.0
    %4590 = vmatprep.subr.mxu0 0.0
    %4591 = vmatpush1.msra.mxu0 0.0
    %4592 = vmatprep.subr.mxu0 0.0
    %4593 = vmatpush1.msra.mxu0 0.0
    %4594 = vmatprep.subr.mxu0 0.0
    %4595 = vmatpush1.msra.mxu0 0.0
    %4596 = vmatprep.subr.mxu0 0.0
    %4597 = vmatpush1.msra.mxu0 0.0
    %4598 = vmatprep.subr.mxu0 0.0
    %4599 = vmatpush1.msra.mxu0 0.0
    %4600 = vmatprep.subr.mxu0 0.0
    %4601 = vmatpush1.msra.mxu0 0.0
    %4602 = vmatprep.subr.mxu0 0.0
    %4603 = vmatpush1.msra.mxu0 0.0
    %4604 = vmatprep.subr.mxu0 0.0
    %4605 = vmatpush1.msra.mxu0 0.0
    %4606 = vmatprep.subr.mxu0 0.0
    %4607 = vmatpush1.msra.mxu0 0.0
    %4608 = vmatprep.subr.mxu0 0.0
    %4609 = vmatpush1.msra.mxu0 0.0
    %4610 = vmatprep.subr.mxu0 0.0
    %4611 = vmatpush1.msra.mxu0 0.0
    %4612 = vmatprep.subr.mxu0 0.0
    %4613 = vmatpush1.msra.mxu0 %v285
    %4614 = vmatprep.subr.mxu0 0.0
    %4615 = vmatpush1.msra.mxu0 %v284
    %4616 = vmatprep.subr.mxu0 0.0
    %4617 = vmatpush2.msra.mxu0 0.0
    %4618 = vmatprep.subr.mxu0 0.0
    %4619 = vmatpush2.msra.mxu0 0.0
    %4620 = vmatprep.subr.mxu0 0.0
    %4621 = vmatpush2.msra.mxu0 0.0
    %4622 = vmatprep.subr.mxu0 0.0
    %4623 = vmatpush2.msra.mxu0 0.0
    %4624 = vmatprep.subr.mxu0 0.0
    %4625 = vmatpush2.msra.mxu0 0.0
    %4626 = vmatprep.subr.mxu0 0.0
    %4627 = vmatpush2.msra.mxu0 0.0
    %4628 = vmatprep.subr.mxu0 0.0
    %4629 = vmatpush2.msra.mxu0 0.0
    %4630 = vmatprep.subr.mxu0 0.0
    %4631 = vmatpush2.msra.mxu0 0.0
    %4632 = vmatprep.subr.mxu0 0.0
    %4633 = vmatpush2.msra.mxu0 0.0
    %4634 = vmatprep.subr.mxu0 0.0
    %4635 = vmatpush2.msra.mxu0 0.0
    %4636 = vmatprep.subr.mxu0 0.0
    %4637 = vmatpush2.msra.mxu0 0.0
    %4638 = vmatprep.subr.mxu0 0.0
    %4639 = vmatpush2.msra.mxu0 0.0
    %4640 = vmatprep.subr.mxu0 0.0
    %4641 = vmatpush2.msra.mxu0 0.0
    %4642 = vmatprep.subr.mxu0 0.0
    %4643 = vmatpush2.msra.mxu0 0.0
    %4644 = vmatprep.subr.mxu0 0.0
    %4645 = vmatpush2.msra.mxu0 0.0
    %4646 = vmatprep.subr.mxu0 0.0
    %4647 = vmatpush2.msra.mxu0 0.0
    %4648 = vmatprep.mubr.f32.mxu0 0.0
    %4649 = vmatmul.mubr.f32.gmra.mxu0 %v4582
    %v4650 = vpop.f32.mrf.mxu0
    %v4651 = vadd.f32 0.0, %v4650
    %v4652 = vpop.f32.mrf.mxu0
    %4653 = vdwg.mxu0
    %v4655 = vsel %vm364, %v2822, 0
    %4657 = vmatprep.subr.mxu0 0.0
    %4658 = vmatpush1.msra.mxu0 0.0
    %4659 = vmatprep.subr.mxu0 0.0
    %4660 = vmatpush1.msra.mxu0 0.0
    %4661 = vmatprep.subr.mxu0 0.0
    %4662 = vmatpush1.msra.mxu0 0.0
    %4663 = vmatprep.subr.mxu0 0.0
    %4664 = vmatpush1.msra.mxu0 0.0
    %4665 = vmatprep.subr.mxu0 0.0
    %4666 = vmatpush1.msra.mxu0 0.0
    %4667 = vmatprep.subr.mxu0 0.0
    %4668 = vmatpush1.msra.mxu0 0.0
    %4669 = vmatprep.subr.mxu0 0.0
    %4670 = vmatpush1.msra.mxu0 0.0
    %4671 = vmatprep.subr.mxu0 0.0
    %4672 = vmatpush1.msra.mxu0 0.0
    %4673 = vmatprep.subr.mxu0 0.0
    %4674 = vmatpush1.msra.mxu0 0.0
    %4675 = vmatprep.subr.mxu0 0.0
    %4676 = vmatpush1.msra.mxu0 0.0
    %4677 = vmatprep.subr.mxu0 0.0
    %4678 = vmatpush1.msra.mxu0 0.0
    %4679 = vmatprep.subr.mxu0 0.0
    %4680 = vmatpush1.msra.mxu0 0.0
    %4681 = vmatprep.subr.mxu0 0.0
    %4682 = vmatpush1.msra.mxu0 0.0
    %4683 = vmatprep.subr.mxu0 0.0
    %4684 = vmatpush1.msra.mxu0 0.0
    %4685 = vmatprep.subr.mxu0 0.0
    %4686 = vmatpush1.msra.mxu0 %v287
    %4687 = vmatprep.subr.mxu0 0.0
    %4688 = vmatpush1.msra.mxu0 %v286
    %4689 = vmatprep.subr.mxu0 0.0
    %4690 = vmatpush2.msra.mxu0 0.0
    %4691 = vmatprep.subr.mxu0 0.0
    %4692 = vmatpush2.msra.mxu0 0.0
    %4693 = vmatprep.subr.mxu0 0.0
    %4694 = vmatpush2.msra.mxu0 0.0
    %4695 = vmatprep.subr.mxu0 0.0
    %4696 = vmatpush2.msra.mxu0 0.0
    %4697 = vmatprep.subr.mxu0 0.0
    %4698 = vmatpush2.msra.mxu0 0.0
    %4699 = vmatprep.subr.mxu0 0.0
    %4700 = vmatpush2.msra.mxu0 0.0
    %4701 = vmatprep.subr.mxu0 0.0
    %4702 = vmatpush2.msra.mxu0 0.0
    %4703 = vmatprep.subr.mxu0 0.0
    %4704 = vmatpush2.msra.mxu0 0.0
    %4705 = vmatprep.subr.mxu0 0.0
    %4706 = vmatpush2.msra.mxu0 0.0
    %4707 = vmatprep.subr.mxu0 0.0
    %4708 = vmatpush2.msra.mxu0 0.0
    %4709 = vmatprep.subr.mxu0 0.0
    %4710 = vmatpush2.msra.mxu0 0.0
    %4711 = vmatprep.subr.mxu0 0.0
    %4712 = vmatpush2.msra.mxu0 0.0
    %4713 = vmatprep.subr.mxu0 0.0
    %4714 = vmatpush2.msra.mxu0 0.0
    %4715 = vmatprep.subr.mxu0 0.0
    %4716 = vmatpush2.msra.mxu0 0.0
    %4717 = vmatprep.subr.mxu0 0.0
    %4718 = vmatpush2.msra.mxu0 0.0
    %4719 = vmatprep.subr.mxu0 0.0
    %4720 = vmatpush2.msra.mxu0 0.0
    %4721 = vmatprep.mubr.f32.mxu0 0.0
    %4722 = vmatmul.mubr.f32.gmra.mxu0 %v4655
    %v4723 = vpop.f32.mrf.mxu0
    %v4724 = vadd.f32 0.0, %v4723
    %v4725 = vpop.f32.mrf.mxu0
    %4726 = vdwg.mxu0
    %v4728 = vsel %vm364, %v2823, 0
    %4730 = vmatprep.subr.mxu0 0.0
    %4731 = vmatpush1.msra.mxu0 0.0
    %4732 = vmatprep.subr.mxu0 0.0
    %4733 = vmatpush1.msra.mxu0 0.0
    %4734 = vmatprep.subr.mxu0 0.0
    %4735 = vmatpush1.msra.mxu0 0.0
    %4736 = vmatprep.subr.mxu0 0.0
    %4737 = vmatpush1.msra.mxu0 0.0
    %4738 = vmatprep.subr.mxu0 0.0
    %4739 = vmatpush1.msra.mxu0 0.0
    %4740 = vmatprep.subr.mxu0 0.0
    %4741 = vmatpush1.msra.mxu0 0.0
    %4742 = vmatprep.subr.mxu0 0.0
    %4743 = vmatpush1.msra.mxu0 0.0
    %4744 = vmatprep.subr.mxu0 0.0
    %4745 = vmatpush1.msra.mxu0 0.0
    %4746 = vmatprep.subr.mxu0 0.0
    %4747 = vmatpush1.msra.mxu0 0.0
    %4748 = vmatprep.subr.mxu0 0.0
    %4749 = vmatpush1.msra.mxu0 0.0
    %4750 = vmatprep.subr.mxu0 0.0
    %4751 = vmatpush1.msra.mxu0 0.0
    %4752 = vmatprep.subr.mxu0 0.0
    %4753 = vmatpush1.msra.mxu0 0.0
    %4754 = vmatprep.subr.mxu0 0.0
    %4755 = vmatpush1.msra.mxu0 0.0
    %4756 = vmatprep.subr.mxu0 0.0
    %4757 = vmatpush1.msra.mxu0 0.0
    %4758 = vmatprep.subr.mxu0 0.0
    %4759 = vmatpush1.msra.mxu0 %v289
    %4760 = vmatprep.subr.mxu0 0.0
    %4761 = vmatpush1.msra.mxu0 %v288
    %4762 = vmatprep.subr.mxu0 0.0
    %4763 = vmatpush2.msra.mxu0 0.0
    %4764 = vmatprep.subr.mxu0 0.0
    %4765 = vmatpush2.msra.mxu0 0.0
    %4766 = vmatprep.subr.mxu0 0.0
    %4767 = vmatpush2.msra.mxu0 0.0
    %4768 = vmatprep.subr.mxu0 0.0
    %4769 = vmatpush2.msra.mxu0 0.0
    %4770 = vmatprep.subr.mxu0 0.0
    %4771 = vmatpush2.msra.mxu0 0.0
    %4772 = vmatprep.subr.mxu0 0.0
    %4773 = vmatpush2.msra.mxu0 0.0
    %4774 = vmatprep.subr.mxu0 0.0
    %4775 = vmatpush2.msra.mxu0 0.0
    %4776 = vmatprep.subr.mxu0 0.0
    %4777 = vmatpush2.msra.mxu0 0.0
    %4778 = vmatprep.subr.mxu0 0.0
    %4779 = vmatpush2.msra.mxu0 0.0
    %4780 = vmatprep.subr.mxu0 0.0
    %4781 = vmatpush2.msra.mxu0 0.0
    %4782 = vmatprep.subr.mxu0 0.0
    %4783 = vmatpush2.msra.mxu0 0.0
    %4784 = vmatprep.subr.mxu0 0.0
    %4785 = vmatpush2.msra.mxu0 0.0
    %4786 = vmatprep.subr.mxu0 0.0
    %4787 = vmatpush2.msra.mxu0 0.0
    %4788 = vmatprep.subr.mxu0 0.0
    %4789 = vmatpush2.msra.mxu0 0.0
    %4790 = vmatprep.subr.mxu0 0.0
    %4791 = vmatpush2.msra.mxu0 0.0
    %4792 = vmatprep.subr.mxu0 0.0
    %4793 = vmatpush2.msra.mxu0 0.0
    %4794 = vmatprep.mubr.f32.mxu0 0.0
    %4795 = vmatmul.mubr.f32.gmra.mxu0 %v4728
    %v4796 = vpop.f32.mrf.mxu0
    %v4797 = vadd.f32 0.0, %v4796
    %v4798 = vpop.f32.mrf.mxu0
    %4799 = vdwg.mxu0
    %v4801 = vsel %vm364, %v2824, 0
    %4803 = vmatprep.subr.mxu0 0.0
    %4804 = vmatpush1.msra.mxu0 0.0
    %4805 = vmatprep.subr.mxu0 0.0
    %4806 = vmatpush1.msra.mxu0 0.0
    %4807 = vmatprep.subr.mxu0 0.0
    %4808 = vmatpush1.msra.mxu0 0.0
    %4809 = vmatprep.subr.mxu0 0.0
    %4810 = vmatpush1.msra.mxu0 0.0
    %4811 = vmatprep.subr.mxu0 0.0
    %4812 = vmatpush1.msra.mxu0 0.0
    %4813 = vmatprep.subr.mxu0 0.0
    %4814 = vmatpush1.msra.mxu0 0.0
    %4815 = vmatprep.subr.mxu0 0.0
    %4816 = vmatpush1.msra.mxu0 0.0
    %4817 = vmatprep.subr.mxu0 0.0
    %4818 = vmatpush1.msra.mxu0 0.0
    %4819 = vmatprep.subr.mxu0 0.0
    %4820 = vmatpush1.msra.mxu0 0.0
    %4821 = vmatprep.subr.mxu0 0.0
    %4822 = vmatpush1.msra.mxu0 0.0
    %4823 = vmatprep.subr.mxu0 0.0
    %4824 = vmatpush1.msra.mxu0 0.0
    %4825 = vmatprep.subr.mxu0 0.0
    %4826 = vmatpush1.msra.mxu0 0.0
    %4827 = vmatprep.subr.mxu0 0.0
    %4828 = vmatpush1.msra.mxu0 0.0
    %4829 = vmatprep.subr.mxu0 0.0
    %4830 = vmatpush1.msra.mxu0 0.0
    %4831 = vmatprep.subr.mxu0 0.0
    %4832 = vmatpush1.msra.mxu0 %v291
    %4833 = vmatprep.subr.mxu0 0.0
    %4834 = vmatpush1.msra.mxu0 %v290
    %4835 = vmatprep.subr.mxu0 0.0
    %4836 = vmatpush2.msra.mxu0 0.0
    %4837 = vmatprep.subr.mxu0 0.0
    %4838 = vmatpush2.msra.mxu0 0.0
    %4839 = vmatprep.subr.mxu0 0.0
    %4840 = vmatpush2.msra.mxu0 0.0
    %4841 = vmatprep.subr.mxu0 0.0
    %4842 = vmatpush2.msra.mxu0 0.0
    %4843 = vmatprep.subr.mxu0 0.0
    %4844 = vmatpush2.msra.mxu0 0.0
    %4845 = vmatprep.subr.mxu0 0.0
    %4846 = vmatpush2.msra.mxu0 0.0
    %4847 = vmatprep.subr.mxu0 0.0
    %4848 = vmatpush2.msra.mxu0 0.0
    %4849 = vmatprep.subr.mxu0 0.0
    %4850 = vmatpush2.msra.mxu0 0.0
    %4851 = vmatprep.subr.mxu0 0.0
    %4852 = vmatpush2.msra.mxu0 0.0
    %4853 = vmatprep.subr.mxu0 0.0
    %4854 = vmatpush2.msra.mxu0 0.0
    %4855 = vmatprep.subr.mxu0 0.0
    %4856 = vmatpush2.msra.mxu0 0.0
    %4857 = vmatprep.subr.mxu0 0.0
    %4858 = vmatpush2.msra.mxu0 0.0
    %4859 = vmatprep.subr.mxu0 0.0
    %4860 = vmatpush2.msra.mxu0 0.0
    %4861 = vmatprep.subr.mxu0 0.0
    %4862 = vmatpush2.msra.mxu0 0.0
    %4863 = vmatprep.subr.mxu0 0.0
    %4864 = vmatpush2.msra.mxu0 0.0
    %4865 = vmatprep.subr.mxu0 0.0
    %4866 = vmatpush2.msra.mxu0 0.0
    %4867 = vmatprep.mubr.f32.mxu0 0.0
    %4868 = vmatmul.mubr.f32.gmra.mxu0 %v4801
    %v4869 = vpop.f32.mrf.mxu0
    %v4870 = vadd.f32 0.0, %v4869
    %v4871 = vpop.f32.mrf.mxu0
    %4872 = vdwg.mxu0
    %v4874 = vsel %vm364, %v2825, 0
    %4876 = vmatprep.subr.mxu0 0.0
    %4877 = vmatpush1.msra.mxu0 0.0
    %4878 = vmatprep.subr.mxu0 0.0
    %4879 = vmatpush1.msra.mxu0 0.0
    %4880 = vmatprep.subr.mxu0 0.0
    %4881 = vmatpush1.msra.mxu0 0.0
    %4882 = vmatprep.subr.mxu0 0.0
    %4883 = vmatpush1.msra.mxu0 0.0
    %4884 = vmatprep.subr.mxu0 0.0
    %4885 = vmatpush1.msra.mxu0 0.0
    %4886 = vmatprep.subr.mxu0 0.0
    %4887 = vmatpush1.msra.mxu0 0.0
    %4888 = vmatprep.subr.mxu0 0.0
    %4889 = vmatpush1.msra.mxu0 0.0
    %4890 = vmatprep.subr.mxu0 0.0
    %4891 = vmatpush1.msra.mxu0 0.0
    %4892 = vmatprep.subr.mxu0 0.0
    %4893 = vmatpush1.msra.mxu0 0.0
    %4894 = vmatprep.subr.mxu0 0.0
    %4895 = vmatpush1.msra.mxu0 0.0
    %4896 = vmatprep.subr.mxu0 0.0
    %4897 = vmatpush1.msra.mxu0 0.0
    %4898 = vmatprep.subr.mxu0 0.0
    %4899 = vmatpush1.msra.mxu0 0.0
    %4900 = vmatprep.subr.mxu0 0.0
    %4901 = vmatpush1.msra.mxu0 0.0
    %4902 = vmatprep.subr.mxu0 0.0
    %4903 = vmatpush1.msra.mxu0 0.0
    %4904 = vmatprep.subr.mxu0 0.0
    %4905 = vmatpush1.msra.mxu0 %v293
    %4906 = vmatprep.subr.mxu0 0.0
    %4907 = vmatpush1.msra.mxu0 %v292
    %4908 = vmatprep.subr.mxu0 0.0
    %4909 = vmatpush2.msra.mxu0 0.0
    %4910 = vmatprep.subr.mxu0 0.0
    %4911 = vmatpush2.msra.mxu0 0.0
    %4912 = vmatprep.subr.mxu0 0.0
    %4913 = vmatpush2.msra.mxu0 0.0
    %4914 = vmatprep.subr.mxu0 0.0
    %4915 = vmatpush2.msra.mxu0 0.0
    %4916 = vmatprep.subr.mxu0 0.0
    %4917 = vmatpush2.msra.mxu0 0.0
    %4918 = vmatprep.subr.mxu0 0.0
    %4919 = vmatpush2.msra.mxu0 0.0
    %4920 = vmatprep.subr.mxu0 0.0
    %4921 = vmatpush2.msra.mxu0 0.0
    %4922 = vmatprep.subr.mxu0 0.0
    %4923 = vmatpush2.msra.mxu0 0.0
    %4924 = vmatprep.subr.mxu0 0.0
    %4925 = vmatpush2.msra.mxu0 0.0
    %4926 = vmatprep.subr.mxu0 0.0
    %4927 = vmatpush2.msra.mxu0 0.0
    %4928 = vmatprep.subr.mxu0 0.0
    %4929 = vmatpush2.msra.mxu0 0.0
    %4930 = vmatprep.subr.mxu0 0.0
    %4931 = vmatpush2.msra.mxu0 0.0
    %4932 = vmatprep.subr.mxu0 0.0
    %4933 = vmatpush2.msra.mxu0 0.0
    %4934 = vmatprep.subr.mxu0 0.0
    %4935 = vmatpush2.msra.mxu0 0.0
    %4936 = vmatprep.subr.mxu0 0.0
    %4937 = vmatpush2.msra.mxu0 0.0
    %4938 = vmatprep.subr.mxu0 0.0
    %4939 = vmatpush2.msra.mxu0 0.0
    %4940 = vmatprep.mubr.f32.mxu0 0.0
    %4941 = vmatmul.mubr.f32.gmra.mxu0 %v4874
    %v4942 = vpop.f32.mrf.mxu0
    %v4943 = vadd.f32 0.0, %v4942
    %v4944 = vpop.f32.mrf.mxu0
    %4945 = vdwg.mxu0
    %v4947 = vsel %vm364, %v2826, 0
    %4949 = vmatprep.subr.mxu0 0.0
    %4950 = vmatpush1.msra.mxu0 0.0
    %4951 = vmatprep.subr.mxu0 0.0
    %4952 = vmatpush1.msra.mxu0 0.0
    %4953 = vmatprep.subr.mxu0 0.0
    %4954 = vmatpush1.msra.mxu0 0.0
    %4955 = vmatprep.subr.mxu0 0.0
    %4956 = vmatpush1.msra.mxu0 0.0
    %4957 = vmatprep.subr.mxu0 0.0
    %4958 = vmatpush1.msra.mxu0 0.0
    %4959 = vmatprep.subr.mxu0 0.0
    %4960 = vmatpush1.msra.mxu0 0.0
    %4961 = vmatprep.subr.mxu0 0.0
    %4962 = vmatpush1.msra.mxu0 0.0
    %4963 = vmatprep.subr.mxu0 0.0
    %4964 = vmatpush1.msra.mxu0 0.0
    %4965 = vmatprep.subr.mxu0 0.0
    %4966 = vmatpush1.msra.mxu0 0.0
    %4967 = vmatprep.subr.mxu0 0.0
    %4968 = vmatpush1.msra.mxu0 0.0
    %4969 = vmatprep.subr.mxu0 0.0
    %4970 = vmatpush1.msra.mxu0 0.0
    %4971 = vmatprep.subr.mxu0 0.0
    %4972 = vmatpush1.msra.mxu0 0.0
    %4973 = vmatprep.subr.mxu0 0.0
    %4974 = vmatpush1.msra.mxu0 0.0
    %4975 = vmatprep.subr.mxu0 0.0
    %4976 = vmatpush1.msra.mxu0 0.0
    %4977 = vmatprep.subr.mxu0 0.0
    %4978 = vmatpush1.msra.mxu0 %v295
    %4979 = vmatprep.subr.mxu0 0.0
    %4980 = vmatpush1.msra.mxu0 %v294
    %4981 = vmatprep.subr.mxu0 0.0
    %4982 = vmatpush2.msra.mxu0 0.0
    %4983 = vmatprep.subr.mxu0 0.0
    %4984 = vmatpush2.msra.mxu0 0.0
    %4985 = vmatprep.subr.mxu0 0.0
    %4986 = vmatpush2.msra.mxu0 0.0
    %4987 = vmatprep.subr.mxu0 0.0
    %4988 = vmatpush2.msra.mxu0 0.0
    %4989 = vmatprep.subr.mxu0 0.0
    %4990 = vmatpush2.msra.mxu0 0.0
    %4991 = vmatprep.subr.mxu0 0.0
    %4992 = vmatpush2.msra.mxu0 0.0
    %4993 = vmatprep.subr.mxu0 0.0
    %4994 = vmatpush2.msra.mxu0 0.0
    %4995 = vmatprep.subr.mxu0 0.0
    %4996 = vmatpush2.msra.mxu0 0.0
    %4997 = vmatprep.subr.mxu0 0.0
    %4998 = vmatpush2.msra.mxu0 0.0
    %4999 = vmatprep.subr.mxu0 0.0
    %5000 = vmatpush2.msra.mxu0 0.0
    %5001 = vmatprep.subr.mxu0 0.0
    %5002 = vmatpush2.msra.mxu0 0.0
    %5003 = vmatprep.subr.mxu0 0.0
    %5004 = vmatpush2.msra.mxu0 0.0
    %5005 = vmatprep.subr.mxu0 0.0
    %5006 = vmatpush2.msra.mxu0 0.0
    %5007 = vmatprep.subr.mxu0 0.0
    %5008 = vmatpush2.msra.mxu0 0.0
    %5009 = vmatprep.subr.mxu0 0.0
    %5010 = vmatpush2.msra.mxu0 0.0
    %5011 = vmatprep.subr.mxu0 0.0
    %5012 = vmatpush2.msra.mxu0 0.0
    %5013 = vmatprep.mubr.f32.mxu0 0.0
    %5014 = vmatmul.mubr.f32.gmra.mxu0 %v4947
    %v5015 = vpop.f32.mrf.mxu0
    %v5016 = vadd.f32 0.0, %v5015
    %v5017 = vpop.f32.mrf.mxu0
    %5018 = vdwg.mxu0
    %v5020 = vsel %vm364, %v2827, 0
    %5022 = vmatprep.subr.mxu0 0.0
    %5023 = vmatpush1.msra.mxu0 0.0
    %5024 = vmatprep.subr.mxu0 0.0
    %5025 = vmatpush1.msra.mxu0 0.0
    %5026 = vmatprep.subr.mxu0 0.0
    %5027 = vmatpush1.msra.mxu0 0.0
    %5028 = vmatprep.subr.mxu0 0.0
    %5029 = vmatpush1.msra.mxu0 0.0
    %5030 = vmatprep.subr.mxu0 0.0
    %5031 = vmatpush1.msra.mxu0 0.0
    %5032 = vmatprep.subr.mxu0 0.0
    %5033 = vmatpush1.msra.mxu0 0.0
    %5034 = vmatprep.subr.mxu0 0.0
    %5035 = vmatpush1.msra.mxu0 0.0
    %5036 = vmatprep.subr.mxu0 0.0
    %5037 = vmatpush1.msra.mxu0 0.0
    %5038 = vmatprep.subr.mxu0 0.0
    %5039 = vmatpush1.msra.mxu0 0.0
    %5040 = vmatprep.subr.mxu0 0.0
    %5041 = vmatpush1.msra.mxu0 0.0
    %5042 = vmatprep.subr.mxu0 0.0
    %5043 = vmatpush1.msra.mxu0 0.0
    %5044 = vmatprep.subr.mxu0 0.0
    %5045 = vmatpush1.msra.mxu0 0.0
    %5046 = vmatprep.subr.mxu0 0.0
    %5047 = vmatpush1.msra.mxu0 0.0
    %5048 = vmatprep.subr.mxu0 0.0
    %5049 = vmatpush1.msra.mxu0 0.0
    %5050 = vmatprep.subr.mxu0 0.0
    %5051 = vmatpush1.msra.mxu0 %v297
    %5052 = vmatprep.subr.mxu0 0.0
    %5053 = vmatpush1.msra.mxu0 %v296
    %5054 = vmatprep.subr.mxu0 0.0
    %5055 = vmatpush2.msra.mxu0 0.0
    %5056 = vmatprep.subr.mxu0 0.0
    %5057 = vmatpush2.msra.mxu0 0.0
    %5058 = vmatprep.subr.mxu0 0.0
    %5059 = vmatpush2.msra.mxu0 0.0
    %5060 = vmatprep.subr.mxu0 0.0
    %5061 = vmatpush2.msra.mxu0 0.0
    %5062 = vmatprep.subr.mxu0 0.0
    %5063 = vmatpush2.msra.mxu0 0.0
    %5064 = vmatprep.subr.mxu0 0.0
    %5065 = vmatpush2.msra.mxu0 0.0
    %5066 = vmatprep.subr.mxu0 0.0
    %5067 = vmatpush2.msra.mxu0 0.0
    %5068 = vmatprep.subr.mxu0 0.0
    %5069 = vmatpush2.msra.mxu0 0.0
    %5070 = vmatprep.subr.mxu0 0.0
    %5071 = vmatpush2.msra.mxu0 0.0
    %5072 = vmatprep.subr.mxu0 0.0
    %5073 = vmatpush2.msra.mxu0 0.0
    %5074 = vmatprep.subr.mxu0 0.0
    %5075 = vmatpush2.msra.mxu0 0.0
    %5076 = vmatprep.subr.mxu0 0.0
    %5077 = vmatpush2.msra.mxu0 0.0
    %5078 = vmatprep.subr.mxu0 0.0
    %5079 = vmatpush2.msra.mxu0 0.0
    %5080 = vmatprep.subr.mxu0 0.0
    %5081 = vmatpush2.msra.mxu0 0.0
    %5082 = vmatprep.subr.mxu0 0.0
    %5083 = vmatpush2.msra.mxu0 0.0
    %5084 = vmatprep.subr.mxu0 0.0
    %5085 = vmatpush2.msra.mxu0 0.0
    %5086 = vmatprep.mubr.f32.mxu0 0.0
    %5087 = vmatmul.mubr.f32.gmra.mxu0 %v5020
    %v5088 = vpop.f32.mrf.mxu0
    %v5089 = vadd.f32 0.0, %v5088
    %v5090 = vpop.f32.mrf.mxu0
    %5091 = vdwg.mxu0
    %v5093 = vsel %vm364, %v2828, 0
    %5095 = vmatprep.subr.mxu0 0.0
    %5096 = vmatpush1.msra.mxu0 0.0
    %5097 = vmatprep.subr.mxu0 0.0
    %5098 = vmatpush1.msra.mxu0 0.0
    %5099 = vmatprep.subr.mxu0 0.0
    %5100 = vmatpush1.msra.mxu0 0.0
    %5101 = vmatprep.subr.mxu0 0.0
    %5102 = vmatpush1.msra.mxu0 0.0
    %5103 = vmatprep.subr.mxu0 0.0
    %5104 = vmatpush1.msra.mxu0 0.0
    %5105 = vmatprep.subr.mxu0 0.0
    %5106 = vmatpush1.msra.mxu0 0.0
    %5107 = vmatprep.subr.mxu0 0.0
    %5108 = vmatpush1.msra.mxu0 0.0
    %5109 = vmatprep.subr.mxu0 0.0
    %5110 = vmatpush1.msra.mxu0 0.0
    %5111 = vmatprep.subr.mxu0 0.0
    %5112 = vmatpush1.msra.mxu0 0.0
    %5113 = vmatprep.subr.mxu0 0.0
    %5114 = vmatpush1.msra.mxu0 0.0
    %5115 = vmatprep.subr.mxu0 0.0
    %5116 = vmatpush1.msra.mxu0 0.0
    %5117 = vmatprep.subr.mxu0 0.0
    %5118 = vmatpush1.msra.mxu0 0.0
    %5119 = vmatprep.subr.mxu0 0.0
    %5120 = vmatpush1.msra.mxu0 0.0
    %5121 = vmatprep.subr.mxu0 0.0
    %5122 = vmatpush1.msra.mxu0 0.0
    %5123 = vmatprep.subr.mxu0 0.0
    %5124 = vmatpush1.msra.mxu0 %v299
    %5125 = vmatprep.subr.mxu0 0.0
    %5126 = vmatpush1.msra.mxu0 %v298
    %5127 = vmatprep.subr.mxu0 0.0
    %5128 = vmatpush2.msra.mxu0 0.0
    %5129 = vmatprep.subr.mxu0 0.0
    %5130 = vmatpush2.msra.mxu0 0.0
    %5131 = vmatprep.subr.mxu0 0.0
    %5132 = vmatpush2.msra.mxu0 0.0
    %5133 = vmatprep.subr.mxu0 0.0
    %5134 = vmatpush2.msra.mxu0 0.0
    %5135 = vmatprep.subr.mxu0 0.0
    %5136 = vmatpush2.msra.mxu0 0.0
    %5137 = vmatprep.subr.mxu0 0.0
    %5138 = vmatpush2.msra.mxu0 0.0
    %5139 = vmatprep.subr.mxu0 0.0
    %5140 = vmatpush2.msra.mxu0 0.0
    %5141 = vmatprep.subr.mxu0 0.0
    %5142 = vmatpush2.msra.mxu0 0.0
    %5143 = vmatprep.subr.mxu0 0.0
    %5144 = vmatpush2.msra.mxu0 0.0
    %5145 = vmatprep.subr.mxu0 0.0
    %5146 = vmatpush2.msra.mxu0 0.0
    %5147 = vmatprep.subr.mxu0 0.0
    %5148 = vmatpush2.msra.mxu0 0.0
    %5149 = vmatprep.subr.mxu0 0.0
    %5150 = vmatpush2.msra.mxu0 0.0
    %5151 = vmatprep.subr.mxu0 0.0
    %5152 = vmatpush2.msra.mxu0 0.0
    %5153 = vmatprep.subr.mxu0 0.0
    %5154 = vmatpush2.msra.mxu0 0.0
    %5155 = vmatprep.subr.mxu0 0.0
    %5156 = vmatpush2.msra.mxu0 0.0
    %5157 = vmatprep.subr.mxu0 0.0
    %5158 = vmatpush2.msra.mxu0 0.0
    %5159 = vmatprep.mubr.f32.mxu0 0.0
    %5160 = vmatmul.mubr.f32.gmra.mxu0 %v5093
    %v5161 = vpop.f32.mrf.mxu0
    %v5162 = vadd.f32 0.0, %v5161
    %v5163 = vpop.f32.mrf.mxu0
    %5164 = vdwg.mxu0
    %v5165 = vadd.f32 %v2765, %v2899
    %v5166 = vadd.f32 %v2766, %v2972
    %v5167 = vadd.f32 %v2767, %v3045
    %v5168 = vadd.f32 %v2768, %v3118
    %v5169 = vadd.f32 %v2769, %v3191
    %v5170 = vadd.f32 %v2770, %v3264
    %v5171 = vadd.f32 %v2771, %v3337
    %v5172 = vadd.f32 %v2772, %v3410
    %v5173 = vadd.f32 %v2773, %v3483
    %v5174 = vadd.f32 %v2774, %v3556
    %v5175 = vadd.f32 %v2775, %v3629
    %v5176 = vadd.f32 %v2776, %v3702
    %v5177 = vadd.f32 %v2777, %v3775
    %v5178 = vadd.f32 %v2778, %v3848
    %v5179 = vadd.f32 %v2779, %v3921
    %v5180 = vadd.f32 %v2780, %v3994
    %v5181 = vadd.f32 %v2781, %v4067
    %v5182 = vadd.f32 %v2782, %v4140
    %v5183 = vadd.f32 %v2783, %v4213
    %v5184 = vadd.f32 %v2784, %v4286
    %v5185 = vadd.f32 %v2785, %v4359
    %v5186 = vadd.f32 %v2786, %v4432
    %v5187 = vadd.f32 %v2787, %v4505
    %v5188 = vadd.f32 %v2788, %v4578
    %v5189 = vadd.f32 %v2789, %v4651
    %v5190 = vadd.f32 %v2790, %v4724
    %v5191 = vadd.f32 %v2791, %v4797
    %v5192 = vadd.f32 %v2792, %v4870
    %v5193 = vadd.f32 %v2793, %v4943
    %v5194 = vadd.f32 %v2794, %v5016
    %v5195 = vadd.f32 %v2795, %v5089
    %v5196 = vadd.f32 %v2796, %v5162
    %5197 = vst [vmem:[#allocation3] sm:$0xff] %v5165
    %5198 = vst [vmem:[#allocation3 + $0x8] sm:$0xff] %v5166
    %5199 = vst [vmem:[#allocation3 + $0x10] sm:$0xff] %v5167
    %5200 = vst [vmem:[#allocation3 + $0x18] sm:$0xff] %v5168
    %5201 = vst [vmem:[#allocation3 + $0x20] sm:$0xff] %v5169
    %5202 = vst [vmem:[#allocation3 + $0x28] sm:$0xff] %v5170
    %5203 = vst [vmem:[#allocation3 + $0x30] sm:$0xff] %v5171
    %5204 = vst [vmem:[#allocation3 + $0x38] sm:$0xff] %v5172
    %5205 = vst [vmem:[#allocation3 + $0x40] sm:$0xff] %v5173
    %5206 = vst [vmem:[#allocation3 + $0x48] sm:$0xff] %v5174
    %5207 = vst [vmem:[#allocation3 + $0x50] sm:$0xff] %v5175
    %5208 = vst [vmem:[#allocation3 + $0x58] sm:$0xff] %v5176
    %5209 = vst [vmem:[#allocation3 + $0x60] sm:$0xff] %v5177
    %5210 = vst [vmem:[#allocation3 + $0x68] sm:$0xff] %v5178
    %5211 = vst [vmem:[#allocation3 + $0x70] sm:$0xff] %v5179
    %5212 = vst [vmem:[#allocation3 + $0x78] sm:$0xff] %v5180
    %5213 = vst [vmem:[#allocation3 + $0x80] sm:$0xff] %v5181
    %5214 = vst [vmem:[#allocation3 + $0x88] sm:$0xff] %v5182
    %5215 = vst [vmem:[#allocation3 + $0x90] sm:$0xff] %v5183
    %5216 = vst [vmem:[#allocation3 + $0x98] sm:$0xff] %v5184
    %5217 = vst [vmem:[#allocation3 + $0xa0] sm:$0xff] %v5185
    %5218 = vst [vmem:[#allocation3 + $0xa8] sm:$0xff] %v5186
    %5219 = vst [vmem:[#allocation3 + $0xb0] sm:$0xff] %v5187
    %5220 = vst [vmem:[#allocation3 + $0xb8] sm:$0xff] %v5188
    %5221 = vst [vmem:[#allocation3 + $0xc0] sm:$0xff] %v5189
    %5222 = vst [vmem:[#allocation3 + $0xc8] sm:$0xff] %v5190
    %5223 = vst [vmem:[#allocation3 + $0xd0] sm:$0xff] %v5191
    %5224 = vst [vmem:[#allocation3 + $0xd8] sm:$0xff] %v5192
    %5225 = vst [vmem:[#allocation3 + $0xe0] sm:$0xff] %v5193
    %5226 = vst [vmem:[#allocation3 + $0xe8] sm:$0xff] %v5194
    %5227 = vst [vmem:[#allocation3 + $0xf0] sm:$0xff] %v5195
    %5228 = vst [vmem:[#allocation3 + $0xf8] sm:$0xff] %v5196
    // Predicated region
    $region66: #{tpu_custom_call.1} parent=1 // pred_check
      %p5229 = pneg %p104
    $region67: #{tpu_custom_call.1} parent=1 // pred_check_branch
      %5231 = sbr.rel (%p5229) target = $region69
    $region68: #{tpu_custom_call.1} parent=1 // pred_region
      %v5232 = vld [vmem:[#allocation2] sm:$0xff]
      %v5233 = vld [vmem:[#allocation2 + $0x8] sm:$0xff]
      %v5234 = vld [vmem:[#allocation2 + $0x10] sm:$0xff]
      %v5235 = vld [vmem:[#allocation2 + $0x18] sm:$0xff]
      %v5236 = vld [vmem:[#allocation2 + $0x20] sm:$0xff]
      %v5237 = vld [vmem:[#allocation2 + $0x28] sm:$0xff]
      %v5238 = vld [vmem:[#allocation2 + $0x30] sm:$0xff]
      %v5239 = vld [vmem:[#allocation2 + $0x38] sm:$0xff]
      %v5240 = vld [vmem:[#allocation2 + $0x40] sm:$0xff]
      %v5241 = vld [vmem:[#allocation2 + $0x48] sm:$0xff]
      %v5242 = vld [vmem:[#allocation2 + $0x50] sm:$0xff]
      %v5243 = vld [vmem:[#allocation2 + $0x58] sm:$0xff]
      %v5244 = vld [vmem:[#allocation2 + $0x60] sm:$0xff]
      %v5245 = vld [vmem:[#allocation2 + $0x68] sm:$0xff]
      %v5246 = vld [vmem:[#allocation2 + $0x70] sm:$0xff]
      %v5247 = vld [vmem:[#allocation2 + $0x78] sm:$0xff]
      %v5248 = vld [vmem:[#allocation2 + $0x80] sm:$0xff]
      %v5249 = vld [vmem:[#allocation2 + $0x88] sm:$0xff]
      %v5250 = vld [vmem:[#allocation2 + $0x90] sm:$0xff]
      %v5251 = vld [vmem:[#allocation2 + $0x98] sm:$0xff]
      %v5252 = vld [vmem:[#allocation2 + $0xa0] sm:$0xff]
      %v5253 = vld [vmem:[#allocation2 + $0xa8] sm:$0xff]
      %v5254 = vld [vmem:[#allocation2 + $0xb0] sm:$0xff]
      %v5255 = vld [vmem:[#allocation2 + $0xb8] sm:$0xff]
      %v5256 = vld [vmem:[#allocation2 + $0xc0] sm:$0xff]
      %v5257 = vld [vmem:[#allocation2 + $0xc8] sm:$0xff]
      %v5258 = vld [vmem:[#allocation2 + $0xd0] sm:$0xff]
      %v5259 = vld [vmem:[#allocation2 + $0xd8] sm:$0xff]
      %v5260 = vld [vmem:[#allocation2 + $0xe0] sm:$0xff]
      %v5261 = vld [vmem:[#allocation2 + $0xe8] sm:$0xff]
      %v5262 = vld [vmem:[#allocation2 + $0xf0] sm:$0xff]
      %v5263 = vld [vmem:[#allocation2 + $0xf8] sm:$0xff]
      %v5264 = vld [vmem:[#allocation3] sm:$0xff]
      %v5265 = vld [vmem:[#allocation3 + $0x8] sm:$0xff]
      %v5266 = vld [vmem:[#allocation3 + $0x10] sm:$0xff]
      %v5267 = vld [vmem:[#allocation3 + $0x18] sm:$0xff]
      %v5268 = vld [vmem:[#allocation3 + $0x20] sm:$0xff]
      %v5269 = vld [vmem:[#allocation3 + $0x28] sm:$0xff]
      %v5270 = vld [vmem:[#allocation3 + $0x30] sm:$0xff]
      %v5271 = vld [vmem:[#allocation3 + $0x38] sm:$0xff]
      %v5272 = vld [vmem:[#allocation3 + $0x40] sm:$0xff]
      %v5273 = vld [vmem:[#allocation3 + $0x48] sm:$0xff]
      %v5274 = vld [vmem:[#allocation3 + $0x50] sm:$0xff]
      %v5275 = vld [vmem:[#allocation3 + $0x58] sm:$0xff]
      %v5276 = vld [vmem:[#allocation3 + $0x60] sm:$0xff]
      %v5277 = vld [vmem:[#allocation3 + $0x68] sm:$0xff]
      %v5278 = vld [vmem:[#allocation3 + $0x70] sm:$0xff]
      %v5279 = vld [vmem:[#allocation3 + $0x78] sm:$0xff]
      %v5280 = vld [vmem:[#allocation3 + $0x80] sm:$0xff]
      %v5281 = vld [vmem:[#allocation3 + $0x88] sm:$0xff]
      %v5282 = vld [vmem:[#allocation3 + $0x90] sm:$0xff]
      %v5283 = vld [vmem:[#allocation3 + $0x98] sm:$0xff]
      %v5284 = vld [vmem:[#allocation3 + $0xa0] sm:$0xff]
      %v5285 = vld [vmem:[#allocation3 + $0xa8] sm:$0xff]
      %v5286 = vld [vmem:[#allocation3 + $0xb0] sm:$0xff]
      %v5287 = vld [vmem:[#allocation3 + $0xb8] sm:$0xff]
      %v5288 = vld [vmem:[#allocation3 + $0xc0] sm:$0xff]
      %v5289 = vld [vmem:[#allocation3 + $0xc8] sm:$0xff]
      %v5290 = vld [vmem:[#allocation3 + $0xd0] sm:$0xff]
      %v5291 = vld [vmem:[#allocation3 + $0xd8] sm:$0xff]
      %v5292 = vld [vmem:[#allocation3 + $0xe0] sm:$0xff]
      %v5293 = vld [vmem:[#allocation3 + $0xe8] sm:$0xff]
      %v5294 = vld [vmem:[#allocation3 + $0xf0] sm:$0xff]
      %v5295 = vld [vmem:[#allocation3 + $0xf8] sm:$0xff]
      %v5296 = vld [vmem:[%s4] sm:$0xff]
      %v5297 = vld [vmem:[%s4 + $0x8] sm:$0xff]
      %v5298 = vld [vmem:[%s4 + $0x10] sm:$0xff]
      %v5299 = vld [vmem:[%s4 + $0x18] sm:$0xff]
      %v5300 = vld [vmem:[%s4 + $0x20] sm:$0xff]
      %v5301 = vld [vmem:[%s4 + $0x28] sm:$0xff]
      %v5302 = vld [vmem:[%s4 + $0x30] sm:$0xff]
      %v5303 = vld [vmem:[%s4 + $0x38] sm:$0xff]
      %v5304 = vld [vmem:[%s4 + $0x40] sm:$0xff]
      %v5305 = vld [vmem:[%s4 + $0x48] sm:$0xff]
      %v5306 = vld [vmem:[%s4 + $0x50] sm:$0xff]
      %v5307 = vld [vmem:[%s4 + $0x58] sm:$0xff]
      %v5308 = vld [vmem:[%s4 + $0x60] sm:$0xff]
      %v5309 = vld [vmem:[%s4 + $0x68] sm:$0xff]
      %v5310 = vld [vmem:[%s4 + $0x70] sm:$0xff]
      %v5311 = vld [vmem:[%s4 + $0x78] sm:$0xff]
      %v5312 = vld [vmem:[%s4 + $0x80] sm:$0xff]
      %v5313 = vld [vmem:[%s4 + $0x88] sm:$0xff]
      %v5314 = vld [vmem:[%s4 + $0x90] sm:$0xff]
      %v5315 = vld [vmem:[%s4 + $0x98] sm:$0xff]
      %v5316 = vld [vmem:[%s4 + $0xa0] sm:$0xff]
      %v5317 = vld [vmem:[%s4 + $0xa8] sm:$0xff]
      %v5318 = vld [vmem:[%s4 + $0xb0] sm:$0xff]
      %v5319 = vld [vmem:[%s4 + $0xb8] sm:$0xff]
      %v5320 = vld [vmem:[%s4 + $0xc0] sm:$0xff]
      %v5321 = vld [vmem:[%s4 + $0xc8] sm:$0xff]
      %v5322 = vld [vmem:[%s4 + $0xd0] sm:$0xff]
      %v5323 = vld [vmem:[%s4 + $0xd8] sm:$0xff]
      %v5324 = vld [vmem:[%s4 + $0xe0] sm:$0xff]
      %v5325 = vld [vmem:[%s4 + $0xe8] sm:$0xff]
      %v5326 = vld [vmem:[%s4 + $0xf0] sm:$0xff]
      %v5327 = vld [vmem:[%s4 + $0xf8] sm:$0xff]
      %v5328 = vld [vmem:[#allocation7] sm:$0xff]
      %v5329 = vld [vmem:[#allocation7 + $0x8] sm:$0xff]
      %v5330 = vld [vmem:[#allocation7 + $0x10] sm:$0xff]
      %v5331 = vld [vmem:[#allocation7 + $0x18] sm:$0xff]
      %v5332 = vld [vmem:[#allocation7 + $0x20] sm:$0xff]
      %v5333 = vld [vmem:[#allocation7 + $0x28] sm:$0xff]
      %v5334 = vld [vmem:[#allocation7 + $0x30] sm:$0xff]
      %v5335 = vld [vmem:[#allocation7 + $0x38] sm:$0xff]
      %v5336 = vld [vmem:[#allocation7 + $0x40] sm:$0xff]
      %v5337 = vld [vmem:[#allocation7 + $0x48] sm:$0xff]
      %v5338 = vld [vmem:[#allocation7 + $0x50] sm:$0xff]
      %v5339 = vld [vmem:[#allocation7 + $0x58] sm:$0xff]
      %v5340 = vld [vmem:[#allocation7 + $0x60] sm:$0xff]
      %v5341 = vld [vmem:[#allocation7 + $0x68] sm:$0xff]
      %v5342 = vld [vmem:[#allocation7 + $0x70] sm:$0xff]
      %v5343 = vld [vmem:[#allocation7 + $0x78] sm:$0xff]
      %v5344 = vld [vmem:[#allocation7 + $0x80] sm:$0xff]
      %v5345 = vld [vmem:[#allocation7 + $0x88] sm:$0xff]
      %v5346 = vld [vmem:[#allocation7 + $0x90] sm:$0xff]
      %v5347 = vld [vmem:[#allocation7 + $0x98] sm:$0xff]
      %v5348 = vld [vmem:[#allocation7 + $0xa0] sm:$0xff]
      %v5349 = vld [vmem:[#allocation7 + $0xa8] sm:$0xff]
      %v5350 = vld [vmem:[#allocation7 + $0xb0] sm:$0xff]
      %v5351 = vld [vmem:[#allocation7 + $0xb8] sm:$0xff]
      %v5352 = vld [vmem:[#allocation7 + $0xc0] sm:$0xff]
      %v5353 = vld [vmem:[#allocation7 + $0xc8] sm:$0xff]
      %v5354 = vld [vmem:[#allocation7 + $0xd0] sm:$0xff]
      %v5355 = vld [vmem:[#allocation7 + $0xd8] sm:$0xff]
      %v5356 = vld [vmem:[#allocation7 + $0xe0] sm:$0xff]
      %v5357 = vld [vmem:[#allocation7 + $0xe8] sm:$0xff]
      %v5358 = vld [vmem:[#allocation7 + $0xf0] sm:$0xff]
      %v5359 = vld [vmem:[#allocation7 + $0xf8] sm:$0xff]
      %v5360 = vld [vmem:[#allocation7 + $0x100] sm:$0xff]
      %v5361 = vld [vmem:[#allocation7 + $0x108] sm:$0xff]
      %v5362 = vld [vmem:[#allocation7 + $0x110] sm:$0xff]
      %v5363 = vld [vmem:[#allocation7 + $0x118] sm:$0xff]
      %v5364 = vld [vmem:[#allocation7 + $0x120] sm:$0xff]
      %v5365 = vld [vmem:[#allocation7 + $0x128] sm:$0xff]
      %v5366 = vld [vmem:[#allocation7 + $0x130] sm:$0xff]
      %v5367 = vld [vmem:[#allocation7 + $0x138] sm:$0xff]
      %v5368 = vld [vmem:[#allocation7 + $0x140] sm:$0xff]
      %v5369 = vld [vmem:[#allocation7 + $0x148] sm:$0xff]
      %v5370 = vld [vmem:[#allocation7 + $0x150] sm:$0xff]
      %v5371 = vld [vmem:[#allocation7 + $0x158] sm:$0xff]
      %v5372 = vld [vmem:[#allocation7 + $0x160] sm:$0xff]
      %v5373 = vld [vmem:[#allocation7 + $0x168] sm:$0xff]
      %v5374 = vld [vmem:[#allocation7 + $0x170] sm:$0xff]
      %v5375 = vld [vmem:[#allocation7 + $0x178] sm:$0xff]
      %v5376 = vld [vmem:[#allocation9] sm:$0xff]
      %v5377 = vld [vmem:[#allocation9 + $0x8] sm:$0xff]
      %v5378 = vld [vmem:[#allocation9 + $0x10] sm:$0xff]
      %v5379 = vld [vmem:[#allocation9 + $0x18] sm:$0xff]
      %v5380 = vld [vmem:[#allocation9 + $0x20] sm:$0xff]
      %v5381 = vld [vmem:[#allocation9 + $0x28] sm:$0xff]
      %v5382 = vld [vmem:[#allocation9 + $0x30] sm:$0xff]
      %v5383 = vld [vmem:[#allocation9 + $0x38] sm:$0xff]
      %v5384 = vld [vmem:[#allocation9 + $0x40] sm:$0xff]
      %v5385 = vld [vmem:[#allocation9 + $0x48] sm:$0xff]
      %v5386 = vld [vmem:[#allocation9 + $0x50] sm:$0xff]
      %v5387 = vld [vmem:[#allocation9 + $0x58] sm:$0xff]
      %v5388 = vld [vmem:[#allocation9 + $0x60] sm:$0xff]
      %v5389 = vld [vmem:[#allocation9 + $0x68] sm:$0xff]
      %v5390 = vld [vmem:[#allocation9 + $0x70] sm:$0xff]
      %v5391 = vld [vmem:[#allocation9 + $0x78] sm:$0xff]
      %v5392 = vld [vmem:[#allocation9 + $0x80] sm:$0xff]
      %v5393 = vld [vmem:[#allocation9 + $0x88] sm:$0xff]
      %v5394 = vld [vmem:[#allocation9 + $0x90] sm:$0xff]
      %v5395 = vld [vmem:[#allocation9 + $0x98] sm:$0xff]
      %v5396 = vld [vmem:[#allocation9 + $0xa0] sm:$0xff]
      %v5397 = vld [vmem:[#allocation9 + $0xa8] sm:$0xff]
      %v5398 = vld [vmem:[#allocation9 + $0xb0] sm:$0xff]
      %v5399 = vld [vmem:[#allocation9 + $0xb8] sm:$0xff]
      %v5400 = vld [vmem:[#allocation9 + $0xc0] sm:$0xff]
      %v5401 = vld [vmem:[#allocation9 + $0xc8] sm:$0xff]
      %v5402 = vld [vmem:[#allocation9 + $0xd0] sm:$0xff]
      %v5403 = vld [vmem:[#allocation9 + $0xd8] sm:$0xff]
      %v5404 = vld [vmem:[#allocation9 + $0xe0] sm:$0xff]
      %v5405 = vld [vmem:[#allocation9 + $0xe8] sm:$0xff]
      %v5406 = vld [vmem:[#allocation9 + $0xf0] sm:$0xff]
      %v5407 = vld [vmem:[#allocation9 + $0xf8] sm:$0xff]
      %v5408 = vld [vmem:[#allocation9 + $0x100] sm:$0xff]
      %v5409 = vld [vmem:[#allocation9 + $0x108] sm:$0xff]
      %v5410 = vld [vmem:[#allocation9 + $0x110] sm:$0xff]
      %v5411 = vld [vmem:[#allocation9 + $0x118] sm:$0xff]
      %v5412 = vld [vmem:[#allocation9 + $0x120] sm:$0xff]
      %v5413 = vld [vmem:[#allocation9 + $0x128] sm:$0xff]
      %v5414 = vld [vmem:[#allocation9 + $0x130] sm:$0xff]
      %v5415 = vld [vmem:[#allocation9 + $0x138] sm:$0xff]
      %v5416 = vld [vmem:[#allocation9 + $0x140] sm:$0xff]
      %v5417 = vld [vmem:[#allocation9 + $0x148] sm:$0xff]
      %v5418 = vld [vmem:[#allocation9 + $0x150] sm:$0xff]
      %v5419 = vld [vmem:[#allocation9 + $0x158] sm:$0xff]
      %v5420 = vld [vmem:[#allocation9 + $0x160] sm:$0xff]
      %v5421 = vld [vmem:[#allocation9 + $0x168] sm:$0xff]
      %v5422 = vld [vmem:[#allocation9 + $0x170] sm:$0xff]
      %v5423 = vld [vmem:[#allocation9 + $0x178] sm:$0xff]
      %5424 = vmatprep.subr.mxu0 %v5422
      %5425 = vmatpush1.msra.mxu0 %v5421
      %5426 = vmatprep.subr.mxu0 %v5419
      %5427 = vmatpush1.msra.mxu0 %v5418
      %5428 = vmatprep.subr.mxu0 %v5416
      %5429 = vmatpush1.msra.mxu0 %v5415
      %5430 = vmatprep.subr.mxu0 %v5413
      %5431 = vmatpush1.msra.mxu0 %v5412
      %5432 = vmatprep.subr.mxu0 %v5410
      %5433 = vmatpush1.msra.mxu0 %v5409
      %5434 = vmatprep.subr.mxu0 %v5407
      %5435 = vmatpush1.msra.mxu0 %v5406
      %5436 = vmatprep.subr.mxu0 %v5404
      %5437 = vmatpush1.msra.mxu0 %v5403
      %5438 = vmatprep.subr.mxu0 %v5401
      %5439 = vmatpush1.msra.mxu0 %v5400
      %5440 = vmatprep.subr.mxu0 %v5398
      %5441 = vmatpush1.msra.mxu0 %v5397
      %5442 = vmatprep.subr.mxu0 %v5395
      %5443 = vmatpush1.msra.mxu0 %v5394
      %5444 = vmatprep.subr.mxu0 %v5392
      %5445 = vmatpush1.msra.mxu0 %v5391
      %5446 = vmatprep.subr.mxu0 %v5389
      %5447 = vmatpush1.msra.mxu0 %v5388
      %5448 = vmatprep.subr.mxu0 %v5386
      %5449 = vmatpush1.msra.mxu0 %v5385
      %5450 = vmatprep.subr.mxu0 %v5383
      %5451 = vmatpush1.msra.mxu0 %v5382
      %5452 = vmatprep.subr.mxu0 %v5380
      %5453 = vmatpush1.msra.mxu0 %v5379
      %5454 = vmatprep.subr.mxu0 %v5377
      %5455 = vmatpush1.msra.mxu0 %v5376
      %5456 = vmatprep.subr.mxu0 0.0
      %5457 = vmatpush2.msra.mxu0 0.0
      %5458 = vmatprep.subr.mxu0 0.0
      %5459 = vmatpush2.msra.mxu0 0.0
      %5460 = vmatprep.subr.mxu0 0.0
      %5461 = vmatpush2.msra.mxu0 0.0
      %5462 = vmatprep.subr.mxu0 0.0
      %5463 = vmatpush2.msra.mxu0 0.0
      %5464 = vmatprep.subr.mxu0 0.0
      %5465 = vmatpush2.msra.mxu0 0.0
      %5466 = vmatprep.subr.mxu0 0.0
      %5467 = vmatpush2.msra.mxu0 0.0
      %5468 = vmatprep.subr.mxu0 0.0
      %5469 = vmatpush2.msra.mxu0 0.0
      %5470 = vmatprep.subr.mxu0 0.0
      %5471 = vmatpush2.msra.mxu0 0.0
      %5472 = vmatprep.subr.mxu0 0.0
      %5473 = vmatpush2.msra.mxu0 0.0
      %5474 = vmatprep.subr.mxu0 0.0
      %5475 = vmatpush2.msra.mxu0 0.0
      %5476 = vmatprep.subr.mxu0 0.0
      %5477 = vmatpush2.msra.mxu0 0.0
      %5478 = vmatprep.subr.mxu0 0.0
      %5479 = vmatpush2.msra.mxu0 0.0
      %5480 = vmatprep.subr.mxu0 0.0
      %5481 = vmatpush2.msra.mxu0 0.0
      %5482 = vmatprep.subr.mxu0 0.0
      %5483 = vmatpush2.msra.mxu0 0.0
      %5484 = vmatprep.subr.mxu0 0.0
      %5485 = vmatpush2.msra.mxu0 0.0
      %5486 = vmatprep.subr.mxu0 0.0
      %5487 = vmatpush2.msra.mxu0 0.0
      %5488 = vmatprep.mubr.f32.mxu0 0.0
      %5489 = vmatmul.mubr.f32.gmra.mxu0 %v5264
      %v5490 = vpop.f32.mrf.mxu0
      %v5491 = vadd.f32 0.0, %v5490
      %v5492 = vpop.f32.mrf.mxu0
      %v5493 = vadd.f32 0.0, %v5492
      %5494 = vmatprep.mubr.f32.mxu0 0.0
      %5495 = vmatmul.mubr.f32.gmra.mxu0 %v5265
      %v5496 = vpop.f32.mrf.mxu0
      %v5497 = vadd.f32 0.0, %v5496
      %v5498 = vpop.f32.mrf.mxu0
      %v5499 = vadd.f32 0.0, %v5498
      %5500 = vmatprep.mubr.f32.mxu0 0.0
      %5501 = vmatmul.mubr.f32.gmra.mxu0 %v5266
      %v5502 = vpop.f32.mrf.mxu0
      %v5503 = vadd.f32 0.0, %v5502
      %v5504 = vpop.f32.mrf.mxu0
      %v5505 = vadd.f32 0.0, %v5504
      %5506 = vmatprep.mubr.f32.mxu0 0.0
      %5507 = vmatmul.mubr.f32.gmra.mxu0 %v5267
      %v5508 = vpop.f32.mrf.mxu0
      %v5509 = vadd.f32 0.0, %v5508
      %v5510 = vpop.f32.mrf.mxu0
      %v5511 = vadd.f32 0.0, %v5510
      %5512 = vmatprep.mubr.f32.mxu0 0.0
      %5513 = vmatmul.mubr.f32.gmra.mxu0 %v5268
      %v5514 = vpop.f32.mrf.mxu0
      %v5515 = vadd.f32 0.0, %v5514
      %v5516 = vpop.f32.mrf.mxu0
      %v5517 = vadd.f32 0.0, %v5516
      %5518 = vmatprep.mubr.f32.mxu0 0.0
      %5519 = vmatmul.mubr.f32.gmra.mxu0 %v5269
      %v5520 = vpop.f32.mrf.mxu0
      %v5521 = vadd.f32 0.0, %v5520
      %v5522 = vpop.f32.mrf.mxu0
      %v5523 = vadd.f32 0.0, %v5522
      %5524 = vmatprep.mubr.f32.mxu0 0.0
      %5525 = vmatmul.mubr.f32.gmra.mxu0 %v5270
      %v5526 = vpop.f32.mrf.mxu0
      %v5527 = vadd.f32 0.0, %v5526
      %v5528 = vpop.f32.mrf.mxu0
      %v5529 = vadd.f32 0.0, %v5528
      %5530 = vmatprep.mubr.f32.mxu0 0.0
      %5531 = vmatmul.mubr.f32.gmra.mxu0 %v5271
      %v5532 = vpop.f32.mrf.mxu0
      %v5533 = vadd.f32 0.0, %v5532
      %v5534 = vpop.f32.mrf.mxu0
      %v5535 = vadd.f32 0.0, %v5534
      %5536 = vmatprep.mubr.f32.mxu0 0.0
      %5537 = vmatmul.mubr.f32.gmra.mxu0 %v5272
      %v5538 = vpop.f32.mrf.mxu0
      %v5539 = vadd.f32 0.0, %v5538
      %v5540 = vpop.f32.mrf.mxu0
      %v5541 = vadd.f32 0.0, %v5540
      %5542 = vmatprep.mubr.f32.mxu0 0.0
      %5543 = vmatmul.mubr.f32.gmra.mxu0 %v5273
      %v5544 = vpop.f32.mrf.mxu0
      %v5545 = vadd.f32 0.0, %v5544
      %v5546 = vpop.f32.mrf.mxu0
      %v5547 = vadd.f32 0.0, %v5546
      %5548 = vmatprep.mubr.f32.mxu0 0.0
      %5549 = vmatmul.mubr.f32.gmra.mxu0 %v5274
      %v5550 = vpop.f32.mrf.mxu0
      %v5551 = vadd.f32 0.0, %v5550
      %v5552 = vpop.f32.mrf.mxu0
      %v5553 = vadd.f32 0.0, %v5552
      %5554 = vmatprep.mubr.f32.mxu0 0.0
      %5555 = vmatmul.mubr.f32.gmra.mxu0 %v5275
      %v5556 = vpop.f32.mrf.mxu0
      %v5557 = vadd.f32 0.0, %v5556
      %v5558 = vpop.f32.mrf.mxu0
      %v5559 = vadd.f32 0.0, %v5558
      %5560 = vmatprep.mubr.f32.mxu0 0.0
      %5561 = vmatmul.mubr.f32.gmra.mxu0 %v5276
      %v5562 = vpop.f32.mrf.mxu0
      %v5563 = vadd.f32 0.0, %v5562
      %v5564 = vpop.f32.mrf.mxu0
      %v5565 = vadd.f32 0.0, %v5564
      %5566 = vmatprep.mubr.f32.mxu0 0.0
      %5567 = vmatmul.mubr.f32.gmra.mxu0 %v5277
      %v5568 = vpop.f32.mrf.mxu0
      %v5569 = vadd.f32 0.0, %v5568
      %v5570 = vpop.f32.mrf.mxu0
      %v5571 = vadd.f32 0.0, %v5570
      %5572 = vmatprep.mubr.f32.mxu0 0.0
      %5573 = vmatmul.mubr.f32.gmra.mxu0 %v5278
      %v5574 = vpop.f32.mrf.mxu0
      %v5575 = vadd.f32 0.0, %v5574
      %v5576 = vpop.f32.mrf.mxu0
      %v5577 = vadd.f32 0.0, %v5576
      %5578 = vmatprep.mubr.f32.mxu0 0.0
      %5579 = vmatmul.mubr.f32.gmra.mxu0 %v5279
      %v5580 = vpop.f32.mrf.mxu0
      %v5581 = vadd.f32 0.0, %v5580
      %v5582 = vpop.f32.mrf.mxu0
      %v5583 = vadd.f32 0.0, %v5582
      %5584 = vmatprep.mubr.f32.mxu0 0.0
      %5585 = vmatmul.mubr.f32.gmra.mxu0 %v5280
      %v5586 = vpop.f32.mrf.mxu0
      %v5587 = vadd.f32 0.0, %v5586
      %v5588 = vpop.f32.mrf.mxu0
      %v5589 = vadd.f32 0.0, %v5588
      %5590 = vmatprep.mubr.f32.mxu0 0.0
      %5591 = vmatmul.mubr.f32.gmra.mxu0 %v5281
      %v5592 = vpop.f32.mrf.mxu0
      %v5593 = vadd.f32 0.0, %v5592
      %v5594 = vpop.f32.mrf.mxu0
      %v5595 = vadd.f32 0.0, %v5594
      %5596 = vmatprep.mubr.f32.mxu0 0.0
      %5597 = vmatmul.mubr.f32.gmra.mxu0 %v5282
      %v5598 = vpop.f32.mrf.mxu0
      %v5599 = vadd.f32 0.0, %v5598
      %v5600 = vpop.f32.mrf.mxu0
      %v5601 = vadd.f32 0.0, %v5600
      %5602 = vmatprep.mubr.f32.mxu0 0.0
      %5603 = vmatmul.mubr.f32.gmra.mxu0 %v5283
      %v5604 = vpop.f32.mrf.mxu0
      %v5605 = vadd.f32 0.0, %v5604
      %v5606 = vpop.f32.mrf.mxu0
      %v5607 = vadd.f32 0.0, %v5606
      %5608 = vmatprep.mubr.f32.mxu0 0.0
      %5609 = vmatmul.mubr.f32.gmra.mxu0 %v5284
      %v5610 = vpop.f32.mrf.mxu0
      %v5611 = vadd.f32 0.0, %v5610
      %v5612 = vpop.f32.mrf.mxu0
      %v5613 = vadd.f32 0.0, %v5612
      %5614 = vmatprep.mubr.f32.mxu0 0.0
      %5615 = vmatmul.mubr.f32.gmra.mxu0 %v5285
      %v5616 = vpop.f32.mrf.mxu0
      %v5617 = vadd.f32 0.0, %v5616
      %v5618 = vpop.f32.mrf.mxu0
      %v5619 = vadd.f32 0.0, %v5618
      %5620 = vmatprep.mubr.f32.mxu0 0.0
      %5621 = vmatmul.mubr.f32.gmra.mxu0 %v5286
      %v5622 = vpop.f32.mrf.mxu0
      %v5623 = vadd.f32 0.0, %v5622
      %v5624 = vpop.f32.mrf.mxu0
      %v5625 = vadd.f32 0.0, %v5624
      %5626 = vmatprep.mubr.f32.mxu0 0.0
      %5627 = vmatmul.mubr.f32.gmra.mxu0 %v5287
      %v5628 = vpop.f32.mrf.mxu0
      %v5629 = vadd.f32 0.0, %v5628
      %v5630 = vpop.f32.mrf.mxu0
      %v5631 = vadd.f32 0.0, %v5630
      %5632 = vmatprep.mubr.f32.mxu0 0.0
      %5633 = vmatmul.mubr.f32.gmra.mxu0 %v5288
      %v5634 = vpop.f32.mrf.mxu0
      %v5635 = vadd.f32 0.0, %v5634
      %v5636 = vpop.f32.mrf.mxu0
      %v5637 = vadd.f32 0.0, %v5636
      %5638 = vmatprep.mubr.f32.mxu0 0.0
      %5639 = vmatmul.mubr.f32.gmra.mxu0 %v5289
      %v5640 = vpop.f32.mrf.mxu0
      %v5641 = vadd.f32 0.0, %v5640
      %v5642 = vpop.f32.mrf.mxu0
      %v5643 = vadd.f32 0.0, %v5642
      %5644 = vmatprep.mubr.f32.mxu0 0.0
      %5645 = vmatmul.mubr.f32.gmra.mxu0 %v5290
      %v5646 = vpop.f32.mrf.mxu0
      %v5647 = vadd.f32 0.0, %v5646
      %v5648 = vpop.f32.mrf.mxu0
      %v5649 = vadd.f32 0.0, %v5648
      %5650 = vmatprep.mubr.f32.mxu0 0.0
      %5651 = vmatmul.mubr.f32.gmra.mxu0 %v5291
      %v5652 = vpop.f32.mrf.mxu0
      %v5653 = vadd.f32 0.0, %v5652
      %v5654 = vpop.f32.mrf.mxu0
      %v5655 = vadd.f32 0.0, %v5654
      %5656 = vmatprep.mubr.f32.mxu0 0.0
      %5657 = vmatmul.mubr.f32.gmra.mxu0 %v5292
      %v5658 = vpop.f32.mrf.mxu0
      %v5659 = vadd.f32 0.0, %v5658
      %v5660 = vpop.f32.mrf.mxu0
      %v5661 = vadd.f32 0.0, %v5660
      %5662 = vmatprep.mubr.f32.mxu0 0.0
      %5663 = vmatmul.mubr.f32.gmra.mxu0 %v5293
      %v5664 = vpop.f32.mrf.mxu0
      %v5665 = vadd.f32 0.0, %v5664
      %v5666 = vpop.f32.mrf.mxu0
      %v5667 = vadd.f32 0.0, %v5666
      %5668 = vmatprep.mubr.f32.mxu0 0.0
      %5669 = vmatmul.mubr.f32.gmra.mxu0 %v5294
      %v5670 = vpop.f32.mrf.mxu0
      %v5671 = vadd.f32 0.0, %v5670
      %v5672 = vpop.f32.mrf.mxu0
      %v5673 = vadd.f32 0.0, %v5672
      %5674 = vmatprep.mubr.f32.mxu0 0.0
      %5675 = vmatmul.mubr.f32.gmra.mxu0 %v5295
      %v5676 = vpop.f32.mrf.mxu0
      %v5677 = vadd.f32 0.0, %v5676
      %v5678 = vpop.f32.mrf.mxu0
      %v5679 = vadd.f32 0.0, %v5678
      %5680 = vdwg.mxu0
      %5681 = vmatprep.subr.mxu0 0.0
      %5682 = vmatpush1.msra.mxu0 %v5423
      %5683 = vmatprep.subr.mxu0 0.0
      %5684 = vmatpush1.msra.mxu0 %v5420
      %5685 = vmatprep.subr.mxu0 0.0
      %5686 = vmatpush1.msra.mxu0 %v5417
      %5687 = vmatprep.subr.mxu0 0.0
      %5688 = vmatpush1.msra.mxu0 %v5414
      %5689 = vmatprep.subr.mxu0 0.0
      %5690 = vmatpush1.msra.mxu0 %v5411
      %5691 = vmatprep.subr.mxu0 0.0
      %5692 = vmatpush1.msra.mxu0 %v5408
      %5693 = vmatprep.subr.mxu0 0.0
      %5694 = vmatpush1.msra.mxu0 %v5405
      %5695 = vmatprep.subr.mxu0 0.0
      %5696 = vmatpush1.msra.mxu0 %v5402
      %5697 = vmatprep.subr.mxu0 0.0
      %5698 = vmatpush1.msra.mxu0 %v5399
      %5699 = vmatprep.subr.mxu0 0.0
      %5700 = vmatpush1.msra.mxu0 %v5396
      %5701 = vmatprep.subr.mxu0 0.0
      %5702 = vmatpush1.msra.mxu0 %v5393
      %5703 = vmatprep.subr.mxu0 0.0
      %5704 = vmatpush1.msra.mxu0 %v5390
      %5705 = vmatprep.subr.mxu0 0.0
      %5706 = vmatpush1.msra.mxu0 %v5387
      %5707 = vmatprep.subr.mxu0 0.0
      %5708 = vmatpush1.msra.mxu0 %v5384
      %5709 = vmatprep.subr.mxu0 0.0
      %5710 = vmatpush1.msra.mxu0 %v5381
      %5711 = vmatprep.subr.mxu0 0.0
      %5712 = vmatpush1.msra.mxu0 %v5378
      %5713 = vmatprep.subr.mxu0 0.0
      %5714 = vmatpush2.msra.mxu0 0.0
      %5715 = vmatprep.subr.mxu0 0.0
      %5716 = vmatpush2.msra.mxu0 0.0
      %5717 = vmatprep.subr.mxu0 0.0
      %5718 = vmatpush2.msra.mxu0 0.0
      %5719 = vmatprep.subr.mxu0 0.0
      %5720 = vmatpush2.msra.mxu0 0.0
      %5721 = vmatprep.subr.mxu0 0.0
      %5722 = vmatpush2.msra.mxu0 0.0
      %5723 = vmatprep.subr.mxu0 0.0
      %5724 = vmatpush2.msra.mxu0 0.0
      %5725 = vmatprep.subr.mxu0 0.0
      %5726 = vmatpush2.msra.mxu0 0.0
      %5727 = vmatprep.subr.mxu0 0.0
      %5728 = vmatpush2.msra.mxu0 0.0
      %5729 = vmatprep.subr.mxu0 0.0
      %5730 = vmatpush2.msra.mxu0 0.0
      %5731 = vmatprep.subr.mxu0 0.0
      %5732 = vmatpush2.msra.mxu0 0.0
      %5733 = vmatprep.subr.mxu0 0.0
      %5734 = vmatpush2.msra.mxu0 0.0
      %5735 = vmatprep.subr.mxu0 0.0
      %5736 = vmatpush2.msra.mxu0 0.0
      %5737 = vmatprep.subr.mxu0 0.0
      %5738 = vmatpush2.msra.mxu0 0.0
      %5739 = vmatprep.subr.mxu0 0.0
      %5740 = vmatpush2.msra.mxu0 0.0
      %5741 = vmatprep.subr.mxu0 0.0
      %5742 = vmatpush2.msra.mxu0 0.0
      %5743 = vmatprep.subr.mxu0 0.0
      %5744 = vmatpush2.msra.mxu0 0.0
      %5745 = vmatprep.mubr.f32.mxu0 0.0
      %5746 = vmatmul.mubr.f32.gmra.mxu0 %v5264
      %v5747 = vpop.f32.mrf.mxu0
      %v5748 = vadd.f32 0.0, %v5747
      %v5749 = vpop.f32.mrf.mxu0
      %5750 = vmatprep.mubr.f32.mxu0 0.0
      %5751 = vmatmul.mubr.f32.gmra.mxu0 %v5265
      %v5752 = vpop.f32.mrf.mxu0
      %v5753 = vadd.f32 0.0, %v5752
      %v5754 = vpop.f32.mrf.mxu0
      %5755 = vmatprep.mubr.f32.mxu0 0.0
      %5756 = vmatmul.mubr.f32.gmra.mxu0 %v5266
      %v5757 = vpop.f32.mrf.mxu0
      %v5758 = vadd.f32 0.0, %v5757
      %v5759 = vpop.f32.mrf.mxu0
      %5760 = vmatprep.mubr.f32.mxu0 0.0
      %5761 = vmatmul.mubr.f32.gmra.mxu0 %v5267
      %v5762 = vpop.f32.mrf.mxu0
      %v5763 = vadd.f32 0.0, %v5762
      %v5764 = vpop.f32.mrf.mxu0
      %5765 = vmatprep.mubr.f32.mxu0 0.0
      %5766 = vmatmul.mubr.f32.gmra.mxu0 %v5268
      %v5767 = vpop.f32.mrf.mxu0
      %v5768 = vadd.f32 0.0, %v5767
      %v5769 = vpop.f32.mrf.mxu0
      %5770 = vmatprep.mubr.f32.mxu0 0.0
      %5771 = vmatmul.mubr.f32.gmra.mxu0 %v5269
      %v5772 = vpop.f32.mrf.mxu0
      %v5773 = vadd.f32 0.0, %v5772
      %v5774 = vpop.f32.mrf.mxu0
      %5775 = vmatprep.mubr.f32.mxu0 0.0
      %5776 = vmatmul.mubr.f32.gmra.mxu0 %v5270
      %v5777 = vpop.f32.mrf.mxu0
      %v5778 = vadd.f32 0.0, %v5777
      %v5779 = vpop.f32.mrf.mxu0
      %5780 = vmatprep.mubr.f32.mxu0 0.0
      %5781 = vmatmul.mubr.f32.gmra.mxu0 %v5271
      %v5782 = vpop.f32.mrf.mxu0
      %v5783 = vadd.f32 0.0, %v5782
      %v5784 = vpop.f32.mrf.mxu0
      %5785 = vmatprep.mubr.f32.mxu0 0.0
      %5786 = vmatmul.mubr.f32.gmra.mxu0 %v5272
      %v5787 = vpop.f32.mrf.mxu0
      %v5788 = vadd.f32 0.0, %v5787
      %v5789 = vpop.f32.mrf.mxu0
      %5790 = vmatprep.mubr.f32.mxu0 0.0
      %5791 = vmatmul.mubr.f32.gmra.mxu0 %v5273
      %v5792 = vpop.f32.mrf.mxu0
      %v5793 = vadd.f32 0.0, %v5792
      %v5794 = vpop.f32.mrf.mxu0
      %5795 = vmatprep.mubr.f32.mxu0 0.0
      %5796 = vmatmul.mubr.f32.gmra.mxu0 %v5274
      %v5797 = vpop.f32.mrf.mxu0
      %v5798 = vadd.f32 0.0, %v5797
      %v5799 = vpop.f32.mrf.mxu0
      %5800 = vmatprep.mubr.f32.mxu0 0.0
      %5801 = vmatmul.mubr.f32.gmra.mxu0 %v5275
      %v5802 = vpop.f32.mrf.mxu0
      %v5803 = vadd.f32 0.0, %v5802
      %v5804 = vpop.f32.mrf.mxu0
      %5805 = vmatprep.mubr.f32.mxu0 0.0
      %5806 = vmatmul.mubr.f32.gmra.mxu0 %v5276
      %v5807 = vpop.f32.mrf.mxu0
      %v5808 = vadd.f32 0.0, %v5807
      %v5809 = vpop.f32.mrf.mxu0
      %5810 = vmatprep.mubr.f32.mxu0 0.0
      %5811 = vmatmul.mubr.f32.gmra.mxu0 %v5277
      %v5812 = vpop.f32.mrf.mxu0
      %v5813 = vadd.f32 0.0, %v5812
      %v5814 = vpop.f32.mrf.mxu0
      %5815 = vmatprep.mubr.f32.mxu0 0.0
      %5816 = vmatmul.mubr.f32.gmra.mxu0 %v5278
      %v5817 = vpop.f32.mrf.mxu0
      %v5818 = vadd.f32 0.0, %v5817
      %v5819 = vpop.f32.mrf.mxu0
      %5820 = vmatprep.mubr.f32.mxu0 0.0
      %5821 = vmatmul.mubr.f32.gmra.mxu0 %v5279
      %v5822 = vpop.f32.mrf.mxu0
      %v5823 = vadd.f32 0.0, %v5822
      %v5824 = vpop.f32.mrf.mxu0
      %5825 = vmatprep.mubr.f32.mxu0 0.0
      %5826 = vmatmul.mubr.f32.gmra.mxu0 %v5280
      %v5827 = vpop.f32.mrf.mxu0
      %v5828 = vadd.f32 0.0, %v5827
      %v5829 = vpop.f32.mrf.mxu0
      %5830 = vmatprep.mubr.f32.mxu0 0.0
      %5831 = vmatmul.mubr.f32.gmra.mxu0 %v5281
      %v5832 = vpop.f32.mrf.mxu0
      %v5833 = vadd.f32 0.0, %v5832
      %v5834 = vpop.f32.mrf.mxu0
      %5835 = vmatprep.mubr.f32.mxu0 0.0
      %5836 = vmatmul.mubr.f32.gmra.mxu0 %v5282
      %v5837 = vpop.f32.mrf.mxu0
      %v5838 = vadd.f32 0.0, %v5837
      %v5839 = vpop.f32.mrf.mxu0
      %5840 = vmatprep.mubr.f32.mxu0 0.0
      %5841 = vmatmul.mubr.f32.gmra.mxu0 %v5283
      %v5842 = vpop.f32.mrf.mxu0
      %v5843 = vadd.f32 0.0, %v5842
      %v5844 = vpop.f32.mrf.mxu0
      %5845 = vmatprep.mubr.f32.mxu0 0.0
      %5846 = vmatmul.mubr.f32.gmra.mxu0 %v5284
      %v5847 = vpop.f32.mrf.mxu0
      %v5848 = vadd.f32 0.0, %v5847
      %v5849 = vpop.f32.mrf.mxu0
      %5850 = vmatprep.mubr.f32.mxu0 0.0
      %5851 = vmatmul.mubr.f32.gmra.mxu0 %v5285
      %v5852 = vpop.f32.mrf.mxu0
      %v5853 = vadd.f32 0.0, %v5852
      %v5854 = vpop.f32.mrf.mxu0
      %5855 = vmatprep.mubr.f32.mxu0 0.0
      %5856 = vmatmul.mubr.f32.gmra.mxu0 %v5286
      %v5857 = vpop.f32.mrf.mxu0
      %v5858 = vadd.f32 0.0, %v5857
      %v5859 = vpop.f32.mrf.mxu0
      %5860 = vmatprep.mubr.f32.mxu0 0.0
      %5861 = vmatmul.mubr.f32.gmra.mxu0 %v5287
      %v5862 = vpop.f32.mrf.mxu0
      %v5863 = vadd.f32 0.0, %v5862
      %v5864 = vpop.f32.mrf.mxu0
      %5865 = vmatprep.mubr.f32.mxu0 0.0
      %5866 = vmatmul.mubr.f32.gmra.mxu0 %v5288
      %v5867 = vpop.f32.mrf.mxu0
      %v5868 = vadd.f32 0.0, %v5867
      %v5869 = vpop.f32.mrf.mxu0
      %5870 = vmatprep.mubr.f32.mxu0 0.0
      %5871 = vmatmul.mubr.f32.gmra.mxu0 %v5289
      %v5872 = vpop.f32.mrf.mxu0
      %v5873 = vadd.f32 0.0, %v5872
      %v5874 = vpop.f32.mrf.mxu0
      %5875 = vmatprep.mubr.f32.mxu0 0.0
      %5876 = vmatmul.mubr.f32.gmra.mxu0 %v5290
      %v5877 = vpop.f32.mrf.mxu0
      %v5878 = vadd.f32 0.0, %v5877
      %v5879 = vpop.f32.mrf.mxu0
      %5880 = vmatprep.mubr.f32.mxu0 0.0
      %5881 = vmatmul.mubr.f32.gmra.mxu0 %v5291
      %v5882 = vpop.f32.mrf.mxu0
      %v5883 = vadd.f32 0.0, %v5882
      %v5884 = vpop.f32.mrf.mxu0
      %5885 = vmatprep.mubr.f32.mxu0 0.0
      %5886 = vmatmul.mubr.f32.gmra.mxu0 %v5292
      %v5887 = vpop.f32.mrf.mxu0
      %v5888 = vadd.f32 0.0, %v5887
      %v5889 = vpop.f32.mrf.mxu0
      %5890 = vmatprep.mubr.f32.mxu0 0.0
      %5891 = vmatmul.mubr.f32.gmra.mxu0 %v5293
      %v5892 = vpop.f32.mrf.mxu0
      %v5893 = vadd.f32 0.0, %v5892
      %v5894 = vpop.f32.mrf.mxu0
      %5895 = vmatprep.mubr.f32.mxu0 0.0
      %5896 = vmatmul.mubr.f32.gmra.mxu0 %v5294
      %v5897 = vpop.f32.mrf.mxu0
      %v5898 = vadd.f32 0.0, %v5897
      %v5899 = vpop.f32.mrf.mxu0
      %5900 = vmatprep.mubr.f32.mxu0 0.0
      %5901 = vmatmul.mubr.f32.gmra.mxu0 %v5295
      %v5902 = vpop.f32.mrf.mxu0
      %v5903 = vadd.f32 0.0, %v5902
      %v5904 = vpop.f32.mrf.mxu0
      %5905 = vdwg.mxu0
      %5906 = vmatprep.subr.mxu0 %v5374
      %5907 = vmatpush1.msra.mxu0 %v5373
      %5908 = vmatprep.subr.mxu0 %v5371
      %5909 = vmatpush1.msra.mxu0 %v5370
      %5910 = vmatprep.subr.mxu0 %v5368
      %5911 = vmatpush1.msra.mxu0 %v5367
      %5912 = vmatprep.subr.mxu0 %v5365
      %5913 = vmatpush1.msra.mxu0 %v5364
      %5914 = vmatprep.subr.mxu0 %v5362
      %5915 = vmatpush1.msra.mxu0 %v5361
      %5916 = vmatprep.subr.mxu0 %v5359
      %5917 = vmatpush1.msra.mxu0 %v5358
      %5918 = vmatprep.subr.mxu0 %v5356
      %5919 = vmatpush1.msra.mxu0 %v5355
      %5920 = vmatprep.subr.mxu0 %v5353
      %5921 = vmatpush1.msra.mxu0 %v5352
      %5922 = vmatprep.subr.mxu0 %v5350
      %5923 = vmatpush1.msra.mxu0 %v5349
      %5924 = vmatprep.subr.mxu0 %v5347
      %5925 = vmatpush1.msra.mxu0 %v5346
      %5926 = vmatprep.subr.mxu0 %v5344
      %5927 = vmatpush1.msra.mxu0 %v5343
      %5928 = vmatprep.subr.mxu0 %v5341
      %5929 = vmatpush1.msra.mxu0 %v5340
      %5930 = vmatprep.subr.mxu0 %v5338
      %5931 = vmatpush1.msra.mxu0 %v5337
      %5932 = vmatprep.subr.mxu0 %v5335
      %5933 = vmatpush1.msra.mxu0 %v5334
      %5934 = vmatprep.subr.mxu0 %v5332
      %5935 = vmatpush1.msra.mxu0 %v5331
      %5936 = vmatprep.subr.mxu0 %v5329
      %5937 = vmatpush1.msra.mxu0 %v5328
      %5938 = vmatprep.subr.mxu0 0.0
      %5939 = vmatpush2.msra.mxu0 0.0
      %5940 = vmatprep.subr.mxu0 0.0
      %5941 = vmatpush2.msra.mxu0 0.0
      %5942 = vmatprep.subr.mxu0 0.0
      %5943 = vmatpush2.msra.mxu0 0.0
      %5944 = vmatprep.subr.mxu0 0.0
      %5945 = vmatpush2.msra.mxu0 0.0
      %5946 = vmatprep.subr.mxu0 0.0
      %5947 = vmatpush2.msra.mxu0 0.0
      %5948 = vmatprep.subr.mxu0 0.0
      %5949 = vmatpush2.msra.mxu0 0.0
      %5950 = vmatprep.subr.mxu0 0.0
      %5951 = vmatpush2.msra.mxu0 0.0
      %5952 = vmatprep.subr.mxu0 0.0
      %5953 = vmatpush2.msra.mxu0 0.0
      %5954 = vmatprep.subr.mxu0 0.0
      %5955 = vmatpush2.msra.mxu0 0.0
      %5956 = vmatprep.subr.mxu0 0.0
      %5957 = vmatpush2.msra.mxu0 0.0
      %5958 = vmatprep.subr.mxu0 0.0
      %5959 = vmatpush2.msra.mxu0 0.0
      %5960 = vmatprep.subr.mxu0 0.0
      %5961 = vmatpush2.msra.mxu0 0.0
      %5962 = vmatprep.subr.mxu0 0.0
      %5963 = vmatpush2.msra.mxu0 0.0
      %5964 = vmatprep.subr.mxu0 0.0
      %5965 = vmatpush2.msra.mxu0 0.0
      %5966 = vmatprep.subr.mxu0 0.0
      %5967 = vmatpush2.msra.mxu0 0.0
      %5968 = vmatprep.subr.mxu0 0.0
      %5969 = vmatpush2.msra.mxu0 0.0
      %5970 = vmatprep.mubr.f32.mxu0 0.0
      %5971 = vmatmul.mubr.f32.gmra.mxu0 %v5232
      %v5972 = vpop.f32.mrf.mxu0
      %v5973 = vadd.f32 %v5491, %v5972
      %v5974 = vpop.f32.mrf.mxu0
      %v5975 = vadd.f32 %v5493, %v5974
      %5976 = vmatprep.mubr.f32.mxu0 0.0
      %5977 = vmatmul.mubr.f32.gmra.mxu0 %v5233
      %v5978 = vpop.f32.mrf.mxu0
      %v5979 = vadd.f32 %v5497, %v5978
      %v5980 = vpop.f32.mrf.mxu0
      %v5981 = vadd.f32 %v5499, %v5980
      %5982 = vmatprep.mubr.f32.mxu0 0.0
      %5983 = vmatmul.mubr.f32.gmra.mxu0 %v5234
      %v5984 = vpop.f32.mrf.mxu0
      %v5985 = vadd.f32 %v5503, %v5984
      %v5986 = vpop.f32.mrf.mxu0
      %v5987 = vadd.f32 %v5505, %v5986
      %5988 = vmatprep.mubr.f32.mxu0 0.0
      %5989 = vmatmul.mubr.f32.gmra.mxu0 %v5235
      %v5990 = vpop.f32.mrf.mxu0
      %v5991 = vadd.f32 %v5509, %v5990
      %v5992 = vpop.f32.mrf.mxu0
      %v5993 = vadd.f32 %v5511, %v5992
      %5994 = vmatprep.mubr.f32.mxu0 0.0
      %5995 = vmatmul.mubr.f32.gmra.mxu0 %v5236
      %v5996 = vpop.f32.mrf.mxu0
      %v5997 = vadd.f32 %v5515, %v5996
      %v5998 = vpop.f32.mrf.mxu0
      %v5999 = vadd.f32 %v5517, %v5998
      %6000 = vmatprep.mubr.f32.mxu0 0.0
      %6001 = vmatmul.mubr.f32.gmra.mxu0 %v5237
      %v6002 = vpop.f32.mrf.mxu0
      %v6003 = vadd.f32 %v5521, %v6002
      %v6004 = vpop.f32.mrf.mxu0
      %v6005 = vadd.f32 %v5523, %v6004
      %6006 = vmatprep.mubr.f32.mxu0 0.0
      %6007 = vmatmul.mubr.f32.gmra.mxu0 %v5238
      %v6008 = vpop.f32.mrf.mxu0
      %v6009 = vadd.f32 %v5527, %v6008
      %v6010 = vpop.f32.mrf.mxu0
      %v6011 = vadd.f32 %v5529, %v6010
      %6012 = vmatprep.mubr.f32.mxu0 0.0
      %6013 = vmatmul.mubr.f32.gmra.mxu0 %v5239
      %v6014 = vpop.f32.mrf.mxu0
      %v6015 = vadd.f32 %v5533, %v6014
      %v6016 = vpop.f32.mrf.mxu0
      %v6017 = vadd.f32 %v5535, %v6016
      %6018 = vmatprep.mubr.f32.mxu0 0.0
      %6019 = vmatmul.mubr.f32.gmra.mxu0 %v5240
      %v6020 = vpop.f32.mrf.mxu0
      %v6021 = vadd.f32 %v5539, %v6020
      %v6022 = vpop.f32.mrf.mxu0
      %v6023 = vadd.f32 %v5541, %v6022
      %6024 = vmatprep.mubr.f32.mxu0 0.0
      %6025 = vmatmul.mubr.f32.gmra.mxu0 %v5241
      %v6026 = vpop.f32.mrf.mxu0
      %v6027 = vadd.f32 %v5545, %v6026
      %v6028 = vpop.f32.mrf.mxu0
      %v6029 = vadd.f32 %v5547, %v6028
      %6030 = vmatprep.mubr.f32.mxu0 0.0
      %6031 = vmatmul.mubr.f32.gmra.mxu0 %v5242
      %v6032 = vpop.f32.mrf.mxu0
      %v6033 = vadd.f32 %v5551, %v6032
      %v6034 = vpop.f32.mrf.mxu0
      %v6035 = vadd.f32 %v5553, %v6034
      %6036 = vmatprep.mubr.f32.mxu0 0.0
      %6037 = vmatmul.mubr.f32.gmra.mxu0 %v5243
      %v6038 = vpop.f32.mrf.mxu0
      %v6039 = vadd.f32 %v5557, %v6038
      %v6040 = vpop.f32.mrf.mxu0
      %v6041 = vadd.f32 %v5559, %v6040
      %6042 = vmatprep.mubr.f32.mxu0 0.0
      %6043 = vmatmul.mubr.f32.gmra.mxu0 %v5244
      %v6044 = vpop.f32.mrf.mxu0
      %v6045 = vadd.f32 %v5563, %v6044
      %v6046 = vpop.f32.mrf.mxu0
      %v6047 = vadd.f32 %v5565, %v6046
      %6048 = vmatprep.mubr.f32.mxu0 0.0
      %6049 = vmatmul.mubr.f32.gmra.mxu0 %v5245
      %v6050 = vpop.f32.mrf.mxu0
      %v6051 = vadd.f32 %v5569, %v6050
      %v6052 = vpop.f32.mrf.mxu0
      %v6053 = vadd.f32 %v5571, %v6052
      %6054 = vmatprep.mubr.f32.mxu0 0.0
      %6055 = vmatmul.mubr.f32.gmra.mxu0 %v5246
      %v6056 = vpop.f32.mrf.mxu0
      %v6057 = vadd.f32 %v5575, %v6056
      %v6058 = vpop.f32.mrf.mxu0
      %v6059 = vadd.f32 %v5577, %v6058
      %6060 = vmatprep.mubr.f32.mxu0 0.0
      %6061 = vmatmul.mubr.f32.gmra.mxu0 %v5247
      %v6062 = vpop.f32.mrf.mxu0
      %v6063 = vadd.f32 %v5581, %v6062
      %v6064 = vpop.f32.mrf.mxu0
      %v6065 = vadd.f32 %v5583, %v6064
      %6066 = vmatprep.mubr.f32.mxu0 0.0
      %6067 = vmatmul.mubr.f32.gmra.mxu0 %v5248
      %v6068 = vpop.f32.mrf.mxu0
      %v6069 = vadd.f32 %v5587, %v6068
      %v6070 = vpop.f32.mrf.mxu0
      %v6071 = vadd.f32 %v5589, %v6070
      %6072 = vmatprep.mubr.f32.mxu0 0.0
      %6073 = vmatmul.mubr.f32.gmra.mxu0 %v5249
      %v6074 = vpop.f32.mrf.mxu0
      %v6075 = vadd.f32 %v5593, %v6074
      %v6076 = vpop.f32.mrf.mxu0
      %v6077 = vadd.f32 %v5595, %v6076
      %6078 = vmatprep.mubr.f32.mxu0 0.0
      %6079 = vmatmul.mubr.f32.gmra.mxu0 %v5250
      %v6080 = vpop.f32.mrf.mxu0
      %v6081 = vadd.f32 %v5599, %v6080
      %v6082 = vpop.f32.mrf.mxu0
      %v6083 = vadd.f32 %v5601, %v6082
      %6084 = vmatprep.mubr.f32.mxu0 0.0
      %6085 = vmatmul.mubr.f32.gmra.mxu0 %v5251
      %v6086 = vpop.f32.mrf.mxu0
      %v6087 = vadd.f32 %v5605, %v6086
      %v6088 = vpop.f32.mrf.mxu0
      %v6089 = vadd.f32 %v5607, %v6088
      %6090 = vmatprep.mubr.f32.mxu0 0.0
      %6091 = vmatmul.mubr.f32.gmra.mxu0 %v5252
      %v6092 = vpop.f32.mrf.mxu0
      %v6093 = vadd.f32 %v5611, %v6092
      %v6094 = vpop.f32.mrf.mxu0
      %v6095 = vadd.f32 %v5613, %v6094
      %6096 = vmatprep.mubr.f32.mxu0 0.0
      %6097 = vmatmul.mubr.f32.gmra.mxu0 %v5253
      %v6098 = vpop.f32.mrf.mxu0
      %v6099 = vadd.f32 %v5617, %v6098
      %v6100 = vpop.f32.mrf.mxu0
      %v6101 = vadd.f32 %v5619, %v6100
      %6102 = vmatprep.mubr.f32.mxu0 0.0
      %6103 = vmatmul.mubr.f32.gmra.mxu0 %v5254
      %v6104 = vpop.f32.mrf.mxu0
      %v6105 = vadd.f32 %v5623, %v6104
      %v6106 = vpop.f32.mrf.mxu0
      %v6107 = vadd.f32 %v5625, %v6106
      %6108 = vmatprep.mubr.f32.mxu0 0.0
      %6109 = vmatmul.mubr.f32.gmra.mxu0 %v5255
      %v6110 = vpop.f32.mrf.mxu0
      %v6111 = vadd.f32 %v5629, %v6110
      %v6112 = vpop.f32.mrf.mxu0
      %v6113 = vadd.f32 %v5631, %v6112
      %6114 = vmatprep.mubr.f32.mxu0 0.0
      %6115 = vmatmul.mubr.f32.gmra.mxu0 %v5256
      %v6116 = vpop.f32.mrf.mxu0
      %v6117 = vadd.f32 %v5635, %v6116
      %v6118 = vpop.f32.mrf.mxu0
      %v6119 = vadd.f32 %v5637, %v6118
      %6120 = vmatprep.mubr.f32.mxu0 0.0
      %6121 = vmatmul.mubr.f32.gmra.mxu0 %v5257
      %v6122 = vpop.f32.mrf.mxu0
      %v6123 = vadd.f32 %v5641, %v6122
      %v6124 = vpop.f32.mrf.mxu0
      %v6125 = vadd.f32 %v5643, %v6124
      %6126 = vmatprep.mubr.f32.mxu0 0.0
      %6127 = vmatmul.mubr.f32.gmra.mxu0 %v5258
      %v6128 = vpop.f32.mrf.mxu0
      %v6129 = vadd.f32 %v5647, %v6128
      %v6130 = vpop.f32.mrf.mxu0
      %v6131 = vadd.f32 %v5649, %v6130
      %6132 = vmatprep.mubr.f32.mxu0 0.0
      %6133 = vmatmul.mubr.f32.gmra.mxu0 %v5259
      %v6134 = vpop.f32.mrf.mxu0
      %v6135 = vadd.f32 %v5653, %v6134
      %v6136 = vpop.f32.mrf.mxu0
      %v6137 = vadd.f32 %v5655, %v6136
      %6138 = vmatprep.mubr.f32.mxu0 0.0
      %6139 = vmatmul.mubr.f32.gmra.mxu0 %v5260
      %v6140 = vpop.f32.mrf.mxu0
      %v6141 = vadd.f32 %v5659, %v6140
      %v6142 = vpop.f32.mrf.mxu0
      %v6143 = vadd.f32 %v5661, %v6142
      %6144 = vmatprep.mubr.f32.mxu0 0.0
      %6145 = vmatmul.mubr.f32.gmra.mxu0 %v5261
      %v6146 = vpop.f32.mrf.mxu0
      %v6147 = vadd.f32 %v5665, %v6146
      %v6148 = vpop.f32.mrf.mxu0
      %v6149 = vadd.f32 %v5667, %v6148
      %6150 = vmatprep.mubr.f32.mxu0 0.0
      %6151 = vmatmul.mubr.f32.gmra.mxu0 %v5262
      %v6152 = vpop.f32.mrf.mxu0
      %v6153 = vadd.f32 %v5671, %v6152
      %v6154 = vpop.f32.mrf.mxu0
      %v6155 = vadd.f32 %v5673, %v6154
      %6156 = vmatprep.mubr.f32.mxu0 0.0
      %6157 = vmatmul.mubr.f32.gmra.mxu0 %v5263
      %v6158 = vpop.f32.mrf.mxu0
      %v6159 = vadd.f32 %v5677, %v6158
      %v6160 = vpop.f32.mrf.mxu0
      %v6161 = vadd.f32 %v5679, %v6160
      %6162 = vdwg.mxu0
      %6163 = vmatprep.subr.mxu0 0.0
      %6164 = vmatpush1.msra.mxu0 %v5375
      %6165 = vmatprep.subr.mxu0 0.0
      %6166 = vmatpush1.msra.mxu0 %v5372
      %6167 = vmatprep.subr.mxu0 0.0
      %6168 = vmatpush1.msra.mxu0 %v5369
      %6169 = vmatprep.subr.mxu0 0.0
      %6170 = vmatpush1.msra.mxu0 %v5366
      %6171 = vmatprep.subr.mxu0 0.0
      %6172 = vmatpush1.msra.mxu0 %v5363
      %6173 = vmatprep.subr.mxu0 0.0
      %6174 = vmatpush1.msra.mxu0 %v5360
      %6175 = vmatprep.subr.mxu0 0.0
      %6176 = vmatpush1.msra.mxu0 %v5357
      %6177 = vmatprep.subr.mxu0 0.0
      %6178 = vmatpush1.msra.mxu0 %v5354
      %6179 = vmatprep.subr.mxu0 0.0
      %6180 = vmatpush1.msra.mxu0 %v5351
      %6181 = vmatprep.subr.mxu0 0.0
      %6182 = vmatpush1.msra.mxu0 %v5348
      %6183 = vmatprep.subr.mxu0 0.0
      %6184 = vmatpush1.msra.mxu0 %v5345
      %6185 = vmatprep.subr.mxu0 0.0
      %6186 = vmatpush1.msra.mxu0 %v5342
      %6187 = vmatprep.subr.mxu0 0.0
      %6188 = vmatpush1.msra.mxu0 %v5339
      %6189 = vmatprep.subr.mxu0 0.0
      %6190 = vmatpush1.msra.mxu0 %v5336
      %6191 = vmatprep.subr.mxu0 0.0
      %6192 = vmatpush1.msra.mxu0 %v5333
      %6193 = vmatprep.subr.mxu0 0.0
      %6194 = vmatpush1.msra.mxu0 %v5330
      %6195 = vmatprep.subr.mxu0 0.0
      %6196 = vmatpush2.msra.mxu0 0.0
      %6197 = vmatprep.subr.mxu0 0.0
      %6198 = vmatpush2.msra.mxu0 0.0
      %6199 = vmatprep.subr.mxu0 0.0
      %6200 = vmatpush2.msra.mxu0 0.0
      %6201 = vmatprep.subr.mxu0 0.0
      %6202 = vmatpush2.msra.mxu0 0.0
      %6203 = vmatprep.subr.mxu0 0.0
      %6204 = vmatpush2.msra.mxu0 0.0
      %6205 = vmatprep.subr.mxu0 0.0
      %6206 = vmatpush2.msra.mxu0 0.0
      %6207 = vmatprep.subr.mxu0 0.0
      %6208 = vmatpush2.msra.mxu0 0.0
      %6209 = vmatprep.subr.mxu0 0.0
      %6210 = vmatpush2.msra.mxu0 0.0
      %6211 = vmatprep.subr.mxu0 0.0
      %6212 = vmatpush2.msra.mxu0 0.0
      %6213 = vmatprep.subr.mxu0 0.0
      %6214 = vmatpush2.msra.mxu0 0.0
      %6215 = vmatprep.subr.mxu0 0.0
      %6216 = vmatpush2.msra.mxu0 0.0
      %6217 = vmatprep.subr.mxu0 0.0
      %6218 = vmatpush2.msra.mxu0 0.0
      %6219 = vmatprep.subr.mxu0 0.0
      %6220 = vmatpush2.msra.mxu0 0.0
      %6221 = vmatprep.subr.mxu0 0.0
      %6222 = vmatpush2.msra.mxu0 0.0
      %6223 = vmatprep.subr.mxu0 0.0
      %6224 = vmatpush2.msra.mxu0 0.0
      %6225 = vmatprep.subr.mxu0 0.0
      %6226 = vmatpush2.msra.mxu0 0.0
      %6227 = vmatprep.mubr.f32.mxu0 0.0
      %6228 = vmatmul.mubr.f32.gmra.mxu0 %v5232
      %v6229 = vpop.f32.mrf.mxu0
      %v6230 = vadd.f32 %v5748, %v6229
      %v6231 = vpop.f32.mrf.mxu0
      %6232 = vmatprep.mubr.f32.mxu0 0.0
      %6233 = vmatmul.mubr.f32.gmra.mxu0 %v5233
      %v6234 = vpop.f32.mrf.mxu0
      %v6235 = vadd.f32 %v5753, %v6234
      %v6236 = vpop.f32.mrf.mxu0
      %6237 = vmatprep.mubr.f32.mxu0 0.0
      %6238 = vmatmul.mubr.f32.gmra.mxu0 %v5234
      %v6239 = vpop.f32.mrf.mxu0
      %v6240 = vadd.f32 %v5758, %v6239
      %v6241 = vpop.f32.mrf.mxu0
      %6242 = vmatprep.mubr.f32.mxu0 0.0
      %6243 = vmatmul.mubr.f32.gmra.mxu0 %v5235
      %v6244 = vpop.f32.mrf.mxu0
      %v6245 = vadd.f32 %v5763, %v6244
      %v6246 = vpop.f32.mrf.mxu0
      %6247 = vmatprep.mubr.f32.mxu0 0.0
      %6248 = vmatmul.mubr.f32.gmra.mxu0 %v5236
      %v6249 = vpop.f32.mrf.mxu0
      %v6250 = vadd.f32 %v5768, %v6249
      %v6251 = vpop.f32.mrf.mxu0
      %6252 = vmatprep.mubr.f32.mxu0 0.0
      %6253 = vmatmul.mubr.f32.gmra.mxu0 %v5237
      %v6254 = vpop.f32.mrf.mxu0
      %v6255 = vadd.f32 %v5773, %v6254
      %v6256 = vpop.f32.mrf.mxu0
      %6257 = vmatprep.mubr.f32.mxu0 0.0
      %6258 = vmatmul.mubr.f32.gmra.mxu0 %v5238
      %v6259 = vpop.f32.mrf.mxu0
      %v6260 = vadd.f32 %v5778, %v6259
      %v6261 = vpop.f32.mrf.mxu0
      %6262 = vmatprep.mubr.f32.mxu0 0.0
      %6263 = vmatmul.mubr.f32.gmra.mxu0 %v5239
      %v6264 = vpop.f32.mrf.mxu0
      %v6265 = vadd.f32 %v5783, %v6264
      %v6266 = vpop.f32.mrf.mxu0
      %6267 = vmatprep.mubr.f32.mxu0 0.0
      %6268 = vmatmul.mubr.f32.gmra.mxu0 %v5240
      %v6269 = vpop.f32.mrf.mxu0
      %v6270 = vadd.f32 %v5788, %v6269
      %v6271 = vpop.f32.mrf.mxu0
      %6272 = vmatprep.mubr.f32.mxu0 0.0
      %6273 = vmatmul.mubr.f32.gmra.mxu0 %v5241
      %v6274 = vpop.f32.mrf.mxu0
      %v6275 = vadd.f32 %v5793, %v6274
      %v6276 = vpop.f32.mrf.mxu0
      %6277 = vmatprep.mubr.f32.mxu0 0.0
      %6278 = vmatmul.mubr.f32.gmra.mxu0 %v5242
      %v6279 = vpop.f32.mrf.mxu0
      %v6280 = vadd.f32 %v5798, %v6279
      %v6281 = vpop.f32.mrf.mxu0
      %6282 = vmatprep.mubr.f32.mxu0 0.0
      %6283 = vmatmul.mubr.f32.gmra.mxu0 %v5243
      %v6284 = vpop.f32.mrf.mxu0
      %v6285 = vadd.f32 %v5803, %v6284
      %v6286 = vpop.f32.mrf.mxu0
      %6287 = vmatprep.mubr.f32.mxu0 0.0
      %6288 = vmatmul.mubr.f32.gmra.mxu0 %v5244
      %v6289 = vpop.f32.mrf.mxu0
      %v6290 = vadd.f32 %v5808, %v6289
      %v6291 = vpop.f32.mrf.mxu0
      %6292 = vmatprep.mubr.f32.mxu0 0.0
      %6293 = vmatmul.mubr.f32.gmra.mxu0 %v5245
      %v6294 = vpop.f32.mrf.mxu0
      %v6295 = vadd.f32 %v5813, %v6294
      %v6296 = vpop.f32.mrf.mxu0
      %6297 = vmatprep.mubr.f32.mxu0 0.0
      %6298 = vmatmul.mubr.f32.gmra.mxu0 %v5246
      %v6299 = vpop.f32.mrf.mxu0
      %v6300 = vadd.f32 %v5818, %v6299
      %v6301 = vpop.f32.mrf.mxu0
      %6302 = vmatprep.mubr.f32.mxu0 0.0
      %6303 = vmatmul.mubr.f32.gmra.mxu0 %v5247
      %v6304 = vpop.f32.mrf.mxu0
      %v6305 = vadd.f32 %v5823, %v6304
      %v6306 = vpop.f32.mrf.mxu0
      %6307 = vmatprep.mubr.f32.mxu0 0.0
      %6308 = vmatmul.mubr.f32.gmra.mxu0 %v5248
      %v6309 = vpop.f32.mrf.mxu0
      %v6310 = vadd.f32 %v5828, %v6309
      %v6311 = vpop.f32.mrf.mxu0
      %6312 = vmatprep.mubr.f32.mxu0 0.0
      %6313 = vmatmul.mubr.f32.gmra.mxu0 %v5249
      %v6314 = vpop.f32.mrf.mxu0
      %v6315 = vadd.f32 %v5833, %v6314
      %v6316 = vpop.f32.mrf.mxu0
      %6317 = vmatprep.mubr.f32.mxu0 0.0
      %6318 = vmatmul.mubr.f32.gmra.mxu0 %v5250
      %v6319 = vpop.f32.mrf.mxu0
      %v6320 = vadd.f32 %v5838, %v6319
      %v6321 = vpop.f32.mrf.mxu0
      %6322 = vmatprep.mubr.f32.mxu0 0.0
      %6323 = vmatmul.mubr.f32.gmra.mxu0 %v5251
      %v6324 = vpop.f32.mrf.mxu0
      %v6325 = vadd.f32 %v5843, %v6324
      %v6326 = vpop.f32.mrf.mxu0
      %6327 = vmatprep.mubr.f32.mxu0 0.0
      %6328 = vmatmul.mubr.f32.gmra.mxu0 %v5252
      %v6329 = vpop.f32.mrf.mxu0
      %v6330 = vadd.f32 %v5848, %v6329
      %v6331 = vpop.f32.mrf.mxu0
      %6332 = vmatprep.mubr.f32.mxu0 0.0
      %6333 = vmatmul.mubr.f32.gmra.mxu0 %v5253
      %v6334 = vpop.f32.mrf.mxu0
      %v6335 = vadd.f32 %v5853, %v6334
      %v6336 = vpop.f32.mrf.mxu0
      %6337 = vmatprep.mubr.f32.mxu0 0.0
      %6338 = vmatmul.mubr.f32.gmra.mxu0 %v5254
      %v6339 = vpop.f32.mrf.mxu0
      %v6340 = vadd.f32 %v5858, %v6339
      %v6341 = vpop.f32.mrf.mxu0
      %6342 = vmatprep.mubr.f32.mxu0 0.0
      %6343 = vmatmul.mubr.f32.gmra.mxu0 %v5255
      %v6344 = vpop.f32.mrf.mxu0
      %v6345 = vadd.f32 %v5863, %v6344
      %v6346 = vpop.f32.mrf.mxu0
      %6347 = vmatprep.mubr.f32.mxu0 0.0
      %6348 = vmatmul.mubr.f32.gmra.mxu0 %v5256
      %v6349 = vpop.f32.mrf.mxu0
      %v6350 = vadd.f32 %v5868, %v6349
      %v6351 = vpop.f32.mrf.mxu0
      %6352 = vmatprep.mubr.f32.mxu0 0.0
      %6353 = vmatmul.mubr.f32.gmra.mxu0 %v5257
      %v6354 = vpop.f32.mrf.mxu0
      %v6355 = vadd.f32 %v5873, %v6354
      %v6356 = vpop.f32.mrf.mxu0
      %6357 = vmatprep.mubr.f32.mxu0 0.0
      %6358 = vmatmul.mubr.f32.gmra.mxu0 %v5258
      %v6359 = vpop.f32.mrf.mxu0
      %v6360 = vadd.f32 %v5878, %v6359
      %v6361 = vpop.f32.mrf.mxu0
      %6362 = vmatprep.mubr.f32.mxu0 0.0
      %6363 = vmatmul.mubr.f32.gmra.mxu0 %v5259
      %v6364 = vpop.f32.mrf.mxu0
      %v6365 = vadd.f32 %v5883, %v6364
      %v6366 = vpop.f32.mrf.mxu0
      %6367 = vmatprep.mubr.f32.mxu0 0.0
      %6368 = vmatmul.mubr.f32.gmra.mxu0 %v5260
      %v6369 = vpop.f32.mrf.mxu0
      %v6370 = vadd.f32 %v5888, %v6369
      %v6371 = vpop.f32.mrf.mxu0
      %6372 = vmatprep.mubr.f32.mxu0 0.0
      %6373 = vmatmul.mubr.f32.gmra.mxu0 %v5261
      %v6374 = vpop.f32.mrf.mxu0
      %v6375 = vadd.f32 %v5893, %v6374
      %v6376 = vpop.f32.mrf.mxu0
      %6377 = vmatprep.mubr.f32.mxu0 0.0
      %6378 = vmatmul.mubr.f32.gmra.mxu0 %v5262
      %v6379 = vpop.f32.mrf.mxu0
      %v6380 = vadd.f32 %v5898, %v6379
      %v6381 = vpop.f32.mrf.mxu0
      %6382 = vmatprep.mubr.f32.mxu0 0.0
      %6383 = vmatmul.mubr.f32.gmra.mxu0 %v5263
      %v6384 = vpop.f32.mrf.mxu0
      %v6385 = vadd.f32 %v5903, %v6384
      %v6386 = vpop.f32.mrf.mxu0
      %6387 = vdwg.mxu0
      %v6388 = vld [vmem:[%s9] sm:$0x7]
      %v6390 = vlaneseq
      %v6391 = vshrl.u32 %v6390, 7
      %v6392 = vsub.s32 0, %v6391
      %v6393 = vrot.slane %v6388, %v6392
      %v6394 = vlaneseq
      %v6395 = vshrl.u32 %v6394, 7
      %v6396 = vsub.s32 1, %v6395
      %v6397 = vrot.slane %v6388, %v6396
      %v6398 = vlaneseq
      %v6399 = vshrl.u32 %v6398, 7
      %v6400 = vsub.s32 2, %v6399
      %v6401 = vrot.slane %v6388, %v6400
      %v6405 = vadd.f32 %v5973, %v6393
      %v6406 = vadd.f32 %v5975, %v6397
      %v6407 = vadd.f32 %v6230, %v6401
      %v6408 = vadd.f32 %v5979, %v6393
      %v6409 = vadd.f32 %v5981, %v6397
      %v6410 = vadd.f32 %v6235, %v6401
      %v6411 = vadd.f32 %v5985, %v6393
      %v6412 = vadd.f32 %v5987, %v6397
      %v6413 = vadd.f32 %v6240, %v6401
      %v6414 = vadd.f32 %v5991, %v6393
      %v6415 = vadd.f32 %v5993, %v6397
      %v6416 = vadd.f32 %v6245, %v6401
      %v6417 = vadd.f32 %v5997, %v6393
      %v6418 = vadd.f32 %v5999, %v6397
      %v6419 = vadd.f32 %v6250, %v6401
      %v6420 = vadd.f32 %v6003, %v6393
      %v6421 = vadd.f32 %v6005, %v6397
      %v6422 = vadd.f32 %v6255, %v6401
      %v6423 = vadd.f32 %v6009, %v6393
      %v6424 = vadd.f32 %v6011, %v6397
      %v6425 = vadd.f32 %v6260, %v6401
      %v6426 = vadd.f32 %v6015, %v6393
      %v6427 = vadd.f32 %v6017, %v6397
      %v6428 = vadd.f32 %v6265, %v6401
      %v6429 = vadd.f32 %v6021, %v6393
      %v6430 = vadd.f32 %v6023, %v6397
      %v6431 = vadd.f32 %v6270, %v6401
      %v6432 = vadd.f32 %v6027, %v6393
      %v6433 = vadd.f32 %v6029, %v6397
      %v6434 = vadd.f32 %v6275, %v6401
      %v6435 = vadd.f32 %v6033, %v6393
      %v6436 = vadd.f32 %v6035, %v6397
      %v6437 = vadd.f32 %v6280, %v6401
      %v6438 = vadd.f32 %v6039, %v6393
      %v6439 = vadd.f32 %v6041, %v6397
      %v6440 = vadd.f32 %v6285, %v6401
      %v6441 = vadd.f32 %v6045, %v6393
      %v6442 = vadd.f32 %v6047, %v6397
      %v6443 = vadd.f32 %v6290, %v6401
      %v6444 = vadd.f32 %v6051, %v6393
      %v6445 = vadd.f32 %v6053, %v6397
      %v6446 = vadd.f32 %v6295, %v6401
      %v6447 = vadd.f32 %v6057, %v6393
      %v6448 = vadd.f32 %v6059, %v6397
      %v6449 = vadd.f32 %v6300, %v6401
      %v6450 = vadd.f32 %v6063, %v6393
      %v6451 = vadd.f32 %v6065, %v6397
      %v6452 = vadd.f32 %v6305, %v6401
      %v6453 = vadd.f32 %v6069, %v6393
      %v6454 = vadd.f32 %v6071, %v6397
      %v6455 = vadd.f32 %v6310, %v6401
      %v6456 = vadd.f32 %v6075, %v6393
      %v6457 = vadd.f32 %v6077, %v6397
      %v6458 = vadd.f32 %v6315, %v6401
      %v6459 = vadd.f32 %v6081, %v6393
      %v6460 = vadd.f32 %v6083, %v6397
      %v6461 = vadd.f32 %v6320, %v6401
      %v6462 = vadd.f32 %v6087, %v6393
      %v6463 = vadd.f32 %v6089, %v6397
      %v6464 = vadd.f32 %v6325, %v6401
      %v6465 = vadd.f32 %v6093, %v6393
      %v6466 = vadd.f32 %v6095, %v6397
      %v6467 = vadd.f32 %v6330, %v6401
      %v6468 = vadd.f32 %v6099, %v6393
      %v6469 = vadd.f32 %v6101, %v6397
      %v6470 = vadd.f32 %v6335, %v6401
      %v6471 = vadd.f32 %v6105, %v6393
      %v6472 = vadd.f32 %v6107, %v6397
      %v6473 = vadd.f32 %v6340, %v6401
      %v6474 = vadd.f32 %v6111, %v6393
      %v6475 = vadd.f32 %v6113, %v6397
      %v6476 = vadd.f32 %v6345, %v6401
      %v6477 = vadd.f32 %v6117, %v6393
      %v6478 = vadd.f32 %v6119, %v6397
      %v6479 = vadd.f32 %v6350, %v6401
      %v6480 = vadd.f32 %v6123, %v6393
      %v6481 = vadd.f32 %v6125, %v6397
      %v6482 = vadd.f32 %v6355, %v6401
      %v6483 = vadd.f32 %v6129, %v6393
      %v6484 = vadd.f32 %v6131, %v6397
      %v6485 = vadd.f32 %v6360, %v6401
      %v6486 = vadd.f32 %v6135, %v6393
      %v6487 = vadd.f32 %v6137, %v6397
      %v6488 = vadd.f32 %v6365, %v6401
      %v6489 = vadd.f32 %v6141, %v6393
      %v6490 = vadd.f32 %v6143, %v6397
      %v6491 = vadd.f32 %v6370, %v6401
      %v6492 = vadd.f32 %v6147, %v6393
      %v6493 = vadd.f32 %v6149, %v6397
      %v6494 = vadd.f32 %v6375, %v6401
      %v6495 = vadd.f32 %v6153, %v6393
      %v6496 = vadd.f32 %v6155, %v6397
      %v6497 = vadd.f32 %v6380, %v6401
      %v6498 = vadd.f32 %v6159, %v6393
      %v6499 = vadd.f32 %v6161, %v6397
      %v6500 = vadd.f32 %v6385, %v6401
      %v6501 = vld [vmem:[#allocation10] sm:$0xff]
      %v6502 = vld [vmem:[#allocation10 + $0x8] sm:$0xff]
      %v6503 = vld [vmem:[#allocation10 + $0x10] sm:$0xff]
      %v6504 = vld [vmem:[#allocation10 + $0x18] sm:$0xff]
      %v6505 = vld [vmem:[#allocation10 + $0x20] sm:$0xff]
      %v6506 = vld [vmem:[#allocation10 + $0x28] sm:$0xff]
      %v6507 = vld [vmem:[#allocation10 + $0x30] sm:$0xff]
      %v6508 = vld [vmem:[#allocation10 + $0x38] sm:$0xff]
      %v6509 = vld [vmem:[#allocation10 + $0x40] sm:$0xff]
      %v6510 = vld [vmem:[#allocation10 + $0x48] sm:$0xff]
      %v6511 = vld [vmem:[#allocation10 + $0x50] sm:$0xff]
      %v6512 = vld [vmem:[#allocation10 + $0x58] sm:$0xff]
      %v6513 = vld [vmem:[#allocation10 + $0x60] sm:$0xff]
      %v6514 = vld [vmem:[#allocation10 + $0x68] sm:$0xff]
      %v6515 = vld [vmem:[#allocation10 + $0x70] sm:$0xff]
      %v6516 = vld [vmem:[#allocation10 + $0x78] sm:$0xff]
      %v6517 = vld [vmem:[#allocation10 + $0x80] sm:$0xff]
      %v6518 = vld [vmem:[#allocation10 + $0x88] sm:$0xff]
      %v6519 = vld [vmem:[#allocation10 + $0x90] sm:$0xff]
      %v6520 = vld [vmem:[#allocation10 + $0x98] sm:$0xff]
      %v6521 = vld [vmem:[#allocation10 + $0xa0] sm:$0xff]
      %v6522 = vld [vmem:[#allocation10 + $0xa8] sm:$0xff]
      %v6523 = vld [vmem:[#allocation10 + $0xb0] sm:$0xff]
      %v6524 = vld [vmem:[#allocation10 + $0xb8] sm:$0xff]
      %v6525 = vld [vmem:[#allocation10 + $0xc0] sm:$0xff]
      %v6526 = vld [vmem:[#allocation10 + $0xc8] sm:$0xff]
      %v6527 = vld [vmem:[#allocation10 + $0xd0] sm:$0xff]
      %v6528 = vld [vmem:[#allocation10 + $0xd8] sm:$0xff]
      %v6529 = vld [vmem:[#allocation10 + $0xe0] sm:$0xff]
      %v6530 = vld [vmem:[#allocation10 + $0xe8] sm:$0xff]
      %v6531 = vld [vmem:[#allocation10 + $0xf0] sm:$0xff]
      %v6532 = vld [vmem:[#allocation10 + $0xf8] sm:$0xff]
      %6533 = vmatprep.subr.mxu0 %v6532
      %6534 = vmatpush1.msra.mxu0 %v6531
      %6535 = vmatprep.subr.mxu0 %v6530
      %6536 = vmatpush1.msra.mxu0 %v6529
      %6537 = vmatprep.subr.mxu0 %v6528
      %6538 = vmatpush1.msra.mxu0 %v6527
      %6539 = vmatprep.subr.mxu0 %v6526
      %6540 = vmatpush1.msra.mxu0 %v6525
      %6541 = vmatprep.subr.mxu0 %v6524
      %6542 = vmatpush1.msra.mxu0 %v6523
      %6543 = vmatprep.subr.mxu0 %v6522
      %6544 = vmatpush1.msra.mxu0 %v6521
      %6545 = vmatprep.subr.mxu0 %v6520
      %6546 = vmatpush1.msra.mxu0 %v6519
      %6547 = vmatprep.subr.mxu0 %v6518
      %6548 = vmatpush1.msra.mxu0 %v6517
      %6549 = vmatprep.subr.mxu0 %v6516
      %6550 = vmatpush1.msra.mxu0 %v6515
      %6551 = vmatprep.subr.mxu0 %v6514
      %6552 = vmatpush1.msra.mxu0 %v6513
      %6553 = vmatprep.subr.mxu0 %v6512
      %6554 = vmatpush1.msra.mxu0 %v6511
      %6555 = vmatprep.subr.mxu0 %v6510
      %6556 = vmatpush1.msra.mxu0 %v6509
      %6557 = vmatprep.subr.mxu0 %v6508
      %6558 = vmatpush1.msra.mxu0 %v6507
      %6559 = vmatprep.subr.mxu0 %v6506
      %6560 = vmatpush1.msra.mxu0 %v6505
      %6561 = vmatprep.subr.mxu0 %v6504
      %6562 = vmatpush1.msra.mxu0 %v6503
      %6563 = vmatprep.subr.mxu0 %v6502
      %6564 = vmatpush1.msra.mxu0 %v6501
      %6565 = vmatprep.subr.mxu0 0.0
      %6566 = vmatpush2.msra.mxu0 0.0
      %6567 = vmatprep.subr.mxu0 0.0
      %6568 = vmatpush2.msra.mxu0 0.0
      %6569 = vmatprep.subr.mxu0 0.0
      %6570 = vmatpush2.msra.mxu0 0.0
      %6571 = vmatprep.subr.mxu0 0.0
      %6572 = vmatpush2.msra.mxu0 0.0
      %6573 = vmatprep.subr.mxu0 0.0
      %6574 = vmatpush2.msra.mxu0 0.0
      %6575 = vmatprep.subr.mxu0 0.0
      %6576 = vmatpush2.msra.mxu0 0.0
      %6577 = vmatprep.subr.mxu0 0.0
      %6578 = vmatpush2.msra.mxu0 0.0
      %6579 = vmatprep.subr.mxu0 0.0
      %6580 = vmatpush2.msra.mxu0 0.0
      %6581 = vmatprep.subr.mxu0 0.0
      %6582 = vmatpush2.msra.mxu0 0.0
      %6583 = vmatprep.subr.mxu0 0.0
      %6584 = vmatpush2.msra.mxu0 0.0
      %6585 = vmatprep.subr.mxu0 0.0
      %6586 = vmatpush2.msra.mxu0 0.0
      %6587 = vmatprep.subr.mxu0 0.0
      %6588 = vmatpush2.msra.mxu0 0.0
      %6589 = vmatprep.subr.mxu0 0.0
      %6590 = vmatpush2.msra.mxu0 0.0
      %6591 = vmatprep.subr.mxu0 0.0
      %6592 = vmatpush2.msra.mxu0 0.0
      %6593 = vmatprep.subr.mxu0 0.0
      %6594 = vmatpush2.msra.mxu0 0.0
      %6595 = vmatprep.subr.mxu0 0.0
      %6596 = vmatpush2.msra.mxu0 0.0
      %6597 = vmatprep.mubr.f32.mxu0 0.0
      %6598 = vmatmul.mubr.f32.gmra.mxu0 %v5296
      %v6599 = vpop.f32.mrf.mxu0
      %v6600 = vadd.f32 0.0, %v6599
      %v6601 = vpop.f32.mrf.mxu0
      %v6602 = vadd.f32 0.0, %v6601
      %6603 = vmatprep.mubr.f32.mxu0 0.0
      %6604 = vmatmul.mubr.f32.gmra.mxu0 %v5297
      %v6605 = vpop.f32.mrf.mxu0
      %v6606 = vadd.f32 0.0, %v6605
      %v6607 = vpop.f32.mrf.mxu0
      %v6608 = vadd.f32 0.0, %v6607
      %6609 = vmatprep.mubr.f32.mxu0 0.0
      %6610 = vmatmul.mubr.f32.gmra.mxu0 %v5298
      %v6611 = vpop.f32.mrf.mxu0
      %v6612 = vadd.f32 0.0, %v6611
      %v6613 = vpop.f32.mrf.mxu0
      %v6614 = vadd.f32 0.0, %v6613
      %6615 = vmatprep.mubr.f32.mxu0 0.0
      %6616 = vmatmul.mubr.f32.gmra.mxu0 %v5299
      %v6617 = vpop.f32.mrf.mxu0
      %v6618 = vadd.f32 0.0, %v6617
      %v6619 = vpop.f32.mrf.mxu0
      %v6620 = vadd.f32 0.0, %v6619
      %6621 = vmatprep.mubr.f32.mxu0 0.0
      %6622 = vmatmul.mubr.f32.gmra.mxu0 %v5300
      %v6623 = vpop.f32.mrf.mxu0
      %v6624 = vadd.f32 0.0, %v6623
      %v6625 = vpop.f32.mrf.mxu0
      %v6626 = vadd.f32 0.0, %v6625
      %6627 = vmatprep.mubr.f32.mxu0 0.0
      %6628 = vmatmul.mubr.f32.gmra.mxu0 %v5301
      %v6629 = vpop.f32.mrf.mxu0
      %v6630 = vadd.f32 0.0, %v6629
      %v6631 = vpop.f32.mrf.mxu0
      %v6632 = vadd.f32 0.0, %v6631
      %6633 = vmatprep.mubr.f32.mxu0 0.0
      %6634 = vmatmul.mubr.f32.gmra.mxu0 %v5302
      %v6635 = vpop.f32.mrf.mxu0
      %v6636 = vadd.f32 0.0, %v6635
      %v6637 = vpop.f32.mrf.mxu0
      %v6638 = vadd.f32 0.0, %v6637
      %6639 = vmatprep.mubr.f32.mxu0 0.0
      %6640 = vmatmul.mubr.f32.gmra.mxu0 %v5303
      %v6641 = vpop.f32.mrf.mxu0
      %v6642 = vadd.f32 0.0, %v6641
      %v6643 = vpop.f32.mrf.mxu0
      %v6644 = vadd.f32 0.0, %v6643
      %6645 = vmatprep.mubr.f32.mxu0 0.0
      %6646 = vmatmul.mubr.f32.gmra.mxu0 %v5304
      %v6647 = vpop.f32.mrf.mxu0
      %v6648 = vadd.f32 0.0, %v6647
      %v6649 = vpop.f32.mrf.mxu0
      %v6650 = vadd.f32 0.0, %v6649
      %6651 = vmatprep.mubr.f32.mxu0 0.0
      %6652 = vmatmul.mubr.f32.gmra.mxu0 %v5305
      %v6653 = vpop.f32.mrf.mxu0
      %v6654 = vadd.f32 0.0, %v6653
      %v6655 = vpop.f32.mrf.mxu0
      %v6656 = vadd.f32 0.0, %v6655
      %6657 = vmatprep.mubr.f32.mxu0 0.0
      %6658 = vmatmul.mubr.f32.gmra.mxu0 %v5306
      %v6659 = vpop.f32.mrf.mxu0
      %v6660 = vadd.f32 0.0, %v6659
      %v6661 = vpop.f32.mrf.mxu0
      %v6662 = vadd.f32 0.0, %v6661
      %6663 = vmatprep.mubr.f32.mxu0 0.0
      %6664 = vmatmul.mubr.f32.gmra.mxu0 %v5307
      %v6665 = vpop.f32.mrf.mxu0
      %v6666 = vadd.f32 0.0, %v6665
      %v6667 = vpop.f32.mrf.mxu0
      %v6668 = vadd.f32 0.0, %v6667
      %6669 = vmatprep.mubr.f32.mxu0 0.0
      %6670 = vmatmul.mubr.f32.gmra.mxu0 %v5308
      %v6671 = vpop.f32.mrf.mxu0
      %v6672 = vadd.f32 0.0, %v6671
      %v6673 = vpop.f32.mrf.mxu0
      %v6674 = vadd.f32 0.0, %v6673
      %6675 = vmatprep.mubr.f32.mxu0 0.0
      %6676 = vmatmul.mubr.f32.gmra.mxu0 %v5309
      %v6677 = vpop.f32.mrf.mxu0
      %v6678 = vadd.f32 0.0, %v6677
      %v6679 = vpop.f32.mrf.mxu0
      %v6680 = vadd.f32 0.0, %v6679
      %6681 = vmatprep.mubr.f32.mxu0 0.0
      %6682 = vmatmul.mubr.f32.gmra.mxu0 %v5310
      %v6683 = vpop.f32.mrf.mxu0
      %v6684 = vadd.f32 0.0, %v6683
      %v6685 = vpop.f32.mrf.mxu0
      %v6686 = vadd.f32 0.0, %v6685
      %6687 = vmatprep.mubr.f32.mxu0 0.0
      %6688 = vmatmul.mubr.f32.gmra.mxu0 %v5311
      %v6689 = vpop.f32.mrf.mxu0
      %v6690 = vadd.f32 0.0, %v6689
      %v6691 = vpop.f32.mrf.mxu0
      %v6692 = vadd.f32 0.0, %v6691
      %6693 = vmatprep.mubr.f32.mxu0 0.0
      %6694 = vmatmul.mubr.f32.gmra.mxu0 %v5312
      %v6695 = vpop.f32.mrf.mxu0
      %v6696 = vadd.f32 0.0, %v6695
      %v6697 = vpop.f32.mrf.mxu0
      %v6698 = vadd.f32 0.0, %v6697
      %6699 = vmatprep.mubr.f32.mxu0 0.0
      %6700 = vmatmul.mubr.f32.gmra.mxu0 %v5313
      %v6701 = vpop.f32.mrf.mxu0
      %v6702 = vadd.f32 0.0, %v6701
      %v6703 = vpop.f32.mrf.mxu0
      %v6704 = vadd.f32 0.0, %v6703
      %6705 = vmatprep.mubr.f32.mxu0 0.0
      %6706 = vmatmul.mubr.f32.gmra.mxu0 %v5314
      %v6707 = vpop.f32.mrf.mxu0
      %v6708 = vadd.f32 0.0, %v6707
      %v6709 = vpop.f32.mrf.mxu0
      %v6710 = vadd.f32 0.0, %v6709
      %6711 = vmatprep.mubr.f32.mxu0 0.0
      %6712 = vmatmul.mubr.f32.gmra.mxu0 %v5315
      %v6713 = vpop.f32.mrf.mxu0
      %v6714 = vadd.f32 0.0, %v6713
      %v6715 = vpop.f32.mrf.mxu0
      %v6716 = vadd.f32 0.0, %v6715
      %6717 = vmatprep.mubr.f32.mxu0 0.0
      %6718 = vmatmul.mubr.f32.gmra.mxu0 %v5316
      %v6719 = vpop.f32.mrf.mxu0
      %v6720 = vadd.f32 0.0, %v6719
      %v6721 = vpop.f32.mrf.mxu0
      %v6722 = vadd.f32 0.0, %v6721
      %6723 = vmatprep.mubr.f32.mxu0 0.0
      %6724 = vmatmul.mubr.f32.gmra.mxu0 %v5317
      %v6725 = vpop.f32.mrf.mxu0
      %v6726 = vadd.f32 0.0, %v6725
      %v6727 = vpop.f32.mrf.mxu0
      %v6728 = vadd.f32 0.0, %v6727
      %6729 = vmatprep.mubr.f32.mxu0 0.0
      %6730 = vmatmul.mubr.f32.gmra.mxu0 %v5318
      %v6731 = vpop.f32.mrf.mxu0
      %v6732 = vadd.f32 0.0, %v6731
      %v6733 = vpop.f32.mrf.mxu0
      %v6734 = vadd.f32 0.0, %v6733
      %6735 = vmatprep.mubr.f32.mxu0 0.0
      %6736 = vmatmul.mubr.f32.gmra.mxu0 %v5319
      %v6737 = vpop.f32.mrf.mxu0
      %v6738 = vadd.f32 0.0, %v6737
      %v6739 = vpop.f32.mrf.mxu0
      %v6740 = vadd.f32 0.0, %v6739
      %6741 = vmatprep.mubr.f32.mxu0 0.0
      %6742 = vmatmul.mubr.f32.gmra.mxu0 %v5320
      %v6743 = vpop.f32.mrf.mxu0
      %v6744 = vadd.f32 0.0, %v6743
      %v6745 = vpop.f32.mrf.mxu0
      %v6746 = vadd.f32 0.0, %v6745
      %6747 = vmatprep.mubr.f32.mxu0 0.0
      %6748 = vmatmul.mubr.f32.gmra.mxu0 %v5321
      %v6749 = vpop.f32.mrf.mxu0
      %v6750 = vadd.f32 0.0, %v6749
      %v6751 = vpop.f32.mrf.mxu0
      %v6752 = vadd.f32 0.0, %v6751
      %6753 = vmatprep.mubr.f32.mxu0 0.0
      %6754 = vmatmul.mubr.f32.gmra.mxu0 %v5322
      %v6755 = vpop.f32.mrf.mxu0
      %v6756 = vadd.f32 0.0, %v6755
      %v6757 = vpop.f32.mrf.mxu0
      %v6758 = vadd.f32 0.0, %v6757
      %6759 = vmatprep.mubr.f32.mxu0 0.0
      %6760 = vmatmul.mubr.f32.gmra.mxu0 %v5323
      %v6761 = vpop.f32.mrf.mxu0
      %v6762 = vadd.f32 0.0, %v6761
      %v6763 = vpop.f32.mrf.mxu0
      %v6764 = vadd.f32 0.0, %v6763
      %6765 = vmatprep.mubr.f32.mxu0 0.0
      %6766 = vmatmul.mubr.f32.gmra.mxu0 %v5324
      %v6767 = vpop.f32.mrf.mxu0
      %v6768 = vadd.f32 0.0, %v6767
      %v6769 = vpop.f32.mrf.mxu0
      %v6770 = vadd.f32 0.0, %v6769
      %6771 = vmatprep.mubr.f32.mxu0 0.0
      %6772 = vmatmul.mubr.f32.gmra.mxu0 %v5325
      %v6773 = vpop.f32.mrf.mxu0
      %v6774 = vadd.f32 0.0, %v6773
      %v6775 = vpop.f32.mrf.mxu0
      %v6776 = vadd.f32 0.0, %v6775
      %6777 = vmatprep.mubr.f32.mxu0 0.0
      %6778 = vmatmul.mubr.f32.gmra.mxu0 %v5326
      %v6779 = vpop.f32.mrf.mxu0
      %v6780 = vadd.f32 0.0, %v6779
      %v6781 = vpop.f32.mrf.mxu0
      %v6782 = vadd.f32 0.0, %v6781
      %6783 = vmatprep.mubr.f32.mxu0 0.0
      %6784 = vmatmul.mubr.f32.gmra.mxu0 %v5327
      %v6785 = vpop.f32.mrf.mxu0
      %v6786 = vadd.f32 0.0, %v6785
      %v6787 = vpop.f32.mrf.mxu0
      %v6788 = vadd.f32 0.0, %v6787
      %6789 = vdwg.mxu0
      %v6790 = vadd.f32 %v6405, %v6600
      %v6791 = vadd.f32 %v6406, %v6602
      %v6792 = vadd.f32 %v6408, %v6606
      %v6793 = vadd.f32 %v6409, %v6608
      %v6794 = vadd.f32 %v6411, %v6612
      %v6795 = vadd.f32 %v6412, %v6614
      %v6796 = vadd.f32 %v6414, %v6618
      %v6797 = vadd.f32 %v6415, %v6620
      %v6798 = vadd.f32 %v6417, %v6624
      %v6799 = vadd.f32 %v6418, %v6626
      %v6800 = vadd.f32 %v6420, %v6630
      %v6801 = vadd.f32 %v6421, %v6632
      %v6802 = vadd.f32 %v6423, %v6636
      %v6803 = vadd.f32 %v6424, %v6638
      %v6804 = vadd.f32 %v6426, %v6642
      %v6805 = vadd.f32 %v6427, %v6644
      %v6806 = vadd.f32 %v6429, %v6648
      %v6807 = vadd.f32 %v6430, %v6650
      %v6808 = vadd.f32 %v6432, %v6654
      %v6809 = vadd.f32 %v6433, %v6656
      %v6810 = vadd.f32 %v6435, %v6660
      %v6811 = vadd.f32 %v6436, %v6662
      %v6812 = vadd.f32 %v6438, %v6666
      %v6813 = vadd.f32 %v6439, %v6668
      %v6814 = vadd.f32 %v6441, %v6672
      %v6815 = vadd.f32 %v6442, %v6674
      %v6816 = vadd.f32 %v6444, %v6678
      %v6817 = vadd.f32 %v6445, %v6680
      %v6818 = vadd.f32 %v6447, %v6684
      %v6819 = vadd.f32 %v6448, %v6686
      %v6820 = vadd.f32 %v6450, %v6690
      %v6821 = vadd.f32 %v6451, %v6692
      %v6822 = vadd.f32 %v6453, %v6696
      %v6823 = vadd.f32 %v6454, %v6698
      %v6824 = vadd.f32 %v6456, %v6702
      %v6825 = vadd.f32 %v6457, %v6704
      %v6826 = vadd.f32 %v6459, %v6708
      %v6827 = vadd.f32 %v6460, %v6710
      %v6828 = vadd.f32 %v6462, %v6714
      %v6829 = vadd.f32 %v6463, %v6716
      %v6830 = vadd.f32 %v6465, %v6720
      %v6831 = vadd.f32 %v6466, %v6722
      %v6832 = vadd.f32 %v6468, %v6726
      %v6833 = vadd.f32 %v6469, %v6728
      %v6834 = vadd.f32 %v6471, %v6732
      %v6835 = vadd.f32 %v6472, %v6734
      %v6836 = vadd.f32 %v6474, %v6738
      %v6837 = vadd.f32 %v6475, %v6740
      %v6838 = vadd.f32 %v6477, %v6744
      %v6839 = vadd.f32 %v6478, %v6746
      %v6840 = vadd.f32 %v6480, %v6750
      %v6841 = vadd.f32 %v6481, %v6752
      %v6842 = vadd.f32 %v6483, %v6756
      %v6843 = vadd.f32 %v6484, %v6758
      %v6844 = vadd.f32 %v6486, %v6762
      %v6845 = vadd.f32 %v6487, %v6764
      %v6846 = vadd.f32 %v6489, %v6768
      %v6847 = vadd.f32 %v6490, %v6770
      %v6848 = vadd.f32 %v6492, %v6774
      %v6849 = vadd.f32 %v6493, %v6776
      %v6850 = vadd.f32 %v6495, %v6780
      %v6851 = vadd.f32 %v6496, %v6782
      %v6852 = vadd.f32 %v6498, %v6786
      %v6853 = vadd.f32 %v6499, %v6788
      %v6854 = vxor.u32 %v6790, 2147483648
      %v6855 = vxor.u32 %v6792, 2147483648
      %v6856 = vxor.u32 %v6794, 2147483648
      %v6857 = vxor.u32 %v6796, 2147483648
      %v6858 = vxor.u32 %v6798, 2147483648
      %v6859 = vxor.u32 %v6800, 2147483648
      %v6860 = vxor.u32 %v6802, 2147483648
      %v6861 = vxor.u32 %v6804, 2147483648
      %v6862 = vxor.u32 %v6806, 2147483648
      %v6863 = vxor.u32 %v6808, 2147483648
      %v6864 = vxor.u32 %v6810, 2147483648
      %v6865 = vxor.u32 %v6812, 2147483648
      %v6866 = vxor.u32 %v6814, 2147483648
      %v6867 = vxor.u32 %v6816, 2147483648
      %v6868 = vxor.u32 %v6818, 2147483648
      %v6869 = vxor.u32 %v6820, 2147483648
      %v6870 = vxor.u32 %v6822, 2147483648
      %v6871 = vxor.u32 %v6824, 2147483648
      %v6872 = vxor.u32 %v6826, 2147483648
      %v6873 = vxor.u32 %v6828, 2147483648
      %v6874 = vxor.u32 %v6830, 2147483648
      %v6875 = vxor.u32 %v6832, 2147483648
      %v6876 = vxor.u32 %v6834, 2147483648
      %v6877 = vxor.u32 %v6836, 2147483648
      %v6878 = vxor.u32 %v6838, 2147483648
      %v6879 = vxor.u32 %v6840, 2147483648
      %v6880 = vxor.u32 %v6842, 2147483648
      %v6881 = vxor.u32 %v6844, 2147483648
      %v6882 = vxor.u32 %v6846, 2147483648
      %v6883 = vxor.u32 %v6848, 2147483648
      %v6884 = vxor.u32 %v6850, 2147483648
      %v6885 = vxor.u32 %v6852, 2147483648
      %v6886 = vmul.f32 %v6854, 1.442695
      %v6887 = vpow.pop %v6886
      %v6888 = vmul.f32 %v6855, 1.442695
      %v6889 = vpow.pop %v6888
      %v6890 = vmul.f32 %v6856, 1.442695
      %v6891 = vpow.pop %v6890
      %v6892 = vmul.f32 %v6857, 1.442695
      %v6893 = vpow.pop %v6892
      %v6894 = vmul.f32 %v6858, 1.442695
      %v6895 = vpow.pop %v6894
      %v6896 = vmul.f32 %v6859, 1.442695
      %v6897 = vpow.pop %v6896
      %v6898 = vmul.f32 %v6860, 1.442695
      %v6899 = vpow.pop %v6898
      %v6900 = vmul.f32 %v6861, 1.442695
      %v6901 = vpow.pop %v6900
      %v6902 = vmul.f32 %v6862, 1.442695
      %v6903 = vpow.pop %v6902
      %v6904 = vmul.f32 %v6863, 1.442695
      %v6905 = vpow.pop %v6904
      %v6906 = vmul.f32 %v6864, 1.442695
      %v6907 = vpow.pop %v6906
      %v6908 = vmul.f32 %v6865, 1.442695
      %v6909 = vpow.pop %v6908
      %v6910 = vmul.f32 %v6866, 1.442695
      %v6911 = vpow.pop %v6910
      %v6912 = vmul.f32 %v6867, 1.442695
      %v6913 = vpow.pop %v6912
      %v6914 = vmul.f32 %v6868, 1.442695
      %v6915 = vpow.pop %v6914
      %v6916 = vmul.f32 %v6869, 1.442695
      %v6917 = vpow.pop %v6916
      %v6918 = vmul.f32 %v6870, 1.442695
      %v6919 = vpow.pop %v6918
      %v6920 = vmul.f32 %v6871, 1.442695
      %v6921 = vpow.pop %v6920
      %v6922 = vmul.f32 %v6872, 1.442695
      %v6923 = vpow.pop %v6922
      %v6924 = vmul.f32 %v6873, 1.442695
      %v6925 = vpow.pop %v6924
      %v6926 = vmul.f32 %v6874, 1.442695
      %v6927 = vpow.pop %v6926
      %v6928 = vmul.f32 %v6875, 1.442695
      %v6929 = vpow.pop %v6928
      %v6930 = vmul.f32 %v6876, 1.442695
      %v6931 = vpow.pop %v6930
      %v6932 = vmul.f32 %v6877, 1.442695
      %v6933 = vpow.pop %v6932
      %v6934 = vmul.f32 %v6878, 1.442695
      %v6935 = vpow.pop %v6934
      %v6936 = vmul.f32 %v6879, 1.442695
      %v6937 = vpow.pop %v6936
      %v6938 = vmul.f32 %v6880, 1.442695
      %v6939 = vpow.pop %v6938
      %v6940 = vmul.f32 %v6881, 1.442695
      %v6941 = vpow.pop %v6940
      %v6942 = vmul.f32 %v6882, 1.442695
      %v6943 = vpow.pop %v6942
      %v6944 = vmul.f32 %v6883, 1.442695
      %v6945 = vpow.pop %v6944
      %v6946 = vmul.f32 %v6884, 1.442695
      %v6947 = vpow.pop %v6946
      %v6948 = vmul.f32 %v6885, 1.442695
      %v6949 = vpow.pop %v6948
      %v6950 = vadd.f32 %v6887, 1.0
      %v6951 = vadd.f32 %v6889, 1.0
      %v6952 = vadd.f32 %v6891, 1.0
      %v6953 = vadd.f32 %v6893, 1.0
      %v6954 = vadd.f32 %v6895, 1.0
      %v6955 = vadd.f32 %v6897, 1.0
      %v6956 = vadd.f32 %v6899, 1.0
      %v6957 = vadd.f32 %v6901, 1.0
      %v6958 = vadd.f32 %v6903, 1.0
      %v6959 = vadd.f32 %v6905, 1.0
      %v6960 = vadd.f32 %v6907, 1.0
      %v6961 = vadd.f32 %v6909, 1.0
      %v6962 = vadd.f32 %v6911, 1.0
      %v6963 = vadd.f32 %v6913, 1.0
      %v6964 = vadd.f32 %v6915, 1.0
      %v6965 = vadd.f32 %v6917, 1.0
      %v6966 = vadd.f32 %v6919, 1.0
      %v6967 = vadd.f32 %v6921, 1.0
      %v6968 = vadd.f32 %v6923, 1.0
      %v6969 = vadd.f32 %v6925, 1.0
      %v6970 = vadd.f32 %v6927, 1.0
      %v6971 = vadd.f32 %v6929, 1.0
      %v6972 = vadd.f32 %v6931, 1.0
      %v6973 = vadd.f32 %v6933, 1.0
      %v6974 = vadd.f32 %v6935, 1.0
      %v6975 = vadd.f32 %v6937, 1.0
      %v6976 = vadd.f32 %v6939, 1.0
      %v6977 = vadd.f32 %v6941, 1.0
      %v6978 = vadd.f32 %v6943, 1.0
      %v6979 = vadd.f32 %v6945, 1.0
      %v6980 = vadd.f32 %v6947, 1.0
      %v6981 = vadd.f32 %v6949, 1.0
      %v6982 = vrcp.pop %v6950
      %v6983 = vmul.f32 1.0, %v6982
      %v6984 = vrcp.pop %v6951
      %v6985 = vmul.f32 1.0, %v6984
      %v6986 = vrcp.pop %v6952
      %v6987 = vmul.f32 1.0, %v6986
      %v6988 = vrcp.pop %v6953
      %v6989 = vmul.f32 1.0, %v6988
      %v6990 = vrcp.pop %v6954
      %v6991 = vmul.f32 1.0, %v6990
      %v6992 = vrcp.pop %v6955
      %v6993 = vmul.f32 1.0, %v6992
      %v6994 = vrcp.pop %v6956
      %v6995 = vmul.f32 1.0, %v6994
      %v6996 = vrcp.pop %v6957
      %v6997 = vmul.f32 1.0, %v6996
      %v6998 = vrcp.pop %v6958
      %v6999 = vmul.f32 1.0, %v6998
      %v7000 = vrcp.pop %v6959
      %v7001 = vmul.f32 1.0, %v7000
      %v7002 = vrcp.pop %v6960
      %v7003 = vmul.f32 1.0, %v7002
      %v7004 = vrcp.pop %v6961
      %v7005 = vmul.f32 1.0, %v7004
      %v7006 = vrcp.pop %v6962
      %v7007 = vmul.f32 1.0, %v7006
      %v7008 = vrcp.pop %v6963
      %v7009 = vmul.f32 1.0, %v7008
      %v7010 = vrcp.pop %v6964
      %v7011 = vmul.f32 1.0, %v7010
      %v7012 = vrcp.pop %v6965
      %v7013 = vmul.f32 1.0, %v7012
      %v7014 = vrcp.pop %v6966
      %v7015 = vmul.f32 1.0, %v7014
      %v7016 = vrcp.pop %v6967
      %v7017 = vmul.f32 1.0, %v7016
      %v7018 = vrcp.pop %v6968
      %v7019 = vmul.f32 1.0, %v7018
      %v7020 = vrcp.pop %v6969
      %v7021 = vmul.f32 1.0, %v7020
      %v7022 = vrcp.pop %v6970
      %v7023 = vmul.f32 1.0, %v7022
      %v7024 = vrcp.pop %v6971
      %v7025 = vmul.f32 1.0, %v7024
      %v7026 = vrcp.pop %v6972
      %v7027 = vmul.f32 1.0, %v7026
      %v7028 = vrcp.pop %v6973
      %v7029 = vmul.f32 1.0, %v7028
      %v7030 = vrcp.pop %v6974
      %v7031 = vmul.f32 1.0, %v7030
      %v7032 = vrcp.pop %v6975
      %v7033 = vmul.f32 1.0, %v7032
      %v7034 = vrcp.pop %v6976
      %v7035 = vmul.f32 1.0, %v7034
      %v7036 = vrcp.pop %v6977
      %v7037 = vmul.f32 1.0, %v7036
      %v7038 = vrcp.pop %v6978
      %v7039 = vmul.f32 1.0, %v7038
      %v7040 = vrcp.pop %v6979
      %v7041 = vmul.f32 1.0, %v7040
      %v7042 = vrcp.pop %v6980
      %v7043 = vmul.f32 1.0, %v7042
      %v7044 = vrcp.pop %v6981
      %v7045 = vmul.f32 1.0, %v7044
      %v7046 = vxor.u32 %v6791, 2147483648
      %v7047 = vxor.u32 %v6793, 2147483648
      %v7048 = vxor.u32 %v6795, 2147483648
      %v7049 = vxor.u32 %v6797, 2147483648
      %v7050 = vxor.u32 %v6799, 2147483648
      %v7051 = vxor.u32 %v6801, 2147483648
      %v7052 = vxor.u32 %v6803, 2147483648
      %v7053 = vxor.u32 %v6805, 2147483648
      %v7054 = vxor.u32 %v6807, 2147483648
      %v7055 = vxor.u32 %v6809, 2147483648
      %v7056 = vxor.u32 %v6811, 2147483648
      %v7057 = vxor.u32 %v6813, 2147483648
      %v7058 = vxor.u32 %v6815, 2147483648
      %v7059 = vxor.u32 %v6817, 2147483648
      %v7060 = vxor.u32 %v6819, 2147483648
      %v7061 = vxor.u32 %v6821, 2147483648
      %v7062 = vxor.u32 %v6823, 2147483648
      %v7063 = vxor.u32 %v6825, 2147483648
      %v7064 = vxor.u32 %v6827, 2147483648
      %v7065 = vxor.u32 %v6829, 2147483648
      %v7066 = vxor.u32 %v6831, 2147483648
      %v7067 = vxor.u32 %v6833, 2147483648
      %v7068 = vxor.u32 %v6835, 2147483648
      %v7069 = vxor.u32 %v6837, 2147483648
      %v7070 = vxor.u32 %v6839, 2147483648
      %v7071 = vxor.u32 %v6841, 2147483648
      %v7072 = vxor.u32 %v6843, 2147483648
      %v7073 = vxor.u32 %v6845, 2147483648
      %v7074 = vxor.u32 %v6847, 2147483648
      %v7075 = vxor.u32 %v6849, 2147483648
      %v7076 = vxor.u32 %v6851, 2147483648
      %v7077 = vxor.u32 %v6853, 2147483648
      %v7078 = vmul.f32 %v7046, 1.442695
      %v7079 = vpow.pop %v7078
      %v7080 = vmul.f32 %v7047, 1.442695
      %v7081 = vpow.pop %v7080
      %v7082 = vmul.f32 %v7048, 1.442695
      %v7083 = vpow.pop %v7082
      %v7084 = vmul.f32 %v7049, 1.442695
      %v7085 = vpow.pop %v7084
      %v7086 = vmul.f32 %v7050, 1.442695
      %v7087 = vpow.pop %v7086
      %v7088 = vmul.f32 %v7051, 1.442695
      %v7089 = vpow.pop %v7088
      %v7090 = vmul.f32 %v7052, 1.442695
      %v7091 = vpow.pop %v7090
      %v7092 = vmul.f32 %v7053, 1.442695
      %v7093 = vpow.pop %v7092
      %v7094 = vmul.f32 %v7054, 1.442695
      %v7095 = vpow.pop %v7094
      %v7096 = vmul.f32 %v7055, 1.442695
      %v7097 = vpow.pop %v7096
      %v7098 = vmul.f32 %v7056, 1.442695
      %v7099 = vpow.pop %v7098
      %v7100 = vmul.f32 %v7057, 1.442695
      %v7101 = vpow.pop %v7100
      %v7102 = vmul.f32 %v7058, 1.442695
      %v7103 = vpow.pop %v7102
      %v7104 = vmul.f32 %v7059, 1.442695
      %v7105 = vpow.pop %v7104
      %v7106 = vmul.f32 %v7060, 1.442695
      %v7107 = vpow.pop %v7106
      %v7108 = vmul.f32 %v7061, 1.442695
      %v7109 = vpow.pop %v7108
      %v7110 = vmul.f32 %v7062, 1.442695
      %v7111 = vpow.pop %v7110
      %v7112 = vmul.f32 %v7063, 1.442695
      %v7113 = vpow.pop %v7112
      %v7114 = vmul.f32 %v7064, 1.442695
      %v7115 = vpow.pop %v7114
      %v7116 = vmul.f32 %v7065, 1.442695
      %v7117 = vpow.pop %v7116
      %v7118 = vmul.f32 %v7066, 1.442695
      %v7119 = vpow.pop %v7118
      %v7120 = vmul.f32 %v7067, 1.442695
      %v7121 = vpow.pop %v7120
      %v7122 = vmul.f32 %v7068, 1.442695
      %v7123 = vpow.pop %v7122
      %v7124 = vmul.f32 %v7069, 1.442695
      %v7125 = vpow.pop %v7124
      %v7126 = vmul.f32 %v7070, 1.442695
      %v7127 = vpow.pop %v7126
      %v7128 = vmul.f32 %v7071, 1.442695
      %v7129 = vpow.pop %v7128
      %v7130 = vmul.f32 %v7072, 1.442695
      %v7131 = vpow.pop %v7130
      %v7132 = vmul.f32 %v7073, 1.442695
      %v7133 = vpow.pop %v7132
      %v7134 = vmul.f32 %v7074, 1.442695
      %v7135 = vpow.pop %v7134
      %v7136 = vmul.f32 %v7075, 1.442695
      %v7137 = vpow.pop %v7136
      %v7138 = vmul.f32 %v7076, 1.442695
      %v7139 = vpow.pop %v7138
      %v7140 = vmul.f32 %v7077, 1.442695
      %v7141 = vpow.pop %v7140
      %v7142 = vadd.f32 %v7079, 1.0
      %v7143 = vadd.f32 %v7081, 1.0
      %v7144 = vadd.f32 %v7083, 1.0
      %v7145 = vadd.f32 %v7085, 1.0
      %v7146 = vadd.f32 %v7087, 1.0
      %v7147 = vadd.f32 %v7089, 1.0
      %v7148 = vadd.f32 %v7091, 1.0
      %v7149 = vadd.f32 %v7093, 1.0
      %v7150 = vadd.f32 %v7095, 1.0
      %v7151 = vadd.f32 %v7097, 1.0
      %v7152 = vadd.f32 %v7099, 1.0
      %v7153 = vadd.f32 %v7101, 1.0
      %v7154 = vadd.f32 %v7103, 1.0
      %v7155 = vadd.f32 %v7105, 1.0
      %v7156 = vadd.f32 %v7107, 1.0
      %v7157 = vadd.f32 %v7109, 1.0
      %v7158 = vadd.f32 %v7111, 1.0
      %v7159 = vadd.f32 %v7113, 1.0
      %v7160 = vadd.f32 %v7115, 1.0
      %v7161 = vadd.f32 %v7117, 1.0
      %v7162 = vadd.f32 %v7119, 1.0
      %v7163 = vadd.f32 %v7121, 1.0
      %v7164 = vadd.f32 %v7123, 1.0
      %v7165 = vadd.f32 %v7125, 1.0
      %v7166 = vadd.f32 %v7127, 1.0
      %v7167 = vadd.f32 %v7129, 1.0
      %v7168 = vadd.f32 %v7131, 1.0
      %v7169 = vadd.f32 %v7133, 1.0
      %v7170 = vadd.f32 %v7135, 1.0
      %v7171 = vadd.f32 %v7137, 1.0
      %v7172 = vadd.f32 %v7139, 1.0
      %v7173 = vadd.f32 %v7141, 1.0
      %v7174 = vrcp.pop %v7142
      %v7175 = vmul.f32 1.0, %v7174
      %v7176 = vrcp.pop %v7143
      %v7177 = vmul.f32 1.0, %v7176
      %v7178 = vrcp.pop %v7144
      %v7179 = vmul.f32 1.0, %v7178
      %v7180 = vrcp.pop %v7145
      %v7181 = vmul.f32 1.0, %v7180
      %v7182 = vrcp.pop %v7146
      %v7183 = vmul.f32 1.0, %v7182
      %v7184 = vrcp.pop %v7147
      %v7185 = vmul.f32 1.0, %v7184
      %v7186 = vrcp.pop %v7148
      %v7187 = vmul.f32 1.0, %v7186
      %v7188 = vrcp.pop %v7149
      %v7189 = vmul.f32 1.0, %v7188
      %v7190 = vrcp.pop %v7150
      %v7191 = vmul.f32 1.0, %v7190
      %v7192 = vrcp.pop %v7151
      %v7193 = vmul.f32 1.0, %v7192
      %v7194 = vrcp.pop %v7152
      %v7195 = vmul.f32 1.0, %v7194
      %v7196 = vrcp.pop %v7153
      %v7197 = vmul.f32 1.0, %v7196
      %v7198 = vrcp.pop %v7154
      %v7199 = vmul.f32 1.0, %v7198
      %v7200 = vrcp.pop %v7155
      %v7201 = vmul.f32 1.0, %v7200
      %v7202 = vrcp.pop %v7156
      %v7203 = vmul.f32 1.0, %v7202
      %v7204 = vrcp.pop %v7157
      %v7205 = vmul.f32 1.0, %v7204
      %v7206 = vrcp.pop %v7158
      %v7207 = vmul.f32 1.0, %v7206
      %v7208 = vrcp.pop %v7159
      %v7209 = vmul.f32 1.0, %v7208
      %v7210 = vrcp.pop %v7160
      %v7211 = vmul.f32 1.0, %v7210
      %v7212 = vrcp.pop %v7161
      %v7213 = vmul.f32 1.0, %v7212
      %v7214 = vrcp.pop %v7162
      %v7215 = vmul.f32 1.0, %v7214
      %v7216 = vrcp.pop %v7163
      %v7217 = vmul.f32 1.0, %v7216
      %v7218 = vrcp.pop %v7164
      %v7219 = vmul.f32 1.0, %v7218
      %v7220 = vrcp.pop %v7165
      %v7221 = vmul.f32 1.0, %v7220
      %v7222 = vrcp.pop %v7166
      %v7223 = vmul.f32 1.0, %v7222
      %v7224 = vrcp.pop %v7167
      %v7225 = vmul.f32 1.0, %v7224
      %v7226 = vrcp.pop %v7168
      %v7227 = vmul.f32 1.0, %v7226
      %v7228 = vrcp.pop %v7169
      %v7229 = vmul.f32 1.0, %v7228
      %v7230 = vrcp.pop %v7170
      %v7231 = vmul.f32 1.0, %v7230
      %v7232 = vrcp.pop %v7171
      %v7233 = vmul.f32 1.0, %v7232
      %v7234 = vrcp.pop %v7172
      %v7235 = vmul.f32 1.0, %v7234
      %v7236 = vrcp.pop %v7173
      %v7237 = vmul.f32 1.0, %v7236
      %v7238 = vmul.f32 %v6983, %v5296
      %v7239 = vmul.f32 %v6985, %v5297
      %v7240 = vmul.f32 %v6987, %v5298
      %v7241 = vmul.f32 %v6989, %v5299
      %v7242 = vmul.f32 %v6991, %v5300
      %v7243 = vmul.f32 %v6993, %v5301
      %v7244 = vmul.f32 %v6995, %v5302
      %v7245 = vmul.f32 %v6997, %v5303
      %v7246 = vmul.f32 %v6999, %v5304
      %v7247 = vmul.f32 %v7001, %v5305
      %v7248 = vmul.f32 %v7003, %v5306
      %v7249 = vmul.f32 %v7005, %v5307
      %v7250 = vmul.f32 %v7007, %v5308
      %v7251 = vmul.f32 %v7009, %v5309
      %v7252 = vmul.f32 %v7011, %v5310
      %v7253 = vmul.f32 %v7013, %v5311
      %v7254 = vmul.f32 %v7015, %v5312
      %v7255 = vmul.f32 %v7017, %v5313
      %v7256 = vmul.f32 %v7019, %v5314
      %v7257 = vmul.f32 %v7021, %v5315
      %v7258 = vmul.f32 %v7023, %v5316
      %v7259 = vmul.f32 %v7025, %v5317
      %v7260 = vmul.f32 %v7027, %v5318
      %v7261 = vmul.f32 %v7029, %v5319
      %v7262 = vmul.f32 %v7031, %v5320
      %v7263 = vmul.f32 %v7033, %v5321
      %v7264 = vmul.f32 %v7035, %v5322
      %v7265 = vmul.f32 %v7037, %v5323
      %v7266 = vmul.f32 %v7039, %v5324
      %v7267 = vmul.f32 %v7041, %v5325
      %v7268 = vmul.f32 %v7043, %v5326
      %v7269 = vmul.f32 %v7045, %v5327
      %v7270 = vld [vmem:[#allocation12] sm:$0xff]
      %v7271 = vld [vmem:[#allocation12 + $0x8] sm:$0xff]
      %v7272 = vld [vmem:[#allocation12 + $0x10] sm:$0xff]
      %v7273 = vld [vmem:[#allocation12 + $0x18] sm:$0xff]
      %v7274 = vld [vmem:[#allocation12 + $0x20] sm:$0xff]
      %v7275 = vld [vmem:[#allocation12 + $0x28] sm:$0xff]
      %v7276 = vld [vmem:[#allocation12 + $0x30] sm:$0xff]
      %v7277 = vld [vmem:[#allocation12 + $0x38] sm:$0xff]
      %v7278 = vld [vmem:[#allocation12 + $0x40] sm:$0xff]
      %v7279 = vld [vmem:[#allocation12 + $0x48] sm:$0xff]
      %v7280 = vld [vmem:[#allocation12 + $0x50] sm:$0xff]
      %v7281 = vld [vmem:[#allocation12 + $0x58] sm:$0xff]
      %v7282 = vld [vmem:[#allocation12 + $0x60] sm:$0xff]
      %v7283 = vld [vmem:[#allocation12 + $0x68] sm:$0xff]
      %v7284 = vld [vmem:[#allocation12 + $0x70] sm:$0xff]
      %v7285 = vld [vmem:[#allocation12 + $0x78] sm:$0xff]
      %7286 = vmatprep.subr.mxu0 0.0
      %7287 = vmatpush1.msra.mxu0 %v7285
      %7288 = vmatprep.subr.mxu0 0.0
      %7289 = vmatpush1.msra.mxu0 %v7284
      %7290 = vmatprep.subr.mxu0 0.0
      %7291 = vmatpush1.msra.mxu0 %v7283
      %7292 = vmatprep.subr.mxu0 0.0
      %7293 = vmatpush1.msra.mxu0 %v7282
      %7294 = vmatprep.subr.mxu0 0.0
      %7295 = vmatpush1.msra.mxu0 %v7281
      %7296 = vmatprep.subr.mxu0 0.0
      %7297 = vmatpush1.msra.mxu0 %v7280
      %7298 = vmatprep.subr.mxu0 0.0
      %7299 = vmatpush1.msra.mxu0 %v7279
      %7300 = vmatprep.subr.mxu0 0.0
      %7301 = vmatpush1.msra.mxu0 %v7278
      %7302 = vmatprep.subr.mxu0 0.0
      %7303 = vmatpush1.msra.mxu0 %v7277
      %7304 = vmatprep.subr.mxu0 0.0
      %7305 = vmatpush1.msra.mxu0 %v7276
      %7306 = vmatprep.subr.mxu0 0.0
      %7307 = vmatpush1.msra.mxu0 %v7275
      %7308 = vmatprep.subr.mxu0 0.0
      %7309 = vmatpush1.msra.mxu0 %v7274
      %7310 = vmatprep.subr.mxu0 0.0
      %7311 = vmatpush1.msra.mxu0 %v7273
      %7312 = vmatprep.subr.mxu0 0.0
      %7313 = vmatpush1.msra.mxu0 %v7272
      %7314 = vmatprep.subr.mxu0 0.0
      %7315 = vmatpush1.msra.mxu0 %v7271
      %7316 = vmatprep.subr.mxu0 0.0
      %7317 = vmatpush1.msra.mxu0 %v7270
      %7318 = vmatprep.subr.mxu0 0.0
      %7319 = vmatpush2.msra.mxu0 0.0
      %7320 = vmatprep.subr.mxu0 0.0
      %7321 = vmatpush2.msra.mxu0 0.0
      %7322 = vmatprep.subr.mxu0 0.0
      %7323 = vmatpush2.msra.mxu0 0.0
      %7324 = vmatprep.subr.mxu0 0.0
      %7325 = vmatpush2.msra.mxu0 0.0
      %7326 = vmatprep.subr.mxu0 0.0
      %7327 = vmatpush2.msra.mxu0 0.0
      %7328 = vmatprep.subr.mxu0 0.0
      %7329 = vmatpush2.msra.mxu0 0.0
      %7330 = vmatprep.subr.mxu0 0.0
      %7331 = vmatpush2.msra.mxu0 0.0
      %7332 = vmatprep.subr.mxu0 0.0
      %7333 = vmatpush2.msra.mxu0 0.0
      %7334 = vmatprep.subr.mxu0 0.0
      %7335 = vmatpush2.msra.mxu0 0.0
      %7336 = vmatprep.subr.mxu0 0.0
      %7337 = vmatpush2.msra.mxu0 0.0
      %7338 = vmatprep.subr.mxu0 0.0
      %7339 = vmatpush2.msra.mxu0 0.0
      %7340 = vmatprep.subr.mxu0 0.0
      %7341 = vmatpush2.msra.mxu0 0.0
      %7342 = vmatprep.subr.mxu0 0.0
      %7343 = vmatpush2.msra.mxu0 0.0
      %7344 = vmatprep.subr.mxu0 0.0
      %7345 = vmatpush2.msra.mxu0 0.0
      %7346 = vmatprep.subr.mxu0 0.0
      %7347 = vmatpush2.msra.mxu0 0.0
      %7348 = vmatprep.subr.mxu0 0.0
      %7349 = vmatpush2.msra.mxu0 0.0
      %7350 = vmatprep.mubr.f32.mxu0 0.0
      %7351 = vmatmul.mubr.f32.gmra.mxu0 %v7238
      %v7352 = vpop.f32.mrf.mxu0
      %v7353 = vadd.f32 0.0, %v7352
      %v7354 = vpop.f32.mrf.mxu0
      %7355 = vmatprep.mubr.f32.mxu0 0.0
      %7356 = vmatmul.mubr.f32.gmra.mxu0 %v7239
      %v7357 = vpop.f32.mrf.mxu0
      %v7358 = vadd.f32 0.0, %v7357
      %v7359 = vpop.f32.mrf.mxu0
      %7360 = vmatprep.mubr.f32.mxu0 0.0
      %7361 = vmatmul.mubr.f32.gmra.mxu0 %v7240
      %v7362 = vpop.f32.mrf.mxu0
      %v7363 = vadd.f32 0.0, %v7362
      %v7364 = vpop.f32.mrf.mxu0
      %7365 = vmatprep.mubr.f32.mxu0 0.0
      %7366 = vmatmul.mubr.f32.gmra.mxu0 %v7241
      %v7367 = vpop.f32.mrf.mxu0
      %v7368 = vadd.f32 0.0, %v7367
      %v7369 = vpop.f32.mrf.mxu0
      %7370 = vmatprep.mubr.f32.mxu0 0.0
      %7371 = vmatmul.mubr.f32.gmra.mxu0 %v7242
      %v7372 = vpop.f32.mrf.mxu0
      %v7373 = vadd.f32 0.0, %v7372
      %v7374 = vpop.f32.mrf.mxu0
      %7375 = vmatprep.mubr.f32.mxu0 0.0
      %7376 = vmatmul.mubr.f32.gmra.mxu0 %v7243
      %v7377 = vpop.f32.mrf.mxu0
      %v7378 = vadd.f32 0.0, %v7377
      %v7379 = vpop.f32.mrf.mxu0
      %7380 = vmatprep.mubr.f32.mxu0 0.0
      %7381 = vmatmul.mubr.f32.gmra.mxu0 %v7244
      %v7382 = vpop.f32.mrf.mxu0
      %v7383 = vadd.f32 0.0, %v7382
      %v7384 = vpop.f32.mrf.mxu0
      %7385 = vmatprep.mubr.f32.mxu0 0.0
      %7386 = vmatmul.mubr.f32.gmra.mxu0 %v7245
      %v7387 = vpop.f32.mrf.mxu0
      %v7388 = vadd.f32 0.0, %v7387
      %v7389 = vpop.f32.mrf.mxu0
      %7390 = vmatprep.mubr.f32.mxu0 0.0
      %7391 = vmatmul.mubr.f32.gmra.mxu0 %v7246
      %v7392 = vpop.f32.mrf.mxu0
      %v7393 = vadd.f32 0.0, %v7392
      %v7394 = vpop.f32.mrf.mxu0
      %7395 = vmatprep.mubr.f32.mxu0 0.0
      %7396 = vmatmul.mubr.f32.gmra.mxu0 %v7247
      %v7397 = vpop.f32.mrf.mxu0
      %v7398 = vadd.f32 0.0, %v7397
      %v7399 = vpop.f32.mrf.mxu0
      %7400 = vmatprep.mubr.f32.mxu0 0.0
      %7401 = vmatmul.mubr.f32.gmra.mxu0 %v7248
      %v7402 = vpop.f32.mrf.mxu0
      %v7403 = vadd.f32 0.0, %v7402
      %v7404 = vpop.f32.mrf.mxu0
      %7405 = vmatprep.mubr.f32.mxu0 0.0
      %7406 = vmatmul.mubr.f32.gmra.mxu0 %v7249
      %v7407 = vpop.f32.mrf.mxu0
      %v7408 = vadd.f32 0.0, %v7407
      %v7409 = vpop.f32.mrf.mxu0
      %7410 = vmatprep.mubr.f32.mxu0 0.0
      %7411 = vmatmul.mubr.f32.gmra.mxu0 %v7250
      %v7412 = vpop.f32.mrf.mxu0
      %v7413 = vadd.f32 0.0, %v7412
      %v7414 = vpop.f32.mrf.mxu0
      %7415 = vmatprep.mubr.f32.mxu0 0.0
      %7416 = vmatmul.mubr.f32.gmra.mxu0 %v7251
      %v7417 = vpop.f32.mrf.mxu0
      %v7418 = vadd.f32 0.0, %v7417
      %v7419 = vpop.f32.mrf.mxu0
      %7420 = vmatprep.mubr.f32.mxu0 0.0
      %7421 = vmatmul.mubr.f32.gmra.mxu0 %v7252
      %v7422 = vpop.f32.mrf.mxu0
      %v7423 = vadd.f32 0.0, %v7422
      %v7424 = vpop.f32.mrf.mxu0
      %7425 = vmatprep.mubr.f32.mxu0 0.0
      %7426 = vmatmul.mubr.f32.gmra.mxu0 %v7253
      %v7427 = vpop.f32.mrf.mxu0
      %v7428 = vadd.f32 0.0, %v7427
      %v7429 = vpop.f32.mrf.mxu0
      %7430 = vmatprep.mubr.f32.mxu0 0.0
      %7431 = vmatmul.mubr.f32.gmra.mxu0 %v7254
      %v7432 = vpop.f32.mrf.mxu0
      %v7433 = vadd.f32 0.0, %v7432
      %v7434 = vpop.f32.mrf.mxu0
      %7435 = vmatprep.mubr.f32.mxu0 0.0
      %7436 = vmatmul.mubr.f32.gmra.mxu0 %v7255
      %v7437 = vpop.f32.mrf.mxu0
      %v7438 = vadd.f32 0.0, %v7437
      %v7439 = vpop.f32.mrf.mxu0
      %7440 = vmatprep.mubr.f32.mxu0 0.0
      %7441 = vmatmul.mubr.f32.gmra.mxu0 %v7256
      %v7442 = vpop.f32.mrf.mxu0
      %v7443 = vadd.f32 0.0, %v7442
      %v7444 = vpop.f32.mrf.mxu0
      %7445 = vmatprep.mubr.f32.mxu0 0.0
      %7446 = vmatmul.mubr.f32.gmra.mxu0 %v7257
      %v7447 = vpop.f32.mrf.mxu0
      %v7448 = vadd.f32 0.0, %v7447
      %v7449 = vpop.f32.mrf.mxu0
      %7450 = vmatprep.mubr.f32.mxu0 0.0
      %7451 = vmatmul.mubr.f32.gmra.mxu0 %v7258
      %v7452 = vpop.f32.mrf.mxu0
      %v7453 = vadd.f32 0.0, %v7452
      %v7454 = vpop.f32.mrf.mxu0
      %7455 = vmatprep.mubr.f32.mxu0 0.0
      %7456 = vmatmul.mubr.f32.gmra.mxu0 %v7259
      %v7457 = vpop.f32.mrf.mxu0
      %v7458 = vadd.f32 0.0, %v7457
      %v7459 = vpop.f32.mrf.mxu0
      %7460 = vmatprep.mubr.f32.mxu0 0.0
      %7461 = vmatmul.mubr.f32.gmra.mxu0 %v7260
      %v7462 = vpop.f32.mrf.mxu0
      %v7463 = vadd.f32 0.0, %v7462
      %v7464 = vpop.f32.mrf.mxu0
      %7465 = vmatprep.mubr.f32.mxu0 0.0
      %7466 = vmatmul.mubr.f32.gmra.mxu0 %v7261
      %v7467 = vpop.f32.mrf.mxu0
      %v7468 = vadd.f32 0.0, %v7467
      %v7469 = vpop.f32.mrf.mxu0
      %7470 = vmatprep.mubr.f32.mxu0 0.0
      %7471 = vmatmul.mubr.f32.gmra.mxu0 %v7262
      %v7472 = vpop.f32.mrf.mxu0
      %v7473 = vadd.f32 0.0, %v7472
      %v7474 = vpop.f32.mrf.mxu0
      %7475 = vmatprep.mubr.f32.mxu0 0.0
      %7476 = vmatmul.mubr.f32.gmra.mxu0 %v7263
      %v7477 = vpop.f32.mrf.mxu0
      %v7478 = vadd.f32 0.0, %v7477
      %v7479 = vpop.f32.mrf.mxu0
      %7480 = vmatprep.mubr.f32.mxu0 0.0
      %7481 = vmatmul.mubr.f32.gmra.mxu0 %v7264
      %v7482 = vpop.f32.mrf.mxu0
      %v7483 = vadd.f32 0.0, %v7482
      %v7484 = vpop.f32.mrf.mxu0
      %7485 = vmatprep.mubr.f32.mxu0 0.0
      %7486 = vmatmul.mubr.f32.gmra.mxu0 %v7265
      %v7487 = vpop.f32.mrf.mxu0
      %v7488 = vadd.f32 0.0, %v7487
      %v7489 = vpop.f32.mrf.mxu0
      %7490 = vmatprep.mubr.f32.mxu0 0.0
      %7491 = vmatmul.mubr.f32.gmra.mxu0 %v7266
      %v7492 = vpop.f32.mrf.mxu0
      %v7493 = vadd.f32 0.0, %v7492
      %v7494 = vpop.f32.mrf.mxu0
      %7495 = vmatprep.mubr.f32.mxu0 0.0
      %7496 = vmatmul.mubr.f32.gmra.mxu0 %v7267
      %v7497 = vpop.f32.mrf.mxu0
      %v7498 = vadd.f32 0.0, %v7497
      %v7499 = vpop.f32.mrf.mxu0
      %7500 = vmatprep.mubr.f32.mxu0 0.0
      %7501 = vmatmul.mubr.f32.gmra.mxu0 %v7268
      %v7502 = vpop.f32.mrf.mxu0
      %v7503 = vadd.f32 0.0, %v7502
      %v7504 = vpop.f32.mrf.mxu0
      %7505 = vmatprep.mubr.f32.mxu0 0.0
      %7506 = vmatmul.mubr.f32.gmra.mxu0 %v7269
      %v7507 = vpop.f32.mrf.mxu0
      %v7508 = vadd.f32 0.0, %v7507
      %v7509 = vpop.f32.mrf.mxu0
      %7510 = vdwg.mxu0
      %v7511 = vadd.f32 %v6407, %v7353
      %v7512 = vadd.f32 %v6410, %v7358
      %v7513 = vadd.f32 %v6413, %v7363
      %v7514 = vadd.f32 %v6416, %v7368
      %v7515 = vadd.f32 %v6419, %v7373
      %v7516 = vadd.f32 %v6422, %v7378
      %v7517 = vadd.f32 %v6425, %v7383
      %v7518 = vadd.f32 %v6428, %v7388
      %v7519 = vadd.f32 %v6431, %v7393
      %v7520 = vadd.f32 %v6434, %v7398
      %v7521 = vadd.f32 %v6437, %v7403
      %v7522 = vadd.f32 %v6440, %v7408
      %v7523 = vadd.f32 %v6443, %v7413
      %v7524 = vadd.f32 %v6446, %v7418
      %v7525 = vadd.f32 %v6449, %v7423
      %v7526 = vadd.f32 %v6452, %v7428
      %v7527 = vadd.f32 %v6455, %v7433
      %v7528 = vadd.f32 %v6458, %v7438
      %v7529 = vadd.f32 %v6461, %v7443
      %v7530 = vadd.f32 %v6464, %v7448
      %v7531 = vadd.f32 %v6467, %v7453
      %v7532 = vadd.f32 %v6470, %v7458
      %v7533 = vadd.f32 %v6473, %v7463
      %v7534 = vadd.f32 %v6476, %v7468
      %v7535 = vadd.f32 %v6479, %v7473
      %v7536 = vadd.f32 %v6482, %v7478
      %v7537 = vadd.f32 %v6485, %v7483
      %v7538 = vadd.f32 %v6488, %v7488
      %v7539 = vadd.f32 %v6491, %v7493
      %v7540 = vadd.f32 %v6494, %v7498
      %v7541 = vadd.f32 %v6497, %v7503
      %v7542 = vadd.f32 %v6500, %v7508
      %v7543 = vtanh.pop %v7511
      %v7544 = vtanh.pop %v7512
      %v7545 = vtanh.pop %v7513
      %v7546 = vtanh.pop %v7514
      %v7547 = vtanh.pop %v7515
      %v7548 = vtanh.pop %v7516
      %v7549 = vtanh.pop %v7517
      %v7550 = vtanh.pop %v7518
      %v7551 = vtanh.pop %v7519
      %v7552 = vtanh.pop %v7520
      %v7553 = vtanh.pop %v7521
      %v7554 = vtanh.pop %v7522
      %v7555 = vtanh.pop %v7523
      %v7556 = vtanh.pop %v7524
      %v7557 = vtanh.pop %v7525
      %v7558 = vtanh.pop %v7526
      %v7559 = vtanh.pop %v7527
      %v7560 = vtanh.pop %v7528
      %v7561 = vtanh.pop %v7529
      %v7562 = vtanh.pop %v7530
      %v7563 = vtanh.pop %v7531
      %v7564 = vtanh.pop %v7532
      %v7565 = vtanh.pop %v7533
      %v7566 = vtanh.pop %v7534
      %v7567 = vtanh.pop %v7535
      %v7568 = vtanh.pop %v7536
      %v7569 = vtanh.pop %v7537
      %v7570 = vtanh.pop %v7538
      %v7571 = vtanh.pop %v7539
      %v7572 = vtanh.pop %v7540
      %v7573 = vtanh.pop %v7541
      %v7574 = vtanh.pop %v7542
      %v7575 = vsub.f32 1.0, %v7175
      %v7576 = vsub.f32 1.0, %v7177
      %v7577 = vsub.f32 1.0, %v7179
      %v7578 = vsub.f32 1.0, %v7181
      %v7579 = vsub.f32 1.0, %v7183
      %v7580 = vsub.f32 1.0, %v7185
      %v7581 = vsub.f32 1.0, %v7187
      %v7582 = vsub.f32 1.0, %v7189
      %v7583 = vsub.f32 1.0, %v7191
      %v7584 = vsub.f32 1.0, %v7193
      %v7585 = vsub.f32 1.0, %v7195
      %v7586 = vsub.f32 1.0, %v7197
      %v7587 = vsub.f32 1.0, %v7199
      %v7588 = vsub.f32 1.0, %v7201
      %v7589 = vsub.f32 1.0, %v7203
      %v7590 = vsub.f32 1.0, %v7205
      %v7591 = vsub.f32 1.0, %v7207
      %v7592 = vsub.f32 1.0, %v7209
      %v7593 = vsub.f32 1.0, %v7211
      %v7594 = vsub.f32 1.0, %v7213
      %v7595 = vsub.f32 1.0, %v7215
      %v7596 = vsub.f32 1.0, %v7217
      %v7597 = vsub.f32 1.0, %v7219
      %v7598 = vsub.f32 1.0, %v7221
      %v7599 = vsub.f32 1.0, %v7223
      %v7600 = vsub.f32 1.0, %v7225
      %v7601 = vsub.f32 1.0, %v7227
      %v7602 = vsub.f32 1.0, %v7229
      %v7603 = vsub.f32 1.0, %v7231
      %v7604 = vsub.f32 1.0, %v7233
      %v7605 = vsub.f32 1.0, %v7235
      %v7606 = vsub.f32 1.0, %v7237
      %v7607 = vmul.f32 %v7575, %v5296
      %v7608 = vmul.f32 %v7576, %v5297
      %v7609 = vmul.f32 %v7577, %v5298
      %v7610 = vmul.f32 %v7578, %v5299
      %v7611 = vmul.f32 %v7579, %v5300
      %v7612 = vmul.f32 %v7580, %v5301
      %v7613 = vmul.f32 %v7581, %v5302
      %v7614 = vmul.f32 %v7582, %v5303
      %v7615 = vmul.f32 %v7583, %v5304
      %v7616 = vmul.f32 %v7584, %v5305
      %v7617 = vmul.f32 %v7585, %v5306
      %v7618 = vmul.f32 %v7586, %v5307
      %v7619 = vmul.f32 %v7587, %v5308
      %v7620 = vmul.f32 %v7588, %v5309
      %v7621 = vmul.f32 %v7589, %v5310
      %v7622 = vmul.f32 %v7590, %v5311
      %v7623 = vmul.f32 %v7591, %v5312
      %v7624 = vmul.f32 %v7592, %v5313
      %v7625 = vmul.f32 %v7593, %v5314
      %v7626 = vmul.f32 %v7594, %v5315
      %v7627 = vmul.f32 %v7595, %v5316
      %v7628 = vmul.f32 %v7596, %v5317
      %v7629 = vmul.f32 %v7597, %v5318
      %v7630 = vmul.f32 %v7598, %v5319
      %v7631 = vmul.f32 %v7599, %v5320
      %v7632 = vmul.f32 %v7600, %v5321
      %v7633 = vmul.f32 %v7601, %v5322
      %v7634 = vmul.f32 %v7602, %v5323
      %v7635 = vmul.f32 %v7603, %v5324
      %v7636 = vmul.f32 %v7604, %v5325
      %v7637 = vmul.f32 %v7605, %v5326
      %v7638 = vmul.f32 %v7606, %v5327
      %v7639 = vmul.f32 %v7175, %v7543
      %v7640 = vmul.f32 %v7177, %v7544
      %v7641 = vmul.f32 %v7179, %v7545
      %v7642 = vmul.f32 %v7181, %v7546
      %v7643 = vmul.f32 %v7183, %v7547
      %v7644 = vmul.f32 %v7185, %v7548
      %v7645 = vmul.f32 %v7187, %v7549
      %v7646 = vmul.f32 %v7189, %v7550
      %v7647 = vmul.f32 %v7191, %v7551
      %v7648 = vmul.f32 %v7193, %v7552
      %v7649 = vmul.f32 %v7195, %v7553
      %v7650 = vmul.f32 %v7197, %v7554
      %v7651 = vmul.f32 %v7199, %v7555
      %v7652 = vmul.f32 %v7201, %v7556
      %v7653 = vmul.f32 %v7203, %v7557
      %v7654 = vmul.f32 %v7205, %v7558
      %v7655 = vmul.f32 %v7207, %v7559
      %v7656 = vmul.f32 %v7209, %v7560
      %v7657 = vmul.f32 %v7211, %v7561
      %v7658 = vmul.f32 %v7213, %v7562
      %v7659 = vmul.f32 %v7215, %v7563
      %v7660 = vmul.f32 %v7217, %v7564
      %v7661 = vmul.f32 %v7219, %v7565
      %v7662 = vmul.f32 %v7221, %v7566
      %v7663 = vmul.f32 %v7223, %v7567
      %v7664 = vmul.f32 %v7225, %v7568
      %v7665 = vmul.f32 %v7227, %v7569
      %v7666 = vmul.f32 %v7229, %v7570
      %v7667 = vmul.f32 %v7231, %v7571
      %v7668 = vmul.f32 %v7233, %v7572
      %v7669 = vmul.f32 %v7235, %v7573
      %v7670 = vmul.f32 %v7237, %v7574
      %v7671 = vadd.f32 %v7607, %v7639
      %v7672 = vadd.f32 %v7608, %v7640
      %v7673 = vadd.f32 %v7609, %v7641
      %v7674 = vadd.f32 %v7610, %v7642
      %v7675 = vadd.f32 %v7611, %v7643
      %v7676 = vadd.f32 %v7612, %v7644
      %v7677 = vadd.f32 %v7613, %v7645
      %v7678 = vadd.f32 %v7614, %v7646
      %v7679 = vadd.f32 %v7615, %v7647
      %v7680 = vadd.f32 %v7616, %v7648
      %v7681 = vadd.f32 %v7617, %v7649
      %v7682 = vadd.f32 %v7618, %v7650
      %v7683 = vadd.f32 %v7619, %v7651
      %v7684 = vadd.f32 %v7620, %v7652
      %v7685 = vadd.f32 %v7621, %v7653
      %v7686 = vadd.f32 %v7622, %v7654
      %v7687 = vadd.f32 %v7623, %v7655
      %v7688 = vadd.f32 %v7624, %v7656
      %v7689 = vadd.f32 %v7625, %v7657
      %v7690 = vadd.f32 %v7626, %v7658
      %v7691 = vadd.f32 %v7627, %v7659
      %v7692 = vadd.f32 %v7628, %v7660
      %v7693 = vadd.f32 %v7629, %v7661
      %v7694 = vadd.f32 %v7630, %v7662
      %v7695 = vadd.f32 %v7631, %v7663
      %v7696 = vadd.f32 %v7632, %v7664
      %v7697 = vadd.f32 %v7633, %v7665
      %v7698 = vadd.f32 %v7634, %v7666
      %v7699 = vadd.f32 %v7635, %v7667
      %v7700 = vadd.f32 %v7636, %v7668
      %v7701 = vadd.f32 %v7637, %v7669
      %v7702 = vadd.f32 %v7638, %v7670
      %7703 = vst [vmem:[#allocation13] sm:$0xff] %v7671
      %7704 = vst [vmem:[#allocation13 + $0x8] sm:$0xff] %v7672
      %7705 = vst [vmem:[#allocation13 + $0x10] sm:$0xff] %v7673
      %7706 = vst [vmem:[#allocation13 + $0x18] sm:$0xff] %v7674
      %7707 = vst [vmem:[#allocation13 + $0x20] sm:$0xff] %v7675
      %7708 = vst [vmem:[#allocation13 + $0x28] sm:$0xff] %v7676
      %7709 = vst [vmem:[#allocation13 + $0x30] sm:$0xff] %v7677
      %7710 = vst [vmem:[#allocation13 + $0x38] sm:$0xff] %v7678
      %7711 = vst [vmem:[#allocation13 + $0x40] sm:$0xff] %v7679
      %7712 = vst [vmem:[#allocation13 + $0x48] sm:$0xff] %v7680
      %7713 = vst [vmem:[#allocation13 + $0x50] sm:$0xff] %v7681
      %7714 = vst [vmem:[#allocation13 + $0x58] sm:$0xff] %v7682
      %7715 = vst [vmem:[#allocation13 + $0x60] sm:$0xff] %v7683
      %7716 = vst [vmem:[#allocation13 + $0x68] sm:$0xff] %v7684
      %7717 = vst [vmem:[#allocation13 + $0x70] sm:$0xff] %v7685
      %7718 = vst [vmem:[#allocation13 + $0x78] sm:$0xff] %v7686
      %7719 = vst [vmem:[#allocation13 + $0x80] sm:$0xff] %v7687
      %7720 = vst [vmem:[#allocation13 + $0x88] sm:$0xff] %v7688
      %7721 = vst [vmem:[#allocation13 + $0x90] sm:$0xff] %v7689
      %7722 = vst [vmem:[#allocation13 + $0x98] sm:$0xff] %v7690
      %7723 = vst [vmem:[#allocation13 + $0xa0] sm:$0xff] %v7691
      %7724 = vst [vmem:[#allocation13 + $0xa8] sm:$0xff] %v7692
      %7725 = vst [vmem:[#allocation13 + $0xb0] sm:$0xff] %v7693
      %7726 = vst [vmem:[#allocation13 + $0xb8] sm:$0xff] %v7694
      %7727 = vst [vmem:[#allocation13 + $0xc0] sm:$0xff] %v7695
      %7728 = vst [vmem:[#allocation13 + $0xc8] sm:$0xff] %v7696
      %7729 = vst [vmem:[#allocation13 + $0xd0] sm:$0xff] %v7697
      %7730 = vst [vmem:[#allocation13 + $0xd8] sm:$0xff] %v7698
      %7731 = vst [vmem:[#allocation13 + $0xe0] sm:$0xff] %v7699
      %7732 = vst [vmem:[#allocation13 + $0xe8] sm:$0xff] %v7700
      %7733 = vst [vmem:[#allocation13 + $0xf0] sm:$0xff] %v7701
      %7734 = vst [vmem:[#allocation13 + $0xf8] sm:$0xff] %v7702
    $region69: #{tpu_custom_call.1} parent=1 // pred_fallthru
      _
    // Predicated region
    $region70: #{tpu_custom_call.1} parent=1 // pred_check
      _
    $region71: #{tpu_custom_call.1} parent=1 // pred_check_branch
      %7736 = sbr.rel (0) target = $region73
    $region72: #{tpu_custom_call.1} parent=1 // pred_region
      %s7738 = ssub.s32 4096, 4096
      %7739 = vsyncadd [#allocation6], %s7738
      %s7740 = sshll.u32 [#allocation13], 4
      %s7741 = int_to_ptr.vmem [resolvable:$true] %s7740
      %7746 = dma.vmem_to_hbm [thread:$0]  %s7741, 4096, %s10, [#allocation6], 128, 128, 8
    $region73: #{tpu_custom_call.1} parent=1 // pred_fallthru
      _
    // Predicated region
    $region74: #{tpu_custom_call.1} parent=1 // pred_check
      _
    $region75: #{tpu_custom_call.1} parent=1 // pred_check_branch
      %7748 = sbr.rel (0) target = $region77
    $region76: #{tpu_custom_call.1} parent=1 // pred_region
      %7749 = dma.done [#allocation6], 4096
    $region77: #{tpu_custom_call.1} parent=1 // pred_fallthru
      _
    %7750 = vsyncpa [#allocation5], 1
    %7751 = vsyncpa [#allocation8], 1
    %7752 = vsyncpa [#allocation11], 1
    %7753 = vsyncpa [#allocation6], 1

</llo_original>
